<compile_context>
chip_gen: v7x
topology: tpu7x:2x2x1
jax: 0.10.0
libtpu: 0.0.40
codegen_flags: <defaults>
</compile_context>

<pallas_src>
import numpy as np

import jax
import jax.numpy as jnp
from jax import lax
from jax.experimental import pallas as pl
from jax.experimental.pallas import tpu as pltpu

# ----------------------------- scaled-down config -----------------------------
B = 2                                   # batch
C_IMG = 4                               # image channels
IMG = 16                                # image spatial size
C0, C1, C2, C3 = 16, 32, 64, 128        # stand-ins for ResNet stage widths
S_MID, S_LAST = 8, 4                    # stand-ins for the 32x32 / 16x16 maps
HW_IMG = IMG * IMG                      # 256
HW_MID, HW_LAST = S_MID * S_MID, S_LAST * S_LAST    # 64, 16
N_MID, N_LAST = B * HW_MID, B * HW_LAST             # 128, 32
ATTN_D = 32                             # stand-in for attn_dim = 768
SCALE = float(ATTN_D) ** -0.5
GENDER_DIM = 32
H1, H2 = 64, 32                         # stand-ins for the 1024 / 512 hidden dims
EPS = 1e-5

# ----------------------------- packed-slab layout ------------------------------
# backbone 1x1-conv weight slab [BB_TOTAL, BB_COLS]: (row0, cout, cin) per stage
BB_ROWS = ((0, C0, C_IMG), (16, C1, C0), (48, C2, C1), (112, C3, C2))
BB_TOTAL = 240
BB_COLS = C2                            # widest backbone fan-in (b3: [C3, C2])
# attention fc1/fc2 slabs [4*ATTN_D, C3]: module i at rows 32i:32i+32, cols 0:C_i
ATTN_CS = (C0, C1, C2, C3)
# attention LayerNorm slab [ATTN_D, 8]: col i = gamma_i, col 4+i = beta_i
# pool slab [HW_IMG + N_MID, HW_MID]:
#   rows 0:256         -> batch-agnostic 2x2 avg-pool matrix [256, 64] (stage 0)
#   rows 256:384, :32  -> block-diagonal 2x2 avg-pool matrix [128, 32] (stage 3)
# avg slab [B, N_MID + N_LAST]: block-diagonal per-batch mean matrices
# head slab [HEAD_TOTAL, H1]; per head (rows relative to its 8-aligned base):
#   [0:feat]             W1 feature half [feat, H1]
#   [feat:feat+32]       W1 gender half  [32, H1]
#   [feat+32:feat+96]    W2              [H1, H2] (cols 0:H2)
#   [feat+96:feat+104]   vector rows: b1, g1, be1, b2, g2, be2, w3, b3


def _head_nrows(feat):
    return feat + GENDER_DIM + H1 + 8


HEAD_FEATS = (C3, C2, C3)               # fc, fc_cls2, fc_cls3 feature widths
HEAD_BASES = (0,
              _head_nrows(HEAD_FEATS[0]),
              _head_nrows(HEAD_FEATS[0]) + _head_nrows(HEAD_FEATS[1]))
HEAD_TOTAL = HEAD_BASES[2] + _head_nrows(HEAD_FEATS[2])


# =============================== fused Pallas kernel ===============================

def _fused_forward_kernel(img_ref, gender_ref, pool_ref, avg_ref, bb_ref,
                          aw1_ref, aw2_ref, aln_ref, gen_ref, heads_ref, o_ref):
    f32 = jnp.float32

    # shared small operands (loaded once)
    avg_mid = avg_ref[:, 0:N_MID]                         # [B, 128]
    avg_last = avg_ref[:, N_MID:N_MID + N_LAST]           # [B, 32]
    aln = aln_ref[...]                                    # [D, 8]
    ln_ones = jnp.full((1, ATTN_D), 1.0 / ATTN_D, f32)    # hoisted LN ones-row

    def conv1x1_relu(stage, a):
        r0, cout, cin = BB_ROWS[stage]
        w = bb_ref[r0:r0 + cout, 0:cin]                   # [cout, cin]
        return jnp.maximum(jnp.dot(w, a, preferred_element_type=f32), 0.0)

    def layernorm_cols(h, gamma, beta):
        # LayerNorm over D (axis 0), per column; stats via MXU ones-row matmuls
        mu = jnp.dot(ln_ones, h, preferred_element_type=f32)          # [1, n]
        d = h - mu
        var = jnp.dot(ln_ones, d * d, preferred_element_type=f32)     # [1, n]
        return d * lax.rsqrt(var + EPS) * gamma + beta

    def attention(idx, a, avg, hw):
        # CNNAttention on channels-first activations a: [C, n], n = B*hw.
        c = ATTN_CS[idx]
        r0 = ATTN_D * idx
        w1 = aw1_ref[r0:r0 + ATTN_D, 0:c]                 # fc1 weight [D, C]
        w2 = aw2_ref[r0:r0 + ATTN_D, 0:c]                 # fc2 weight [D, C]
        gamma = aln[:, idx:idx + 1]                       # [D, 1]
        beta = aln[:, 4 + idx:5 + idx]                    # [D, 1]
        mask = avg * float(hw)                            # block-diag 0/1 indicator [B, n]

        # adaptive_avg_pool2d(x, 1) per batch -> columns [C, B]
        avg_cols = lax.dot_general(a, avg, (((1,), (1,)), ((), ())),
                                   preferred_element_type=f32)
        # feature / cls paths as two separate fc1 matmuls (no n+B lane concat)
        f_feat = jnp.maximum(jnp.dot(w1, a, preferred_element_type=f32), 0.0)        # [D, n]
        f_cls = jnp.maximum(jnp.dot(w1, avg_cols, preferred_element_type=f32), 0.0)  # [D, B]
        n_feat = layernorm_cols(f_feat, gamma, beta)
        n_cls = layernorm_cols(f_cls, gamma, beta)

        # all batched logits in one MXU matmul, then block-diag segment softmax
        logits = lax.dot_general(n_cls, n_feat, (((0,), (0,)), ((), ())),
                                 preferred_element_type=f32) * SCALE                 # [B, n]
        logits = jnp.where(mask > 0.0, logits, -1e30)
        m = jnp.max(logits, axis=1, keepdims=True)
        e = jnp.exp(logits - m) * mask
        s = jnp.sum(e, axis=1, keepdims=True)
        soft = e * (1.0 / s)                              # exact softmax rows [B, n]
        # lane-dense attention row: column b*hw+i belongs to exactly one batch
        attn_lane = jnp.sum(soft, axis=0, keepdims=True)                              # [1, n]
        a_out = a * attn_lane                                                          # [C, n]
        # cls output = fc2 of the PRE-norm relu(fc1(avgpool(x))) columns
        cls_out = lax.dot_general(f_cls, w2, (((0,), (0,)), ((), ())),
                                  preferred_element_type=f32)                          # [B, C]
        return a_out, cls_out, attn_lane

    def bn_relu(h, gamma, beta):
        # BatchNorm1d with batch statistics (train mode) + ReLU; h: [B, F]
        mu = jnp.mean(h, axis=0, keepdims=True)
        var = jnp.mean(jnp.square(h - mu), axis=0, keepdims=True)
        return jnp.maximum((h - mu) * lax.rsqrt(var + EPS) * gamma + beta, 0.0)

    def head(idx, x_feat, g_enc):
        # Linear -> BN -> ReLU -> Linear -> BN -> ReLU -> Linear(., 1)
        feat, base = HEAD_FEATS[idx], HEAD_BASES[idx]
        w1a = heads_ref[base:base + feat, :]                                  # [feat, H1]
        w1b = heads_ref[base + feat:base + feat + GENDER_DIM, :]              # [32, H1]
        r2 = base + feat + GENDER_DIM
        w2 = heads_ref[r2:r2 + H1, 0:H2]                                      # [H1, H2]
        vec = heads_ref[r2 + H1:r2 + H1 + 8, :]                               # [8, H1]
        b1, g1, be1 = vec[0:1, :], vec[1:2, :], vec[2:3, :]
        b2, g2, be2 = vec[3:4, 0:H2], vec[4:5, 0:H2], vec[5:6, 0:H2]
        w3, b3 = vec[6:7, 0:H2], vec[7:8, 0:1]
        # fc1 split host-side into feature / gender halves (no lane concat)
        h = (jnp.dot(x_feat, w1a, preferred_element_type=f32)
             + jnp.dot(g_enc, w1b, preferred_element_type=f32) + b1)
        h = bn_relu(h, g1, be1)
        h = bn_relu(jnp.dot(h, w2, preferred_element_type=f32) + b2, g2, be2)
        # final Linear(H2, 1) as VPU multiply + lane reduce
        return jnp.sum(h * w3, axis=1, keepdims=True) + b3                    # [B, 1]

    # ---- gender branch: Linear(1, 32) + BatchNorm1d + ReLU
    gen = gen_ref[...]                                                        # [4, 32]
    g_enc = bn_relu(gender_ref[...] * gen[0:1, :] + gen[1:2, :],
                    gen[2:3, :], gen[3:4, :])                                 # [B, 32]

    # ---- stage 0: backbone0 stand-in (1x1 conv + ReLU + 2x2 avg pool) + attn0
    a = conv1x1_relu(0, img_ref[...])                                         # [C0, B*256]
    pool0 = pool_ref[0:HW_IMG, 0:HW_MID]                                      # [256, 64]
    a = jnp.concatenate(
        [jnp.dot(a[:, b * HW_IMG:(b + 1) * HW_IMG], pool0,
                 preferred_element_type=f32) for b in range(B)], axis=1)      # [C0, 128]
    a, _, attn0 = attention(0, a, avg_mid, HW_MID)

    # ---- stage 1: backbone1 stand-in + attn1
    a = conv1x1_relu(1, a)                                                    # [C1, 128]
    a, _, attn1 = attention(1, a, avg_mid, HW_MID)

    # ---- stage 2: backbone2 stand-in + adj_learning0
    a = conv1x1_relu(2, a)                                                    # [C2, 128]
    a, cls2, attn2 = attention(2, a, avg_mid, HW_MID)

    # ---- stage 3: backbone3 stand-in (conv + ReLU + pool) + adj_learning1
    a = conv1x1_relu(3, a)                                                    # [C3, 128]
    pool3 = pool_ref[HW_IMG:HW_IMG + N_MID, 0:N_LAST]                         # [128, 32]
    a = jnp.dot(a, pool3, preferred_element_type=f32)                         # [C3, 32]
    a, cls3, attn3 = attention(3, a, avg_last, HW_LAST)

    # ---- adaptive_avg_pool2d(x3, 1) + flatten -> rows [B, C3]
    pooled = lax.dot_general(avg_last, a, (((1,), (1,)), ((), ())),
                             preferred_element_type=f32)                      # [B, C3]

    # ---- three MLP heads on [features ++ gender_encode]
    x_out = head(0, pooled, g_enc)
    c2_out = head(1, cls2, g_enc)
    c3_out = head(2, cls3, g_enc)

    # ---- single lane-dense [8, 128] output slab (one vreg tile, one store)
    attn3_row = jnp.concatenate(
        [attn3, jnp.zeros((1, N_MID - N_LAST), f32)], axis=1)                 # [1, 128]
    head_rows = jnp.concatenate(
        [x_out, c2_out, c3_out, jnp.zeros((B, N_MID - 3), f32)], axis=1)      # [B, 128]
    o_ref[...] = jnp.concatenate(
        [attn0, attn1, attn2, attn3_row, head_rows,
         jnp.zeros((8 - 4 - B, N_MID), f32)], axis=0)                         # [8, 128]


# ================================== wrapper ==================================

def student_gcn_forward(image, gender, packed):
    bsz, c_img, h, w = image.shape
    # single layout change at the input: NCHW -> [C_IMG, B*H*W]
    x_img = jnp.transpose(image, (1, 0, 2, 3)).reshape(c_img, bsz * h * w)

    inputs = [x_img, gender, packed["pool"], packed["avg"], packed["bb"],
              packed["attn_w1"], packed["attn_w2"], packed["attn_ln"],
              packed["gender"], packed["heads"]]

    vspec = pl.BlockSpec(memory_space=pltpu.MemorySpace.VMEM)
    out = pl.pallas_call(
        _fused_forward_kernel,
        out_shape=jax.ShapeDtypeStruct((8, N_MID), jnp.float32),
        in_specs=[vspec] * len(inputs),
        out_specs=vspec,
        compiler_params=pltpu.CompilerParams(vmem_limit_bytes=32 * 1024 * 1024),
    )(*inputs)

    # unpack the lane-dense output slab
    a0 = out[0].reshape(bsz, 1, S_MID, S_MID)
    a1 = out[1].reshape(bsz, 1, S_MID, S_MID)
    a2 = out[2].reshape(bsz, 1, S_MID, S_MID)
    a3 = out[3, :bsz * HW_LAST].reshape(bsz, 1, S_LAST, S_LAST)
    heads = out[4:4 + bsz]
    x_out, c2, c3 = heads[:, 0:1], heads[:, 1:2], heads[:, 2:3]
    return x_out, c2, c3, a0, a1, a2, a3


# ================================ param setup =================================

def _pool2_matrix(h_in, w_in):
    """Batch-agnostic 2x2 average pool as a [h*w, (h/2)*(w/2)] matmul."""
    h_out, w_out = h_in // 2, w_in // 2
    m = np.zeros((h_in * w_in, h_out * w_out), np.float32)
    for hi in range(h_in):
        for wi in range(w_in):
            m[hi * w_in + wi, (hi // 2) * w_out + (wi // 2)] = 0.25
    return m


def _pool2_matrix_blockdiag(batch, h_in, w_in):
    base = _pool2_matrix(h_in, w_in)
    hw_i, hw_o = base.shape
    m = np.zeros((batch * hw_i, batch * hw_o), np.float32)
    for b in range(batch):
        m[b * hw_i:(b + 1) * hw_i, b * hw_o:(b + 1) * hw_o] = base
    return m


def _avg_matrix(batch, hw):
    """Block-diagonal per-batch mean matrix [batch, batch*hw]."""
    m = np.zeros((batch, batch * hw), np.float32)
    for b in range(batch):
        m[b, b * hw:(b + 1) * hw] = 1.0 / hw
    return m


def init_params(key):
    keys = iter(jax.random.split(key, 32))

    def dense(shape, fan_in):
        return (jax.random.normal(next(keys), shape, jnp.float32)
                / jnp.sqrt(float(fan_in)))

    def attn_params(c):
        # fc1 / fc2 stored [D, C] (left-multiply the [C, N] channels-first activation)
        return dict(w1=dense((ATTN_D, c), c), w2=dense((ATTN_D, c), ATTN_D),
                    gamma=jnp.ones((ATTN_D,), jnp.float32),
                    beta=jnp.zeros((ATTN_D,), jnp.float32))

    def head_params(fin):
        return dict(w1=dense((fin, H1), fin), b1=jnp.zeros((H1,), jnp.float32),
                    g1=jnp.ones((H1,), jnp.float32), be1=jnp.zeros((H1,), jnp.float32),
                    w2=dense((H1, H2), H1), b2=jnp.zeros((H2,), jnp.float32),
                    g2=jnp.ones((H2,), jnp.float32), be2=jnp.zeros((H2,), jnp.float32),
                    w3=dense((H2,), H2), b3=jnp.zeros((1,), jnp.float32))

    return {
        # TODO(synk): backbone0..3 / attn0 / attn1 are external frozen modules
        # not defined in the reference source; 1x1-conv(+pool) + CNNAttention
        # stand-ins are used instead.
        "b0_w": dense((C0, C_IMG), C_IMG),
        "b1_w": dense((C1, C0), C0),
        "b2_w": dense((C2, C1), C1),
        "b3_w": dense((C3, C2), C2),
        "a0": attn_params(C0), "a1": attn_params(C1),
        "adj0": attn_params(C2), "adj1": attn_params(C3),
        "g_w": dense((1, GENDER_DIM), 1),
        "g_b": jnp.zeros((GENDER_DIM,), jnp.float32),
        "g_gamma": jnp.ones((GENDER_DIM,), jnp.float32),
        "g_beta": jnp.zeros((GENDER_DIM,), jnp.float32),
        "fc": head_params(C3 + GENDER_DIM),
        "fc_cls2": head_params(C2 + GENDER_DIM),
        "fc_cls3": head_params(C3 + GENDER_DIM),
    }


def pack_params(p):
    """Host-side, one-time consolidation of all parameters into a few slabs."""
    f32 = jnp.float32

    bb = jnp.zeros((BB_TOTAL, BB_COLS), f32)
    for (r0, cout, cin), w in zip(BB_ROWS,
                                  (p["b0_w"], p["b1_w"], p["b2_w"], p["b3_w"])):
        bb = bb.at[r0:r0 + cout, 0:cin].set(w)

    aw1 = jnp.zeros((4 * ATTN_D, C3), f32)
    aw2 = jnp.zeros((4 * ATTN_D, C3), f32)
    aln = jnp.zeros((ATTN_D, 8), f32)
    for i, name in enumerate(("a0", "a1", "adj0", "adj1")):
        ap, c = p[name], ATTN_CS[i]
        aw1 = aw1.at[ATTN_D * i:ATTN_D * (i + 1), 0:c].set(ap["w1"])
        aw2 = aw2.at[ATTN_D * i:ATTN_D * (i + 1), 0:c].set(ap["w2"])
        aln = aln.at[:, i].set(ap["gamma"])
        aln = aln.at[:, 4 + i].set(ap["beta"])

    gen = jnp.stack([p["g_w"][0], p["g_b"], p["g_gamma"], p["g_beta"]], axis=0)

    heads = jnp.zeros((HEAD_TOTAL, H1), f32)
    for i, name in enumerate(("fc", "fc_cls2", "fc_cls3")):
        hp, feat, base = p[name], HEAD_FEATS[i], HEAD_BASES[i]
        # split fc1 host-side into feature / gender halves (no in-kernel concat)
        heads = heads.at[base:base + feat, :].set(hp["w1"][:feat])
        heads = heads.at[base + feat:base + feat + GENDER_DIM, :].set(hp["w1"][feat:])
        r2 = base + feat + GENDER_DIM
        heads = heads.at[r2:r2 + H1, 0:H2].set(hp["w2"])
        v = r2 + H1
        heads = heads.at[v + 0, :].set(hp["b1"])
        heads = heads.at[v + 1, :].set(hp["g1"])
        heads = heads.at[v + 2, :].set(hp["be1"])
        heads = heads.at[v + 3, 0:H2].set(hp["b2"])
        heads = heads.at[v + 4, 0:H2].set(hp["g2"])
        heads = heads.at[v + 5, 0:H2].set(hp["be2"])
        heads = heads.at[v + 6, 0:H2].set(hp["w3"])
        heads = heads.at[v + 7, 0].set(hp["b3"][0])

    pool = np.zeros((HW_IMG + N_MID, HW_MID), np.float32)               # [384, 64]
    pool[0:HW_IMG, 0:HW_MID] = _pool2_matrix(IMG, IMG)                  # stage-0, batch-agnostic
    pool[HW_IMG:, 0:N_LAST] = _pool2_matrix_blockdiag(B, S_MID, S_MID)  # stage-3, block-diag

    avg = np.zeros((B, N_MID + N_LAST), np.float32)
    avg[:, 0:N_MID] = _avg_matrix(B, HW_MID)
    avg[:, N_MID:] = _avg_matrix(B, HW_LAST)

    return dict(pool=jnp.asarray(pool), avg=jnp.asarray(avg), bb=bb,
                attn_w1=aw1, attn_w2=aw2, attn_ln=aln, gender=gen, heads=heads)


if __name__ == "__main__":
    key = jax.random.PRNGKey(0)
    pkey, ikey, gkey = jax.random.split(key, 3)
    params = init_params(pkey)
    packed = pack_params(params)
    image = jax.random.normal(ikey, (B, C_IMG, IMG, IMG), jnp.float32)
    gender = jax.random.normal(gkey, (B, 1), jnp.float32)

    fwd = jax.jit(student_gcn_forward)
    outs = jax.block_until_ready(fwd(image, gender, packed))

    x_out, c2, c3, a0, a1, a2, a3 = outs
    assert x_out.shape == (B, 1) and c2.shape == (B, 1) and c3.shape == (B, 1)
    assert a0.shape == (B, 1, S_MID, S_MID) and a1.shape == (B, 1, S_MID, S_MID)
    assert a2.shape == (B, 1, S_MID, S_MID) and a3.shape == (B, 1, S_LAST, S_LAST)
    assert all(bool(jnp.all(jnp.isfinite(o))) for o in outs)
    # attention maps are softmax outputs -> each per-sample map sums to ~1
    for a_map in (a0, a1, a2, a3):
        assert bool(jnp.allclose(jnp.sum(a_map, axis=(1, 2, 3)), 1.0, atol=1e-3))
    print("KERNEL_OK")
</pallas_src>

<mosaic_0001>
module attributes {stable_mosaic.version = 11 : i64} {
  func.func @_fused_forward_kernel(%arg0: memref<4x512xf32, #tpu.memory_space<vmem>>, %arg1: memref<2x1xf32, #tpu.memory_space<vmem>>, %arg2: memref<384x64xf32, #tpu.memory_space<vmem>>, %arg3: memref<2x160xf32, #tpu.memory_space<vmem>>, %arg4: memref<240x64xf32, #tpu.memory_space<vmem>>, %arg5: memref<128x128xf32, #tpu.memory_space<vmem>>, %arg6: memref<128x128xf32, #tpu.memory_space<vmem>>, %arg7: memref<32x8xf32, #tpu.memory_space<vmem>>, %arg8: memref<4x32xf32, #tpu.memory_space<vmem>>, %arg9: memref<632x64xf32, #tpu.memory_space<vmem>>, %arg10: memref<8x128xf32, #tpu.memory_space<vmem>>) attributes {dimension_semantics = [], scalar_prefetch = 0 : i64, scratch_operands = 0 : i64, tpu.core_type = #tpu.core_type<tc>} {
    %c0 = arith.constant 0 : index
    %c0_0 = arith.constant 0 : index
    %0 = vector.load %arg3[%c0, %c0_0] : memref<2x160xf32, #tpu.memory_space<vmem>>, vector<2x128xf32>
    %c0_1 = arith.constant 0 : index
    %c128 = arith.constant 128 : index
    %1 = vector.load %arg3[%c0_1, %c128] : memref<2x160xf32, #tpu.memory_space<vmem>>, vector<2x32xf32>
    %c0_2 = arith.constant 0 : index
    %c0_3 = arith.constant 0 : index
    %2 = vector.load %arg7[%c0_2, %c0_3] : memref<32x8xf32, #tpu.memory_space<vmem>>, vector<32x8xf32>
    %cst = arith.constant 3.125000e-02 : f32
    %3 = vector.broadcast %cst : f32 to vector<1x32xf32>
    %c0_4 = arith.constant 0 : index
    %c0_5 = arith.constant 0 : index
    %4 = vector.load %arg8[%c0_4, %c0_5] : memref<4x32xf32, #tpu.memory_space<vmem>>, vector<4x32xf32>
    %c0_6 = arith.constant 0 : index
    %c0_7 = arith.constant 0 : index
    %5 = vector.load %arg1[%c0_6, %c0_7] : memref<2x1xf32, #tpu.memory_space<vmem>>, vector<2x1xf32>
    %6 = vector.extract_strided_slice %4 {offsets = [0, 0], sizes = [1, 32], strides = [1, 1]} : vector<4x32xf32> to vector<1x32xf32>
    %7 = vector.broadcast %5 : vector<2x1xf32> to vector<2x32xf32>
    %8 = vector.broadcast %6 : vector<1x32xf32> to vector<2x32xf32>
    %9 = arith.mulf %7, %8 : vector<2x32xf32>
    %10 = vector.extract_strided_slice %4 {offsets = [1, 0], sizes = [1, 32], strides = [1, 1]} : vector<4x32xf32> to vector<1x32xf32>
    %11 = vector.broadcast %10 : vector<1x32xf32> to vector<2x32xf32>
    %12 = arith.addf %9, %11 : vector<2x32xf32>
    %13 = vector.extract_strided_slice %4 {offsets = [2, 0], sizes = [1, 32], strides = [1, 1]} : vector<4x32xf32> to vector<1x32xf32>
    %14 = vector.extract_strided_slice %4 {offsets = [3, 0], sizes = [1, 32], strides = [1, 1]} : vector<4x32xf32> to vector<1x32xf32>
    %cst_8 = arith.constant dense<0.000000e+00> : vector<32xf32>
    %15 = vector.multi_reduction <add>, %12, %cst_8 [0] : vector<2x32xf32> to vector<32xf32>
    %16 = vector.shape_cast %15 : vector<32xf32> to vector<1x32xf32>
    %cst_9 = arith.constant 2.000000e+00 : f32
    %17 = vector.broadcast %cst_9 : f32 to vector<1x32xf32>
    %18 = arith.divf %16, %17 : vector<1x32xf32>
    %19 = vector.broadcast %18 : vector<1x32xf32> to vector<2x32xf32>
    %20 = arith.subf %12, %19 : vector<2x32xf32>
    %21 = arith.mulf %20, %20 : vector<2x32xf32>
    %cst_10 = arith.constant dense<0.000000e+00> : vector<32xf32>
    %22 = vector.multi_reduction <add>, %21, %cst_10 [0] : vector<2x32xf32> to vector<32xf32>
    %23 = vector.shape_cast %22 : vector<32xf32> to vector<1x32xf32>
    %cst_11 = arith.constant 2.000000e+00 : f32
    %24 = vector.broadcast %cst_11 : f32 to vector<1x32xf32>
    %25 = arith.divf %23, %24 : vector<1x32xf32>
    %26 = vector.broadcast %18 : vector<1x32xf32> to vector<2x32xf32>
    %27 = arith.subf %12, %26 : vector<2x32xf32>
    %cst_12 = arith.constant 9.99999974E-6 : f32
    %28 = vector.broadcast %cst_12 : f32 to vector<1x32xf32>
    %29 = arith.addf %25, %28 : vector<1x32xf32>
    %30 = math.rsqrt %29 : vector<1x32xf32>
    %31 = vector.broadcast %30 : vector<1x32xf32> to vector<2x32xf32>
    %32 = arith.mulf %27, %31 : vector<2x32xf32>
    %33 = vector.broadcast %13 : vector<1x32xf32> to vector<2x32xf32>
    %34 = arith.mulf %32, %33 : vector<2x32xf32>
    %35 = vector.broadcast %14 : vector<1x32xf32> to vector<2x32xf32>
    %36 = arith.addf %34, %35 : vector<2x32xf32>
    %cst_13 = arith.constant 0.000000e+00 : f32
    %37 = vector.broadcast %cst_13 : f32 to vector<2x32xf32>
    %38 = arith.maximumf %36, %37 : vector<2x32xf32>
    %c0_14 = arith.constant 0 : index
    %c0_15 = arith.constant 0 : index
    %39 = vector.load %arg0[%c0_14, %c0_15] : memref<4x512xf32, #tpu.memory_space<vmem>>, vector<4x512xf32>
    %c0_16 = arith.constant 0 : index
    %c0_17 = arith.constant 0 : index
    %40 = vector.load %arg4[%c0_16, %c0_17] : memref<240x64xf32, #tpu.memory_space<vmem>>, vector<16x4xf32>
    %cst_18 = arith.constant dense<0.000000e+00> : vector<16x512xf32>
    %41 = tpu.matmul %40, %39, %cst_18 {dimension_numbers = #tpu.dot_dimension_numbers<[1], [0], [0], [1], [0, 0, 1, 1], [], []>} : vector<16x4xf32>, vector<4x512xf32>, vector<16x512xf32> -> vector<16x512xf32>
    %cst_19 = arith.constant 0.000000e+00 : f32
    %42 = vector.broadcast %cst_19 : f32 to vector<16x512xf32>
    %43 = arith.maximumf %41, %42 : vector<16x512xf32>
    %c0_20 = arith.constant 0 : index
    %c0_21 = arith.constant 0 : index
    %44 = vector.load %arg2[%c0_20, %c0_21] : memref<384x64xf32, #tpu.memory_space<vmem>>, vector<256x64xf32>
    %45 = vector.extract_strided_slice %43 {offsets = [0, 0], sizes = [16, 256], strides = [1, 1]} : vector<16x512xf32> to vector<16x256xf32>
    %cst_22 = arith.constant dense<0.000000e+00> : vector<16x64xf32>
    %46 = tpu.matmul %45, %44, %cst_22 {dimension_numbers = #tpu.dot_dimension_numbers<[1], [0], [0], [1], [0, 0, 1, 1], [], []>} : vector<16x256xf32>, vector<256x64xf32>, vector<16x64xf32> -> vector<16x64xf32>
    %47 = vector.extract_strided_slice %43 {offsets = [0, 256], sizes = [16, 256], strides = [1, 1]} : vector<16x512xf32> to vector<16x256xf32>
    %cst_23 = arith.constant dense<0.000000e+00> : vector<16x64xf32>
    %48 = tpu.matmul %47, %44, %cst_23 {dimension_numbers = #tpu.dot_dimension_numbers<[1], [0], [0], [1], [0, 0, 1, 1], [], []>} : vector<16x256xf32>, vector<256x64xf32>, vector<16x64xf32> -> vector<16x64xf32>
    %49 = tpu.concatenate %46, %48 in 1 : vector<16x64xf32>, vector<16x64xf32> -> vector<16x128xf32>
    %c0_24 = arith.constant 0 : index
    %c0_25 = arith.constant 0 : index
    %50 = vector.load %arg5[%c0_24, %c0_25] : memref<128x128xf32, #tpu.memory_space<vmem>>, vector<32x16xf32>
    %51 = vector.extract_strided_slice %2 {offsets = [0, 0], sizes = [32, 1], strides = [1, 1]} : vector<32x8xf32> to vector<32x1xf32>
    %52 = vector.extract_strided_slice %2 {offsets = [0, 4], sizes = [32, 1], strides = [1, 1]} : vector<32x8xf32> to vector<32x1xf32>
    %cst_26 = arith.constant 6.400000e+01 : f32
    %53 = vector.broadcast %cst_26 : f32 to vector<2x128xf32>
    %54 = arith.mulf %0, %53 : vector<2x128xf32>
    %cst_27 = arith.constant dense<0.000000e+00> : vector<16x2xf32>
    %55 = tpu.matmul %49, %0, %cst_27 {dimension_numbers = #tpu.dot_dimension_numbers<[1], [1], [0], [0], [0, 0, 1, 0], [], []>} : vector<16x128xf32>, vector<2x128xf32>, vector<16x2xf32> -> vector<16x2xf32>
    %cst_28 = arith.constant dense<0.000000e+00> : vector<32x128xf32>
    %56 = tpu.matmul %50, %49, %cst_28 {dimension_numbers = #tpu.dot_dimension_numbers<[1], [0], [0], [1], [0, 0, 1, 1], [], []>} : vector<32x16xf32>, vector<16x128xf32>, vector<32x128xf32> -> vector<32x128xf32>
    %cst_29 = arith.constant 0.000000e+00 : f32
    %57 = vector.broadcast %cst_29 : f32 to vector<32x128xf32>
    %58 = arith.maximumf %56, %57 : vector<32x128xf32>
    %cst_30 = arith.constant dense<0.000000e+00> : vector<32x2xf32>
    %59 = tpu.matmul %50, %55, %cst_30 {dimension_numbers = #tpu.dot_dimension_numbers<[1], [0], [0], [1], [0, 0, 1, 1], [], []>} : vector<32x16xf32>, vector<16x2xf32>, vector<32x2xf32> -> vector<32x2xf32>
    %cst_31 = arith.constant 0.000000e+00 : f32
    %60 = vector.broadcast %cst_31 : f32 to vector<32x2xf32>
    %61 = arith.maximumf %59, %60 : vector<32x2xf32>
    %cst_32 = arith.constant dense<0.000000e+00> : vector<1x128xf32>
    %62 = tpu.matmul %3, %58, %cst_32 {dimension_numbers = #tpu.dot_dimension_numbers<[1], [0], [0], [1], [0, 0, 1, 1], [], []>} : vector<1x32xf32>, vector<32x128xf32>, vector<1x128xf32> -> vector<1x128xf32>
    %63 = vector.broadcast %62 : vector<1x128xf32> to vector<32x128xf32>
    %64 = arith.subf %58, %63 : vector<32x128xf32>
    %65 = arith.mulf %64, %64 : vector<32x128xf32>
    %cst_33 = arith.constant dense<0.000000e+00> : vector<1x128xf32>
    %66 = tpu.matmul %3, %65, %cst_33 {dimension_numbers = #tpu.dot_dimension_numbers<[1], [0], [0], [1], [0, 0, 1, 1], [], []>} : vector<1x32xf32>, vector<32x128xf32>, vector<1x128xf32> -> vector<1x128xf32>
    %cst_34 = arith.constant 9.99999974E-6 : f32
    %67 = vector.broadcast %cst_34 : f32 to vector<1x128xf32>
    %68 = arith.addf %66, %67 : vector<1x128xf32>
    %69 = math.rsqrt %68 : vector<1x128xf32>
    %70 = vector.broadcast %69 : vector<1x128xf32> to vector<32x128xf32>
    %71 = arith.mulf %64, %70 : vector<32x128xf32>
    %72 = vector.broadcast %51 : vector<32x1xf32> to vector<32x128xf32>
    %73 = arith.mulf %71, %72 : vector<32x128xf32>
    %74 = vector.broadcast %52 : vector<32x1xf32> to vector<32x128xf32>
    %75 = arith.addf %73, %74 : vector<32x128xf32>
    %cst_35 = arith.constant dense<0.000000e+00> : vector<1x2xf32>
    %76 = tpu.matmul %3, %61, %cst_35 {dimension_numbers = #tpu.dot_dimension_numbers<[1], [0], [0], [1], [0, 0, 1, 1], [], []>} : vector<1x32xf32>, vector<32x2xf32>, vector<1x2xf32> -> vector<1x2xf32>
    %77 = vector.broadcast %76 : vector<1x2xf32> to vector<32x2xf32>
    %78 = arith.subf %61, %77 : vector<32x2xf32>
    %79 = arith.mulf %78, %78 : vector<32x2xf32>
    %cst_36 = arith.constant dense<0.000000e+00> : vector<1x2xf32>
    %80 = tpu.matmul %3, %79, %cst_36 {dimension_numbers = #tpu.dot_dimension_numbers<[1], [0], [0], [1], [0, 0, 1, 1], [], []>} : vector<1x32xf32>, vector<32x2xf32>, vector<1x2xf32> -> vector<1x2xf32>
    %cst_37 = arith.constant 9.99999974E-6 : f32
    %81 = vector.broadcast %cst_37 : f32 to vector<1x2xf32>
    %82 = arith.addf %80, %81 : vector<1x2xf32>
    %83 = math.rsqrt %82 : vector<1x2xf32>
    %84 = vector.broadcast %83 : vector<1x2xf32> to vector<32x2xf32>
    %85 = arith.mulf %78, %84 : vector<32x2xf32>
    %86 = vector.broadcast %51 : vector<32x1xf32> to vector<32x2xf32>
    %87 = arith.mulf %85, %86 : vector<32x2xf32>
    %88 = vector.broadcast %52 : vector<32x1xf32> to vector<32x2xf32>
    %89 = arith.addf %87, %88 : vector<32x2xf32>
    %cst_38 = arith.constant dense<0.000000e+00> : vector<2x128xf32>
    %90 = tpu.matmul %89, %75, %cst_38 {dimension_numbers = #tpu.dot_dimension_numbers<[0], [0], [1], [1], [0, 1, 1, 1], [], []>} : vector<32x2xf32>, vector<32x128xf32>, vector<2x128xf32> -> vector<2x128xf32>
    %cst_39 = arith.constant 0.176776692 : f32
    %91 = vector.broadcast %cst_39 : f32 to vector<2x128xf32>
    %92 = arith.mulf %90, %91 : vector<2x128xf32>
    %cst_40 = arith.constant 0.000000e+00 : f32
    %93 = vector.broadcast %cst_40 : f32 to vector<2x128xf32>
    %94 = arith.cmpf ogt, %54, %93 : vector<2x128xf32>
    %cst_41 = arith.constant -1.000000e+30 : f32
    %95 = vector.broadcast %cst_41 : f32 to vector<2x128xf32>
    %96 = arith.select %94, %92, %95 : vector<2x128xi1>, vector<2x128xf32>
    %cst_42 = arith.constant dense<0xFF800000> : vector<2xf32>
    %97 = vector.multi_reduction <maximumf>, %96, %cst_42 [1] : vector<2x128xf32> to vector<2xf32>
    %98 = vector.shape_cast %97 : vector<2xf32> to vector<2x1xf32>
    %99 = vector.broadcast %98 : vector<2x1xf32> to vector<2x128xf32>
    %100 = arith.subf %96, %99 : vector<2x128xf32>
    %101 = math.exp %100 : vector<2x128xf32>
    %102 = arith.mulf %101, %54 : vector<2x128xf32>
    %cst_43 = arith.constant dense<0.000000e+00> : vector<2xf32>
    %103 = vector.multi_reduction <add>, %102, %cst_43 [1] : vector<2x128xf32> to vector<2xf32>
    %104 = vector.shape_cast %103 : vector<2xf32> to vector<2x1xf32>
    %cst_44 = arith.constant 1.000000e+00 : f32
    %105 = vector.broadcast %cst_44 : f32 to vector<2x1xf32>
    %106 = arith.divf %105, %104 : vector<2x1xf32>
    %107 = vector.broadcast %106 : vector<2x1xf32> to vector<2x128xf32>
    %108 = arith.mulf %102, %107 : vector<2x128xf32>
    %cst_45 = arith.constant dense<0.000000e+00> : vector<128xf32>
    %109 = vector.multi_reduction <add>, %108, %cst_45 [0] : vector<2x128xf32> to vector<128xf32>
    %110 = vector.shape_cast %109 : vector<128xf32> to vector<1x128xf32>
    %111 = vector.broadcast %110 : vector<1x128xf32> to vector<16x128xf32>
    %112 = arith.mulf %49, %111 : vector<16x128xf32>
    %c16 = arith.constant 16 : index
    %c0_46 = arith.constant 0 : index
    %113 = vector.load %arg4[%c16, %c0_46] : memref<240x64xf32, #tpu.memory_space<vmem>>, vector<32x16xf32>
    %cst_47 = arith.constant dense<0.000000e+00> : vector<32x128xf32>
    %114 = tpu.matmul %113, %112, %cst_47 {dimension_numbers = #tpu.dot_dimension_numbers<[1], [0], [0], [1], [0, 0, 1, 1], [], []>} : vector<32x16xf32>, vector<16x128xf32>, vector<32x128xf32> -> vector<32x128xf32>
    %cst_48 = arith.constant 0.000000e+00 : f32
    %115 = vector.broadcast %cst_48 : f32 to vector<32x128xf32>
    %116 = arith.maximumf %114, %115 : vector<32x128xf32>
    %c32 = arith.constant 32 : index
    %c0_49 = arith.constant 0 : index
    %117 = vector.load %arg5[%c32, %c0_49] : memref<128x128xf32, #tpu.memory_space<vmem>>, vector<32x32xf32>
    %118 = vector.extract_strided_slice %2 {offsets = [0, 1], sizes = [32, 1], strides = [1, 1]} : vector<32x8xf32> to vector<32x1xf32>
    %119 = vector.extract_strided_slice %2 {offsets = [0, 5], sizes = [32, 1], strides = [1, 1]} : vector<32x8xf32> to vector<32x1xf32>
    %cst_50 = arith.constant 6.400000e+01 : f32
    %120 = vector.broadcast %cst_50 : f32 to vector<2x128xf32>
    %121 = arith.mulf %0, %120 : vector<2x128xf32>
    %cst_51 = arith.constant dense<0.000000e+00> : vector<32x2xf32>
    %122 = tpu.matmul %116, %0, %cst_51 {dimension_numbers = #tpu.dot_dimension_numbers<[1], [1], [0], [0], [0, 0, 1, 0], [], []>} : vector<32x128xf32>, vector<2x128xf32>, vector<32x2xf32> -> vector<32x2xf32>
    %cst_52 = arith.constant dense<0.000000e+00> : vector<32x128xf32>
    %123 = tpu.matmul %117, %116, %cst_52 {dimension_numbers = #tpu.dot_dimension_numbers<[1], [0], [0], [1], [0, 0, 1, 1], [], []>} : vector<32x32xf32>, vector<32x128xf32>, vector<32x128xf32> -> vector<32x128xf32>
    %cst_53 = arith.constant 0.000000e+00 : f32
    %124 = vector.broadcast %cst_53 : f32 to vector<32x128xf32>
    %125 = arith.maximumf %123, %124 : vector<32x128xf32>
    %cst_54 = arith.constant dense<0.000000e+00> : vector<32x2xf32>
    %126 = tpu.matmul %117, %122, %cst_54 {dimension_numbers = #tpu.dot_dimension_numbers<[1], [0], [0], [1], [0, 0, 1, 1], [], []>} : vector<32x32xf32>, vector<32x2xf32>, vector<32x2xf32> -> vector<32x2xf32>
    %cst_55 = arith.constant 0.000000e+00 : f32
    %127 = vector.broadcast %cst_55 : f32 to vector<32x2xf32>
    %128 = arith.maximumf %126, %127 : vector<32x2xf32>
    %cst_56 = arith.constant dense<0.000000e+00> : vector<1x128xf32>
    %129 = tpu.matmul %3, %125, %cst_56 {dimension_numbers = #tpu.dot_dimension_numbers<[1], [0], [0], [1], [0, 0, 1, 1], [], []>} : vector<1x32xf32>, vector<32x128xf32>, vector<1x128xf32> -> vector<1x128xf32>
    %130 = vector.broadcast %129 : vector<1x128xf32> to vector<32x128xf32>
    %131 = arith.subf %125, %130 : vector<32x128xf32>
    %132 = arith.mulf %131, %131 : vector<32x128xf32>
    %cst_57 = arith.constant dense<0.000000e+00> : vector<1x128xf32>
    %133 = tpu.matmul %3, %132, %cst_57 {dimension_numbers = #tpu.dot_dimension_numbers<[1], [0], [0], [1], [0, 0, 1, 1], [], []>} : vector<1x32xf32>, vector<32x128xf32>, vector<1x128xf32> -> vector<1x128xf32>
    %cst_58 = arith.constant 9.99999974E-6 : f32
    %134 = vector.broadcast %cst_58 : f32 to vector<1x128xf32>
    %135 = arith.addf %133, %134 : vector<1x128xf32>
    %136 = math.rsqrt %135 : vector<1x128xf32>
    %137 = vector.broadcast %136 : vector<1x128xf32> to vector<32x128xf32>
    %138 = arith.mulf %131, %137 : vector<32x128xf32>
    %139 = vector.broadcast %118 : vector<32x1xf32> to vector<32x128xf32>
    %140 = arith.mulf %138, %139 : vector<32x128xf32>
    %141 = vector.broadcast %119 : vector<32x1xf32> to vector<32x128xf32>
    %142 = arith.addf %140, %141 : vector<32x128xf32>
    %cst_59 = arith.constant dense<0.000000e+00> : vector<1x2xf32>
    %143 = tpu.matmul %3, %128, %cst_59 {dimension_numbers = #tpu.dot_dimension_numbers<[1], [0], [0], [1], [0, 0, 1, 1], [], []>} : vector<1x32xf32>, vector<32x2xf32>, vector<1x2xf32> -> vector<1x2xf32>
    %144 = vector.broadcast %143 : vector<1x2xf32> to vector<32x2xf32>
    %145 = arith.subf %128, %144 : vector<32x2xf32>
    %146 = arith.mulf %145, %145 : vector<32x2xf32>
    %cst_60 = arith.constant dense<0.000000e+00> : vector<1x2xf32>
    %147 = tpu.matmul %3, %146, %cst_60 {dimension_numbers = #tpu.dot_dimension_numbers<[1], [0], [0], [1], [0, 0, 1, 1], [], []>} : vector<1x32xf32>, vector<32x2xf32>, vector<1x2xf32> -> vector<1x2xf32>
    %cst_61 = arith.constant 9.99999974E-6 : f32
    %148 = vector.broadcast %cst_61 : f32 to vector<1x2xf32>
    %149 = arith.addf %147, %148 : vector<1x2xf32>
    %150 = math.rsqrt %149 : vector<1x2xf32>
    %151 = vector.broadcast %150 : vector<1x2xf32> to vector<32x2xf32>
    %152 = arith.mulf %145, %151 : vector<32x2xf32>
    %153 = vector.broadcast %118 : vector<32x1xf32> to vector<32x2xf32>
    %154 = arith.mulf %152, %153 : vector<32x2xf32>
    %155 = vector.broadcast %119 : vector<32x1xf32> to vector<32x2xf32>
    %156 = arith.addf %154, %155 : vector<32x2xf32>
    %cst_62 = arith.constant dense<0.000000e+00> : vector<2x128xf32>
    %157 = tpu.matmul %156, %142, %cst_62 {dimension_numbers = #tpu.dot_dimension_numbers<[0], [0], [1], [1], [0, 1, 1, 1], [], []>} : vector<32x2xf32>, vector<32x128xf32>, vector<2x128xf32> -> vector<2x128xf32>
    %cst_63 = arith.constant 0.176776692 : f32
    %158 = vector.broadcast %cst_63 : f32 to vector<2x128xf32>
    %159 = arith.mulf %157, %158 : vector<2x128xf32>
    %cst_64 = arith.constant 0.000000e+00 : f32
    %160 = vector.broadcast %cst_64 : f32 to vector<2x128xf32>
    %161 = arith.cmpf ogt, %121, %160 : vector<2x128xf32>
    %cst_65 = arith.constant -1.000000e+30 : f32
    %162 = vector.broadcast %cst_65 : f32 to vector<2x128xf32>
    %163 = arith.select %161, %159, %162 : vector<2x128xi1>, vector<2x128xf32>
    %cst_66 = arith.constant dense<0xFF800000> : vector<2xf32>
    %164 = vector.multi_reduction <maximumf>, %163, %cst_66 [1] : vector<2x128xf32> to vector<2xf32>
    %165 = vector.shape_cast %164 : vector<2xf32> to vector<2x1xf32>
    %166 = vector.broadcast %165 : vector<2x1xf32> to vector<2x128xf32>
    %167 = arith.subf %163, %166 : vector<2x128xf32>
    %168 = math.exp %167 : vector<2x128xf32>
    %169 = arith.mulf %168, %121 : vector<2x128xf32>
    %cst_67 = arith.constant dense<0.000000e+00> : vector<2xf32>
    %170 = vector.multi_reduction <add>, %169, %cst_67 [1] : vector<2x128xf32> to vector<2xf32>
    %171 = vector.shape_cast %170 : vector<2xf32> to vector<2x1xf32>
    %cst_68 = arith.constant 1.000000e+00 : f32
    %172 = vector.broadcast %cst_68 : f32 to vector<2x1xf32>
    %173 = arith.divf %172, %171 : vector<2x1xf32>
    %174 = vector.broadcast %173 : vector<2x1xf32> to vector<2x128xf32>
    %175 = arith.mulf %169, %174 : vector<2x128xf32>
    %cst_69 = arith.constant dense<0.000000e+00> : vector<128xf32>
    %176 = vector.multi_reduction <add>, %175, %cst_69 [0] : vector<2x128xf32> to vector<128xf32>
    %177 = vector.shape_cast %176 : vector<128xf32> to vector<1x128xf32>
    %178 = vector.broadcast %177 : vector<1x128xf32> to vector<32x128xf32>
    %179 = arith.mulf %116, %178 : vector<32x128xf32>
    %c48 = arith.constant 48 : index
    %c0_70 = arith.constant 0 : index
    %180 = vector.load %arg4[%c48, %c0_70] : memref<240x64xf32, #tpu.memory_space<vmem>>, vector<64x32xf32>
    %cst_71 = arith.constant dense<0.000000e+00> : vector<64x128xf32>
    %181 = tpu.matmul %180, %179, %cst_71 {dimension_numbers = #tpu.dot_dimension_numbers<[1], [0], [0], [1], [0, 0, 1, 1], [], []>} : vector<64x32xf32>, vector<32x128xf32>, vector<64x128xf32> -> vector<64x128xf32>
    %cst_72 = arith.constant 0.000000e+00 : f32
    %182 = vector.broadcast %cst_72 : f32 to vector<64x128xf32>
    %183 = arith.maximumf %181, %182 : vector<64x128xf32>
    %c64 = arith.constant 64 : index
    %c0_73 = arith.constant 0 : index
    %184 = vector.load %arg5[%c64, %c0_73] : memref<128x128xf32, #tpu.memory_space<vmem>>, vector<32x64xf32>
    %c64_74 = arith.constant 64 : index
    %c0_75 = arith.constant 0 : index
    %185 = vector.load %arg6[%c64_74, %c0_75] : memref<128x128xf32, #tpu.memory_space<vmem>>, vector<32x64xf32>
    %186 = vector.extract_strided_slice %2 {offsets = [0, 2], sizes = [32, 1], strides = [1, 1]} : vector<32x8xf32> to vector<32x1xf32>
    %187 = vector.extract_strided_slice %2 {offsets = [0, 6], sizes = [32, 1], strides = [1, 1]} : vector<32x8xf32> to vector<32x1xf32>
    %cst_76 = arith.constant 6.400000e+01 : f32
    %188 = vector.broadcast %cst_76 : f32 to vector<2x128xf32>
    %189 = arith.mulf %0, %188 : vector<2x128xf32>
    %cst_77 = arith.constant dense<0.000000e+00> : vector<64x2xf32>
    %190 = tpu.matmul %183, %0, %cst_77 {dimension_numbers = #tpu.dot_dimension_numbers<[1], [1], [0], [0], [0, 0, 1, 0], [], []>} : vector<64x128xf32>, vector<2x128xf32>, vector<64x2xf32> -> vector<64x2xf32>
    %cst_78 = arith.constant dense<0.000000e+00> : vector<32x128xf32>
    %191 = tpu.matmul %184, %183, %cst_78 {dimension_numbers = #tpu.dot_dimension_numbers<[1], [0], [0], [1], [0, 0, 1, 1], [], []>} : vector<32x64xf32>, vector<64x128xf32>, vector<32x128xf32> -> vector<32x128xf32>
    %cst_79 = arith.constant 0.000000e+00 : f32
    %192 = vector.broadcast %cst_79 : f32 to vector<32x128xf32>
    %193 = arith.maximumf %191, %192 : vector<32x128xf32>
    %cst_80 = arith.constant dense<0.000000e+00> : vector<32x2xf32>
    %194 = tpu.matmul %184, %190, %cst_80 {dimension_numbers = #tpu.dot_dimension_numbers<[1], [0], [0], [1], [0, 0, 1, 1], [], []>} : vector<32x64xf32>, vector<64x2xf32>, vector<32x2xf32> -> vector<32x2xf32>
    %cst_81 = arith.constant 0.000000e+00 : f32
    %195 = vector.broadcast %cst_81 : f32 to vector<32x2xf32>
    %196 = arith.maximumf %194, %195 : vector<32x2xf32>
    %cst_82 = arith.constant dense<0.000000e+00> : vector<1x128xf32>
    %197 = tpu.matmul %3, %193, %cst_82 {dimension_numbers = #tpu.dot_dimension_numbers<[1], [0], [0], [1], [0, 0, 1, 1], [], []>} : vector<1x32xf32>, vector<32x128xf32>, vector<1x128xf32> -> vector<1x128xf32>
    %198 = vector.broadcast %197 : vector<1x128xf32> to vector<32x128xf32>
    %199 = arith.subf %193, %198 : vector<32x128xf32>
    %200 = arith.mulf %199, %199 : vector<32x128xf32>
    %cst_83 = arith.constant dense<0.000000e+00> : vector<1x128xf32>
    %201 = tpu.matmul %3, %200, %cst_83 {dimension_numbers = #tpu.dot_dimension_numbers<[1], [0], [0], [1], [0, 0, 1, 1], [], []>} : vector<1x32xf32>, vector<32x128xf32>, vector<1x128xf32> -> vector<1x128xf32>
    %cst_84 = arith.constant 9.99999974E-6 : f32
    %202 = vector.broadcast %cst_84 : f32 to vector<1x128xf32>
    %203 = arith.addf %201, %202 : vector<1x128xf32>
    %204 = math.rsqrt %203 : vector<1x128xf32>
    %205 = vector.broadcast %204 : vector<1x128xf32> to vector<32x128xf32>
    %206 = arith.mulf %199, %205 : vector<32x128xf32>
    %207 = vector.broadcast %186 : vector<32x1xf32> to vector<32x128xf32>
    %208 = arith.mulf %206, %207 : vector<32x128xf32>
    %209 = vector.broadcast %187 : vector<32x1xf32> to vector<32x128xf32>
    %210 = arith.addf %208, %209 : vector<32x128xf32>
    %cst_85 = arith.constant dense<0.000000e+00> : vector<1x2xf32>
    %211 = tpu.matmul %3, %196, %cst_85 {dimension_numbers = #tpu.dot_dimension_numbers<[1], [0], [0], [1], [0, 0, 1, 1], [], []>} : vector<1x32xf32>, vector<32x2xf32>, vector<1x2xf32> -> vector<1x2xf32>
    %212 = vector.broadcast %211 : vector<1x2xf32> to vector<32x2xf32>
    %213 = arith.subf %196, %212 : vector<32x2xf32>
    %214 = arith.mulf %213, %213 : vector<32x2xf32>
    %cst_86 = arith.constant dense<0.000000e+00> : vector<1x2xf32>
    %215 = tpu.matmul %3, %214, %cst_86 {dimension_numbers = #tpu.dot_dimension_numbers<[1], [0], [0], [1], [0, 0, 1, 1], [], []>} : vector<1x32xf32>, vector<32x2xf32>, vector<1x2xf32> -> vector<1x2xf32>
    %cst_87 = arith.constant 9.99999974E-6 : f32
    %216 = vector.broadcast %cst_87 : f32 to vector<1x2xf32>
    %217 = arith.addf %215, %216 : vector<1x2xf32>
    %218 = math.rsqrt %217 : vector<1x2xf32>
    %219 = vector.broadcast %218 : vector<1x2xf32> to vector<32x2xf32>
    %220 = arith.mulf %213, %219 : vector<32x2xf32>
    %221 = vector.broadcast %186 : vector<32x1xf32> to vector<32x2xf32>
    %222 = arith.mulf %220, %221 : vector<32x2xf32>
    %223 = vector.broadcast %187 : vector<32x1xf32> to vector<32x2xf32>
    %224 = arith.addf %222, %223 : vector<32x2xf32>
    %cst_88 = arith.constant dense<0.000000e+00> : vector<2x128xf32>
    %225 = tpu.matmul %224, %210, %cst_88 {dimension_numbers = #tpu.dot_dimension_numbers<[0], [0], [1], [1], [0, 1, 1, 1], [], []>} : vector<32x2xf32>, vector<32x128xf32>, vector<2x128xf32> -> vector<2x128xf32>
    %cst_89 = arith.constant 0.176776692 : f32
    %226 = vector.broadcast %cst_89 : f32 to vector<2x128xf32>
    %227 = arith.mulf %225, %226 : vector<2x128xf32>
    %cst_90 = arith.constant 0.000000e+00 : f32
    %228 = vector.broadcast %cst_90 : f32 to vector<2x128xf32>
    %229 = arith.cmpf ogt, %189, %228 : vector<2x128xf32>
    %cst_91 = arith.constant -1.000000e+30 : f32
    %230 = vector.broadcast %cst_91 : f32 to vector<2x128xf32>
    %231 = arith.select %229, %227, %230 : vector<2x128xi1>, vector<2x128xf32>
    %cst_92 = arith.constant dense<0xFF800000> : vector<2xf32>
    %232 = vector.multi_reduction <maximumf>, %231, %cst_92 [1] : vector<2x128xf32> to vector<2xf32>
    %233 = vector.shape_cast %232 : vector<2xf32> to vector<2x1xf32>
    %234 = vector.broadcast %233 : vector<2x1xf32> to vector<2x128xf32>
    %235 = arith.subf %231, %234 : vector<2x128xf32>
    %236 = math.exp %235 : vector<2x128xf32>
    %237 = arith.mulf %236, %189 : vector<2x128xf32>
    %cst_93 = arith.constant dense<0.000000e+00> : vector<2xf32>
    %238 = vector.multi_reduction <add>, %237, %cst_93 [1] : vector<2x128xf32> to vector<2xf32>
    %239 = vector.shape_cast %238 : vector<2xf32> to vector<2x1xf32>
    %cst_94 = arith.constant 1.000000e+00 : f32
    %240 = vector.broadcast %cst_94 : f32 to vector<2x1xf32>
    %241 = arith.divf %240, %239 : vector<2x1xf32>
    %242 = vector.broadcast %241 : vector<2x1xf32> to vector<2x128xf32>
    %243 = arith.mulf %237, %242 : vector<2x128xf32>
    %cst_95 = arith.constant dense<0.000000e+00> : vector<128xf32>
    %244 = vector.multi_reduction <add>, %243, %cst_95 [0] : vector<2x128xf32> to vector<128xf32>
    %245 = vector.shape_cast %244 : vector<128xf32> to vector<1x128xf32>
    %246 = vector.broadcast %245 : vector<1x128xf32> to vector<64x128xf32>
    %247 = arith.mulf %183, %246 : vector<64x128xf32>
    %cst_96 = arith.constant dense<0.000000e+00> : vector<2x64xf32>
    %248 = tpu.matmul %196, %185, %cst_96 {dimension_numbers = #tpu.dot_dimension_numbers<[0], [0], [1], [1], [0, 1, 1, 1], [], []>} : vector<32x2xf32>, vector<32x64xf32>, vector<2x64xf32> -> vector<2x64xf32>
    %c112 = arith.constant 112 : index
    %c0_97 = arith.constant 0 : index
    %249 = vector.load %arg4[%c112, %c0_97] : memref<240x64xf32, #tpu.memory_space<vmem>>, vector<128x64xf32>
    %cst_98 = arith.constant dense<0.000000e+00> : vector<128x128xf32>
    %250 = tpu.matmul %249, %247, %cst_98 {dimension_numbers = #tpu.dot_dimension_numbers<[1], [0], [0], [1], [0, 0, 1, 1], [], []>} : vector<128x64xf32>, vector<64x128xf32>, vector<128x128xf32> -> vector<128x128xf32>
    %cst_99 = arith.constant 0.000000e+00 : f32
    %251 = vector.broadcast %cst_99 : f32 to vector<128x128xf32>
    %252 = arith.maximumf %250, %251 : vector<128x128xf32>
    %c256 = arith.constant 256 : index
    %c0_100 = arith.constant 0 : index
    %253 = vector.load %arg2[%c256, %c0_100] : memref<384x64xf32, #tpu.memory_space<vmem>>, vector<128x32xf32>
    %cst_101 = arith.constant dense<0.000000e+00> : vector<128x32xf32>
    %254 = tpu.matmul %252, %253, %cst_101 {dimension_numbers = #tpu.dot_dimension_numbers<[1], [0], [0], [1], [0, 0, 1, 1], [], []>} : vector<128x128xf32>, vector<128x32xf32>, vector<128x32xf32> -> vector<128x32xf32>
    %c96 = arith.constant 96 : index
    %c0_102 = arith.constant 0 : index
    %255 = vector.load %arg5[%c96, %c0_102] : memref<128x128xf32, #tpu.memory_space<vmem>>, vector<32x128xf32>
    %c96_103 = arith.constant 96 : index
    %c0_104 = arith.constant 0 : index
    %256 = vector.load %arg6[%c96_103, %c0_104] : memref<128x128xf32, #tpu.memory_space<vmem>>, vector<32x128xf32>
    %257 = vector.extract_strided_slice %2 {offsets = [0, 3], sizes = [32, 1], strides = [1, 1]} : vector<32x8xf32> to vector<32x1xf32>
    %258 = vector.extract_strided_slice %2 {offsets = [0, 7], sizes = [32, 1], strides = [1, 1]} : vector<32x8xf32> to vector<32x1xf32>
    %cst_105 = arith.constant 1.600000e+01 : f32
    %259 = vector.broadcast %cst_105 : f32 to vector<2x32xf32>
    %260 = arith.mulf %1, %259 : vector<2x32xf32>
    %cst_106 = arith.constant dense<0.000000e+00> : vector<128x2xf32>
    %261 = tpu.matmul %254, %1, %cst_106 {dimension_numbers = #tpu.dot_dimension_numbers<[1], [1], [0], [0], [0, 0, 1, 0], [], []>} : vector<128x32xf32>, vector<2x32xf32>, vector<128x2xf32> -> vector<128x2xf32>
    %cst_107 = arith.constant dense<0.000000e+00> : vector<32x32xf32>
    %262 = tpu.matmul %255, %254, %cst_107 {dimension_numbers = #tpu.dot_dimension_numbers<[1], [0], [0], [1], [0, 0, 1, 1], [], []>} : vector<32x128xf32>, vector<128x32xf32>, vector<32x32xf32> -> vector<32x32xf32>
    %cst_108 = arith.constant 0.000000e+00 : f32
    %263 = vector.broadcast %cst_108 : f32 to vector<32x32xf32>
    %264 = arith.maximumf %262, %263 : vector<32x32xf32>
    %cst_109 = arith.constant dense<0.000000e+00> : vector<32x2xf32>
    %265 = tpu.matmul %255, %261, %cst_109 {dimension_numbers = #tpu.dot_dimension_numbers<[1], [0], [0], [1], [0, 0, 1, 1], [], []>} : vector<32x128xf32>, vector<128x2xf32>, vector<32x2xf32> -> vector<32x2xf32>
    %cst_110 = arith.constant 0.000000e+00 : f32
    %266 = vector.broadcast %cst_110 : f32 to vector<32x2xf32>
    %267 = arith.maximumf %265, %266 : vector<32x2xf32>
    %cst_111 = arith.constant dense<0.000000e+00> : vector<1x32xf32>
    %268 = tpu.matmul %3, %264, %cst_111 {dimension_numbers = #tpu.dot_dimension_numbers<[1], [0], [0], [1], [0, 0, 1, 1], [], []>} : vector<1x32xf32>, vector<32x32xf32>, vector<1x32xf32> -> vector<1x32xf32>
    %269 = vector.broadcast %268 : vector<1x32xf32> to vector<32x32xf32>
    %270 = arith.subf %264, %269 : vector<32x32xf32>
    %271 = arith.mulf %270, %270 : vector<32x32xf32>
    %cst_112 = arith.constant dense<0.000000e+00> : vector<1x32xf32>
    %272 = tpu.matmul %3, %271, %cst_112 {dimension_numbers = #tpu.dot_dimension_numbers<[1], [0], [0], [1], [0, 0, 1, 1], [], []>} : vector<1x32xf32>, vector<32x32xf32>, vector<1x32xf32> -> vector<1x32xf32>
    %cst_113 = arith.constant 9.99999974E-6 : f32
    %273 = vector.broadcast %cst_113 : f32 to vector<1x32xf32>
    %274 = arith.addf %272, %273 : vector<1x32xf32>
    %275 = math.rsqrt %274 : vector<1x32xf32>
    %276 = vector.broadcast %275 : vector<1x32xf32> to vector<32x32xf32>
    %277 = arith.mulf %270, %276 : vector<32x32xf32>
    %278 = vector.broadcast %257 : vector<32x1xf32> to vector<32x32xf32>
    %279 = arith.mulf %277, %278 : vector<32x32xf32>
    %280 = vector.broadcast %258 : vector<32x1xf32> to vector<32x32xf32>
    %281 = arith.addf %279, %280 : vector<32x32xf32>
    %cst_114 = arith.constant dense<0.000000e+00> : vector<1x2xf32>
    %282 = tpu.matmul %3, %267, %cst_114 {dimension_numbers = #tpu.dot_dimension_numbers<[1], [0], [0], [1], [0, 0, 1, 1], [], []>} : vector<1x32xf32>, vector<32x2xf32>, vector<1x2xf32> -> vector<1x2xf32>
    %283 = vector.broadcast %282 : vector<1x2xf32> to vector<32x2xf32>
    %284 = arith.subf %267, %283 : vector<32x2xf32>
    %285 = arith.mulf %284, %284 : vector<32x2xf32>
    %cst_115 = arith.constant dense<0.000000e+00> : vector<1x2xf32>
    %286 = tpu.matmul %3, %285, %cst_115 {dimension_numbers = #tpu.dot_dimension_numbers<[1], [0], [0], [1], [0, 0, 1, 1], [], []>} : vector<1x32xf32>, vector<32x2xf32>, vector<1x2xf32> -> vector<1x2xf32>
    %cst_116 = arith.constant 9.99999974E-6 : f32
    %287 = vector.broadcast %cst_116 : f32 to vector<1x2xf32>
    %288 = arith.addf %286, %287 : vector<1x2xf32>
    %289 = math.rsqrt %288 : vector<1x2xf32>
    %290 = vector.broadcast %289 : vector<1x2xf32> to vector<32x2xf32>
    %291 = arith.mulf %284, %290 : vector<32x2xf32>
    %292 = vector.broadcast %257 : vector<32x1xf32> to vector<32x2xf32>
    %293 = arith.mulf %291, %292 : vector<32x2xf32>
    %294 = vector.broadcast %258 : vector<32x1xf32> to vector<32x2xf32>
    %295 = arith.addf %293, %294 : vector<32x2xf32>
    %cst_117 = arith.constant dense<0.000000e+00> : vector<2x32xf32>
    %296 = tpu.matmul %295, %281, %cst_117 {dimension_numbers = #tpu.dot_dimension_numbers<[0], [0], [1], [1], [0, 1, 1, 1], [], []>} : vector<32x2xf32>, vector<32x32xf32>, vector<2x32xf32> -> vector<2x32xf32>
    %cst_118 = arith.constant 0.176776692 : f32
    %297 = vector.broadcast %cst_118 : f32 to vector<2x32xf32>
    %298 = arith.mulf %296, %297 : vector<2x32xf32>
    %cst_119 = arith.constant 0.000000e+00 : f32
    %299 = vector.broadcast %cst_119 : f32 to vector<2x32xf32>
    %300 = arith.cmpf ogt, %260, %299 : vector<2x32xf32>
    %cst_120 = arith.constant -1.000000e+30 : f32
    %301 = vector.broadcast %cst_120 : f32 to vector<2x32xf32>
    %302 = arith.select %300, %298, %301 : vector<2x32xi1>, vector<2x32xf32>
    %cst_121 = arith.constant dense<0xFF800000> : vector<2xf32>
    %303 = vector.multi_reduction <maximumf>, %302, %cst_121 [1] : vector<2x32xf32> to vector<2xf32>
    %304 = vector.shape_cast %303 : vector<2xf32> to vector<2x1xf32>
    %305 = vector.broadcast %304 : vector<2x1xf32> to vector<2x32xf32>
    %306 = arith.subf %302, %305 : vector<2x32xf32>
    %307 = math.exp %306 : vector<2x32xf32>
    %308 = arith.mulf %307, %260 : vector<2x32xf32>
    %cst_122 = arith.constant dense<0.000000e+00> : vector<2xf32>
    %309 = vector.multi_reduction <add>, %308, %cst_122 [1] : vector<2x32xf32> to vector<2xf32>
    %310 = vector.shape_cast %309 : vector<2xf32> to vector<2x1xf32>
    %cst_123 = arith.constant 1.000000e+00 : f32
    %311 = vector.broadcast %cst_123 : f32 to vector<2x1xf32>
    %312 = arith.divf %311, %310 : vector<2x1xf32>
    %313 = vector.broadcast %312 : vector<2x1xf32> to vector<2x32xf32>
    %314 = arith.mulf %308, %313 : vector<2x32xf32>
    %cst_124 = arith.constant dense<0.000000e+00> : vector<32xf32>
    %315 = vector.multi_reduction <add>, %314, %cst_124 [0] : vector<2x32xf32> to vector<32xf32>
    %316 = vector.shape_cast %315 : vector<32xf32> to vector<1x32xf32>
    %317 = vector.broadcast %316 : vector<1x32xf32> to vector<128x32xf32>
    %318 = arith.mulf %254, %317 : vector<128x32xf32>
    %cst_125 = arith.constant dense<0.000000e+00> : vector<2x128xf32>
    %319 = tpu.matmul %267, %256, %cst_125 {dimension_numbers = #tpu.dot_dimension_numbers<[0], [0], [1], [1], [0, 1, 1, 1], [], []>} : vector<32x2xf32>, vector<32x128xf32>, vector<2x128xf32> -> vector<2x128xf32>
    %cst_126 = arith.constant dense<0.000000e+00> : vector<2x128xf32>
    %320 = tpu.matmul %1, %318, %cst_126 {dimension_numbers = #tpu.dot_dimension_numbers<[1], [1], [0], [0], [0, 0, 1, 0], [], []>} : vector<2x32xf32>, vector<128x32xf32>, vector<2x128xf32> -> vector<2x128xf32>
    %c0_127 = arith.constant 0 : index
    %c0_128 = arith.constant 0 : index
    %321 = vector.load %arg9[%c0_127, %c0_128] : memref<632x64xf32, #tpu.memory_space<vmem>>, vector<128x64xf32>
    %c128_129 = arith.constant 128 : index
    %c0_130 = arith.constant 0 : index
    %322 = vector.load %arg9[%c128_129, %c0_130] : memref<632x64xf32, #tpu.memory_space<vmem>>, vector<32x64xf32>
    %c160 = arith.constant 160 : index
    %c0_131 = arith.constant 0 : index
    %323 = vector.load %arg9[%c160, %c0_131] : memref<632x64xf32, #tpu.memory_space<vmem>>, vector<64x32xf32>
    %c224 = arith.constant 224 : index
    %c0_132 = arith.constant 0 : index
    %324 = vector.load %arg9[%c224, %c0_132] : memref<632x64xf32, #tpu.memory_space<vmem>>, vector<8x64xf32>
    %325 = vector.extract_strided_slice %324 {offsets = [0, 0], sizes = [1, 64], strides = [1, 1]} : vector<8x64xf32> to vector<1x64xf32>
    %326 = vector.extract_strided_slice %324 {offsets = [1, 0], sizes = [1, 64], strides = [1, 1]} : vector<8x64xf32> to vector<1x64xf32>
    %327 = vector.extract_strided_slice %324 {offsets = [2, 0], sizes = [1, 64], strides = [1, 1]} : vector<8x64xf32> to vector<1x64xf32>
    %328 = vector.extract_strided_slice %324 {offsets = [3, 0], sizes = [1, 32], strides = [1, 1]} : vector<8x64xf32> to vector<1x32xf32>
    %329 = vector.extract_strided_slice %324 {offsets = [4, 0], sizes = [1, 32], strides = [1, 1]} : vector<8x64xf32> to vector<1x32xf32>
    %330 = vector.extract_strided_slice %324 {offsets = [5, 0], sizes = [1, 32], strides = [1, 1]} : vector<8x64xf32> to vector<1x32xf32>
    %331 = vector.extract_strided_slice %324 {offsets = [6, 0], sizes = [1, 32], strides = [1, 1]} : vector<8x64xf32> to vector<1x32xf32>
    %332 = vector.extract_strided_slice %324 {offsets = [7, 0], sizes = [1, 1], strides = [1, 1]} : vector<8x64xf32> to vector<1x1xf32>
    %cst_133 = arith.constant dense<0.000000e+00> : vector<2x64xf32>
    %333 = tpu.matmul %320, %321, %cst_133 {dimension_numbers = #tpu.dot_dimension_numbers<[1], [0], [0], [1], [0, 0, 1, 1], [], []>} : vector<2x128xf32>, vector<128x64xf32>, vector<2x64xf32> -> vector<2x64xf32>
    %cst_134 = arith.constant dense<0.000000e+00> : vector<2x64xf32>
    %334 = tpu.matmul %38, %322, %cst_134 {dimension_numbers = #tpu.dot_dimension_numbers<[1], [0], [0], [1], [0, 0, 1, 1], [], []>} : vector<2x32xf32>, vector<32x64xf32>, vector<2x64xf32> -> vector<2x64xf32>
    %335 = arith.addf %333, %334 : vector<2x64xf32>
    %336 = vector.broadcast %325 : vector<1x64xf32> to vector<2x64xf32>
    %337 = arith.addf %335, %336 : vector<2x64xf32>
    %cst_135 = arith.constant dense<0.000000e+00> : vector<64xf32>
    %338 = vector.multi_reduction <add>, %337, %cst_135 [0] : vector<2x64xf32> to vector<64xf32>
    %339 = vector.shape_cast %338 : vector<64xf32> to vector<1x64xf32>
    %cst_136 = arith.constant 2.000000e+00 : f32
    %340 = vector.broadcast %cst_136 : f32 to vector<1x64xf32>
    %341 = arith.divf %339, %340 : vector<1x64xf32>
    %342 = vector.broadcast %341 : vector<1x64xf32> to vector<2x64xf32>
    %343 = arith.subf %337, %342 : vector<2x64xf32>
    %344 = arith.mulf %343, %343 : vector<2x64xf32>
    %cst_137 = arith.constant dense<0.000000e+00> : vector<64xf32>
    %345 = vector.multi_reduction <add>, %344, %cst_137 [0] : vector<2x64xf32> to vector<64xf32>
    %346 = vector.shape_cast %345 : vector<64xf32> to vector<1x64xf32>
    %cst_138 = arith.constant 2.000000e+00 : f32
    %347 = vector.broadcast %cst_138 : f32 to vector<1x64xf32>
    %348 = arith.divf %346, %347 : vector<1x64xf32>
    %349 = vector.broadcast %341 : vector<1x64xf32> to vector<2x64xf32>
    %350 = arith.subf %337, %349 : vector<2x64xf32>
    %cst_139 = arith.constant 9.99999974E-6 : f32
    %351 = vector.broadcast %cst_139 : f32 to vector<1x64xf32>
    %352 = arith.addf %348, %351 : vector<1x64xf32>
    %353 = math.rsqrt %352 : vector<1x64xf32>
    %354 = vector.broadcast %353 : vector<1x64xf32> to vector<2x64xf32>
    %355 = arith.mulf %350, %354 : vector<2x64xf32>
    %356 = vector.broadcast %326 : vector<1x64xf32> to vector<2x64xf32>
    %357 = arith.mulf %355, %356 : vector<2x64xf32>
    %358 = vector.broadcast %327 : vector<1x64xf32> to vector<2x64xf32>
    %359 = arith.addf %357, %358 : vector<2x64xf32>
    %cst_140 = arith.constant 0.000000e+00 : f32
    %360 = vector.broadcast %cst_140 : f32 to vector<2x64xf32>
    %361 = arith.maximumf %359, %360 : vector<2x64xf32>
    %cst_141 = arith.constant dense<0.000000e+00> : vector<2x32xf32>
    %362 = tpu.matmul %361, %323, %cst_141 {dimension_numbers = #tpu.dot_dimension_numbers<[1], [0], [0], [1], [0, 0, 1, 1], [], []>} : vector<2x64xf32>, vector<64x32xf32>, vector<2x32xf32> -> vector<2x32xf32>
    %363 = vector.broadcast %328 : vector<1x32xf32> to vector<2x32xf32>
    %364 = arith.addf %362, %363 : vector<2x32xf32>
    %cst_142 = arith.constant dense<0.000000e+00> : vector<32xf32>
    %365 = vector.multi_reduction <add>, %364, %cst_142 [0] : vector<2x32xf32> to vector<32xf32>
    %366 = vector.shape_cast %365 : vector<32xf32> to vector<1x32xf32>
    %cst_143 = arith.constant 2.000000e+00 : f32
    %367 = vector.broadcast %cst_143 : f32 to vector<1x32xf32>
    %368 = arith.divf %366, %367 : vector<1x32xf32>
    %369 = vector.broadcast %368 : vector<1x32xf32> to vector<2x32xf32>
    %370 = arith.subf %364, %369 : vector<2x32xf32>
    %371 = arith.mulf %370, %370 : vector<2x32xf32>
    %cst_144 = arith.constant dense<0.000000e+00> : vector<32xf32>
    %372 = vector.multi_reduction <add>, %371, %cst_144 [0] : vector<2x32xf32> to vector<32xf32>
    %373 = vector.shape_cast %372 : vector<32xf32> to vector<1x32xf32>
    %cst_145 = arith.constant 2.000000e+00 : f32
    %374 = vector.broadcast %cst_145 : f32 to vector<1x32xf32>
    %375 = arith.divf %373, %374 : vector<1x32xf32>
    %376 = vector.broadcast %368 : vector<1x32xf32> to vector<2x32xf32>
    %377 = arith.subf %364, %376 : vector<2x32xf32>
    %cst_146 = arith.constant 9.99999974E-6 : f32
    %378 = vector.broadcast %cst_146 : f32 to vector<1x32xf32>
    %379 = arith.addf %375, %378 : vector<1x32xf32>
    %380 = math.rsqrt %379 : vector<1x32xf32>
    %381 = vector.broadcast %380 : vector<1x32xf32> to vector<2x32xf32>
    %382 = arith.mulf %377, %381 : vector<2x32xf32>
    %383 = vector.broadcast %329 : vector<1x32xf32> to vector<2x32xf32>
    %384 = arith.mulf %382, %383 : vector<2x32xf32>
    %385 = vector.broadcast %330 : vector<1x32xf32> to vector<2x32xf32>
    %386 = arith.addf %384, %385 : vector<2x32xf32>
    %cst_147 = arith.constant 0.000000e+00 : f32
    %387 = vector.broadcast %cst_147 : f32 to vector<2x32xf32>
    %388 = arith.maximumf %386, %387 : vector<2x32xf32>
    %389 = vector.broadcast %331 : vector<1x32xf32> to vector<2x32xf32>
    %390 = arith.mulf %388, %389 : vector<2x32xf32>
    %cst_148 = arith.constant dense<0.000000e+00> : vector<2xf32>
    %391 = vector.multi_reduction <add>, %390, %cst_148 [1] : vector<2x32xf32> to vector<2xf32>
    %392 = vector.shape_cast %391 : vector<2xf32> to vector<2x1xf32>
    %393 = vector.broadcast %332 : vector<1x1xf32> to vector<2x1xf32>
    %394 = arith.addf %392, %393 : vector<2x1xf32>
    %c232 = arith.constant 232 : index
    %c0_149 = arith.constant 0 : index
    %395 = vector.load %arg9[%c232, %c0_149] : memref<632x64xf32, #tpu.memory_space<vmem>>, vector<64x64xf32>
    %c296 = arith.constant 296 : index
    %c0_150 = arith.constant 0 : index
    %396 = vector.load %arg9[%c296, %c0_150] : memref<632x64xf32, #tpu.memory_space<vmem>>, vector<32x64xf32>
    %c328 = arith.constant 328 : index
    %c0_151 = arith.constant 0 : index
    %397 = vector.load %arg9[%c328, %c0_151] : memref<632x64xf32, #tpu.memory_space<vmem>>, vector<64x32xf32>
    %c392 = arith.constant 392 : index
    %c0_152 = arith.constant 0 : index
    %398 = vector.load %arg9[%c392, %c0_152] : memref<632x64xf32, #tpu.memory_space<vmem>>, vector<8x64xf32>
    %399 = vector.extract_strided_slice %398 {offsets = [0, 0], sizes = [1, 64], strides = [1, 1]} : vector<8x64xf32> to vector<1x64xf32>
    %400 = vector.extract_strided_slice %398 {offsets = [1, 0], sizes = [1, 64], strides = [1, 1]} : vector<8x64xf32> to vector<1x64xf32>
    %401 = vector.extract_strided_slice %398 {offsets = [2, 0], sizes = [1, 64], strides = [1, 1]} : vector<8x64xf32> to vector<1x64xf32>
    %402 = vector.extract_strided_slice %398 {offsets = [3, 0], sizes = [1, 32], strides = [1, 1]} : vector<8x64xf32> to vector<1x32xf32>
    %403 = vector.extract_strided_slice %398 {offsets = [4, 0], sizes = [1, 32], strides = [1, 1]} : vector<8x64xf32> to vector<1x32xf32>
    %404 = vector.extract_strided_slice %398 {offsets = [5, 0], sizes = [1, 32], strides = [1, 1]} : vector<8x64xf32> to vector<1x32xf32>
    %405 = vector.extract_strided_slice %398 {offsets = [6, 0], sizes = [1, 32], strides = [1, 1]} : vector<8x64xf32> to vector<1x32xf32>
    %406 = vector.extract_strided_slice %398 {offsets = [7, 0], sizes = [1, 1], strides = [1, 1]} : vector<8x64xf32> to vector<1x1xf32>
    %cst_153 = arith.constant dense<0.000000e+00> : vector<2x64xf32>
    %407 = tpu.matmul %248, %395, %cst_153 {dimension_numbers = #tpu.dot_dimension_numbers<[1], [0], [0], [1], [0, 0, 1, 1], [], []>} : vector<2x64xf32>, vector<64x64xf32>, vector<2x64xf32> -> vector<2x64xf32>
    %cst_154 = arith.constant dense<0.000000e+00> : vector<2x64xf32>
    %408 = tpu.matmul %38, %396, %cst_154 {dimension_numbers = #tpu.dot_dimension_numbers<[1], [0], [0], [1], [0, 0, 1, 1], [], []>} : vector<2x32xf32>, vector<32x64xf32>, vector<2x64xf32> -> vector<2x64xf32>
    %409 = arith.addf %407, %408 : vector<2x64xf32>
    %410 = vector.broadcast %399 : vector<1x64xf32> to vector<2x64xf32>
    %411 = arith.addf %409, %410 : vector<2x64xf32>
    %cst_155 = arith.constant dense<0.000000e+00> : vector<64xf32>
    %412 = vector.multi_reduction <add>, %411, %cst_155 [0] : vector<2x64xf32> to vector<64xf32>
    %413 = vector.shape_cast %412 : vector<64xf32> to vector<1x64xf32>
    %cst_156 = arith.constant 2.000000e+00 : f32
    %414 = vector.broadcast %cst_156 : f32 to vector<1x64xf32>
    %415 = arith.divf %413, %414 : vector<1x64xf32>
    %416 = vector.broadcast %415 : vector<1x64xf32> to vector<2x64xf32>
    %417 = arith.subf %411, %416 : vector<2x64xf32>
    %418 = arith.mulf %417, %417 : vector<2x64xf32>
    %cst_157 = arith.constant dense<0.000000e+00> : vector<64xf32>
    %419 = vector.multi_reduction <add>, %418, %cst_157 [0] : vector<2x64xf32> to vector<64xf32>
    %420 = vector.shape_cast %419 : vector<64xf32> to vector<1x64xf32>
    %cst_158 = arith.constant 2.000000e+00 : f32
    %421 = vector.broadcast %cst_158 : f32 to vector<1x64xf32>
    %422 = arith.divf %420, %421 : vector<1x64xf32>
    %423 = vector.broadcast %415 : vector<1x64xf32> to vector<2x64xf32>
    %424 = arith.subf %411, %423 : vector<2x64xf32>
    %cst_159 = arith.constant 9.99999974E-6 : f32
    %425 = vector.broadcast %cst_159 : f32 to vector<1x64xf32>
    %426 = arith.addf %422, %425 : vector<1x64xf32>
    %427 = math.rsqrt %426 : vector<1x64xf32>
    %428 = vector.broadcast %427 : vector<1x64xf32> to vector<2x64xf32>
    %429 = arith.mulf %424, %428 : vector<2x64xf32>
    %430 = vector.broadcast %400 : vector<1x64xf32> to vector<2x64xf32>
    %431 = arith.mulf %429, %430 : vector<2x64xf32>
    %432 = vector.broadcast %401 : vector<1x64xf32> to vector<2x64xf32>
    %433 = arith.addf %431, %432 : vector<2x64xf32>
    %cst_160 = arith.constant 0.000000e+00 : f32
    %434 = vector.broadcast %cst_160 : f32 to vector<2x64xf32>
    %435 = arith.maximumf %433, %434 : vector<2x64xf32>
    %cst_161 = arith.constant dense<0.000000e+00> : vector<2x32xf32>
    %436 = tpu.matmul %435, %397, %cst_161 {dimension_numbers = #tpu.dot_dimension_numbers<[1], [0], [0], [1], [0, 0, 1, 1], [], []>} : vector<2x64xf32>, vector<64x32xf32>, vector<2x32xf32> -> vector<2x32xf32>
    %437 = vector.broadcast %402 : vector<1x32xf32> to vector<2x32xf32>
    %438 = arith.addf %436, %437 : vector<2x32xf32>
    %cst_162 = arith.constant dense<0.000000e+00> : vector<32xf32>
    %439 = vector.multi_reduction <add>, %438, %cst_162 [0] : vector<2x32xf32> to vector<32xf32>
    %440 = vector.shape_cast %439 : vector<32xf32> to vector<1x32xf32>
    %cst_163 = arith.constant 2.000000e+00 : f32
    %441 = vector.broadcast %cst_163 : f32 to vector<1x32xf32>
    %442 = arith.divf %440, %441 : vector<1x32xf32>
    %443 = vector.broadcast %442 : vector<1x32xf32> to vector<2x32xf32>
    %444 = arith.subf %438, %443 : vector<2x32xf32>
    %445 = arith.mulf %444, %444 : vector<2x32xf32>
    %cst_164 = arith.constant dense<0.000000e+00> : vector<32xf32>
    %446 = vector.multi_reduction <add>, %445, %cst_164 [0] : vector<2x32xf32> to vector<32xf32>
    %447 = vector.shape_cast %446 : vector<32xf32> to vector<1x32xf32>
    %cst_165 = arith.constant 2.000000e+00 : f32
    %448 = vector.broadcast %cst_165 : f32 to vector<1x32xf32>
    %449 = arith.divf %447, %448 : vector<1x32xf32>
    %450 = vector.broadcast %442 : vector<1x32xf32> to vector<2x32xf32>
    %451 = arith.subf %438, %450 : vector<2x32xf32>
    %cst_166 = arith.constant 9.99999974E-6 : f32
    %452 = vector.broadcast %cst_166 : f32 to vector<1x32xf32>
    %453 = arith.addf %449, %452 : vector<1x32xf32>
    %454 = math.rsqrt %453 : vector<1x32xf32>
    %455 = vector.broadcast %454 : vector<1x32xf32> to vector<2x32xf32>
    %456 = arith.mulf %451, %455 : vector<2x32xf32>
    %457 = vector.broadcast %403 : vector<1x32xf32> to vector<2x32xf32>
    %458 = arith.mulf %456, %457 : vector<2x32xf32>
    %459 = vector.broadcast %404 : vector<1x32xf32> to vector<2x32xf32>
    %460 = arith.addf %458, %459 : vector<2x32xf32>
    %cst_167 = arith.constant 0.000000e+00 : f32
    %461 = vector.broadcast %cst_167 : f32 to vector<2x32xf32>
    %462 = arith.maximumf %460, %461 : vector<2x32xf32>
    %463 = vector.broadcast %405 : vector<1x32xf32> to vector<2x32xf32>
    %464 = arith.mulf %462, %463 : vector<2x32xf32>
    %cst_168 = arith.constant dense<0.000000e+00> : vector<2xf32>
    %465 = vector.multi_reduction <add>, %464, %cst_168 [1] : vector<2x32xf32> to vector<2xf32>
    %466 = vector.shape_cast %465 : vector<2xf32> to vector<2x1xf32>
    %467 = vector.broadcast %406 : vector<1x1xf32> to vector<2x1xf32>
    %468 = arith.addf %466, %467 : vector<2x1xf32>
    %c400 = arith.constant 400 : index
    %c0_169 = arith.constant 0 : index
    %469 = vector.load %arg9[%c400, %c0_169] : memref<632x64xf32, #tpu.memory_space<vmem>>, vector<128x64xf32>
    %c528 = arith.constant 528 : index
    %c0_170 = arith.constant 0 : index
    %470 = vector.load %arg9[%c528, %c0_170] : memref<632x64xf32, #tpu.memory_space<vmem>>, vector<32x64xf32>
    %c560 = arith.constant 560 : index
    %c0_171 = arith.constant 0 : index
    %471 = vector.load %arg9[%c560, %c0_171] : memref<632x64xf32, #tpu.memory_space<vmem>>, vector<64x32xf32>
    %c624 = arith.constant 624 : index
    %c0_172 = arith.constant 0 : index
    %472 = vector.load %arg9[%c624, %c0_172] : memref<632x64xf32, #tpu.memory_space<vmem>>, vector<8x64xf32>
    %473 = vector.extract_strided_slice %472 {offsets = [0, 0], sizes = [1, 64], strides = [1, 1]} : vector<8x64xf32> to vector<1x64xf32>
    %474 = vector.extract_strided_slice %472 {offsets = [1, 0], sizes = [1, 64], strides = [1, 1]} : vector<8x64xf32> to vector<1x64xf32>
    %475 = vector.extract_strided_slice %472 {offsets = [2, 0], sizes = [1, 64], strides = [1, 1]} : vector<8x64xf32> to vector<1x64xf32>
    %476 = vector.extract_strided_slice %472 {offsets = [3, 0], sizes = [1, 32], strides = [1, 1]} : vector<8x64xf32> to vector<1x32xf32>
    %477 = vector.extract_strided_slice %472 {offsets = [4, 0], sizes = [1, 32], strides = [1, 1]} : vector<8x64xf32> to vector<1x32xf32>
    %478 = vector.extract_strided_slice %472 {offsets = [5, 0], sizes = [1, 32], strides = [1, 1]} : vector<8x64xf32> to vector<1x32xf32>
    %479 = vector.extract_strided_slice %472 {offsets = [6, 0], sizes = [1, 32], strides = [1, 1]} : vector<8x64xf32> to vector<1x32xf32>
    %480 = vector.extract_strided_slice %472 {offsets = [7, 0], sizes = [1, 1], strides = [1, 1]} : vector<8x64xf32> to vector<1x1xf32>
    %cst_173 = arith.constant dense<0.000000e+00> : vector<2x64xf32>
    %481 = tpu.matmul %319, %469, %cst_173 {dimension_numbers = #tpu.dot_dimension_numbers<[1], [0], [0], [1], [0, 0, 1, 1], [], []>} : vector<2x128xf32>, vector<128x64xf32>, vector<2x64xf32> -> vector<2x64xf32>
    %cst_174 = arith.constant dense<0.000000e+00> : vector<2x64xf32>
    %482 = tpu.matmul %38, %470, %cst_174 {dimension_numbers = #tpu.dot_dimension_numbers<[1], [0], [0], [1], [0, 0, 1, 1], [], []>} : vector<2x32xf32>, vector<32x64xf32>, vector<2x64xf32> -> vector<2x64xf32>
    %483 = arith.addf %481, %482 : vector<2x64xf32>
    %484 = vector.broadcast %473 : vector<1x64xf32> to vector<2x64xf32>
    %485 = arith.addf %483, %484 : vector<2x64xf32>
    %cst_175 = arith.constant dense<0.000000e+00> : vector<64xf32>
    %486 = vector.multi_reduction <add>, %485, %cst_175 [0] : vector<2x64xf32> to vector<64xf32>
    %487 = vector.shape_cast %486 : vector<64xf32> to vector<1x64xf32>
    %cst_176 = arith.constant 2.000000e+00 : f32
    %488 = vector.broadcast %cst_176 : f32 to vector<1x64xf32>
    %489 = arith.divf %487, %488 : vector<1x64xf32>
    %490 = vector.broadcast %489 : vector<1x64xf32> to vector<2x64xf32>
    %491 = arith.subf %485, %490 : vector<2x64xf32>
    %492 = arith.mulf %491, %491 : vector<2x64xf32>
    %cst_177 = arith.constant dense<0.000000e+00> : vector<64xf32>
    %493 = vector.multi_reduction <add>, %492, %cst_177 [0] : vector<2x64xf32> to vector<64xf32>
    %494 = vector.shape_cast %493 : vector<64xf32> to vector<1x64xf32>
    %cst_178 = arith.constant 2.000000e+00 : f32
    %495 = vector.broadcast %cst_178 : f32 to vector<1x64xf32>
    %496 = arith.divf %494, %495 : vector<1x64xf32>
    %497 = vector.broadcast %489 : vector<1x64xf32> to vector<2x64xf32>
    %498 = arith.subf %485, %497 : vector<2x64xf32>
    %cst_179 = arith.constant 9.99999974E-6 : f32
    %499 = vector.broadcast %cst_179 : f32 to vector<1x64xf32>
    %500 = arith.addf %496, %499 : vector<1x64xf32>
    %501 = math.rsqrt %500 : vector<1x64xf32>
    %502 = vector.broadcast %501 : vector<1x64xf32> to vector<2x64xf32>
    %503 = arith.mulf %498, %502 : vector<2x64xf32>
    %504 = vector.broadcast %474 : vector<1x64xf32> to vector<2x64xf32>
    %505 = arith.mulf %503, %504 : vector<2x64xf32>
    %506 = vector.broadcast %475 : vector<1x64xf32> to vector<2x64xf32>
    %507 = arith.addf %505, %506 : vector<2x64xf32>
    %cst_180 = arith.constant 0.000000e+00 : f32
    %508 = vector.broadcast %cst_180 : f32 to vector<2x64xf32>
    %509 = arith.maximumf %507, %508 : vector<2x64xf32>
    %cst_181 = arith.constant dense<0.000000e+00> : vector<2x32xf32>
    %510 = tpu.matmul %509, %471, %cst_181 {dimension_numbers = #tpu.dot_dimension_numbers<[1], [0], [0], [1], [0, 0, 1, 1], [], []>} : vector<2x64xf32>, vector<64x32xf32>, vector<2x32xf32> -> vector<2x32xf32>
    %511 = vector.broadcast %476 : vector<1x32xf32> to vector<2x32xf32>
    %512 = arith.addf %510, %511 : vector<2x32xf32>
    %cst_182 = arith.constant dense<0.000000e+00> : vector<32xf32>
    %513 = vector.multi_reduction <add>, %512, %cst_182 [0] : vector<2x32xf32> to vector<32xf32>
    %514 = vector.shape_cast %513 : vector<32xf32> to vector<1x32xf32>
    %cst_183 = arith.constant 2.000000e+00 : f32
    %515 = vector.broadcast %cst_183 : f32 to vector<1x32xf32>
    %516 = arith.divf %514, %515 : vector<1x32xf32>
    %517 = vector.broadcast %516 : vector<1x32xf32> to vector<2x32xf32>
    %518 = arith.subf %512, %517 : vector<2x32xf32>
    %519 = arith.mulf %518, %518 : vector<2x32xf32>
    %cst_184 = arith.constant dense<0.000000e+00> : vector<32xf32>
    %520 = vector.multi_reduction <add>, %519, %cst_184 [0] : vector<2x32xf32> to vector<32xf32>
    %521 = vector.shape_cast %520 : vector<32xf32> to vector<1x32xf32>
    %cst_185 = arith.constant 2.000000e+00 : f32
    %522 = vector.broadcast %cst_185 : f32 to vector<1x32xf32>
    %523 = arith.divf %521, %522 : vector<1x32xf32>
    %524 = vector.broadcast %516 : vector<1x32xf32> to vector<2x32xf32>
    %525 = arith.subf %512, %524 : vector<2x32xf32>
    %cst_186 = arith.constant 9.99999974E-6 : f32
    %526 = vector.broadcast %cst_186 : f32 to vector<1x32xf32>
    %527 = arith.addf %523, %526 : vector<1x32xf32>
    %528 = math.rsqrt %527 : vector<1x32xf32>
    %529 = vector.broadcast %528 : vector<1x32xf32> to vector<2x32xf32>
    %530 = arith.mulf %525, %529 : vector<2x32xf32>
    %531 = vector.broadcast %477 : vector<1x32xf32> to vector<2x32xf32>
    %532 = arith.mulf %530, %531 : vector<2x32xf32>
    %533 = vector.broadcast %478 : vector<1x32xf32> to vector<2x32xf32>
    %534 = arith.addf %532, %533 : vector<2x32xf32>
    %cst_187 = arith.constant 0.000000e+00 : f32
    %535 = vector.broadcast %cst_187 : f32 to vector<2x32xf32>
    %536 = arith.maximumf %534, %535 : vector<2x32xf32>
    %537 = vector.broadcast %479 : vector<1x32xf32> to vector<2x32xf32>
    %538 = arith.mulf %536, %537 : vector<2x32xf32>
    %cst_188 = arith.constant dense<0.000000e+00> : vector<2xf32>
    %539 = vector.multi_reduction <add>, %538, %cst_188 [1] : vector<2x32xf32> to vector<2xf32>
    %540 = vector.shape_cast %539 : vector<2xf32> to vector<2x1xf32>
    %541 = vector.broadcast %480 : vector<1x1xf32> to vector<2x1xf32>
    %542 = arith.addf %540, %541 : vector<2x1xf32>
    %cst_189 = arith.constant 0.000000e+00 : f32
    %543 = vector.broadcast %cst_189 : f32 to vector<1x96xf32>
    %544 = tpu.concatenate %316, %543 in 1 : vector<1x32xf32>, vector<1x96xf32> -> vector<1x128xf32>
    %cst_190 = arith.constant 0.000000e+00 : f32
    %545 = vector.broadcast %cst_190 : f32 to vector<2x125xf32>
    %546 = tpu.concatenate %394, %468, %542, %545 in 1 : vector<2x1xf32>, vector<2x1xf32>, vector<2x1xf32>, vector<2x125xf32> -> vector<2x128xf32>
    %cst_191 = arith.constant 0.000000e+00 : f32
    %547 = vector.broadcast %cst_191 : f32 to vector<2x128xf32>
    %548 = tpu.concatenate %110, %177, %245, %544, %546, %547 in 0 : vector<1x128xf32>, vector<1x128xf32>, vector<1x128xf32>, vector<1x128xf32>, vector<2x128xf32>, vector<2x128xf32> -> vector<8x128xf32>
    %c0_192 = arith.constant 0 : index
    %c0_193 = arith.constant 0 : index
    %549 = vector.load %arg10[%c0_192, %c0_193] : memref<8x128xf32, #tpu.memory_space<vmem>>, vector<8x128xf32>
    tpu.vector_store %arg10[%c0_192, %c0_193], %548 {strides = array<i32>} : memref<8x128xf32, #tpu.memory_space<vmem>>, vector<8x128xf32>,
    return
  }
}

</mosaic_0001>

<llo_original>
// kernel: squeeze.7
$region0: #{squeeze.7}
  %s0 = inlined_call_operand.vmem [shape: f32[32], index: 0, kind: input, shape index: {}]
  %s1 = inlined_call_operand.hbm [shape: f32[2,1,4,4], index: 1, kind: output, shape index: {}]
  $region1: #{squeeze.7} parent=0
    #allocation0 [shape = 'u8[4096]{0}', space=vmem, size = 0x1000, scoped, tag = 'operand span for operand 1']
    #allocation1 [shape = 's32[1]{0}', space=sflag, size = 0x4, scoped, tag = 'scoped memory for squeeze.7']
    #allocation2 [shape = 'u8[8192]{0}', space=vmem, size = 0x2000, scoped, tag = 'scoped mem for output reshape']
    #allocation3 [shape = 'u8[4096]{0}', space=vmem, size = 0x1000, scoped, tag = 'scoped mem for input reshape']
    %2 = vsyncpa [#allocation1], 0
    %s4 = sshllo.u32 0, 1
    %v5 = vld [vmem:[%s0] sm:%s4]
    %6 = vst [vmem:[#allocation3] sm:%s4] %v5
    %v7 = vld [vmem:[#allocation3] sm:$0x1]
    %vm8 = vcmask 31744
    %9 = vst.msk [vmem:[#allocation2] sm:$0x1] %vm8, %v7
    %v10 = vld [vmem:[#allocation3] sm:$0x1]
    %11 = vrot.lane.b32.xlu0 %v10, 124
    %v12 = vpop.permute.xlu0 %11
    %vm13 = vcmask 31744
    %s14 = scalar_lea.vmem [#allocation2], 1
    %15 = vst.msk [vmem:[%s14] sm:$0x1] %vm13, %v12
    %v16 = vld [vmem:[#allocation3] sm:$0x1]
    %17 = vrot.lane.b32.xlu0 %v16, 120
    %v18 = vpop.permute.xlu0 %17
    %vm19 = vcmask 31744
    %s20 = scalar_lea.vmem [#allocation2], 2
    %21 = vst.msk [vmem:[%s20] sm:$0x1] %vm19, %v18
    %v22 = vld [vmem:[#allocation3] sm:$0x1]
    %23 = vrot.lane.b32.xlu0 %v22, 116
    %v24 = vpop.permute.xlu0 %23
    %vm25 = vcmask 31744
    %s26 = scalar_lea.vmem [#allocation2], 3
    %27 = vst.msk [vmem:[%s26] sm:$0x1] %vm25, %v24
    %v28 = vld [vmem:[#allocation3] sm:$0x1]
    %29 = vrot.lane.b32.xlu0 %v28, 112
    %v30 = vpop.permute.xlu0 %29
    %vm31 = vcmask 31744
    %s32 = scalar_lea.vmem [#allocation2], 8
    %33 = vst.msk [vmem:[%s32] sm:$0x1] %vm31, %v30
    %v34 = vld [vmem:[#allocation3] sm:$0x1]
    %35 = vrot.lane.b32.xlu0 %v34, 108
    %v36 = vpop.permute.xlu0 %35
    %vm37 = vcmask 31744
    %s38 = scalar_lea.vmem [#allocation2], 9
    %39 = vst.msk [vmem:[%s38] sm:$0x1] %vm37, %v36
    %v40 = vld [vmem:[#allocation3] sm:$0x1]
    %41 = vrot.lane.b32.xlu0 %v40, 104
    %v42 = vpop.permute.xlu0 %41
    %vm43 = vcmask 31744
    %s44 = scalar_lea.vmem [#allocation2], 10
    %45 = vst.msk [vmem:[%s44] sm:$0x1] %vm43, %v42
    %v46 = vld [vmem:[#allocation3] sm:$0x1]
    %47 = vrot.lane.b32.xlu0 %v46, 100
    %v48 = vpop.permute.xlu0 %47
    %vm49 = vcmask 31744
    %s50 = scalar_lea.vmem [#allocation2], 11
    %51 = vst.msk [vmem:[%s50] sm:$0x1] %vm49, %v48
    %s53 = sshllo.u32 0, 4
    %v55 = vld [vmem:[#allocation2] sm:%s53]
    %s56 = sshllo.u32 0, 4
    %57 = vst [vmem:[#allocation0] sm:%s56] %v55
    %s58 = scalar_lea.vmem [#allocation2], 8
    %v59 = vld [vmem:[%s58] sm:%s53]
    %s60 = sshllo.u32 0, 4
    %s61 = scalar_lea.vmem [#allocation0], 4
    %62 = vst [vmem:[%s61] sm:%s60] %v59
    %s64 = ssub.s32 128, 128
    %65 = vsyncadd [#allocation1], %s64
    %s67 = sshll.u32 [#allocation0], 4
    %s68 = int_to_ptr.vmem [resolvable:$true] %s67
    %70 = dma.vmem_to_hbm [thread:$0]  %s68, 128, %s1, [#allocation1]
    %71 = dma.done [#allocation1], 128
    %72 = vsyncpa [#allocation1], 1

// kernel: squeeze.6
$region0: #{squeeze.6}
  %s0 = inlined_call_operand.vmem [shape: f32[128], index: 0, kind: input, shape index: {}]
  %s1 = inlined_call_operand.hbm [shape: f32[2,1,8,8], index: 1, kind: output, shape index: {}]
  $region1: #{squeeze.6} parent=0
    #allocation0 [shape = 'u8[8192]{0}', space=vmem, size = 0x2000, scoped, tag = 'operand span for operand 1']
    #allocation1 [shape = 's32[1]{0}', space=sflag, size = 0x4, scoped, tag = 'scoped memory for squeeze.6']
    #allocation2 [shape = 'u8[4096]{0}', space=vmem, size = 0x1000, scoped, tag = 'scoped mem for input reshape']
    %2 = vsyncpa [#allocation1], 0
    %s4 = sshllo.u32 0, 1
    %v5 = vld [vmem:[%s0] sm:%s4]
    %6 = vst [vmem:[#allocation2] sm:%s4] %v5
    %v7 = vld [vmem:[#allocation2] sm:$0x1]
    %vm8 = vcmask 64512
    %9 = vst.msk [vmem:[#allocation0] sm:$0x1] %vm8, %v7
    %v10 = vld [vmem:[#allocation2] sm:$0x1]
    %11 = vrot.lane.b32.xlu0 %v10, 120
    %v12 = vpop.permute.xlu0 %11
    %vm13 = vcmask 64512
    %s14 = scalar_lea.vmem [#allocation0], 1
    %15 = vst.msk [vmem:[%s14] sm:$0x1] %vm13, %v12
    %v16 = vld [vmem:[#allocation2] sm:$0x1]
    %17 = vrot.lane.b32.xlu0 %v16, 112
    %v18 = vpop.permute.xlu0 %17
    %vm19 = vcmask 64512
    %s20 = scalar_lea.vmem [#allocation0], 2
    %21 = vst.msk [vmem:[%s20] sm:$0x1] %vm19, %v18
    %v22 = vld [vmem:[#allocation2] sm:$0x1]
    %23 = vrot.lane.b32.xlu0 %v22, 104
    %v24 = vpop.permute.xlu0 %23
    %vm25 = vcmask 64512
    %s26 = scalar_lea.vmem [#allocation0], 3
    %27 = vst.msk [vmem:[%s26] sm:$0x1] %vm25, %v24
    %v28 = vld [vmem:[#allocation2] sm:$0x1]
    %29 = vrot.lane.b32.xlu0 %v28, 96
    %v30 = vpop.permute.xlu0 %29
    %vm31 = vcmask 64512
    %s32 = scalar_lea.vmem [#allocation0], 4
    %33 = vst.msk [vmem:[%s32] sm:$0x1] %vm31, %v30
    %v34 = vld [vmem:[#allocation2] sm:$0x1]
    %35 = vrot.lane.b32.xlu0 %v34, 88
    %v36 = vpop.permute.xlu0 %35
    %vm37 = vcmask 64512
    %s38 = scalar_lea.vmem [#allocation0], 5
    %39 = vst.msk [vmem:[%s38] sm:$0x1] %vm37, %v36
    %v40 = vld [vmem:[#allocation2] sm:$0x1]
    %41 = vrot.lane.b32.xlu0 %v40, 80
    %v42 = vpop.permute.xlu0 %41
    %vm43 = vcmask 64512
    %s44 = scalar_lea.vmem [#allocation0], 6
    %45 = vst.msk [vmem:[%s44] sm:$0x1] %vm43, %v42
    %v46 = vld [vmem:[#allocation2] sm:$0x1]
    %47 = vrot.lane.b32.xlu0 %v46, 72
    %v48 = vpop.permute.xlu0 %47
    %vm49 = vcmask 64512
    %s50 = scalar_lea.vmem [#allocation0], 7
    %51 = vst.msk [vmem:[%s50] sm:$0x1] %vm49, %v48
    %v52 = vld [vmem:[#allocation2] sm:$0x1]
    %53 = vrot.lane.b32.xlu0 %v52, 64
    %v54 = vpop.permute.xlu0 %53
    %vm55 = vcmask 64512
    %s56 = scalar_lea.vmem [#allocation0], 8
    %57 = vst.msk [vmem:[%s56] sm:$0x1] %vm55, %v54
    %v58 = vld [vmem:[#allocation2] sm:$0x1]
    %59 = vrot.lane.b32.xlu0 %v58, 56
    %v60 = vpop.permute.xlu0 %59
    %vm61 = vcmask 64512
    %s62 = scalar_lea.vmem [#allocation0], 9
    %63 = vst.msk [vmem:[%s62] sm:$0x1] %vm61, %v60
    %v64 = vld [vmem:[#allocation2] sm:$0x1]
    %65 = vrot.lane.b32.xlu0 %v64, 48
    %v66 = vpop.permute.xlu0 %65
    %vm67 = vcmask 64512
    %s68 = scalar_lea.vmem [#allocation0], 10
    %69 = vst.msk [vmem:[%s68] sm:$0x1] %vm67, %v66
    %v70 = vld [vmem:[#allocation2] sm:$0x1]
    %71 = vrot.lane.b32.xlu0 %v70, 40
    %v72 = vpop.permute.xlu0 %71
    %vm73 = vcmask 64512
    %s74 = scalar_lea.vmem [#allocation0], 11
    %75 = vst.msk [vmem:[%s74] sm:$0x1] %vm73, %v72
    %v76 = vld [vmem:[#allocation2] sm:$0x1]
    %77 = vrot.lane.b32.xlu0 %v76, 32
    %v78 = vpop.permute.xlu0 %77
    %vm79 = vcmask 64512
    %s80 = scalar_lea.vmem [#allocation0], 12
    %81 = vst.msk [vmem:[%s80] sm:$0x1] %vm79, %v78
    %v82 = vld [vmem:[#allocation2] sm:$0x1]
    %83 = vrot.lane.b32.xlu0 %v82, 24
    %v84 = vpop.permute.xlu0 %83
    %vm85 = vcmask 64512
    %s86 = scalar_lea.vmem [#allocation0], 13
    %87 = vst.msk [vmem:[%s86] sm:$0x1] %vm85, %v84
    %v88 = vld [vmem:[#allocation2] sm:$0x1]
    %89 = vrot.lane.b32.xlu0 %v88, 16
    %v90 = vpop.permute.xlu0 %89
    %vm91 = vcmask 64512
    %s92 = scalar_lea.vmem [#allocation0], 14
    %93 = vst.msk [vmem:[%s92] sm:$0x1] %vm91, %v90
    %v94 = vld [vmem:[#allocation2] sm:$0x1]
    %95 = vrot.lane.b32.xlu0 %v94, 8
    %v96 = vpop.permute.xlu0 %95
    %vm97 = vcmask 64512
    %s98 = scalar_lea.vmem [#allocation0], 15
    %99 = vst.msk [vmem:[%s98] sm:$0x1] %vm97, %v96
    %s101 = ssub.s32 256, 256
    %102 = vsyncadd [#allocation1], %s101
    %s104 = sshll.u32 [#allocation0], 4
    %s105 = int_to_ptr.vmem [resolvable:$true] %s104
    %107 = dma.vmem_to_hbm [thread:$0]  %s105, 256, %s1, [#allocation1]
    %108 = dma.done [#allocation1], 256
    %109 = vsyncpa [#allocation1], 1

// kernel: student_gcn_forward.1
$region0: #{student_gcn_forward.1}
  #allocation0 [shape = 'u32[]', space=smem, size = 0x4, offset = 0x4, fixed_abs, tag = 'smem constant byte address 0x4 - core index']
  #allocation1 [shape = 'u32[144,128]{1,0:T(1,128)}', space=vmem, size = 0x12000, scoped, tag = 'internal scratch']
  %s0 = inlined_call_operand.vmem [shape: f32[4,512], index: 0, kind: input, shape index: {}]
  %s1 = inlined_call_operand.vmem [shape: f32[2,1], index: 1, kind: input, shape index: {}]
  %s2 = inlined_call_operand.vmem [shape: f32[384,64], index: 2, kind: input, shape index: {}]
  %s3 = inlined_call_operand.vmem [shape: f32[2,160], index: 3, kind: input, shape index: {}]
  %s4 = inlined_call_operand.vmem [shape: f32[240,64], index: 4, kind: input, shape index: {}]
  %s5 = inlined_call_operand.vmem [shape: f32[128,128], index: 5, kind: input, shape index: {}]
  %s6 = inlined_call_operand.vmem [shape: f32[128,128], index: 6, kind: input, shape index: {}]
  %s7 = inlined_call_operand.vmem [shape: f32[32,8], index: 7, kind: input, shape index: {}]
  %s8 = inlined_call_operand.vmem [shape: f32[4,32], index: 8, kind: input, shape index: {}]
  %s9 = inlined_call_operand.vmem [shape: f32[632,64], index: 9, kind: input, shape index: {}]
  %s10 = inlined_call_operand.vmem [shape: f32[8,128], index: 10, kind: output, shape index: {}]
  %s11 = sld [smem:[#allocation0]]
  $region50: #{student_gcn_forward.1} parent=0
    _
  %s13 = ssub.s32 1, %s11
  %s14 = scalar_select 0, %s13, %s11
  // Predicated region
  $region2: #{student_gcn_forward.1} parent=0 // pred_check
    _
  $region3: #{student_gcn_forward.1} parent=0 // pred_check_branch
    %16 = sbr.rel (0) target = $region5
  $region4: #{student_gcn_forward.1} parent=0 // pred_region
    _
  $region5: #{student_gcn_forward.1} parent=0 // pred_fallthru
    _
  // Predicated region
  $region6: #{student_gcn_forward.1} parent=0 // pred_check
    _
  $region7: #{student_gcn_forward.1} parent=0 // pred_check_branch
    %18 = sbr.rel (0) target = $region9
  $region8: #{student_gcn_forward.1} parent=0 // pred_region
    _
  $region9: #{student_gcn_forward.1} parent=0 // pred_fallthru
    _
  // Predicated region
  $region10: #{student_gcn_forward.1} parent=0 // pred_check
    _
  $region11: #{student_gcn_forward.1} parent=0 // pred_check_branch
    %20 = sbr.rel (0) target = $region13
  $region12: #{student_gcn_forward.1} parent=0 // pred_region
    _
  $region13: #{student_gcn_forward.1} parent=0 // pred_fallthru
    _
  // Predicated region
  $region14: #{student_gcn_forward.1} parent=0 // pred_check
    _
  $region15: #{student_gcn_forward.1} parent=0 // pred_check_branch
    %22 = sbr.rel (0) target = $region17
  $region16: #{student_gcn_forward.1} parent=0 // pred_region
    _
  $region17: #{student_gcn_forward.1} parent=0 // pred_fallthru
    _
  // Predicated region
  $region18: #{student_gcn_forward.1} parent=0 // pred_check
    _
  $region19: #{student_gcn_forward.1} parent=0 // pred_check_branch
    %24 = sbr.rel (0) target = $region21
  $region20: #{student_gcn_forward.1} parent=0 // pred_region
    _
  $region21: #{student_gcn_forward.1} parent=0 // pred_fallthru
    _
  // Predicated region
  $region22: #{student_gcn_forward.1} parent=0 // pred_check
    _
  $region23: #{student_gcn_forward.1} parent=0 // pred_check_branch
    %26 = sbr.rel (0) target = $region25
  $region24: #{student_gcn_forward.1} parent=0 // pred_region
    _
  $region25: #{student_gcn_forward.1} parent=0 // pred_fallthru
    _
  // Predicated region
  $region26: #{student_gcn_forward.1} parent=0 // pred_check
    _
  $region27: #{student_gcn_forward.1} parent=0 // pred_check_branch
    %28 = sbr.rel (0) target = $region29
  $region28: #{student_gcn_forward.1} parent=0 // pred_region
    _
  $region29: #{student_gcn_forward.1} parent=0 // pred_fallthru
    _
  // Predicated region
  $region30: #{student_gcn_forward.1} parent=0 // pred_check
    _
  $region31: #{student_gcn_forward.1} parent=0 // pred_check_branch
    %30 = sbr.rel (0) target = $region33
  $region32: #{student_gcn_forward.1} parent=0 // pred_region
    _
  $region33: #{student_gcn_forward.1} parent=0 // pred_fallthru
    _
  // Predicated region
  $region34: #{student_gcn_forward.1} parent=0 // pred_check
    _
  $region35: #{student_gcn_forward.1} parent=0 // pred_check_branch
    %32 = sbr.rel (0) target = $region37
  $region36: #{student_gcn_forward.1} parent=0 // pred_region
    _
  $region37: #{student_gcn_forward.1} parent=0 // pred_fallthru
    _
  // Predicated region
  $region38: #{student_gcn_forward.1} parent=0 // pred_check
    _
  $region39: #{student_gcn_forward.1} parent=0 // pred_check_branch
    %34 = sbr.rel (0) target = $region41
  $region40: #{student_gcn_forward.1} parent=0 // pred_region
    _
  $region41: #{student_gcn_forward.1} parent=0 // pred_fallthru
    _
  %v35 = vld [vmem:[%s3] sm:$0x3]
  %v36 = vld [vmem:[%s3 + $0x2] sm:$0x3]
  %v37 = vld [vmem:[%s7] sm:$0xff]
  %v38 = vld [vmem:[%s7 + $0x8] sm:$0xff]
  %v39 = vld [vmem:[%s7 + $0x10] sm:$0xff]
  %v40 = vld [vmem:[%s7 + $0x18] sm:$0xff]
  %v41 = vld [vmem:[%s8] sm:$0xf]
  %v42 = vld [vmem:[%s1] sm:$0x3]
  %44 = vset.pattern.permute.xlu0 0
  %45 = vperm.xlu0 %44, %v42
  %v46 = vpop.permute.xlu0 %45
  %v48 = vlaneseq
  %v49 = vshrl.u32 %v48, 7
  %v50 = vsub.s32 0, %v49
  %v51 = vrot.slane %v41, %v50
  %v52 = vmul.f32 %v46, %v51
  %v53 = vlaneseq
  %v54 = vshrl.u32 %v53, 7
  %v55 = vsub.s32 1, %v54
  %v56 = vrot.slane %v41, %v55
  %v57 = vadd.f32 %v52, %v56
  %vm58 = vcmask 254976
  %v59 = vsel %vm58, %v57, 0.0
  %v60 = vrot.slane %v59, 4
  %v61 = vadd.f32 %v59, %v60
  %v62 = vrot.slane %v61, 2
  %v63 = vadd.f32 %v61, %v62
  %v64 = vrot.slane %v63, 1
  %v65 = vadd.f32 %v63, %v64
  %v66 = vrcp.pop 2.0
  %v67 = vmul.f32 %v65, %v66
  %v68 = vsub.f32 %v57, %v67
  %v69 = vmul.f32 %v68, %v68
  %v70 = vsel %vm58, %v69, 0.0
  %v71 = vrot.slane %v70, 4
  %v72 = vadd.f32 %v70, %v71
  %v73 = vrot.slane %v72, 2
  %v74 = vadd.f32 %v72, %v73
  %v75 = vrot.slane %v74, 1
  %v76 = vadd.f32 %v74, %v75
  %v77 = vmul.f32 %v76, %v66
  %v78 = vadd.f32 %v77, 1e-05
  %v79 = vrsqrt.pop %v78
  %v80 = vmul.f32 %v68, %v79
  %v81 = vlaneseq
  %v82 = vshrl.u32 %v81, 7
  %v83 = vsub.s32 2, %v82
  %v84 = vrot.slane %v41, %v83
  %v85 = vmul.f32 %v80, %v84
  %v86 = vlaneseq
  %v87 = vshrl.u32 %v86, 7
  %v88 = vsub.s32 3, %v87
  %v89 = vrot.slane %v41, %v88
  %v90 = vadd.f32 %v85, %v89
  %v91 = vmax.f32 %v90, 0.0
  %v92 = vld [vmem:[%s0] sm:$0xff]
  %v93 = vld [vmem:[%s0 + $0x8] sm:$0xff]
  %v94 = vld [vmem:[%s4] sm:$0xff]
  %v95 = vld [vmem:[%s4 + $0x8] sm:$0xff]
  %v98 = vcombine.high %v92, %v92
  %v99 = vcombine.high %v93, %v93
  %vm100 = vcmask 31744
  %v102 = vsel %vm100, %v94, 0
  %v105 = vsel %vm100, %v95, 0
  %vm107 = vcmask 1043456
  %v108 = vsel %vm107, %v92, 0
  %v110 = vsel %vm107, %v98, 0
  %v112 = vsel %vm107, %v93, 0
  %v114 = vsel %vm107, %v99, 0
  %116 = vmatprep.subr.mxu0 %v110
  %117 = vmatpush1.msra.mxu0 %v108
  %118 = vmatprep.subr.mxu0 0.0
  %119 = vmatpush1.msra.mxu0 0.0
  %120 = vmatprep.subr.mxu0 0.0
  %121 = vmatpush1.msra.mxu0 0.0
  %122 = vmatprep.subr.mxu0 0.0
  %123 = vmatpush1.msra.mxu0 0.0
  %124 = vmatprep.subr.mxu0 0.0
  %125 = vmatpush1.msra.mxu0 0.0
  %126 = vmatprep.subr.mxu0 0.0
  %127 = vmatpush1.msra.mxu0 0.0
  %128 = vmatprep.subr.mxu0 0.0
  %129 = vmatpush1.msra.mxu0 0.0
  %130 = vmatprep.subr.mxu0 0.0
  %131 = vmatpush1.msra.mxu0 0.0
  %132 = vmatprep.subr.mxu0 0.0
  %133 = vmatpush1.msra.mxu0 0.0
  %134 = vmatprep.subr.mxu0 0.0
  %135 = vmatpush1.msra.mxu0 0.0
  %136 = vmatprep.subr.mxu0 0.0
  %137 = vmatpush1.msra.mxu0 0.0
  %138 = vmatprep.subr.mxu0 0.0
  %139 = vmatpush1.msra.mxu0 0.0
  %140 = vmatprep.subr.mxu0 0.0
  %141 = vmatpush1.msra.mxu0 0.0
  %142 = vmatprep.subr.mxu0 0.0
  %143 = vmatpush1.msra.mxu0 0.0
  %144 = vmatprep.subr.mxu0 0.0
  %145 = vmatpush1.msra.mxu0 0.0
  %146 = vmatprep.subr.mxu0 0.0
  %147 = vmatpush1.msra.mxu0 0.0
  %148 = vmatprep.subr.mxu0 0.0
  %149 = vmatpush1.msra.mxu0 0.0
  %150 = vmatprep.subr.mxu0 0.0
  %151 = vmatpush1.msra.mxu0 0.0
  %152 = vmatprep.subr.mxu0 0.0
  %153 = vmatpush1.msra.mxu0 0.0
  %154 = vmatprep.subr.mxu0 0.0
  %155 = vmatpush1.msra.mxu0 0.0
  %156 = vmatprep.subr.mxu0 0.0
  %157 = vmatpush1.msra.mxu0 0.0
  %158 = vmatprep.subr.mxu0 0.0
  %159 = vmatpush1.msra.mxu0 0.0
  %160 = vmatprep.subr.mxu0 0.0
  %161 = vmatpush1.msra.mxu0 0.0
  %162 = vmatprep.subr.mxu0 0.0
  %163 = vmatpush1.msra.mxu0 0.0
  %164 = vmatprep.subr.mxu0 0.0
  %165 = vmatpush1.msra.mxu0 0.0
  %166 = vmatprep.subr.mxu0 0.0
  %167 = vmatpush1.msra.mxu0 0.0
  %168 = vmatprep.subr.mxu0 0.0
  %169 = vmatpush1.msra.mxu0 0.0
  %170 = vmatprep.subr.mxu0 0.0
  %171 = vmatpush1.msra.mxu0 0.0
  %172 = vmatprep.subr.mxu0 0.0
  %173 = vmatpush1.msra.mxu0 0.0
  %174 = vmatprep.subr.mxu0 0.0
  %175 = vmatpush1.msra.mxu0 0.0
  %176 = vmatprep.subr.mxu0 0.0
  %177 = vmatpush1.msra.mxu0 0.0
  %178 = vmatprep.subr.mxu0 0.0
  %179 = vmatpush1.msra.mxu0 0.0
  %180 = vmatprep.mubr.f32.mxu0 0.0
  %181 = vmatmul.mubr.f32.gmra.mrb[0].mxu0 %v102
  %v182 = vpop.f32.mrb[0].mxu0
  %v183 = vadd.f32 0.0, %v182
  %v184 = vpop.f32.mrb[0].mxu0
  %v185 = vadd.f32 0.0, %v184
  %186 = vmatprep.mubr.f32.mxu0 0.0
  %187 = vmatmul.mubr.f32.gmra.mrb[0].mxu0 %v105
  %v188 = vpop.f32.mrb[0].mxu0
  %v189 = vadd.f32 0.0, %v188
  %v190 = vpop.f32.mrb[0].mxu0
  %v191 = vadd.f32 0.0, %v190
  %192 = vdwg.mxu0
  %193 = vmatprep.subr.mxu0 %v114
  %194 = vmatpush1.msra.mxu0 %v112
  %195 = vmatprep.subr.mxu0 0.0
  %196 = vmatpush1.msra.mxu0 0.0
  %197 = vmatprep.subr.mxu0 0.0
  %198 = vmatpush1.msra.mxu0 0.0
  %199 = vmatprep.subr.mxu0 0.0
  %200 = vmatpush1.msra.mxu0 0.0
  %201 = vmatprep.subr.mxu0 0.0
  %202 = vmatpush1.msra.mxu0 0.0
  %203 = vmatprep.subr.mxu0 0.0
  %204 = vmatpush1.msra.mxu0 0.0
  %205 = vmatprep.subr.mxu0 0.0
  %206 = vmatpush1.msra.mxu0 0.0
  %207 = vmatprep.subr.mxu0 0.0
  %208 = vmatpush1.msra.mxu0 0.0
  %209 = vmatprep.subr.mxu0 0.0
  %210 = vmatpush1.msra.mxu0 0.0
  %211 = vmatprep.subr.mxu0 0.0
  %212 = vmatpush1.msra.mxu0 0.0
  %213 = vmatprep.subr.mxu0 0.0
  %214 = vmatpush1.msra.mxu0 0.0
  %215 = vmatprep.subr.mxu0 0.0
  %216 = vmatpush1.msra.mxu0 0.0
  %217 = vmatprep.subr.mxu0 0.0
  %218 = vmatpush1.msra.mxu0 0.0
  %219 = vmatprep.subr.mxu0 0.0
  %220 = vmatpush1.msra.mxu0 0.0
  %221 = vmatprep.subr.mxu0 0.0
  %222 = vmatpush1.msra.mxu0 0.0
  %223 = vmatprep.subr.mxu0 0.0
  %224 = vmatpush1.msra.mxu0 0.0
  %225 = vmatprep.subr.mxu0 0.0
  %226 = vmatpush1.msra.mxu0 0.0
  %227 = vmatprep.subr.mxu0 0.0
  %228 = vmatpush1.msra.mxu0 0.0
  %229 = vmatprep.subr.mxu0 0.0
  %230 = vmatpush1.msra.mxu0 0.0
  %231 = vmatprep.subr.mxu0 0.0
  %232 = vmatpush1.msra.mxu0 0.0
  %233 = vmatprep.subr.mxu0 0.0
  %234 = vmatpush1.msra.mxu0 0.0
  %235 = vmatprep.subr.mxu0 0.0
  %236 = vmatpush1.msra.mxu0 0.0
  %237 = vmatprep.subr.mxu0 0.0
  %238 = vmatpush1.msra.mxu0 0.0
  %239 = vmatprep.subr.mxu0 0.0
  %240 = vmatpush1.msra.mxu0 0.0
  %241 = vmatprep.subr.mxu0 0.0
  %242 = vmatpush1.msra.mxu0 0.0
  %243 = vmatprep.subr.mxu0 0.0
  %244 = vmatpush1.msra.mxu0 0.0
  %245 = vmatprep.subr.mxu0 0.0
  %246 = vmatpush1.msra.mxu0 0.0
  %247 = vmatprep.subr.mxu0 0.0
  %248 = vmatpush1.msra.mxu0 0.0
  %249 = vmatprep.subr.mxu0 0.0
  %250 = vmatpush1.msra.mxu0 0.0
  %251 = vmatprep.subr.mxu0 0.0
  %252 = vmatpush1.msra.mxu0 0.0
  %253 = vmatprep.subr.mxu0 0.0
  %254 = vmatpush1.msra.mxu0 0.0
  %255 = vmatprep.subr.mxu0 0.0
  %256 = vmatpush1.msra.mxu0 0.0
  %257 = vmatprep.mubr.f32.mxu0 0.0
  %258 = vmatmul.mubr.f32.gmra.mrb[0].mxu0 %v102
  %v259 = vpop.f32.mrb[0].mxu0
  %v260 = vadd.f32 0.0, %v259
  %v261 = vpop.f32.mrb[0].mxu0
  %v262 = vadd.f32 0.0, %v261
  %263 = vmatprep.mubr.f32.mxu0 0.0
  %264 = vmatmul.mubr.f32.gmra.mrb[0].mxu0 %v105
  %v265 = vpop.f32.mrb[0].mxu0
  %v266 = vadd.f32 0.0, %v265
  %v267 = vpop.f32.mrb[0].mxu0
  %v268 = vadd.f32 0.0, %v267
  %269 = vdwg.mxu0
  %v270 = vmax.f32 %v183, 0.0
  %v271 = vmax.f32 %v185, 0.0
  %v272 = vmax.f32 %v260, 0.0
  %v273 = vmax.f32 %v262, 0.0
  %v274 = vmax.f32 %v189, 0.0
  %v275 = vmax.f32 %v191, 0.0
  %v276 = vmax.f32 %v266, 0.0
  %v277 = vmax.f32 %v268, 0.0
  %v278 = vld [vmem:[%s2] sm:$0xff]
  %v279 = vld [vmem:[%s2 + $0x8] sm:$0xff]
  %v280 = vld [vmem:[%s2 + $0x10] sm:$0xff]
  %v281 = vld [vmem:[%s2 + $0x18] sm:$0xff]
  %v282 = vld [vmem:[%s2 + $0x20] sm:$0xff]
  %v283 = vld [vmem:[%s2 + $0x28] sm:$0xff]
  %v284 = vld [vmem:[%s2 + $0x30] sm:$0xff]
  %v285 = vld [vmem:[%s2 + $0x38] sm:$0xff]
  %v286 = vld [vmem:[%s2 + $0x40] sm:$0xff]
  %v287 = vld [vmem:[%s2 + $0x48] sm:$0xff]
  %v288 = vld [vmem:[%s2 + $0x50] sm:$0xff]
  %v289 = vld [vmem:[%s2 + $0x58] sm:$0xff]
  %v290 = vld [vmem:[%s2 + $0x60] sm:$0xff]
  %v291 = vld [vmem:[%s2 + $0x68] sm:$0xff]
  %v292 = vld [vmem:[%s2 + $0x70] sm:$0xff]
  %v293 = vld [vmem:[%s2 + $0x78] sm:$0xff]
  %v294 = vld [vmem:[%s2 + $0x80] sm:$0xff]
  %v295 = vld [vmem:[%s2 + $0x88] sm:$0xff]
  %v296 = vld [vmem:[%s2 + $0x90] sm:$0xff]
  %v297 = vld [vmem:[%s2 + $0x98] sm:$0xff]
  %v298 = vld [vmem:[%s2 + $0xa0] sm:$0xff]
  %v299 = vld [vmem:[%s2 + $0xa8] sm:$0xff]
  %v300 = vld [vmem:[%s2 + $0xb0] sm:$0xff]
  %v301 = vld [vmem:[%s2 + $0xb8] sm:$0xff]
  %v302 = vld [vmem:[%s2 + $0xc0] sm:$0xff]
  %v303 = vld [vmem:[%s2 + $0xc8] sm:$0xff]
  %v304 = vld [vmem:[%s2 + $0xd0] sm:$0xff]
  %v305 = vld [vmem:[%s2 + $0xd8] sm:$0xff]
  %v306 = vld [vmem:[%s2 + $0xe0] sm:$0xff]
  %v307 = vld [vmem:[%s2 + $0xe8] sm:$0xff]
  %v308 = vld [vmem:[%s2 + $0xf0] sm:$0xff]
  %v309 = vld [vmem:[%s2 + $0xf8] sm:$0xff]
  %310 = vmatprep.subr.mxu0 0.0
  %311 = vmatpush1.msra.mxu0 %v278
  %312 = vmatprep.subr.mxu0 0.0
  %313 = vmatpush1.msra.mxu0 %v279
  %314 = vmatprep.subr.mxu0 0.0
  %315 = vmatpush1.msra.mxu0 %v280
  %316 = vmatprep.subr.mxu0 0.0
  %317 = vmatpush1.msra.mxu0 %v281
  %318 = vmatprep.subr.mxu0 0.0
  %319 = vmatpush1.msra.mxu0 %v282
  %320 = vmatprep.subr.mxu0 0.0
  %321 = vmatpush1.msra.mxu0 %v283
  %322 = vmatprep.subr.mxu0 0.0
  %323 = vmatpush1.msra.mxu0 %v284
  %324 = vmatprep.subr.mxu0 0.0
  %325 = vmatpush1.msra.mxu0 %v285
  %326 = vmatprep.subr.mxu0 0.0
  %327 = vmatpush1.msra.mxu0 %v286
  %328 = vmatprep.subr.mxu0 0.0
  %329 = vmatpush1.msra.mxu0 %v287
  %330 = vmatprep.subr.mxu0 0.0
  %331 = vmatpush1.msra.mxu0 %v288
  %332 = vmatprep.subr.mxu0 0.0
  %333 = vmatpush1.msra.mxu0 %v289
  %334 = vmatprep.subr.mxu0 0.0
  %335 = vmatpush1.msra.mxu0 %v290
  %336 = vmatprep.subr.mxu0 0.0
  %337 = vmatpush1.msra.mxu0 %v291
  %338 = vmatprep.subr.mxu0 0.0
  %339 = vmatpush1.msra.mxu0 %v292
  %340 = vmatprep.subr.mxu0 0.0
  %341 = vmatpush1.msra.mxu0 %v293
  %342 = vmatprep.subr.mxu0 0.0
  %343 = vmatpush1.msra.mxu0 %v294
  %344 = vmatprep.subr.mxu0 0.0
  %345 = vmatpush1.msra.mxu0 %v295
  %346 = vmatprep.subr.mxu0 0.0
  %347 = vmatpush1.msra.mxu0 %v296
  %348 = vmatprep.subr.mxu0 0.0
  %349 = vmatpush1.msra.mxu0 %v297
  %350 = vmatprep.subr.mxu0 0.0
  %351 = vmatpush1.msra.mxu0 %v298
  %352 = vmatprep.subr.mxu0 0.0
  %353 = vmatpush1.msra.mxu0 %v299
  %354 = vmatprep.subr.mxu0 0.0
  %355 = vmatpush1.msra.mxu0 %v300
  %356 = vmatprep.subr.mxu0 0.0
  %357 = vmatpush1.msra.mxu0 %v301
  %358 = vmatprep.subr.mxu0 0.0
  %359 = vmatpush1.msra.mxu0 %v302
  %360 = vmatprep.subr.mxu0 0.0
  %361 = vmatpush1.msra.mxu0 %v303
  %362 = vmatprep.subr.mxu0 0.0
  %363 = vmatpush1.msra.mxu0 %v304
  %364 = vmatprep.subr.mxu0 0.0
  %365 = vmatpush1.msra.mxu0 %v305
  %366 = vmatprep.subr.mxu0 0.0
  %367 = vmatpush1.msra.mxu0 %v306
  %368 = vmatprep.subr.mxu0 0.0
  %369 = vmatpush1.msra.mxu0 %v307
  %370 = vmatprep.subr.mxu0 0.0
  %371 = vmatpush1.msra.mxu0 %v308
  %372 = vmatprep.subr.mxu0 0.0
  %373 = vmatpush1.msra.mxu0 %v309
  %374 = vmatprep.mubr.f32.mxu0 %v271
  %375 = vmatmul.mubr.f32.gmra.mrb[0].mxu0 %v270
  %v376 = vpop.f32.mrb[0].mxu0
  %v377 = vadd.f32 0.0, %v376
  %v378 = vpop.f32.mrb[0].mxu0
  %379 = vmatprep.mubr.f32.mxu0 %v275
  %380 = vmatmul.mubr.f32.gmra.mrb[0].mxu0 %v274
  %v381 = vpop.f32.mrb[0].mxu0
  %v382 = vadd.f32 0.0, %v381
  %v383 = vpop.f32.mrb[0].mxu0
  %384 = vdwg.mxu0
  %385 = vmatprep.subr.mxu0 0.0
  %386 = vmatpush1.msra.mxu0 %v278
  %387 = vmatprep.subr.mxu0 0.0
  %388 = vmatpush1.msra.mxu0 %v279
  %389 = vmatprep.subr.mxu0 0.0
  %390 = vmatpush1.msra.mxu0 %v280
  %391 = vmatprep.subr.mxu0 0.0
  %392 = vmatpush1.msra.mxu0 %v281
  %393 = vmatprep.subr.mxu0 0.0
  %394 = vmatpush1.msra.mxu0 %v282
  %395 = vmatprep.subr.mxu0 0.0
  %396 = vmatpush1.msra.mxu0 %v283
  %397 = vmatprep.subr.mxu0 0.0
  %398 = vmatpush1.msra.mxu0 %v284
  %399 = vmatprep.subr.mxu0 0.0
  %400 = vmatpush1.msra.mxu0 %v285
  %401 = vmatprep.subr.mxu0 0.0
  %402 = vmatpush1.msra.mxu0 %v286
  %403 = vmatprep.subr.mxu0 0.0
  %404 = vmatpush1.msra.mxu0 %v287
  %405 = vmatprep.subr.mxu0 0.0
  %406 = vmatpush1.msra.mxu0 %v288
  %407 = vmatprep.subr.mxu0 0.0
  %408 = vmatpush1.msra.mxu0 %v289
  %409 = vmatprep.subr.mxu0 0.0
  %410 = vmatpush1.msra.mxu0 %v290
  %411 = vmatprep.subr.mxu0 0.0
  %412 = vmatpush1.msra.mxu0 %v291
  %413 = vmatprep.subr.mxu0 0.0
  %414 = vmatpush1.msra.mxu0 %v292
  %415 = vmatprep.subr.mxu0 0.0
  %416 = vmatpush1.msra.mxu0 %v293
  %417 = vmatprep.subr.mxu0 0.0
  %418 = vmatpush1.msra.mxu0 %v294
  %419 = vmatprep.subr.mxu0 0.0
  %420 = vmatpush1.msra.mxu0 %v295
  %421 = vmatprep.subr.mxu0 0.0
  %422 = vmatpush1.msra.mxu0 %v296
  %423 = vmatprep.subr.mxu0 0.0
  %424 = vmatpush1.msra.mxu0 %v297
  %425 = vmatprep.subr.mxu0 0.0
  %426 = vmatpush1.msra.mxu0 %v298
  %427 = vmatprep.subr.mxu0 0.0
  %428 = vmatpush1.msra.mxu0 %v299
  %429 = vmatprep.subr.mxu0 0.0
  %430 = vmatpush1.msra.mxu0 %v300
  %431 = vmatprep.subr.mxu0 0.0
  %432 = vmatpush1.msra.mxu0 %v301
  %433 = vmatprep.subr.mxu0 0.0
  %434 = vmatpush1.msra.mxu0 %v302
  %435 = vmatprep.subr.mxu0 0.0
  %436 = vmatpush1.msra.mxu0 %v303
  %437 = vmatprep.subr.mxu0 0.0
  %438 = vmatpush1.msra.mxu0 %v304
  %439 = vmatprep.subr.mxu0 0.0
  %440 = vmatpush1.msra.mxu0 %v305
  %441 = vmatprep.subr.mxu0 0.0
  %442 = vmatpush1.msra.mxu0 %v306
  %443 = vmatprep.subr.mxu0 0.0
  %444 = vmatpush1.msra.mxu0 %v307
  %445 = vmatprep.subr.mxu0 0.0
  %446 = vmatpush1.msra.mxu0 %v308
  %447 = vmatprep.subr.mxu0 0.0
  %448 = vmatpush1.msra.mxu0 %v309
  %449 = vmatprep.mubr.f32.mxu0 %v273
  %450 = vmatmul.mubr.f32.gmra.mrb[0].mxu0 %v272
  %v451 = vpop.f32.mrb[0].mxu0
  %v452 = vadd.f32 0.0, %v451
  %v453 = vpop.f32.mrb[0].mxu0
  %454 = vmatprep.mubr.f32.mxu0 %v277
  %455 = vmatmul.mubr.f32.gmra.mrb[0].mxu0 %v276
  %v456 = vpop.f32.mrb[0].mxu0
  %v457 = vadd.f32 0.0, %v456
  %v458 = vpop.f32.mrb[0].mxu0
  %459 = vdwg.mxu0
  %462 = vrot.lane.b32.xlu0 %v452, 64
  %v463 = vpop.permute.xlu0 %462
  %464 = vrot.lane.b32.xlu0 %v457, 64
  %v465 = vpop.permute.xlu0 %464
  %vm468 = vcmask 523264
  %v469 = vsel %vm468, %v377, %v463
  %v470 = vsel %vm468, %v382, %v465
  %v471 = vld [vmem:[%s5] sm:$0xff]
  %v472 = vld [vmem:[%s5 + $0x8] sm:$0xff]
  %v473 = vld [vmem:[%s5 + $0x10] sm:$0xff]
  %v474 = vld [vmem:[%s5 + $0x18] sm:$0xff]
  %v475 = vmul.f32 %v35, 64.0
  %476 = vmatprep.subr.mxu0 0.0
  %477 = vmatpush1.xpose.msra.mxu0 %v35
  %478 = vmatprep.subr.mxu0 0.0
  %479 = vmatpush1.xpose.msra.mxu0 0.0
  %480 = vmatprep.subr.mxu0 0.0
  %481 = vmatpush1.xpose.msra.mxu0 0.0
  %482 = vmatprep.subr.mxu0 0.0
  %483 = vmatpush1.xpose.msra.mxu0 0.0
  %484 = vmatprep.subr.mxu0 0.0
  %485 = vmatpush1.xpose.msra.mxu0 0.0
  %486 = vmatprep.subr.mxu0 0.0
  %487 = vmatpush1.xpose.msra.mxu0 0.0
  %488 = vmatprep.subr.mxu0 0.0
  %489 = vmatpush1.xpose.msra.mxu0 0.0
  %490 = vmatprep.subr.mxu0 0.0
  %491 = vmatpush1.xpose.msra.mxu0 0.0
  %492 = vmatprep.subr.mxu0 0.0
  %493 = vmatpush1.xpose.msra.mxu0 0.0
  %494 = vmatprep.subr.mxu0 0.0
  %495 = vmatpush1.xpose.msra.mxu0 0.0
  %496 = vmatprep.subr.mxu0 0.0
  %497 = vmatpush1.xpose.msra.mxu0 0.0
  %498 = vmatprep.subr.mxu0 0.0
  %499 = vmatpush1.xpose.msra.mxu0 0.0
  %500 = vmatprep.subr.mxu0 0.0
  %501 = vmatpush1.xpose.msra.mxu0 0.0
  %502 = vmatprep.subr.mxu0 0.0
  %503 = vmatpush1.xpose.msra.mxu0 0.0
  %504 = vmatprep.subr.mxu0 0.0
  %505 = vmatpush1.xpose.msra.mxu0 0.0
  %506 = vmatprep.subr.mxu0 0.0
  %507 = vmatpush1.xpose.msra.mxu0 0.0
  %508 = vmatprep.subr.mxu0 0.0
  %509 = vmatpush1.xpose.msra.mxu0 0.0
  %510 = vmatprep.subr.mxu0 0.0
  %511 = vmatpush1.xpose.msra.mxu0 0.0
  %512 = vmatprep.subr.mxu0 0.0
  %513 = vmatpush1.xpose.msra.mxu0 0.0
  %514 = vmatprep.subr.mxu0 0.0
  %515 = vmatpush1.xpose.msra.mxu0 0.0
  %516 = vmatprep.subr.mxu0 0.0
  %517 = vmatpush1.xpose.msra.mxu0 0.0
  %518 = vmatprep.subr.mxu0 0.0
  %519 = vmatpush1.xpose.msra.mxu0 0.0
  %520 = vmatprep.subr.mxu0 0.0
  %521 = vmatpush1.xpose.msra.mxu0 0.0
  %522 = vmatprep.subr.mxu0 0.0
  %523 = vmatpush1.xpose.msra.mxu0 0.0
  %524 = vmatprep.subr.mxu0 0.0
  %525 = vmatpush1.xpose.msra.mxu0 0.0
  %526 = vmatprep.subr.mxu0 0.0
  %527 = vmatpush1.xpose.msra.mxu0 0.0
  %528 = vmatprep.subr.mxu0 0.0
  %529 = vmatpush1.xpose.msra.mxu0 0.0
  %530 = vmatprep.subr.mxu0 0.0
  %531 = vmatpush1.xpose.msra.mxu0 0.0
  %532 = vmatprep.subr.mxu0 0.0
  %533 = vmatpush1.xpose.msra.mxu0 0.0
  %534 = vmatprep.subr.mxu0 0.0
  %535 = vmatpush1.xpose.msra.mxu0 0.0
  %536 = vmatprep.subr.mxu0 0.0
  %537 = vmatpush1.xpose.msra.mxu0 0.0
  %538 = vmatprep.subr.mxu0 0.0
  %539 = vmatpush1.xpose.msra.mxu0 0.0
  %540 = vmatprep.mubr.f32.mxu0 0.0
  %541 = vmatmul.mubr.f32.gmra.mrb[0].mxu0 %v469
  %v542 = vpop.f32.mrb[0].mxu0
  %v543 = vadd.f32 0.0, %v542
  %v544 = vpop.f32.mrb[0].mxu0
  %545 = vmatprep.mubr.f32.mxu0 0.0
  %546 = vmatmul.mubr.f32.gmra.mrb[0].mxu0 %v470
  %v547 = vpop.f32.mrb[0].mxu0
  %v548 = vadd.f32 0.0, %v547
  %v549 = vpop.f32.mrb[0].mxu0
  %550 = vdwg.mxu0
  %vm551 = vcmask 130048
  %v553 = vsel %vm551, %v471, 0
  %v556 = vsel %vm551, %v472, 0
  %v559 = vsel %vm551, %v473, 0
  %v562 = vsel %vm551, %v474, 0
  %564 = vmatprep.subr.mxu0 0.0
  %565 = vmatpush1.msra.mxu0 %v469
  %566 = vmatprep.subr.mxu0 0.0
  %567 = vmatpush1.msra.mxu0 %v470
  %568 = vmatprep.subr.mxu0 0.0
  %569 = vmatpush1.msra.mxu0 0.0
  %570 = vmatprep.subr.mxu0 0.0
  %571 = vmatpush1.msra.mxu0 0.0
  %572 = vmatprep.subr.mxu0 0.0
  %573 = vmatpush1.msra.mxu0 0.0
  %574 = vmatprep.subr.mxu0 0.0
  %575 = vmatpush1.msra.mxu0 0.0
  %576 = vmatprep.subr.mxu0 0.0
  %577 = vmatpush1.msra.mxu0 0.0
  %578 = vmatprep.subr.mxu0 0.0
  %579 = vmatpush1.msra.mxu0 0.0
  %580 = vmatprep.subr.mxu0 0.0
  %581 = vmatpush1.msra.mxu0 0.0
  %582 = vmatprep.subr.mxu0 0.0
  %583 = vmatpush1.msra.mxu0 0.0
  %584 = vmatprep.subr.mxu0 0.0
  %585 = vmatpush1.msra.mxu0 0.0
  %586 = vmatprep.subr.mxu0 0.0
  %587 = vmatpush1.msra.mxu0 0.0
  %588 = vmatprep.subr.mxu0 0.0
  %589 = vmatpush1.msra.mxu0 0.0
  %590 = vmatprep.subr.mxu0 0.0
  %591 = vmatpush1.msra.mxu0 0.0
  %592 = vmatprep.subr.mxu0 0.0
  %593 = vmatpush1.msra.mxu0 0.0
  %594 = vmatprep.subr.mxu0 0.0
  %595 = vmatpush1.msra.mxu0 0.0
  %596 = vmatprep.subr.mxu0 0.0
  %597 = vmatpush1.msra.mxu0 0.0
  %598 = vmatprep.subr.mxu0 0.0
  %599 = vmatpush1.msra.mxu0 0.0
  %600 = vmatprep.subr.mxu0 0.0
  %601 = vmatpush1.msra.mxu0 0.0
  %602 = vmatprep.subr.mxu0 0.0
  %603 = vmatpush1.msra.mxu0 0.0
  %604 = vmatprep.subr.mxu0 0.0
  %605 = vmatpush1.msra.mxu0 0.0
  %606 = vmatprep.subr.mxu0 0.0
  %607 = vmatpush1.msra.mxu0 0.0
  %608 = vmatprep.subr.mxu0 0.0
  %609 = vmatpush1.msra.mxu0 0.0
  %610 = vmatprep.subr.mxu0 0.0
  %611 = vmatpush1.msra.mxu0 0.0
  %612 = vmatprep.subr.mxu0 0.0
  %613 = vmatpush1.msra.mxu0 0.0
  %614 = vmatprep.subr.mxu0 0.0
  %615 = vmatpush1.msra.mxu0 0.0
  %616 = vmatprep.subr.mxu0 0.0
  %617 = vmatpush1.msra.mxu0 0.0
  %618 = vmatprep.subr.mxu0 0.0
  %619 = vmatpush1.msra.mxu0 0.0
  %620 = vmatprep.subr.mxu0 0.0
  %621 = vmatpush1.msra.mxu0 0.0
  %622 = vmatprep.subr.mxu0 0.0
  %623 = vmatpush1.msra.mxu0 0.0
  %624 = vmatprep.subr.mxu0 0.0
  %625 = vmatpush1.msra.mxu0 0.0
  %626 = vmatprep.subr.mxu0 0.0
  %627 = vmatpush1.msra.mxu0 0.0
  %628 = vmatprep.mubr.f32.mxu0 0.0
  %629 = vmatmul.mubr.f32.gmra.mrb[0].mxu0 %v553
  %v630 = vpop.f32.mrb[0].mxu0
  %v631 = vadd.f32 0.0, %v630
  %v632 = vpop.f32.mrb[0].mxu0
  %633 = vmatprep.mubr.f32.mxu0 0.0
  %634 = vmatmul.mubr.f32.gmra.mrb[0].mxu0 %v556
  %v635 = vpop.f32.mrb[0].mxu0
  %v636 = vadd.f32 0.0, %v635
  %v637 = vpop.f32.mrb[0].mxu0
  %638 = vmatprep.mubr.f32.mxu0 0.0
  %639 = vmatmul.mubr.f32.gmra.mrb[0].mxu0 %v559
  %v640 = vpop.f32.mrb[0].mxu0
  %v641 = vadd.f32 0.0, %v640
  %v642 = vpop.f32.mrb[0].mxu0
  %643 = vmatprep.mubr.f32.mxu0 0.0
  %644 = vmatmul.mubr.f32.gmra.mrb[0].mxu0 %v562
  %v645 = vpop.f32.mrb[0].mxu0
  %v646 = vadd.f32 0.0, %v645
  %v647 = vpop.f32.mrb[0].mxu0
  %648 = vdwg.mxu0
  %v649 = vmax.f32 %v631, 0.0
  %v650 = vmax.f32 %v636, 0.0
  %v651 = vmax.f32 %v641, 0.0
  %v652 = vmax.f32 %v646, 0.0
  %653 = vmatprep.subr.mxu0 0.0
  %654 = vmatpush1.msra.mxu0 %v543
  %655 = vmatprep.subr.mxu0 0.0
  %656 = vmatpush1.msra.mxu0 %v548
  %657 = vmatprep.subr.mxu0 0.0
  %658 = vmatpush1.msra.mxu0 0.0
  %659 = vmatprep.subr.mxu0 0.0
  %660 = vmatpush1.msra.mxu0 0.0
  %661 = vmatprep.subr.mxu0 0.0
  %662 = vmatpush1.msra.mxu0 0.0
  %663 = vmatprep.subr.mxu0 0.0
  %664 = vmatpush1.msra.mxu0 0.0
  %665 = vmatprep.subr.mxu0 0.0
  %666 = vmatpush1.msra.mxu0 0.0
  %667 = vmatprep.subr.mxu0 0.0
  %668 = vmatpush1.msra.mxu0 0.0
  %669 = vmatprep.subr.mxu0 0.0
  %670 = vmatpush1.msra.mxu0 0.0
  %671 = vmatprep.subr.mxu0 0.0
  %672 = vmatpush1.msra.mxu0 0.0
  %673 = vmatprep.subr.mxu0 0.0
  %674 = vmatpush1.msra.mxu0 0.0
  %675 = vmatprep.subr.mxu0 0.0
  %676 = vmatpush1.msra.mxu0 0.0
  %677 = vmatprep.subr.mxu0 0.0
  %678 = vmatpush1.msra.mxu0 0.0
  %679 = vmatprep.subr.mxu0 0.0
  %680 = vmatpush1.msra.mxu0 0.0
  %681 = vmatprep.subr.mxu0 0.0
  %682 = vmatpush1.msra.mxu0 0.0
  %683 = vmatprep.subr.mxu0 0.0
  %684 = vmatpush1.msra.mxu0 0.0
  %685 = vmatprep.subr.mxu0 0.0
  %686 = vmatpush1.msra.mxu0 0.0
  %687 = vmatprep.subr.mxu0 0.0
  %688 = vmatpush1.msra.mxu0 0.0
  %689 = vmatprep.subr.mxu0 0.0
  %690 = vmatpush1.msra.mxu0 0.0
  %691 = vmatprep.subr.mxu0 0.0
  %692 = vmatpush1.msra.mxu0 0.0
  %693 = vmatprep.subr.mxu0 0.0
  %694 = vmatpush1.msra.mxu0 0.0
  %695 = vmatprep.subr.mxu0 0.0
  %696 = vmatpush1.msra.mxu0 0.0
  %697 = vmatprep.subr.mxu0 0.0
  %698 = vmatpush1.msra.mxu0 0.0
  %699 = vmatprep.subr.mxu0 0.0
  %700 = vmatpush1.msra.mxu0 0.0
  %701 = vmatprep.subr.mxu0 0.0
  %702 = vmatpush1.msra.mxu0 0.0
  %703 = vmatprep.subr.mxu0 0.0
  %704 = vmatpush1.msra.mxu0 0.0
  %705 = vmatprep.subr.mxu0 0.0
  %706 = vmatpush1.msra.mxu0 0.0
  %707 = vmatprep.subr.mxu0 0.0
  %708 = vmatpush1.msra.mxu0 0.0
  %709 = vmatprep.subr.mxu0 0.0
  %710 = vmatpush1.msra.mxu0 0.0
  %711 = vmatprep.subr.mxu0 0.0
  %712 = vmatpush1.msra.mxu0 0.0
  %713 = vmatprep.subr.mxu0 0.0
  %714 = vmatpush1.msra.mxu0 0.0
  %715 = vmatprep.subr.mxu0 0.0
  %716 = vmatpush1.msra.mxu0 0.0
  %717 = vmatprep.mubr.f32.mxu0 0.0
  %718 = vmatmul.mubr.f32.gmra.mrb[0].mxu0 %v553
  %v719 = vpop.f32.mrb[0].mxu0
  %v720 = vadd.f32 0.0, %v719
  %v721 = vpop.f32.mrb[0].mxu0
  %722 = vmatprep.mubr.f32.mxu0 0.0
  %723 = vmatmul.mubr.f32.gmra.mrb[0].mxu0 %v556
  %v724 = vpop.f32.mrb[0].mxu0
  %v725 = vadd.f32 0.0, %v724
  %v726 = vpop.f32.mrb[0].mxu0
  %727 = vmatprep.mubr.f32.mxu0 0.0
  %728 = vmatmul.mubr.f32.gmra.mrb[0].mxu0 %v559
  %v729 = vpop.f32.mrb[0].mxu0
  %v730 = vadd.f32 0.0, %v729
  %v731 = vpop.f32.mrb[0].mxu0
  %732 = vmatprep.mubr.f32.mxu0 0.0
  %733 = vmatmul.mubr.f32.gmra.mrb[0].mxu0 %v562
  %v734 = vpop.f32.mrb[0].mxu0
  %v735 = vadd.f32 0.0, %v734
  %v736 = vpop.f32.mrb[0].mxu0
  %737 = vdwg.mxu0
  %v738 = vmax.f32 %v720, 0.0
  %v739 = vmax.f32 %v725, 0.0
  %v740 = vmax.f32 %v730, 0.0
  %v741 = vmax.f32 %v735, 0.0
  %vm742 = vcmask 261120
  %v744 = vsel %vm742, 0.03125, 0
  %746 = vmatprep.subr.mxu0 0.0
  %747 = vmatpush1.msra.mxu0 %v649
  %748 = vmatprep.subr.mxu0 0.0
  %749 = vmatpush1.msra.mxu0 %v650
  %750 = vmatprep.subr.mxu0 0.0
  %751 = vmatpush1.msra.mxu0 %v651
  %752 = vmatprep.subr.mxu0 0.0
  %753 = vmatpush1.msra.mxu0 %v652
  %754 = vmatprep.subr.mxu0 0.0
  %755 = vmatpush1.msra.mxu0 0.0
  %756 = vmatprep.subr.mxu0 0.0
  %757 = vmatpush1.msra.mxu0 0.0
  %758 = vmatprep.subr.mxu0 0.0
  %759 = vmatpush1.msra.mxu0 0.0
  %760 = vmatprep.subr.mxu0 0.0
  %761 = vmatpush1.msra.mxu0 0.0
  %762 = vmatprep.subr.mxu0 0.0
  %763 = vmatpush1.msra.mxu0 0.0
  %764 = vmatprep.subr.mxu0 0.0
  %765 = vmatpush1.msra.mxu0 0.0
  %766 = vmatprep.subr.mxu0 0.0
  %767 = vmatpush1.msra.mxu0 0.0
  %768 = vmatprep.subr.mxu0 0.0
  %769 = vmatpush1.msra.mxu0 0.0
  %770 = vmatprep.subr.mxu0 0.0
  %771 = vmatpush1.msra.mxu0 0.0
  %772 = vmatprep.subr.mxu0 0.0
  %773 = vmatpush1.msra.mxu0 0.0
  %774 = vmatprep.subr.mxu0 0.0
  %775 = vmatpush1.msra.mxu0 0.0
  %776 = vmatprep.subr.mxu0 0.0
  %777 = vmatpush1.msra.mxu0 0.0
  %778 = vmatprep.subr.mxu0 0.0
  %779 = vmatpush1.msra.mxu0 0.0
  %780 = vmatprep.subr.mxu0 0.0
  %781 = vmatpush1.msra.mxu0 0.0
  %782 = vmatprep.subr.mxu0 0.0
  %783 = vmatpush1.msra.mxu0 0.0
  %784 = vmatprep.subr.mxu0 0.0
  %785 = vmatpush1.msra.mxu0 0.0
  %786 = vmatprep.subr.mxu0 0.0
  %787 = vmatpush1.msra.mxu0 0.0
  %788 = vmatprep.subr.mxu0 0.0
  %789 = vmatpush1.msra.mxu0 0.0
  %790 = vmatprep.subr.mxu0 0.0
  %791 = vmatpush1.msra.mxu0 0.0
  %792 = vmatprep.subr.mxu0 0.0
  %793 = vmatpush1.msra.mxu0 0.0
  %794 = vmatprep.subr.mxu0 0.0
  %795 = vmatpush1.msra.mxu0 0.0
  %796 = vmatprep.subr.mxu0 0.0
  %797 = vmatpush1.msra.mxu0 0.0
  %798 = vmatprep.subr.mxu0 0.0
  %799 = vmatpush1.msra.mxu0 0.0
  %800 = vmatprep.subr.mxu0 0.0
  %801 = vmatpush1.msra.mxu0 0.0
  %802 = vmatprep.subr.mxu0 0.0
  %803 = vmatpush1.msra.mxu0 0.0
  %804 = vmatprep.subr.mxu0 0.0
  %805 = vmatpush1.msra.mxu0 0.0
  %806 = vmatprep.subr.mxu0 0.0
  %807 = vmatpush1.msra.mxu0 0.0
  %808 = vmatprep.subr.mxu0 0.0
  %809 = vmatpush1.msra.mxu0 0.0
  %810 = vmatprep.mubr.f32.mxu0 0.0
  %811 = vmatmul.mubr.f32.gmra.mrb[0].mxu0 %v744
  %v812 = vpop.f32.mrb[0].mxu0
  %v813 = vadd.f32 0.0, %v812
  %v814 = vpop.f32.mrb[0].mxu0
  %815 = vdwg.mxu0
  %v816 = vlaneseq
  %v817 = vshrl.u32 %v816, 7
  %v818 = vsub.s32 0, %v817
  %v819 = vrot.slane %v813, %v818
  %v820 = vsub.f32 %v649, %v819
  %v821 = vsub.f32 %v650, %v819
  %v822 = vsub.f32 %v651, %v819
  %v823 = vsub.f32 %v652, %v819
  %v824 = vmul.f32 %v820, %v820
  %v825 = vmul.f32 %v821, %v821
  %v826 = vmul.f32 %v822, %v822
  %v827 = vmul.f32 %v823, %v823
  %828 = vmatprep.subr.mxu0 0.0
  %829 = vmatpush1.msra.mxu0 %v824
  %830 = vmatprep.subr.mxu0 0.0
  %831 = vmatpush1.msra.mxu0 %v825
  %832 = vmatprep.subr.mxu0 0.0
  %833 = vmatpush1.msra.mxu0 %v826
  %834 = vmatprep.subr.mxu0 0.0
  %835 = vmatpush1.msra.mxu0 %v827
  %836 = vmatprep.subr.mxu0 0.0
  %837 = vmatpush1.msra.mxu0 0.0
  %838 = vmatprep.subr.mxu0 0.0
  %839 = vmatpush1.msra.mxu0 0.0
  %840 = vmatprep.subr.mxu0 0.0
  %841 = vmatpush1.msra.mxu0 0.0
  %842 = vmatprep.subr.mxu0 0.0
  %843 = vmatpush1.msra.mxu0 0.0
  %844 = vmatprep.subr.mxu0 0.0
  %845 = vmatpush1.msra.mxu0 0.0
  %846 = vmatprep.subr.mxu0 0.0
  %847 = vmatpush1.msra.mxu0 0.0
  %848 = vmatprep.subr.mxu0 0.0
  %849 = vmatpush1.msra.mxu0 0.0
  %850 = vmatprep.subr.mxu0 0.0
  %851 = vmatpush1.msra.mxu0 0.0
  %852 = vmatprep.subr.mxu0 0.0
  %853 = vmatpush1.msra.mxu0 0.0
  %854 = vmatprep.subr.mxu0 0.0
  %855 = vmatpush1.msra.mxu0 0.0
  %856 = vmatprep.subr.mxu0 0.0
  %857 = vmatpush1.msra.mxu0 0.0
  %858 = vmatprep.subr.mxu0 0.0
  %859 = vmatpush1.msra.mxu0 0.0
  %860 = vmatprep.subr.mxu0 0.0
  %861 = vmatpush1.msra.mxu0 0.0
  %862 = vmatprep.subr.mxu0 0.0
  %863 = vmatpush1.msra.mxu0 0.0
  %864 = vmatprep.subr.mxu0 0.0
  %865 = vmatpush1.msra.mxu0 0.0
  %866 = vmatprep.subr.mxu0 0.0
  %867 = vmatpush1.msra.mxu0 0.0
  %868 = vmatprep.subr.mxu0 0.0
  %869 = vmatpush1.msra.mxu0 0.0
  %870 = vmatprep.subr.mxu0 0.0
  %871 = vmatpush1.msra.mxu0 0.0
  %872 = vmatprep.subr.mxu0 0.0
  %873 = vmatpush1.msra.mxu0 0.0
  %874 = vmatprep.subr.mxu0 0.0
  %875 = vmatpush1.msra.mxu0 0.0
  %876 = vmatprep.subr.mxu0 0.0
  %877 = vmatpush1.msra.mxu0 0.0
  %878 = vmatprep.subr.mxu0 0.0
  %879 = vmatpush1.msra.mxu0 0.0
  %880 = vmatprep.subr.mxu0 0.0
  %881 = vmatpush1.msra.mxu0 0.0
  %882 = vmatprep.subr.mxu0 0.0
  %883 = vmatpush1.msra.mxu0 0.0
  %884 = vmatprep.subr.mxu0 0.0
  %885 = vmatpush1.msra.mxu0 0.0
  %886 = vmatprep.subr.mxu0 0.0
  %887 = vmatpush1.msra.mxu0 0.0
  %888 = vmatprep.subr.mxu0 0.0
  %889 = vmatpush1.msra.mxu0 0.0
  %890 = vmatprep.subr.mxu0 0.0
  %891 = vmatpush1.msra.mxu0 0.0
  %892 = vmatprep.mubr.f32.mxu0 0.0
  %893 = vmatmul.mubr.f32.gmra.mrb[0].mxu0 %v744
  %v894 = vpop.f32.mrb[0].mxu0
  %v895 = vadd.f32 1e-05, %v894
  %v896 = vpop.f32.mrb[0].mxu0
  %897 = vdwg.mxu0
  %v898 = vrsqrt.pop %v895
  %v899 = vlaneseq
  %v900 = vshrl.u32 %v899, 7
  %v901 = vsub.s32 0, %v900
  %v902 = vrot.slane %v898, %v901
  %v903 = vmul.f32 %v820, %v902
  %v904 = vmul.f32 %v821, %v902
  %v905 = vmul.f32 %v822, %v902
  %v906 = vmul.f32 %v823, %v902
  %908 = vset.pattern.permute.xlu0 0
  %909 = vperm.xlu0 %908, %v37
  %v910 = vpop.permute.xlu0 %909
  %913 = vset.pattern.permute.xlu0 0
  %914 = vperm.xlu0 %913, %v38
  %v915 = vpop.permute.xlu0 %914
  %918 = vset.pattern.permute.xlu0 0
  %919 = vperm.xlu0 %918, %v39
  %v920 = vpop.permute.xlu0 %919
  %923 = vset.pattern.permute.xlu0 0
  %924 = vperm.xlu0 %923, %v40
  %v925 = vpop.permute.xlu0 %924
  %v927 = vmul.f32 %v903, %v910
  %v928 = vmul.f32 %v904, %v915
  %v929 = vmul.f32 %v905, %v920
  %v930 = vmul.f32 %v906, %v925
  %931 = vset.pattern.permute.xlu0 4
  %932 = vperm.xlu0 %931, %v37
  %v933 = vpop.permute.xlu0 %932
  %935 = vset.pattern.permute.xlu0 4
  %936 = vperm.xlu0 %935, %v38
  %v937 = vpop.permute.xlu0 %936
  %939 = vset.pattern.permute.xlu0 4
  %940 = vperm.xlu0 %939, %v39
  %v941 = vpop.permute.xlu0 %940
  %943 = vset.pattern.permute.xlu0 4
  %944 = vperm.xlu0 %943, %v40
  %v945 = vpop.permute.xlu0 %944
  %v947 = vadd.f32 %v927, %v933
  %v948 = vadd.f32 %v928, %v937
  %v949 = vadd.f32 %v929, %v941
  %v950 = vadd.f32 %v930, %v945
  %951 = vmatprep.subr.mxu0 0.0
  %952 = vmatpush1.msra.mxu0 %v738
  %953 = vmatprep.subr.mxu0 0.0
  %954 = vmatpush1.msra.mxu0 %v739
  %955 = vmatprep.subr.mxu0 0.0
  %956 = vmatpush1.msra.mxu0 %v740
  %957 = vmatprep.subr.mxu0 0.0
  %958 = vmatpush1.msra.mxu0 %v741
  %959 = vmatprep.subr.mxu0 0.0
  %960 = vmatpush1.msra.mxu0 0.0
  %961 = vmatprep.subr.mxu0 0.0
  %962 = vmatpush1.msra.mxu0 0.0
  %963 = vmatprep.subr.mxu0 0.0
  %964 = vmatpush1.msra.mxu0 0.0
  %965 = vmatprep.subr.mxu0 0.0
  %966 = vmatpush1.msra.mxu0 0.0
  %967 = vmatprep.subr.mxu0 0.0
  %968 = vmatpush1.msra.mxu0 0.0
  %969 = vmatprep.subr.mxu0 0.0
  %970 = vmatpush1.msra.mxu0 0.0
  %971 = vmatprep.subr.mxu0 0.0
  %972 = vmatpush1.msra.mxu0 0.0
  %973 = vmatprep.subr.mxu0 0.0
  %974 = vmatpush1.msra.mxu0 0.0
  %975 = vmatprep.subr.mxu0 0.0
  %976 = vmatpush1.msra.mxu0 0.0
  %977 = vmatprep.subr.mxu0 0.0
  %978 = vmatpush1.msra.mxu0 0.0
  %979 = vmatprep.subr.mxu0 0.0
  %980 = vmatpush1.msra.mxu0 0.0
  %981 = vmatprep.subr.mxu0 0.0
  %982 = vmatpush1.msra.mxu0 0.0
  %983 = vmatprep.subr.mxu0 0.0
  %984 = vmatpush1.msra.mxu0 0.0
  %985 = vmatprep.subr.mxu0 0.0
  %986 = vmatpush1.msra.mxu0 0.0
  %987 = vmatprep.subr.mxu0 0.0
  %988 = vmatpush1.msra.mxu0 0.0
  %989 = vmatprep.subr.mxu0 0.0
  %990 = vmatpush1.msra.mxu0 0.0
  %991 = vmatprep.subr.mxu0 0.0
  %992 = vmatpush1.msra.mxu0 0.0
  %993 = vmatprep.subr.mxu0 0.0
  %994 = vmatpush1.msra.mxu0 0.0
  %995 = vmatprep.subr.mxu0 0.0
  %996 = vmatpush1.msra.mxu0 0.0
  %997 = vmatprep.subr.mxu0 0.0
  %998 = vmatpush1.msra.mxu0 0.0
  %999 = vmatprep.subr.mxu0 0.0
  %1000 = vmatpush1.msra.mxu0 0.0
  %1001 = vmatprep.subr.mxu0 0.0
  %1002 = vmatpush1.msra.mxu0 0.0
  %1003 = vmatprep.subr.mxu0 0.0
  %1004 = vmatpush1.msra.mxu0 0.0
  %1005 = vmatprep.subr.mxu0 0.0
  %1006 = vmatpush1.msra.mxu0 0.0
  %1007 = vmatprep.subr.mxu0 0.0
  %1008 = vmatpush1.msra.mxu0 0.0
  %1009 = vmatprep.subr.mxu0 0.0
  %1010 = vmatpush1.msra.mxu0 0.0
  %1011 = vmatprep.subr.mxu0 0.0
  %1012 = vmatpush1.msra.mxu0 0.0
  %1013 = vmatprep.subr.mxu0 0.0
  %1014 = vmatpush1.msra.mxu0 0.0
  %1015 = vmatprep.mubr.f32.mxu0 0.0
  %1016 = vmatmul.mubr.f32.gmra.mrb[0].mxu0 %v744
  %v1017 = vpop.f32.mrb[0].mxu0
  %v1018 = vadd.f32 0.0, %v1017
  %v1019 = vpop.f32.mrb[0].mxu0
  %1020 = vdwg.mxu0
  %v1021 = vlaneseq
  %v1022 = vshrl.u32 %v1021, 7
  %v1023 = vsub.s32 0, %v1022
  %v1024 = vrot.slane %v1018, %v1023
  %v1025 = vsub.f32 %v738, %v1024
  %v1026 = vsub.f32 %v739, %v1024
  %v1027 = vsub.f32 %v740, %v1024
  %v1028 = vsub.f32 %v741, %v1024
  %v1029 = vmul.f32 %v1025, %v1025
  %v1030 = vmul.f32 %v1026, %v1026
  %v1031 = vmul.f32 %v1027, %v1027
  %v1032 = vmul.f32 %v1028, %v1028
  %1033 = vmatprep.subr.mxu0 0.0
  %1034 = vmatpush1.msra.mxu0 %v1029
  %1035 = vmatprep.subr.mxu0 0.0
  %1036 = vmatpush1.msra.mxu0 %v1030
  %1037 = vmatprep.subr.mxu0 0.0
  %1038 = vmatpush1.msra.mxu0 %v1031
  %1039 = vmatprep.subr.mxu0 0.0
  %1040 = vmatpush1.msra.mxu0 %v1032
  %1041 = vmatprep.subr.mxu0 0.0
  %1042 = vmatpush1.msra.mxu0 0.0
  %1043 = vmatprep.subr.mxu0 0.0
  %1044 = vmatpush1.msra.mxu0 0.0
  %1045 = vmatprep.subr.mxu0 0.0
  %1046 = vmatpush1.msra.mxu0 0.0
  %1047 = vmatprep.subr.mxu0 0.0
  %1048 = vmatpush1.msra.mxu0 0.0
  %1049 = vmatprep.subr.mxu0 0.0
  %1050 = vmatpush1.msra.mxu0 0.0
  %1051 = vmatprep.subr.mxu0 0.0
  %1052 = vmatpush1.msra.mxu0 0.0
  %1053 = vmatprep.subr.mxu0 0.0
  %1054 = vmatpush1.msra.mxu0 0.0
  %1055 = vmatprep.subr.mxu0 0.0
  %1056 = vmatpush1.msra.mxu0 0.0
  %1057 = vmatprep.subr.mxu0 0.0
  %1058 = vmatpush1.msra.mxu0 0.0
  %1059 = vmatprep.subr.mxu0 0.0
  %1060 = vmatpush1.msra.mxu0 0.0
  %1061 = vmatprep.subr.mxu0 0.0
  %1062 = vmatpush1.msra.mxu0 0.0
  %1063 = vmatprep.subr.mxu0 0.0
  %1064 = vmatpush1.msra.mxu0 0.0
  %1065 = vmatprep.subr.mxu0 0.0
  %1066 = vmatpush1.msra.mxu0 0.0
  %1067 = vmatprep.subr.mxu0 0.0
  %1068 = vmatpush1.msra.mxu0 0.0
  %1069 = vmatprep.subr.mxu0 0.0
  %1070 = vmatpush1.msra.mxu0 0.0
  %1071 = vmatprep.subr.mxu0 0.0
  %1072 = vmatpush1.msra.mxu0 0.0
  %1073 = vmatprep.subr.mxu0 0.0
  %1074 = vmatpush1.msra.mxu0 0.0
  %1075 = vmatprep.subr.mxu0 0.0
  %1076 = vmatpush1.msra.mxu0 0.0
  %1077 = vmatprep.subr.mxu0 0.0
  %1078 = vmatpush1.msra.mxu0 0.0
  %1079 = vmatprep.subr.mxu0 0.0
  %1080 = vmatpush1.msra.mxu0 0.0
  %1081 = vmatprep.subr.mxu0 0.0
  %1082 = vmatpush1.msra.mxu0 0.0
  %1083 = vmatprep.subr.mxu0 0.0
  %1084 = vmatpush1.msra.mxu0 0.0
  %1085 = vmatprep.subr.mxu0 0.0
  %1086 = vmatpush1.msra.mxu0 0.0
  %1087 = vmatprep.subr.mxu0 0.0
  %1088 = vmatpush1.msra.mxu0 0.0
  %1089 = vmatprep.subr.mxu0 0.0
  %1090 = vmatpush1.msra.mxu0 0.0
  %1091 = vmatprep.subr.mxu0 0.0
  %1092 = vmatpush1.msra.mxu0 0.0
  %1093 = vmatprep.subr.mxu0 0.0
  %1094 = vmatpush1.msra.mxu0 0.0
  %1095 = vmatprep.subr.mxu0 0.0
  %1096 = vmatpush1.msra.mxu0 0.0
  %1097 = vmatprep.mubr.f32.mxu0 0.0
  %1098 = vmatmul.mubr.f32.gmra.mrb[0].mxu0 %v744
  %v1099 = vpop.f32.mrb[0].mxu0
  %v1100 = vadd.f32 1e-05, %v1099
  %v1101 = vpop.f32.mrb[0].mxu0
  %1102 = vdwg.mxu0
  %v1103 = vrsqrt.pop %v1100
  %v1104 = vlaneseq
  %v1105 = vshrl.u32 %v1104, 7
  %v1106 = vsub.s32 0, %v1105
  %v1107 = vrot.slane %v1103, %v1106
  %v1108 = vmul.f32 %v1025, %v1107
  %v1109 = vmul.f32 %v1026, %v1107
  %v1110 = vmul.f32 %v1027, %v1107
  %v1111 = vmul.f32 %v1028, %v1107
  %v1112 = vmul.f32 %v1108, %v910
  %v1113 = vmul.f32 %v1109, %v915
  %v1114 = vmul.f32 %v1110, %v920
  %v1115 = vmul.f32 %v1111, %v925
  %v1116 = vadd.f32 %v1112, %v933
  %v1117 = vadd.f32 %v1113, %v937
  %v1118 = vadd.f32 %v1114, %v941
  %v1119 = vadd.f32 %v1115, %v945
  %1120 = vxpose.xlu0.b32.start [1/16] %v1116, 128
  %1121 = vxpose.xlu0.b32.cont [2/16] %v1117, 128
  %1122 = vxpose.xlu0.b32.cont [3/16] %v1118, 128
  %1123 = vxpose.xlu0.b32.cont [4/16] %v1119, 128
  %1124 = vxpose.xlu0.b32.cont [5/16] 0.0, 128
  %1125 = vxpose.xlu0.b32.cont [6/16] 0.0, 128
  %1126 = vxpose.xlu0.b32.cont [7/16] 0.0, 128
  %1127 = vxpose.xlu0.b32.cont [8/16] 0.0, 128
  %1128 = vxpose.xlu0.b32.cont [9/16] 0.0, 128
  %1129 = vxpose.xlu0.b32.cont [10/16] 0.0, 128
  %1130 = vxpose.xlu0.b32.cont [11/16] 0.0, 128
  %1131 = vxpose.xlu0.b32.cont [12/16] 0.0, 128
  %1132 = vxpose.xlu0.b32.cont [13/16] 0.0, 128
  %1133 = vxpose.xlu0.b32.cont [14/16] 0.0, 128
  %1134 = vxpose.xlu0.b32.cont [15/16] 0.0, 128
  %1135 = vxpose.xlu0.b32.end [16/16] 0.0, 128
  %v1136 = vpop.trf.xlu0
  %v1137 = vpop.trf.xlu0
  %v1138 = vpop.trf.xlu0
  %v1139 = vpop.trf.xlu0
  %v1140 = vpop.trf.xlu0
  %v1141 = vpop.trf.xlu0
  %v1142 = vpop.trf.xlu0
  %v1143 = vpop.trf.xlu0
  %v1144 = vpop.trf.xlu0
  %v1145 = vpop.trf.xlu0
  %v1146 = vpop.trf.xlu0
  %v1147 = vpop.trf.xlu0
  %v1148 = vpop.trf.xlu0
  %v1149 = vpop.trf.xlu0
  %v1150 = vpop.trf.xlu0
  %v1151 = vpop.trf.xlu0
  %v1153 = vsel %vm742, %v1136, 0
  %1155 = vmatprep.subr.mxu0 0.0
  %1156 = vmatpush1.msra.mxu0 %v947
  %1157 = vmatprep.subr.mxu0 0.0
  %1158 = vmatpush1.msra.mxu0 %v948
  %1159 = vmatprep.subr.mxu0 0.0
  %1160 = vmatpush1.msra.mxu0 %v949
  %1161 = vmatprep.subr.mxu0 0.0
  %1162 = vmatpush1.msra.mxu0 %v950
  %1163 = vmatprep.subr.mxu0 0.0
  %1164 = vmatpush1.msra.mxu0 0.0
  %1165 = vmatprep.subr.mxu0 0.0
  %1166 = vmatpush1.msra.mxu0 0.0
  %1167 = vmatprep.subr.mxu0 0.0
  %1168 = vmatpush1.msra.mxu0 0.0
  %1169 = vmatprep.subr.mxu0 0.0
  %1170 = vmatpush1.msra.mxu0 0.0
  %1171 = vmatprep.subr.mxu0 0.0
  %1172 = vmatpush1.msra.mxu0 0.0
  %1173 = vmatprep.subr.mxu0 0.0
  %1174 = vmatpush1.msra.mxu0 0.0
  %1175 = vmatprep.subr.mxu0 0.0
  %1176 = vmatpush1.msra.mxu0 0.0
  %1177 = vmatprep.subr.mxu0 0.0
  %1178 = vmatpush1.msra.mxu0 0.0
  %1179 = vmatprep.subr.mxu0 0.0
  %1180 = vmatpush1.msra.mxu0 0.0
  %1181 = vmatprep.subr.mxu0 0.0
  %1182 = vmatpush1.msra.mxu0 0.0
  %1183 = vmatprep.subr.mxu0 0.0
  %1184 = vmatpush1.msra.mxu0 0.0
  %1185 = vmatprep.subr.mxu0 0.0
  %1186 = vmatpush1.msra.mxu0 0.0
  %1187 = vmatprep.subr.mxu0 0.0
  %1188 = vmatpush1.msra.mxu0 0.0
  %1189 = vmatprep.subr.mxu0 0.0
  %1190 = vmatpush1.msra.mxu0 0.0
  %1191 = vmatprep.subr.mxu0 0.0
  %1192 = vmatpush1.msra.mxu0 0.0
  %1193 = vmatprep.subr.mxu0 0.0
  %1194 = vmatpush1.msra.mxu0 0.0
  %1195 = vmatprep.subr.mxu0 0.0
  %1196 = vmatpush1.msra.mxu0 0.0
  %1197 = vmatprep.subr.mxu0 0.0
  %1198 = vmatpush1.msra.mxu0 0.0
  %1199 = vmatprep.subr.mxu0 0.0
  %1200 = vmatpush1.msra.mxu0 0.0
  %1201 = vmatprep.subr.mxu0 0.0
  %1202 = vmatpush1.msra.mxu0 0.0
  %1203 = vmatprep.subr.mxu0 0.0
  %1204 = vmatpush1.msra.mxu0 0.0
  %1205 = vmatprep.subr.mxu0 0.0
  %1206 = vmatpush1.msra.mxu0 0.0
  %1207 = vmatprep.subr.mxu0 0.0
  %1208 = vmatpush1.msra.mxu0 0.0
  %1209 = vmatprep.subr.mxu0 0.0
  %1210 = vmatpush1.msra.mxu0 0.0
  %1211 = vmatprep.subr.mxu0 0.0
  %1212 = vmatpush1.msra.mxu0 0.0
  %1213 = vmatprep.subr.mxu0 0.0
  %1214 = vmatpush1.msra.mxu0 0.0
  %1215 = vmatprep.subr.mxu0 0.0
  %1216 = vmatpush1.msra.mxu0 0.0
  %1217 = vmatprep.subr.mxu0 0.0
  %1218 = vmatpush1.msra.mxu0 0.0
  %1219 = vmatprep.mubr.f32.mxu0 0.0
  %1220 = vmatmul.mubr.f32.gmra.mrb[0].mxu0 %v1153
  %v1221 = vpop.f32.mrb[0].mxu0
  %v1222 = vadd.f32 0.0, %v1221
  %v1223 = vpop.f32.mrb[0].mxu0
  %1224 = vdwg.mxu0
  %v1225 = vmul.f32 %v1222, 0.17677669
  %vm1226 = vcmp.gt.f32.partialorder %v475, 0.0
  %v1227 = vsel %vm1226, %v1225, -1e+30
  %vm1228 = vcmask 1041408
  %v1229 = vsel %vm1228, %v1227, -inf
  %1230 = vmax.xlane.f32.xlu0 %v1229
  %v1231 = vpop.xlane.xlu0 %1230
  %v1232 = vsub.f32 %v1227, %v1231
  %v1233 = vmul.f32 %v1232, 1.442695
  %v1234 = vpow.pop %v1233
  %v1235 = vmul.f32 %v1234, %v475
  %v1236 = vsel %vm1228, %v1235, 0.0
  %1237 = vadd.xlane.f32.xlu0 %v1236
  %v1238 = vpop.xlane.xlu0 %1237
  %v1239 = vrcp.pop %v1238
  %v1240 = vmul.f32 1.0, %v1239
  %v1241 = vmul.f32 %v1235, %v1240
  %v1242 = vsel %vm1228, %v1241, 0.0
  %v1243 = vrot.slane %v1242, 4
  %v1244 = vadd.f32 %v1242, %v1243
  %v1245 = vrot.slane %v1244, 2
  %v1246 = vadd.f32 %v1244, %v1245
  %v1247 = vrot.slane %v1246, 1
  %v1248 = vadd.f32 %v1246, %v1247
  %v1249 = vmul.f32 %v469, %v1248
  %v1250 = vmul.f32 %v470, %v1248
  %v1251 = vld [vmem:[%s4 + $0x10] sm:$0xff]
  %v1252 = vld [vmem:[%s4 + $0x18] sm:$0xff]
  %v1253 = vld [vmem:[%s4 + $0x20] sm:$0xff]
  %v1254 = vld [vmem:[%s4 + $0x28] sm:$0xff]
  %v1256 = vsel %vm551, %v1251, 0
  %v1259 = vsel %vm551, %v1252, 0
  %v1262 = vsel %vm551, %v1253, 0
  %v1265 = vsel %vm551, %v1254, 0
  %1267 = vmatprep.subr.mxu0 0.0
  %1268 = vmatpush1.msra.mxu0 %v1249
  %1269 = vmatprep.subr.mxu0 0.0
  %1270 = vmatpush1.msra.mxu0 %v1250
  %1271 = vmatprep.subr.mxu0 0.0
  %1272 = vmatpush1.msra.mxu0 0.0
  %1273 = vmatprep.subr.mxu0 0.0
  %1274 = vmatpush1.msra.mxu0 0.0
  %1275 = vmatprep.subr.mxu0 0.0
  %1276 = vmatpush1.msra.mxu0 0.0
  %1277 = vmatprep.subr.mxu0 0.0
  %1278 = vmatpush1.msra.mxu0 0.0
  %1279 = vmatprep.subr.mxu0 0.0
  %1280 = vmatpush1.msra.mxu0 0.0
  %1281 = vmatprep.subr.mxu0 0.0
  %1282 = vmatpush1.msra.mxu0 0.0
  %1283 = vmatprep.subr.mxu0 0.0
  %1284 = vmatpush1.msra.mxu0 0.0
  %1285 = vmatprep.subr.mxu0 0.0
  %1286 = vmatpush1.msra.mxu0 0.0
  %1287 = vmatprep.subr.mxu0 0.0
  %1288 = vmatpush1.msra.mxu0 0.0
  %1289 = vmatprep.subr.mxu0 0.0
  %1290 = vmatpush1.msra.mxu0 0.0
  %1291 = vmatprep.subr.mxu0 0.0
  %1292 = vmatpush1.msra.mxu0 0.0
  %1293 = vmatprep.subr.mxu0 0.0
  %1294 = vmatpush1.msra.mxu0 0.0
  %1295 = vmatprep.subr.mxu0 0.0
  %1296 = vmatpush1.msra.mxu0 0.0
  %1297 = vmatprep.subr.mxu0 0.0
  %1298 = vmatpush1.msra.mxu0 0.0
  %1299 = vmatprep.subr.mxu0 0.0
  %1300 = vmatpush1.msra.mxu0 0.0
  %1301 = vmatprep.subr.mxu0 0.0
  %1302 = vmatpush1.msra.mxu0 0.0
  %1303 = vmatprep.subr.mxu0 0.0
  %1304 = vmatpush1.msra.mxu0 0.0
  %1305 = vmatprep.subr.mxu0 0.0
  %1306 = vmatpush1.msra.mxu0 0.0
  %1307 = vmatprep.subr.mxu0 0.0
  %1308 = vmatpush1.msra.mxu0 0.0
  %1309 = vmatprep.subr.mxu0 0.0
  %1310 = vmatpush1.msra.mxu0 0.0
  %1311 = vmatprep.subr.mxu0 0.0
  %1312 = vmatpush1.msra.mxu0 0.0
  %1313 = vmatprep.subr.mxu0 0.0
  %1314 = vmatpush1.msra.mxu0 0.0
  %1315 = vmatprep.subr.mxu0 0.0
  %1316 = vmatpush1.msra.mxu0 0.0
  %1317 = vmatprep.subr.mxu0 0.0
  %1318 = vmatpush1.msra.mxu0 0.0
  %1319 = vmatprep.subr.mxu0 0.0
  %1320 = vmatpush1.msra.mxu0 0.0
  %1321 = vmatprep.subr.mxu0 0.0
  %1322 = vmatpush1.msra.mxu0 0.0
  %1323 = vmatprep.subr.mxu0 0.0
  %1324 = vmatpush1.msra.mxu0 0.0
  %1325 = vmatprep.subr.mxu0 0.0
  %1326 = vmatpush1.msra.mxu0 0.0
  %1327 = vmatprep.subr.mxu0 0.0
  %1328 = vmatpush1.msra.mxu0 0.0
  %1329 = vmatprep.subr.mxu0 0.0
  %1330 = vmatpush1.msra.mxu0 0.0
  %1331 = vmatprep.mubr.f32.mxu0 0.0
  %1332 = vmatmul.mubr.f32.gmra.mrb[0].mxu0 %v1256
  %v1333 = vpop.f32.mrb[0].mxu0
  %v1334 = vadd.f32 0.0, %v1333
  %v1335 = vpop.f32.mrb[0].mxu0
  %1336 = vmatprep.mubr.f32.mxu0 0.0
  %1337 = vmatmul.mubr.f32.gmra.mrb[0].mxu0 %v1259
  %v1338 = vpop.f32.mrb[0].mxu0
  %v1339 = vadd.f32 0.0, %v1338
  %v1340 = vpop.f32.mrb[0].mxu0
  %1341 = vmatprep.mubr.f32.mxu0 0.0
  %1342 = vmatmul.mubr.f32.gmra.mrb[0].mxu0 %v1262
  %v1343 = vpop.f32.mrb[0].mxu0
  %v1344 = vadd.f32 0.0, %v1343
  %v1345 = vpop.f32.mrb[0].mxu0
  %1346 = vmatprep.mubr.f32.mxu0 0.0
  %1347 = vmatmul.mubr.f32.gmra.mrb[0].mxu0 %v1265
  %v1348 = vpop.f32.mrb[0].mxu0
  %v1349 = vadd.f32 0.0, %v1348
  %v1350 = vpop.f32.mrb[0].mxu0
  %1351 = vdwg.mxu0
  %v1352 = vmax.f32 %v1334, 0.0
  %v1353 = vmax.f32 %v1339, 0.0
  %v1354 = vmax.f32 %v1344, 0.0
  %v1355 = vmax.f32 %v1349, 0.0
  %v1356 = vld [vmem:[%s5 + $0x20] sm:$0xff]
  %v1357 = vld [vmem:[%s5 + $0x28] sm:$0xff]
  %v1358 = vld [vmem:[%s5 + $0x30] sm:$0xff]
  %v1359 = vld [vmem:[%s5 + $0x38] sm:$0xff]
  %1360 = vmatprep.subr.mxu0 0.0
  %1361 = vmatpush1.xpose.msra.mxu0 %v35
  %1362 = vmatprep.subr.mxu0 0.0
  %1363 = vmatpush1.xpose.msra.mxu0 0.0
  %1364 = vmatprep.subr.mxu0 0.0
  %1365 = vmatpush1.xpose.msra.mxu0 0.0
  %1366 = vmatprep.subr.mxu0 0.0
  %1367 = vmatpush1.xpose.msra.mxu0 0.0
  %1368 = vmatprep.subr.mxu0 0.0
  %1369 = vmatpush1.xpose.msra.mxu0 0.0
  %1370 = vmatprep.subr.mxu0 0.0
  %1371 = vmatpush1.xpose.msra.mxu0 0.0
  %1372 = vmatprep.subr.mxu0 0.0
  %1373 = vmatpush1.xpose.msra.mxu0 0.0
  %1374 = vmatprep.subr.mxu0 0.0
  %1375 = vmatpush1.xpose.msra.mxu0 0.0
  %1376 = vmatprep.subr.mxu0 0.0
  %1377 = vmatpush1.xpose.msra.mxu0 0.0
  %1378 = vmatprep.subr.mxu0 0.0
  %1379 = vmatpush1.xpose.msra.mxu0 0.0
  %1380 = vmatprep.subr.mxu0 0.0
  %1381 = vmatpush1.xpose.msra.mxu0 0.0
  %1382 = vmatprep.subr.mxu0 0.0
  %1383 = vmatpush1.xpose.msra.mxu0 0.0
  %1384 = vmatprep.subr.mxu0 0.0
  %1385 = vmatpush1.xpose.msra.mxu0 0.0
  %1386 = vmatprep.subr.mxu0 0.0
  %1387 = vmatpush1.xpose.msra.mxu0 0.0
  %1388 = vmatprep.subr.mxu0 0.0
  %1389 = vmatpush1.xpose.msra.mxu0 0.0
  %1390 = vmatprep.subr.mxu0 0.0
  %1391 = vmatpush1.xpose.msra.mxu0 0.0
  %1392 = vmatprep.subr.mxu0 0.0
  %1393 = vmatpush1.xpose.msra.mxu0 0.0
  %1394 = vmatprep.subr.mxu0 0.0
  %1395 = vmatpush1.xpose.msra.mxu0 0.0
  %1396 = vmatprep.subr.mxu0 0.0
  %1397 = vmatpush1.xpose.msra.mxu0 0.0
  %1398 = vmatprep.subr.mxu0 0.0
  %1399 = vmatpush1.xpose.msra.mxu0 0.0
  %1400 = vmatprep.subr.mxu0 0.0
  %1401 = vmatpush1.xpose.msra.mxu0 0.0
  %1402 = vmatprep.subr.mxu0 0.0
  %1403 = vmatpush1.xpose.msra.mxu0 0.0
  %1404 = vmatprep.subr.mxu0 0.0
  %1405 = vmatpush1.xpose.msra.mxu0 0.0
  %1406 = vmatprep.subr.mxu0 0.0
  %1407 = vmatpush1.xpose.msra.mxu0 0.0
  %1408 = vmatprep.subr.mxu0 0.0
  %1409 = vmatpush1.xpose.msra.mxu0 0.0
  %1410 = vmatprep.subr.mxu0 0.0
  %1411 = vmatpush1.xpose.msra.mxu0 0.0
  %1412 = vmatprep.subr.mxu0 0.0
  %1413 = vmatpush1.xpose.msra.mxu0 0.0
  %1414 = vmatprep.subr.mxu0 0.0
  %1415 = vmatpush1.xpose.msra.mxu0 0.0
  %1416 = vmatprep.subr.mxu0 0.0
  %1417 = vmatpush1.xpose.msra.mxu0 0.0
  %1418 = vmatprep.subr.mxu0 0.0
  %1419 = vmatpush1.xpose.msra.mxu0 0.0
  %1420 = vmatprep.subr.mxu0 0.0
  %1421 = vmatpush1.xpose.msra.mxu0 0.0
  %1422 = vmatprep.subr.mxu0 0.0
  %1423 = vmatpush1.xpose.msra.mxu0 0.0
  %1424 = vmatprep.mubr.f32.mxu0 0.0
  %1425 = vmatmul.mubr.f32.gmra.mrb[0].mxu0 %v1352
  %v1426 = vpop.f32.mrb[0].mxu0
  %v1427 = vadd.f32 0.0, %v1426
  %v1428 = vpop.f32.mrb[0].mxu0
  %1429 = vmatprep.mubr.f32.mxu0 0.0
  %1430 = vmatmul.mubr.f32.gmra.mrb[0].mxu0 %v1353
  %v1431 = vpop.f32.mrb[0].mxu0
  %v1432 = vadd.f32 0.0, %v1431
  %v1433 = vpop.f32.mrb[0].mxu0
  %1434 = vmatprep.mubr.f32.mxu0 0.0
  %1435 = vmatmul.mubr.f32.gmra.mrb[0].mxu0 %v1354
  %v1436 = vpop.f32.mrb[0].mxu0
  %v1437 = vadd.f32 0.0, %v1436
  %v1438 = vpop.f32.mrb[0].mxu0
  %1439 = vmatprep.mubr.f32.mxu0 0.0
  %1440 = vmatmul.mubr.f32.gmra.mrb[0].mxu0 %v1355
  %v1441 = vpop.f32.mrb[0].mxu0
  %v1442 = vadd.f32 0.0, %v1441
  %v1443 = vpop.f32.mrb[0].mxu0
  %1444 = vdwg.mxu0
  %v1446 = vsel %vm742, %v1356, 0
  %v1449 = vsel %vm742, %v1357, 0
  %v1452 = vsel %vm742, %v1358, 0
  %v1455 = vsel %vm742, %v1359, 0
  %1457 = vmatprep.subr.mxu0 0.0
  %1458 = vmatpush1.msra.mxu0 %v1352
  %1459 = vmatprep.subr.mxu0 0.0
  %1460 = vmatpush1.msra.mxu0 %v1353
  %1461 = vmatprep.subr.mxu0 0.0
  %1462 = vmatpush1.msra.mxu0 %v1354
  %1463 = vmatprep.subr.mxu0 0.0
  %1464 = vmatpush1.msra.mxu0 %v1355
  %1465 = vmatprep.subr.mxu0 0.0
  %1466 = vmatpush1.msra.mxu0 0.0
  %1467 = vmatprep.subr.mxu0 0.0
  %1468 = vmatpush1.msra.mxu0 0.0
  %1469 = vmatprep.subr.mxu0 0.0
  %1470 = vmatpush1.msra.mxu0 0.0
  %1471 = vmatprep.subr.mxu0 0.0
  %1472 = vmatpush1.msra.mxu0 0.0
  %1473 = vmatprep.subr.mxu0 0.0
  %1474 = vmatpush1.msra.mxu0 0.0
  %1475 = vmatprep.subr.mxu0 0.0
  %1476 = vmatpush1.msra.mxu0 0.0
  %1477 = vmatprep.subr.mxu0 0.0
  %1478 = vmatpush1.msra.mxu0 0.0
  %1479 = vmatprep.subr.mxu0 0.0
  %1480 = vmatpush1.msra.mxu0 0.0
  %1481 = vmatprep.subr.mxu0 0.0
  %1482 = vmatpush1.msra.mxu0 0.0
  %1483 = vmatprep.subr.mxu0 0.0
  %1484 = vmatpush1.msra.mxu0 0.0
  %1485 = vmatprep.subr.mxu0 0.0
  %1486 = vmatpush1.msra.mxu0 0.0
  %1487 = vmatprep.subr.mxu0 0.0
  %1488 = vmatpush1.msra.mxu0 0.0
  %1489 = vmatprep.subr.mxu0 0.0
  %1490 = vmatpush1.msra.mxu0 0.0
  %1491 = vmatprep.subr.mxu0 0.0
  %1492 = vmatpush1.msra.mxu0 0.0
  %1493 = vmatprep.subr.mxu0 0.0
  %1494 = vmatpush1.msra.mxu0 0.0
  %1495 = vmatprep.subr.mxu0 0.0
  %1496 = vmatpush1.msra.mxu0 0.0
  %1497 = vmatprep.subr.mxu0 0.0
  %1498 = vmatpush1.msra.mxu0 0.0
  %1499 = vmatprep.subr.mxu0 0.0
  %1500 = vmatpush1.msra.mxu0 0.0
  %1501 = vmatprep.subr.mxu0 0.0
  %1502 = vmatpush1.msra.mxu0 0.0
  %1503 = vmatprep.subr.mxu0 0.0
  %1504 = vmatpush1.msra.mxu0 0.0
  %1505 = vmatprep.subr.mxu0 0.0
  %1506 = vmatpush1.msra.mxu0 0.0
  %1507 = vmatprep.subr.mxu0 0.0
  %1508 = vmatpush1.msra.mxu0 0.0
  %1509 = vmatprep.subr.mxu0 0.0
  %1510 = vmatpush1.msra.mxu0 0.0
  %1511 = vmatprep.subr.mxu0 0.0
  %1512 = vmatpush1.msra.mxu0 0.0
  %1513 = vmatprep.subr.mxu0 0.0
  %1514 = vmatpush1.msra.mxu0 0.0
  %1515 = vmatprep.subr.mxu0 0.0
  %1516 = vmatpush1.msra.mxu0 0.0
  %1517 = vmatprep.subr.mxu0 0.0
  %1518 = vmatpush1.msra.mxu0 0.0
  %1519 = vmatprep.subr.mxu0 0.0
  %1520 = vmatpush1.msra.mxu0 0.0
  %1521 = vmatprep.mubr.f32.mxu0 0.0
  %1522 = vmatmul.mubr.f32.gmra.mrb[0].mxu0 %v1446
  %v1523 = vpop.f32.mrb[0].mxu0
  %v1524 = vadd.f32 0.0, %v1523
  %v1525 = vpop.f32.mrb[0].mxu0
  %1526 = vmatprep.mubr.f32.mxu0 0.0
  %1527 = vmatmul.mubr.f32.gmra.mrb[0].mxu0 %v1449
  %v1528 = vpop.f32.mrb[0].mxu0
  %v1529 = vadd.f32 0.0, %v1528
  %v1530 = vpop.f32.mrb[0].mxu0
  %1531 = vmatprep.mubr.f32.mxu0 0.0
  %1532 = vmatmul.mubr.f32.gmra.mrb[0].mxu0 %v1452
  %v1533 = vpop.f32.mrb[0].mxu0
  %v1534 = vadd.f32 0.0, %v1533
  %v1535 = vpop.f32.mrb[0].mxu0
  %1536 = vmatprep.mubr.f32.mxu0 0.0
  %1537 = vmatmul.mubr.f32.gmra.mrb[0].mxu0 %v1455
  %v1538 = vpop.f32.mrb[0].mxu0
  %v1539 = vadd.f32 0.0, %v1538
  %v1540 = vpop.f32.mrb[0].mxu0
  %1541 = vdwg.mxu0
  %v1542 = vmax.f32 %v1524, 0.0
  %v1543 = vmax.f32 %v1529, 0.0
  %v1544 = vmax.f32 %v1534, 0.0
  %v1545 = vmax.f32 %v1539, 0.0
  %1546 = vmatprep.subr.mxu0 0.0
  %1547 = vmatpush1.msra.mxu0 %v1427
  %1548 = vmatprep.subr.mxu0 0.0
  %1549 = vmatpush1.msra.mxu0 %v1432
  %1550 = vmatprep.subr.mxu0 0.0
  %1551 = vmatpush1.msra.mxu0 %v1437
  %1552 = vmatprep.subr.mxu0 0.0
  %1553 = vmatpush1.msra.mxu0 %v1442
  %1554 = vmatprep.subr.mxu0 0.0
  %1555 = vmatpush1.msra.mxu0 0.0
  %1556 = vmatprep.subr.mxu0 0.0
  %1557 = vmatpush1.msra.mxu0 0.0
  %1558 = vmatprep.subr.mxu0 0.0
  %1559 = vmatpush1.msra.mxu0 0.0
  %1560 = vmatprep.subr.mxu0 0.0
  %1561 = vmatpush1.msra.mxu0 0.0
  %1562 = vmatprep.subr.mxu0 0.0
  %1563 = vmatpush1.msra.mxu0 0.0
  %1564 = vmatprep.subr.mxu0 0.0
  %1565 = vmatpush1.msra.mxu0 0.0
  %1566 = vmatprep.subr.mxu0 0.0
  %1567 = vmatpush1.msra.mxu0 0.0
  %1568 = vmatprep.subr.mxu0 0.0
  %1569 = vmatpush1.msra.mxu0 0.0
  %1570 = vmatprep.subr.mxu0 0.0
  %1571 = vmatpush1.msra.mxu0 0.0
  %1572 = vmatprep.subr.mxu0 0.0
  %1573 = vmatpush1.msra.mxu0 0.0
  %1574 = vmatprep.subr.mxu0 0.0
  %1575 = vmatpush1.msra.mxu0 0.0
  %1576 = vmatprep.subr.mxu0 0.0
  %1577 = vmatpush1.msra.mxu0 0.0
  %1578 = vmatprep.subr.mxu0 0.0
  %1579 = vmatpush1.msra.mxu0 0.0
  %1580 = vmatprep.subr.mxu0 0.0
  %1581 = vmatpush1.msra.mxu0 0.0
  %1582 = vmatprep.subr.mxu0 0.0
  %1583 = vmatpush1.msra.mxu0 0.0
  %1584 = vmatprep.subr.mxu0 0.0
  %1585 = vmatpush1.msra.mxu0 0.0
  %1586 = vmatprep.subr.mxu0 0.0
  %1587 = vmatpush1.msra.mxu0 0.0
  %1588 = vmatprep.subr.mxu0 0.0
  %1589 = vmatpush1.msra.mxu0 0.0
  %1590 = vmatprep.subr.mxu0 0.0
  %1591 = vmatpush1.msra.mxu0 0.0
  %1592 = vmatprep.subr.mxu0 0.0
  %1593 = vmatpush1.msra.mxu0 0.0
  %1594 = vmatprep.subr.mxu0 0.0
  %1595 = vmatpush1.msra.mxu0 0.0
  %1596 = vmatprep.subr.mxu0 0.0
  %1597 = vmatpush1.msra.mxu0 0.0
  %1598 = vmatprep.subr.mxu0 0.0
  %1599 = vmatpush1.msra.mxu0 0.0
  %1600 = vmatprep.subr.mxu0 0.0
  %1601 = vmatpush1.msra.mxu0 0.0
  %1602 = vmatprep.subr.mxu0 0.0
  %1603 = vmatpush1.msra.mxu0 0.0
  %1604 = vmatprep.subr.mxu0 0.0
  %1605 = vmatpush1.msra.mxu0 0.0
  %1606 = vmatprep.subr.mxu0 0.0
  %1607 = vmatpush1.msra.mxu0 0.0
  %1608 = vmatprep.subr.mxu0 0.0
  %1609 = vmatpush1.msra.mxu0 0.0
  %1610 = vmatprep.mubr.f32.mxu0 0.0
  %1611 = vmatmul.mubr.f32.gmra.mrb[0].mxu0 %v1446
  %v1612 = vpop.f32.mrb[0].mxu0
  %v1613 = vadd.f32 0.0, %v1612
  %v1614 = vpop.f32.mrb[0].mxu0
  %1615 = vmatprep.mubr.f32.mxu0 0.0
  %1616 = vmatmul.mubr.f32.gmra.mrb[0].mxu0 %v1449
  %v1617 = vpop.f32.mrb[0].mxu0
  %v1618 = vadd.f32 0.0, %v1617
  %v1619 = vpop.f32.mrb[0].mxu0
  %1620 = vmatprep.mubr.f32.mxu0 0.0
  %1621 = vmatmul.mubr.f32.gmra.mrb[0].mxu0 %v1452
  %v1622 = vpop.f32.mrb[0].mxu0
  %v1623 = vadd.f32 0.0, %v1622
  %v1624 = vpop.f32.mrb[0].mxu0
  %1625 = vmatprep.mubr.f32.mxu0 0.0
  %1626 = vmatmul.mubr.f32.gmra.mrb[0].mxu0 %v1455
  %v1627 = vpop.f32.mrb[0].mxu0
  %v1628 = vadd.f32 0.0, %v1627
  %v1629 = vpop.f32.mrb[0].mxu0
  %1630 = vdwg.mxu0
  %v1631 = vmax.f32 %v1613, 0.0
  %v1632 = vmax.f32 %v1618, 0.0
  %v1633 = vmax.f32 %v1623, 0.0
  %v1634 = vmax.f32 %v1628, 0.0
  %1635 = vmatprep.subr.mxu0 0.0
  %1636 = vmatpush1.msra.mxu0 %v1542
  %1637 = vmatprep.subr.mxu0 0.0
  %1638 = vmatpush1.msra.mxu0 %v1543
  %1639 = vmatprep.subr.mxu0 0.0
  %1640 = vmatpush1.msra.mxu0 %v1544
  %1641 = vmatprep.subr.mxu0 0.0
  %1642 = vmatpush1.msra.mxu0 %v1545
  %1643 = vmatprep.subr.mxu0 0.0
  %1644 = vmatpush1.msra.mxu0 0.0
  %1645 = vmatprep.subr.mxu0 0.0
  %1646 = vmatpush1.msra.mxu0 0.0
  %1647 = vmatprep.subr.mxu0 0.0
  %1648 = vmatpush1.msra.mxu0 0.0
  %1649 = vmatprep.subr.mxu0 0.0
  %1650 = vmatpush1.msra.mxu0 0.0
  %1651 = vmatprep.subr.mxu0 0.0
  %1652 = vmatpush1.msra.mxu0 0.0
  %1653 = vmatprep.subr.mxu0 0.0
  %1654 = vmatpush1.msra.mxu0 0.0
  %1655 = vmatprep.subr.mxu0 0.0
  %1656 = vmatpush1.msra.mxu0 0.0
  %1657 = vmatprep.subr.mxu0 0.0
  %1658 = vmatpush1.msra.mxu0 0.0
  %1659 = vmatprep.subr.mxu0 0.0
  %1660 = vmatpush1.msra.mxu0 0.0
  %1661 = vmatprep.subr.mxu0 0.0
  %1662 = vmatpush1.msra.mxu0 0.0
  %1663 = vmatprep.subr.mxu0 0.0
  %1664 = vmatpush1.msra.mxu0 0.0
  %1665 = vmatprep.subr.mxu0 0.0
  %1666 = vmatpush1.msra.mxu0 0.0
  %1667 = vmatprep.subr.mxu0 0.0
  %1668 = vmatpush1.msra.mxu0 0.0
  %1669 = vmatprep.subr.mxu0 0.0
  %1670 = vmatpush1.msra.mxu0 0.0
  %1671 = vmatprep.subr.mxu0 0.0
  %1672 = vmatpush1.msra.mxu0 0.0
  %1673 = vmatprep.subr.mxu0 0.0
  %1674 = vmatpush1.msra.mxu0 0.0
  %1675 = vmatprep.subr.mxu0 0.0
  %1676 = vmatpush1.msra.mxu0 0.0
  %1677 = vmatprep.subr.mxu0 0.0
  %1678 = vmatpush1.msra.mxu0 0.0
  %1679 = vmatprep.subr.mxu0 0.0
  %1680 = vmatpush1.msra.mxu0 0.0
  %1681 = vmatprep.subr.mxu0 0.0
  %1682 = vmatpush1.msra.mxu0 0.0
  %1683 = vmatprep.subr.mxu0 0.0
  %1684 = vmatpush1.msra.mxu0 0.0
  %1685 = vmatprep.subr.mxu0 0.0
  %1686 = vmatpush1.msra.mxu0 0.0
  %1687 = vmatprep.subr.mxu0 0.0
  %1688 = vmatpush1.msra.mxu0 0.0
  %1689 = vmatprep.subr.mxu0 0.0
  %1690 = vmatpush1.msra.mxu0 0.0
  %1691 = vmatprep.subr.mxu0 0.0
  %1692 = vmatpush1.msra.mxu0 0.0
  %1693 = vmatprep.subr.mxu0 0.0
  %1694 = vmatpush1.msra.mxu0 0.0
  %1695 = vmatprep.subr.mxu0 0.0
  %1696 = vmatpush1.msra.mxu0 0.0
  %1697 = vmatprep.subr.mxu0 0.0
  %1698 = vmatpush1.msra.mxu0 0.0
  %1699 = vmatprep.mubr.f32.mxu0 0.0
  %1700 = vmatmul.mubr.f32.gmra.mrb[0].mxu0 %v744
  %v1701 = vpop.f32.mrb[0].mxu0
  %v1702 = vadd.f32 0.0, %v1701
  %v1703 = vpop.f32.mrb[0].mxu0
  %1704 = vdwg.mxu0
  %v1705 = vlaneseq
  %v1706 = vshrl.u32 %v1705, 7
  %v1707 = vsub.s32 0, %v1706
  %v1708 = vrot.slane %v1702, %v1707
  %v1709 = vsub.f32 %v1542, %v1708
  %v1710 = vsub.f32 %v1543, %v1708
  %v1711 = vsub.f32 %v1544, %v1708
  %v1712 = vsub.f32 %v1545, %v1708
  %v1713 = vmul.f32 %v1709, %v1709
  %v1714 = vmul.f32 %v1710, %v1710
  %v1715 = vmul.f32 %v1711, %v1711
  %v1716 = vmul.f32 %v1712, %v1712
  %1717 = vmatprep.subr.mxu0 0.0
  %1718 = vmatpush1.msra.mxu0 %v1713
  %1719 = vmatprep.subr.mxu0 0.0
  %1720 = vmatpush1.msra.mxu0 %v1714
  %1721 = vmatprep.subr.mxu0 0.0
  %1722 = vmatpush1.msra.mxu0 %v1715
  %1723 = vmatprep.subr.mxu0 0.0
  %1724 = vmatpush1.msra.mxu0 %v1716
  %1725 = vmatprep.subr.mxu0 0.0
  %1726 = vmatpush1.msra.mxu0 0.0
  %1727 = vmatprep.subr.mxu0 0.0
  %1728 = vmatpush1.msra.mxu0 0.0
  %1729 = vmatprep.subr.mxu0 0.0
  %1730 = vmatpush1.msra.mxu0 0.0
  %1731 = vmatprep.subr.mxu0 0.0
  %1732 = vmatpush1.msra.mxu0 0.0
  %1733 = vmatprep.subr.mxu0 0.0
  %1734 = vmatpush1.msra.mxu0 0.0
  %1735 = vmatprep.subr.mxu0 0.0
  %1736 = vmatpush1.msra.mxu0 0.0
  %1737 = vmatprep.subr.mxu0 0.0
  %1738 = vmatpush1.msra.mxu0 0.0
  %1739 = vmatprep.subr.mxu0 0.0
  %1740 = vmatpush1.msra.mxu0 0.0
  %1741 = vmatprep.subr.mxu0 0.0
  %1742 = vmatpush1.msra.mxu0 0.0
  %1743 = vmatprep.subr.mxu0 0.0
  %1744 = vmatpush1.msra.mxu0 0.0
  %1745 = vmatprep.subr.mxu0 0.0
  %1746 = vmatpush1.msra.mxu0 0.0
  %1747 = vmatprep.subr.mxu0 0.0
  %1748 = vmatpush1.msra.mxu0 0.0
  %1749 = vmatprep.subr.mxu0 0.0
  %1750 = vmatpush1.msra.mxu0 0.0
  %1751 = vmatprep.subr.mxu0 0.0
  %1752 = vmatpush1.msra.mxu0 0.0
  %1753 = vmatprep.subr.mxu0 0.0
  %1754 = vmatpush1.msra.mxu0 0.0
  %1755 = vmatprep.subr.mxu0 0.0
  %1756 = vmatpush1.msra.mxu0 0.0
  %1757 = vmatprep.subr.mxu0 0.0
  %1758 = vmatpush1.msra.mxu0 0.0
  %1759 = vmatprep.subr.mxu0 0.0
  %1760 = vmatpush1.msra.mxu0 0.0
  %1761 = vmatprep.subr.mxu0 0.0
  %1762 = vmatpush1.msra.mxu0 0.0
  %1763 = vmatprep.subr.mxu0 0.0
  %1764 = vmatpush1.msra.mxu0 0.0
  %1765 = vmatprep.subr.mxu0 0.0
  %1766 = vmatpush1.msra.mxu0 0.0
  %1767 = vmatprep.subr.mxu0 0.0
  %1768 = vmatpush1.msra.mxu0 0.0
  %1769 = vmatprep.subr.mxu0 0.0
  %1770 = vmatpush1.msra.mxu0 0.0
  %1771 = vmatprep.subr.mxu0 0.0
  %1772 = vmatpush1.msra.mxu0 0.0
  %1773 = vmatprep.subr.mxu0 0.0
  %1774 = vmatpush1.msra.mxu0 0.0
  %1775 = vmatprep.subr.mxu0 0.0
  %1776 = vmatpush1.msra.mxu0 0.0
  %1777 = vmatprep.subr.mxu0 0.0
  %1778 = vmatpush1.msra.mxu0 0.0
  %1779 = vmatprep.subr.mxu0 0.0
  %1780 = vmatpush1.msra.mxu0 0.0
  %1781 = vmatprep.mubr.f32.mxu0 0.0
  %1782 = vmatmul.mubr.f32.gmra.mrb[0].mxu0 %v744
  %v1783 = vpop.f32.mrb[0].mxu0
  %v1784 = vadd.f32 1e-05, %v1783
  %v1785 = vpop.f32.mrb[0].mxu0
  %1786 = vdwg.mxu0
  %v1787 = vrsqrt.pop %v1784
  %v1788 = vlaneseq
  %v1789 = vshrl.u32 %v1788, 7
  %v1790 = vsub.s32 0, %v1789
  %v1791 = vrot.slane %v1787, %v1790
  %v1792 = vmul.f32 %v1709, %v1791
  %v1793 = vmul.f32 %v1710, %v1791
  %v1794 = vmul.f32 %v1711, %v1791
  %v1795 = vmul.f32 %v1712, %v1791
  %1796 = vset.pattern.permute.xlu0 1
  %1797 = vperm.xlu0 %1796, %v37
  %v1798 = vpop.permute.xlu0 %1797
  %1800 = vset.pattern.permute.xlu0 1
  %1801 = vperm.xlu0 %1800, %v38
  %v1802 = vpop.permute.xlu0 %1801
  %1804 = vset.pattern.permute.xlu0 1
  %1805 = vperm.xlu0 %1804, %v39
  %v1806 = vpop.permute.xlu0 %1805
  %1808 = vset.pattern.permute.xlu0 1
  %1809 = vperm.xlu0 %1808, %v40
  %v1810 = vpop.permute.xlu0 %1809
  %v1812 = vmul.f32 %v1792, %v1798
  %v1813 = vmul.f32 %v1793, %v1802
  %v1814 = vmul.f32 %v1794, %v1806
  %v1815 = vmul.f32 %v1795, %v1810
  %1816 = vset.pattern.permute.xlu0 5
  %1817 = vperm.xlu0 %1816, %v37
  %v1818 = vpop.permute.xlu0 %1817
  %1820 = vset.pattern.permute.xlu0 5
  %1821 = vperm.xlu0 %1820, %v38
  %v1822 = vpop.permute.xlu0 %1821
  %1824 = vset.pattern.permute.xlu0 5
  %1825 = vperm.xlu0 %1824, %v39
  %v1826 = vpop.permute.xlu0 %1825
  %1828 = vset.pattern.permute.xlu0 5
  %1829 = vperm.xlu0 %1828, %v40
  %v1830 = vpop.permute.xlu0 %1829
  %v1832 = vadd.f32 %v1812, %v1818
  %v1833 = vadd.f32 %v1813, %v1822
  %v1834 = vadd.f32 %v1814, %v1826
  %v1835 = vadd.f32 %v1815, %v1830
  %1836 = vmatprep.subr.mxu0 0.0
  %1837 = vmatpush1.msra.mxu0 %v1631
  %1838 = vmatprep.subr.mxu0 0.0
  %1839 = vmatpush1.msra.mxu0 %v1632
  %1840 = vmatprep.subr.mxu0 0.0
  %1841 = vmatpush1.msra.mxu0 %v1633
  %1842 = vmatprep.subr.mxu0 0.0
  %1843 = vmatpush1.msra.mxu0 %v1634
  %1844 = vmatprep.subr.mxu0 0.0
  %1845 = vmatpush1.msra.mxu0 0.0
  %1846 = vmatprep.subr.mxu0 0.0
  %1847 = vmatpush1.msra.mxu0 0.0
  %1848 = vmatprep.subr.mxu0 0.0
  %1849 = vmatpush1.msra.mxu0 0.0
  %1850 = vmatprep.subr.mxu0 0.0
  %1851 = vmatpush1.msra.mxu0 0.0
  %1852 = vmatprep.subr.mxu0 0.0
  %1853 = vmatpush1.msra.mxu0 0.0
  %1854 = vmatprep.subr.mxu0 0.0
  %1855 = vmatpush1.msra.mxu0 0.0
  %1856 = vmatprep.subr.mxu0 0.0
  %1857 = vmatpush1.msra.mxu0 0.0
  %1858 = vmatprep.subr.mxu0 0.0
  %1859 = vmatpush1.msra.mxu0 0.0
  %1860 = vmatprep.subr.mxu0 0.0
  %1861 = vmatpush1.msra.mxu0 0.0
  %1862 = vmatprep.subr.mxu0 0.0
  %1863 = vmatpush1.msra.mxu0 0.0
  %1864 = vmatprep.subr.mxu0 0.0
  %1865 = vmatpush1.msra.mxu0 0.0
  %1866 = vmatprep.subr.mxu0 0.0
  %1867 = vmatpush1.msra.mxu0 0.0
  %1868 = vmatprep.subr.mxu0 0.0
  %1869 = vmatpush1.msra.mxu0 0.0
  %1870 = vmatprep.subr.mxu0 0.0
  %1871 = vmatpush1.msra.mxu0 0.0
  %1872 = vmatprep.subr.mxu0 0.0
  %1873 = vmatpush1.msra.mxu0 0.0
  %1874 = vmatprep.subr.mxu0 0.0
  %1875 = vmatpush1.msra.mxu0 0.0
  %1876 = vmatprep.subr.mxu0 0.0
  %1877 = vmatpush1.msra.mxu0 0.0
  %1878 = vmatprep.subr.mxu0 0.0
  %1879 = vmatpush1.msra.mxu0 0.0
  %1880 = vmatprep.subr.mxu0 0.0
  %1881 = vmatpush1.msra.mxu0 0.0
  %1882 = vmatprep.subr.mxu0 0.0
  %1883 = vmatpush1.msra.mxu0 0.0
  %1884 = vmatprep.subr.mxu0 0.0
  %1885 = vmatpush1.msra.mxu0 0.0
  %1886 = vmatprep.subr.mxu0 0.0
  %1887 = vmatpush1.msra.mxu0 0.0
  %1888 = vmatprep.subr.mxu0 0.0
  %1889 = vmatpush1.msra.mxu0 0.0
  %1890 = vmatprep.subr.mxu0 0.0
  %1891 = vmatpush1.msra.mxu0 0.0
  %1892 = vmatprep.subr.mxu0 0.0
  %1893 = vmatpush1.msra.mxu0 0.0
  %1894 = vmatprep.subr.mxu0 0.0
  %1895 = vmatpush1.msra.mxu0 0.0
  %1896 = vmatprep.subr.mxu0 0.0
  %1897 = vmatpush1.msra.mxu0 0.0
  %1898 = vmatprep.subr.mxu0 0.0
  %1899 = vmatpush1.msra.mxu0 0.0
  %1900 = vmatprep.mubr.f32.mxu0 0.0
  %1901 = vmatmul.mubr.f32.gmra.mrb[0].mxu0 %v744
  %v1902 = vpop.f32.mrb[0].mxu0
  %v1903 = vadd.f32 0.0, %v1902
  %v1904 = vpop.f32.mrb[0].mxu0
  %1905 = vdwg.mxu0
  %v1906 = vlaneseq
  %v1907 = vshrl.u32 %v1906, 7
  %v1908 = vsub.s32 0, %v1907
  %v1909 = vrot.slane %v1903, %v1908
  %v1910 = vsub.f32 %v1631, %v1909
  %v1911 = vsub.f32 %v1632, %v1909
  %v1912 = vsub.f32 %v1633, %v1909
  %v1913 = vsub.f32 %v1634, %v1909
  %v1914 = vmul.f32 %v1910, %v1910
  %v1915 = vmul.f32 %v1911, %v1911
  %v1916 = vmul.f32 %v1912, %v1912
  %v1917 = vmul.f32 %v1913, %v1913
  %1918 = vmatprep.subr.mxu0 0.0
  %1919 = vmatpush1.msra.mxu0 %v1914
  %1920 = vmatprep.subr.mxu0 0.0
  %1921 = vmatpush1.msra.mxu0 %v1915
  %1922 = vmatprep.subr.mxu0 0.0
  %1923 = vmatpush1.msra.mxu0 %v1916
  %1924 = vmatprep.subr.mxu0 0.0
  %1925 = vmatpush1.msra.mxu0 %v1917
  %1926 = vmatprep.subr.mxu0 0.0
  %1927 = vmatpush1.msra.mxu0 0.0
  %1928 = vmatprep.subr.mxu0 0.0
  %1929 = vmatpush1.msra.mxu0 0.0
  %1930 = vmatprep.subr.mxu0 0.0
  %1931 = vmatpush1.msra.mxu0 0.0
  %1932 = vmatprep.subr.mxu0 0.0
  %1933 = vmatpush1.msra.mxu0 0.0
  %1934 = vmatprep.subr.mxu0 0.0
  %1935 = vmatpush1.msra.mxu0 0.0
  %1936 = vmatprep.subr.mxu0 0.0
  %1937 = vmatpush1.msra.mxu0 0.0
  %1938 = vmatprep.subr.mxu0 0.0
  %1939 = vmatpush1.msra.mxu0 0.0
  %1940 = vmatprep.subr.mxu0 0.0
  %1941 = vmatpush1.msra.mxu0 0.0
  %1942 = vmatprep.subr.mxu0 0.0
  %1943 = vmatpush1.msra.mxu0 0.0
  %1944 = vmatprep.subr.mxu0 0.0
  %1945 = vmatpush1.msra.mxu0 0.0
  %1946 = vmatprep.subr.mxu0 0.0
  %1947 = vmatpush1.msra.mxu0 0.0
  %1948 = vmatprep.subr.mxu0 0.0
  %1949 = vmatpush1.msra.mxu0 0.0
  %1950 = vmatprep.subr.mxu0 0.0
  %1951 = vmatpush1.msra.mxu0 0.0
  %1952 = vmatprep.subr.mxu0 0.0
  %1953 = vmatpush1.msra.mxu0 0.0
  %1954 = vmatprep.subr.mxu0 0.0
  %1955 = vmatpush1.msra.mxu0 0.0
  %1956 = vmatprep.subr.mxu0 0.0
  %1957 = vmatpush1.msra.mxu0 0.0
  %1958 = vmatprep.subr.mxu0 0.0
  %1959 = vmatpush1.msra.mxu0 0.0
  %1960 = vmatprep.subr.mxu0 0.0
  %1961 = vmatpush1.msra.mxu0 0.0
  %1962 = vmatprep.subr.mxu0 0.0
  %1963 = vmatpush1.msra.mxu0 0.0
  %1964 = vmatprep.subr.mxu0 0.0
  %1965 = vmatpush1.msra.mxu0 0.0
  %1966 = vmatprep.subr.mxu0 0.0
  %1967 = vmatpush1.msra.mxu0 0.0
  %1968 = vmatprep.subr.mxu0 0.0
  %1969 = vmatpush1.msra.mxu0 0.0
  %1970 = vmatprep.subr.mxu0 0.0
  %1971 = vmatpush1.msra.mxu0 0.0
  %1972 = vmatprep.subr.mxu0 0.0
  %1973 = vmatpush1.msra.mxu0 0.0
  %1974 = vmatprep.subr.mxu0 0.0
  %1975 = vmatpush1.msra.mxu0 0.0
  %1976 = vmatprep.subr.mxu0 0.0
  %1977 = vmatpush1.msra.mxu0 0.0
  %1978 = vmatprep.subr.mxu0 0.0
  %1979 = vmatpush1.msra.mxu0 0.0
  %1980 = vmatprep.subr.mxu0 0.0
  %1981 = vmatpush1.msra.mxu0 0.0
  %1982 = vmatprep.mubr.f32.mxu0 0.0
  %1983 = vmatmul.mubr.f32.gmra.mrb[0].mxu0 %v744
  %v1984 = vpop.f32.mrb[0].mxu0
  %v1985 = vadd.f32 1e-05, %v1984
  %v1986 = vpop.f32.mrb[0].mxu0
  %1987 = vdwg.mxu0
  %v1988 = vrsqrt.pop %v1985
  %v1989 = vlaneseq
  %v1990 = vshrl.u32 %v1989, 7
  %v1991 = vsub.s32 0, %v1990
  %v1992 = vrot.slane %v1988, %v1991
  %v1993 = vmul.f32 %v1910, %v1992
  %v1994 = vmul.f32 %v1911, %v1992
  %v1995 = vmul.f32 %v1912, %v1992
  %v1996 = vmul.f32 %v1913, %v1992
  %v1997 = vmul.f32 %v1993, %v1798
  %v1998 = vmul.f32 %v1994, %v1802
  %v1999 = vmul.f32 %v1995, %v1806
  %v2000 = vmul.f32 %v1996, %v1810
  %v2001 = vadd.f32 %v1997, %v1818
  %v2002 = vadd.f32 %v1998, %v1822
  %v2003 = vadd.f32 %v1999, %v1826
  %v2004 = vadd.f32 %v2000, %v1830
  %2005 = vxpose.xlu0.b32.start [1/16] %v2001, 128
  %2006 = vxpose.xlu0.b32.cont [2/16] %v2002, 128
  %2007 = vxpose.xlu0.b32.cont [3/16] %v2003, 128
  %2008 = vxpose.xlu0.b32.cont [4/16] %v2004, 128
  %2009 = vxpose.xlu0.b32.cont [5/16] 0.0, 128
  %2010 = vxpose.xlu0.b32.cont [6/16] 0.0, 128
  %2011 = vxpose.xlu0.b32.cont [7/16] 0.0, 128
  %2012 = vxpose.xlu0.b32.cont [8/16] 0.0, 128
  %2013 = vxpose.xlu0.b32.cont [9/16] 0.0, 128
  %2014 = vxpose.xlu0.b32.cont [10/16] 0.0, 128
  %2015 = vxpose.xlu0.b32.cont [11/16] 0.0, 128
  %2016 = vxpose.xlu0.b32.cont [12/16] 0.0, 128
  %2017 = vxpose.xlu0.b32.cont [13/16] 0.0, 128
  %2018 = vxpose.xlu0.b32.cont [14/16] 0.0, 128
  %2019 = vxpose.xlu0.b32.cont [15/16] 0.0, 128
  %2020 = vxpose.xlu0.b32.end [16/16] 0.0, 128
  %v2021 = vpop.trf.xlu0
  %v2022 = vpop.trf.xlu0
  %v2023 = vpop.trf.xlu0
  %v2024 = vpop.trf.xlu0
  %v2025 = vpop.trf.xlu0
  %v2026 = vpop.trf.xlu0
  %v2027 = vpop.trf.xlu0
  %v2028 = vpop.trf.xlu0
  %v2029 = vpop.trf.xlu0
  %v2030 = vpop.trf.xlu0
  %v2031 = vpop.trf.xlu0
  %v2032 = vpop.trf.xlu0
  %v2033 = vpop.trf.xlu0
  %v2034 = vpop.trf.xlu0
  %v2035 = vpop.trf.xlu0
  %v2036 = vpop.trf.xlu0
  %v2038 = vsel %vm742, %v2021, 0
  %2040 = vmatprep.subr.mxu0 0.0
  %2041 = vmatpush1.msra.mxu0 %v1832
  %2042 = vmatprep.subr.mxu0 0.0
  %2043 = vmatpush1.msra.mxu0 %v1833
  %2044 = vmatprep.subr.mxu0 0.0
  %2045 = vmatpush1.msra.mxu0 %v1834
  %2046 = vmatprep.subr.mxu0 0.0
  %2047 = vmatpush1.msra.mxu0 %v1835
  %2048 = vmatprep.subr.mxu0 0.0
  %2049 = vmatpush1.msra.mxu0 0.0
  %2050 = vmatprep.subr.mxu0 0.0
  %2051 = vmatpush1.msra.mxu0 0.0
  %2052 = vmatprep.subr.mxu0 0.0
  %2053 = vmatpush1.msra.mxu0 0.0
  %2054 = vmatprep.subr.mxu0 0.0
  %2055 = vmatpush1.msra.mxu0 0.0
  %2056 = vmatprep.subr.mxu0 0.0
  %2057 = vmatpush1.msra.mxu0 0.0
  %2058 = vmatprep.subr.mxu0 0.0
  %2059 = vmatpush1.msra.mxu0 0.0
  %2060 = vmatprep.subr.mxu0 0.0
  %2061 = vmatpush1.msra.mxu0 0.0
  %2062 = vmatprep.subr.mxu0 0.0
  %2063 = vmatpush1.msra.mxu0 0.0
  %2064 = vmatprep.subr.mxu0 0.0
  %2065 = vmatpush1.msra.mxu0 0.0
  %2066 = vmatprep.subr.mxu0 0.0
  %2067 = vmatpush1.msra.mxu0 0.0
  %2068 = vmatprep.subr.mxu0 0.0
  %2069 = vmatpush1.msra.mxu0 0.0
  %2070 = vmatprep.subr.mxu0 0.0
  %2071 = vmatpush1.msra.mxu0 0.0
  %2072 = vmatprep.subr.mxu0 0.0
  %2073 = vmatpush1.msra.mxu0 0.0
  %2074 = vmatprep.subr.mxu0 0.0
  %2075 = vmatpush1.msra.mxu0 0.0
  %2076 = vmatprep.subr.mxu0 0.0
  %2077 = vmatpush1.msra.mxu0 0.0
  %2078 = vmatprep.subr.mxu0 0.0
  %2079 = vmatpush1.msra.mxu0 0.0
  %2080 = vmatprep.subr.mxu0 0.0
  %2081 = vmatpush1.msra.mxu0 0.0
  %2082 = vmatprep.subr.mxu0 0.0
  %2083 = vmatpush1.msra.mxu0 0.0
  %2084 = vmatprep.subr.mxu0 0.0
  %2085 = vmatpush1.msra.mxu0 0.0
  %2086 = vmatprep.subr.mxu0 0.0
  %2087 = vmatpush1.msra.mxu0 0.0
  %2088 = vmatprep.subr.mxu0 0.0
  %2089 = vmatpush1.msra.mxu0 0.0
  %2090 = vmatprep.subr.mxu0 0.0
  %2091 = vmatpush1.msra.mxu0 0.0
  %2092 = vmatprep.subr.mxu0 0.0
  %2093 = vmatpush1.msra.mxu0 0.0
  %2094 = vmatprep.subr.mxu0 0.0
  %2095 = vmatpush1.msra.mxu0 0.0
  %2096 = vmatprep.subr.mxu0 0.0
  %2097 = vmatpush1.msra.mxu0 0.0
  %2098 = vmatprep.subr.mxu0 0.0
  %2099 = vmatpush1.msra.mxu0 0.0
  %2100 = vmatprep.subr.mxu0 0.0
  %2101 = vmatpush1.msra.mxu0 0.0
  %2102 = vmatprep.subr.mxu0 0.0
  %2103 = vmatpush1.msra.mxu0 0.0
  %2104 = vmatprep.mubr.f32.mxu0 0.0
  %2105 = vmatmul.mubr.f32.gmra.mrb[0].mxu0 %v2038
  %v2106 = vpop.f32.mrb[0].mxu0
  %v2107 = vadd.f32 0.0, %v2106
  %v2108 = vpop.f32.mrb[0].mxu0
  %2109 = vdwg.mxu0
  %v2110 = vmul.f32 %v2107, 0.17677669
  %v2111 = vsel %vm1226, %v2110, -1e+30
  %v2112 = vsel %vm1228, %v2111, -inf
  %2113 = vmax.xlane.f32.xlu0 %v2112
  %v2114 = vpop.xlane.xlu0 %2113
  %v2115 = vsub.f32 %v2111, %v2114
  %v2116 = vmul.f32 %v2115, 1.442695
  %v2117 = vpow.pop %v2116
  %v2118 = vmul.f32 %v2117, %v475
  %v2119 = vsel %vm1228, %v2118, 0.0
  %2120 = vadd.xlane.f32.xlu0 %v2119
  %v2121 = vpop.xlane.xlu0 %2120
  %v2122 = vrcp.pop %v2121
  %v2123 = vmul.f32 1.0, %v2122
  %v2124 = vmul.f32 %v2118, %v2123
  %v2125 = vsel %vm1228, %v2124, 0.0
  %v2126 = vrot.slane %v2125, 4
  %v2127 = vadd.f32 %v2125, %v2126
  %v2128 = vrot.slane %v2127, 2
  %v2129 = vadd.f32 %v2127, %v2128
  %v2130 = vrot.slane %v2129, 1
  %v2131 = vadd.f32 %v2129, %v2130
  %v2132 = vmul.f32 %v1352, %v2131
  %v2133 = vmul.f32 %v1353, %v2131
  %v2134 = vmul.f32 %v1354, %v2131
  %v2135 = vmul.f32 %v1355, %v2131
  %v2136 = vld [vmem:[%s4 + $0x30] sm:$0xff]
  %v2137 = vld [vmem:[%s4 + $0x38] sm:$0xff]
  %v2138 = vld [vmem:[%s4 + $0x40] sm:$0xff]
  %v2139 = vld [vmem:[%s4 + $0x48] sm:$0xff]
  %v2140 = vld [vmem:[%s4 + $0x50] sm:$0xff]
  %v2141 = vld [vmem:[%s4 + $0x58] sm:$0xff]
  %v2142 = vld [vmem:[%s4 + $0x60] sm:$0xff]
  %v2143 = vld [vmem:[%s4 + $0x68] sm:$0xff]
  %v2145 = vsel %vm742, %v2136, 0
  %v2148 = vsel %vm742, %v2137, 0
  %v2151 = vsel %vm742, %v2138, 0
  %v2154 = vsel %vm742, %v2139, 0
  %v2157 = vsel %vm742, %v2140, 0
  %v2160 = vsel %vm742, %v2141, 0
  %v2163 = vsel %vm742, %v2142, 0
  %v2166 = vsel %vm742, %v2143, 0
  %2168 = vmatprep.subr.mxu0 0.0
  %2169 = vmatpush1.msra.mxu0 %v2132
  %2170 = vmatprep.subr.mxu0 0.0
  %2171 = vmatpush1.msra.mxu0 %v2133
  %2172 = vmatprep.subr.mxu0 0.0
  %2173 = vmatpush1.msra.mxu0 %v2134
  %2174 = vmatprep.subr.mxu0 0.0
  %2175 = vmatpush1.msra.mxu0 %v2135
  %2176 = vmatprep.subr.mxu0 0.0
  %2177 = vmatpush1.msra.mxu0 0.0
  %2178 = vmatprep.subr.mxu0 0.0
  %2179 = vmatpush1.msra.mxu0 0.0
  %2180 = vmatprep.subr.mxu0 0.0
  %2181 = vmatpush1.msra.mxu0 0.0
  %2182 = vmatprep.subr.mxu0 0.0
  %2183 = vmatpush1.msra.mxu0 0.0
  %2184 = vmatprep.subr.mxu0 0.0
  %2185 = vmatpush1.msra.mxu0 0.0
  %2186 = vmatprep.subr.mxu0 0.0
  %2187 = vmatpush1.msra.mxu0 0.0
  %2188 = vmatprep.subr.mxu0 0.0
  %2189 = vmatpush1.msra.mxu0 0.0
  %2190 = vmatprep.subr.mxu0 0.0
  %2191 = vmatpush1.msra.mxu0 0.0
  %2192 = vmatprep.subr.mxu0 0.0
  %2193 = vmatpush1.msra.mxu0 0.0
  %2194 = vmatprep.subr.mxu0 0.0
  %2195 = vmatpush1.msra.mxu0 0.0
  %2196 = vmatprep.subr.mxu0 0.0
  %2197 = vmatpush1.msra.mxu0 0.0
  %2198 = vmatprep.subr.mxu0 0.0
  %2199 = vmatpush1.msra.mxu0 0.0
  %2200 = vmatprep.subr.mxu0 0.0
  %2201 = vmatpush1.msra.mxu0 0.0
  %2202 = vmatprep.subr.mxu0 0.0
  %2203 = vmatpush1.msra.mxu0 0.0
  %2204 = vmatprep.subr.mxu0 0.0
  %2205 = vmatpush1.msra.mxu0 0.0
  %2206 = vmatprep.subr.mxu0 0.0
  %2207 = vmatpush1.msra.mxu0 0.0
  %2208 = vmatprep.subr.mxu0 0.0
  %2209 = vmatpush1.msra.mxu0 0.0
  %2210 = vmatprep.subr.mxu0 0.0
  %2211 = vmatpush1.msra.mxu0 0.0
  %2212 = vmatprep.subr.mxu0 0.0
  %2213 = vmatpush1.msra.mxu0 0.0
  %2214 = vmatprep.subr.mxu0 0.0
  %2215 = vmatpush1.msra.mxu0 0.0
  %2216 = vmatprep.subr.mxu0 0.0
  %2217 = vmatpush1.msra.mxu0 0.0
  %2218 = vmatprep.subr.mxu0 0.0
  %2219 = vmatpush1.msra.mxu0 0.0
  %2220 = vmatprep.subr.mxu0 0.0
  %2221 = vmatpush1.msra.mxu0 0.0
  %2222 = vmatprep.subr.mxu0 0.0
  %2223 = vmatpush1.msra.mxu0 0.0
  %2224 = vmatprep.subr.mxu0 0.0
  %2225 = vmatpush1.msra.mxu0 0.0
  %2226 = vmatprep.subr.mxu0 0.0
  %2227 = vmatpush1.msra.mxu0 0.0
  %2228 = vmatprep.subr.mxu0 0.0
  %2229 = vmatpush1.msra.mxu0 0.0
  %2230 = vmatprep.subr.mxu0 0.0
  %2231 = vmatpush1.msra.mxu0 0.0
  %2232 = vmatprep.mubr.f32.mxu0 0.0
  %2233 = vmatmul.mubr.f32.gmra.mrb[0].mxu0 %v2145
  %v2234 = vpop.f32.mrb[0].mxu0
  %v2235 = vadd.f32 0.0, %v2234
  %v2236 = vpop.f32.mrb[0].mxu0
  %2237 = vmatprep.mubr.f32.mxu0 0.0
  %2238 = vmatmul.mubr.f32.gmra.mrb[0].mxu0 %v2148
  %v2239 = vpop.f32.mrb[0].mxu0
  %v2240 = vadd.f32 0.0, %v2239
  %v2241 = vpop.f32.mrb[0].mxu0
  %2242 = vmatprep.mubr.f32.mxu0 0.0
  %2243 = vmatmul.mubr.f32.gmra.mrb[0].mxu0 %v2151
  %v2244 = vpop.f32.mrb[0].mxu0
  %v2245 = vadd.f32 0.0, %v2244
  %v2246 = vpop.f32.mrb[0].mxu0
  %2247 = vmatprep.mubr.f32.mxu0 0.0
  %2248 = vmatmul.mubr.f32.gmra.mrb[0].mxu0 %v2154
  %v2249 = vpop.f32.mrb[0].mxu0
  %v2250 = vadd.f32 0.0, %v2249
  %v2251 = vpop.f32.mrb[0].mxu0
  %2252 = vmatprep.mubr.f32.mxu0 0.0
  %2253 = vmatmul.mubr.f32.gmra.mrb[0].mxu0 %v2157
  %v2254 = vpop.f32.mrb[0].mxu0
  %v2255 = vadd.f32 0.0, %v2254
  %v2256 = vpop.f32.mrb[0].mxu0
  %2257 = vmatprep.mubr.f32.mxu0 0.0
  %2258 = vmatmul.mubr.f32.gmra.mrb[0].mxu0 %v2160
  %v2259 = vpop.f32.mrb[0].mxu0
  %v2260 = vadd.f32 0.0, %v2259
  %v2261 = vpop.f32.mrb[0].mxu0
  %2262 = vmatprep.mubr.f32.mxu0 0.0
  %2263 = vmatmul.mubr.f32.gmra.mrb[0].mxu0 %v2163
  %v2264 = vpop.f32.mrb[0].mxu0
  %v2265 = vadd.f32 0.0, %v2264
  %v2266 = vpop.f32.mrb[0].mxu0
  %2267 = vmatprep.mubr.f32.mxu0 0.0
  %2268 = vmatmul.mubr.f32.gmra.mrb[0].mxu0 %v2166
  %v2269 = vpop.f32.mrb[0].mxu0
  %v2270 = vadd.f32 0.0, %v2269
  %v2271 = vpop.f32.mrb[0].mxu0
  %2272 = vdwg.mxu0
  %v2273 = vmax.f32 %v2235, 0.0
  %v2274 = vmax.f32 %v2240, 0.0
  %v2275 = vmax.f32 %v2245, 0.0
  %v2276 = vmax.f32 %v2250, 0.0
  %v2277 = vmax.f32 %v2255, 0.0
  %v2278 = vmax.f32 %v2260, 0.0
  %v2279 = vmax.f32 %v2265, 0.0
  %v2280 = vmax.f32 %v2270, 0.0
  %v2281 = vld [vmem:[%s5 + $0x40] sm:$0xff]
  %v2282 = vld [vmem:[%s5 + $0x48] sm:$0xff]
  %v2283 = vld [vmem:[%s5 + $0x50] sm:$0xff]
  %v2284 = vld [vmem:[%s5 + $0x58] sm:$0xff]
  %v2285 = vld [vmem:[%s6 + $0x40] sm:$0xff]
  %v2286 = vld [vmem:[%s6 + $0x48] sm:$0xff]
  %v2287 = vld [vmem:[%s6 + $0x50] sm:$0xff]
  %v2288 = vld [vmem:[%s6 + $0x58] sm:$0xff]
  %2289 = vmatprep.subr.mxu0 0.0
  %2290 = vmatpush1.xpose.msra.mxu0 %v35
  %2291 = vmatprep.subr.mxu0 0.0
  %2292 = vmatpush1.xpose.msra.mxu0 0.0
  %2293 = vmatprep.subr.mxu0 0.0
  %2294 = vmatpush1.xpose.msra.mxu0 0.0
  %2295 = vmatprep.subr.mxu0 0.0
  %2296 = vmatpush1.xpose.msra.mxu0 0.0
  %2297 = vmatprep.subr.mxu0 0.0
  %2298 = vmatpush1.xpose.msra.mxu0 0.0
  %2299 = vmatprep.subr.mxu0 0.0
  %2300 = vmatpush1.xpose.msra.mxu0 0.0
  %2301 = vmatprep.subr.mxu0 0.0
  %2302 = vmatpush1.xpose.msra.mxu0 0.0
  %2303 = vmatprep.subr.mxu0 0.0
  %2304 = vmatpush1.xpose.msra.mxu0 0.0
  %2305 = vmatprep.subr.mxu0 0.0
  %2306 = vmatpush1.xpose.msra.mxu0 0.0
  %2307 = vmatprep.subr.mxu0 0.0
  %2308 = vmatpush1.xpose.msra.mxu0 0.0
  %2309 = vmatprep.subr.mxu0 0.0
  %2310 = vmatpush1.xpose.msra.mxu0 0.0
  %2311 = vmatprep.subr.mxu0 0.0
  %2312 = vmatpush1.xpose.msra.mxu0 0.0
  %2313 = vmatprep.subr.mxu0 0.0
  %2314 = vmatpush1.xpose.msra.mxu0 0.0
  %2315 = vmatprep.subr.mxu0 0.0
  %2316 = vmatpush1.xpose.msra.mxu0 0.0
  %2317 = vmatprep.subr.mxu0 0.0
  %2318 = vmatpush1.xpose.msra.mxu0 0.0
  %2319 = vmatprep.subr.mxu0 0.0
  %2320 = vmatpush1.xpose.msra.mxu0 0.0
  %2321 = vmatprep.subr.mxu0 0.0
  %2322 = vmatpush1.xpose.msra.mxu0 0.0
  %2323 = vmatprep.subr.mxu0 0.0
  %2324 = vmatpush1.xpose.msra.mxu0 0.0
  %2325 = vmatprep.subr.mxu0 0.0
  %2326 = vmatpush1.xpose.msra.mxu0 0.0
  %2327 = vmatprep.subr.mxu0 0.0
  %2328 = vmatpush1.xpose.msra.mxu0 0.0
  %2329 = vmatprep.subr.mxu0 0.0
  %2330 = vmatpush1.xpose.msra.mxu0 0.0
  %2331 = vmatprep.subr.mxu0 0.0
  %2332 = vmatpush1.xpose.msra.mxu0 0.0
  %2333 = vmatprep.subr.mxu0 0.0
  %2334 = vmatpush1.xpose.msra.mxu0 0.0
  %2335 = vmatprep.subr.mxu0 0.0
  %2336 = vmatpush1.xpose.msra.mxu0 0.0
  %2337 = vmatprep.subr.mxu0 0.0
  %2338 = vmatpush1.xpose.msra.mxu0 0.0
  %2339 = vmatprep.subr.mxu0 0.0
  %2340 = vmatpush1.xpose.msra.mxu0 0.0
  %2341 = vmatprep.subr.mxu0 0.0
  %2342 = vmatpush1.xpose.msra.mxu0 0.0
  %2343 = vmatprep.subr.mxu0 0.0
  %2344 = vmatpush1.xpose.msra.mxu0 0.0
  %2345 = vmatprep.subr.mxu0 0.0
  %2346 = vmatpush1.xpose.msra.mxu0 0.0
  %2347 = vmatprep.subr.mxu0 0.0
  %2348 = vmatpush1.xpose.msra.mxu0 0.0
  %2349 = vmatprep.subr.mxu0 0.0
  %2350 = vmatpush1.xpose.msra.mxu0 0.0
  %2351 = vmatprep.subr.mxu0 0.0
  %2352 = vmatpush1.xpose.msra.mxu0 0.0
  %2353 = vmatprep.mubr.f32.mxu0 0.0
  %2354 = vmatmul.mubr.f32.gmra.mrb[0].mxu0 %v2273
  %v2355 = vpop.f32.mrb[0].mxu0
  %v2356 = vadd.f32 0.0, %v2355
  %v2357 = vpop.f32.mrb[0].mxu0
  %2358 = vmatprep.mubr.f32.mxu0 0.0
  %2359 = vmatmul.mubr.f32.gmra.mrb[0].mxu0 %v2274
  %v2360 = vpop.f32.mrb[0].mxu0
  %v2361 = vadd.f32 0.0, %v2360
  %v2362 = vpop.f32.mrb[0].mxu0
  %2363 = vmatprep.mubr.f32.mxu0 0.0
  %2364 = vmatmul.mubr.f32.gmra.mrb[0].mxu0 %v2275
  %v2365 = vpop.f32.mrb[0].mxu0
  %v2366 = vadd.f32 0.0, %v2365
  %v2367 = vpop.f32.mrb[0].mxu0
  %2368 = vmatprep.mubr.f32.mxu0 0.0
  %2369 = vmatmul.mubr.f32.gmra.mrb[0].mxu0 %v2276
  %v2370 = vpop.f32.mrb[0].mxu0
  %v2371 = vadd.f32 0.0, %v2370
  %v2372 = vpop.f32.mrb[0].mxu0
  %2373 = vmatprep.mubr.f32.mxu0 0.0
  %2374 = vmatmul.mubr.f32.gmra.mrb[0].mxu0 %v2277
  %v2375 = vpop.f32.mrb[0].mxu0
  %v2376 = vadd.f32 0.0, %v2375
  %v2377 = vpop.f32.mrb[0].mxu0
  %2378 = vmatprep.mubr.f32.mxu0 0.0
  %2379 = vmatmul.mubr.f32.gmra.mrb[0].mxu0 %v2278
  %v2380 = vpop.f32.mrb[0].mxu0
  %v2381 = vadd.f32 0.0, %v2380
  %v2382 = vpop.f32.mrb[0].mxu0
  %2383 = vmatprep.mubr.f32.mxu0 0.0
  %2384 = vmatmul.mubr.f32.gmra.mrb[0].mxu0 %v2279
  %v2385 = vpop.f32.mrb[0].mxu0
  %v2386 = vadd.f32 0.0, %v2385
  %v2387 = vpop.f32.mrb[0].mxu0
  %2388 = vmatprep.mubr.f32.mxu0 0.0
  %2389 = vmatmul.mubr.f32.gmra.mrb[0].mxu0 %v2280
  %v2390 = vpop.f32.mrb[0].mxu0
  %v2391 = vadd.f32 0.0, %v2390
  %v2392 = vpop.f32.mrb[0].mxu0
  %2393 = vdwg.mxu0
  %v2395 = vsel %vm468, %v2281, 0
  %v2398 = vsel %vm468, %v2282, 0
  %v2401 = vsel %vm468, %v2283, 0
  %v2404 = vsel %vm468, %v2284, 0
  %2406 = vmatprep.subr.mxu0 0.0
  %2407 = vmatpush1.msra.mxu0 %v2273
  %2408 = vmatprep.subr.mxu0 0.0
  %2409 = vmatpush1.msra.mxu0 %v2274
  %2410 = vmatprep.subr.mxu0 0.0
  %2411 = vmatpush1.msra.mxu0 %v2275
  %2412 = vmatprep.subr.mxu0 0.0
  %2413 = vmatpush1.msra.mxu0 %v2276
  %2414 = vmatprep.subr.mxu0 0.0
  %2415 = vmatpush1.msra.mxu0 %v2277
  %2416 = vmatprep.subr.mxu0 0.0
  %2417 = vmatpush1.msra.mxu0 %v2278
  %2418 = vmatprep.subr.mxu0 0.0
  %2419 = vmatpush1.msra.mxu0 %v2279
  %2420 = vmatprep.subr.mxu0 0.0
  %2421 = vmatpush1.msra.mxu0 %v2280
  %2422 = vmatprep.subr.mxu0 0.0
  %2423 = vmatpush1.msra.mxu0 0.0
  %2424 = vmatprep.subr.mxu0 0.0
  %2425 = vmatpush1.msra.mxu0 0.0
  %2426 = vmatprep.subr.mxu0 0.0
  %2427 = vmatpush1.msra.mxu0 0.0
  %2428 = vmatprep.subr.mxu0 0.0
  %2429 = vmatpush1.msra.mxu0 0.0
  %2430 = vmatprep.subr.mxu0 0.0
  %2431 = vmatpush1.msra.mxu0 0.0
  %2432 = vmatprep.subr.mxu0 0.0
  %2433 = vmatpush1.msra.mxu0 0.0
  %2434 = vmatprep.subr.mxu0 0.0
  %2435 = vmatpush1.msra.mxu0 0.0
  %2436 = vmatprep.subr.mxu0 0.0
  %2437 = vmatpush1.msra.mxu0 0.0
  %2438 = vmatprep.subr.mxu0 0.0
  %2439 = vmatpush1.msra.mxu0 0.0
  %2440 = vmatprep.subr.mxu0 0.0
  %2441 = vmatpush1.msra.mxu0 0.0
  %2442 = vmatprep.subr.mxu0 0.0
  %2443 = vmatpush1.msra.mxu0 0.0
  %2444 = vmatprep.subr.mxu0 0.0
  %2445 = vmatpush1.msra.mxu0 0.0
  %2446 = vmatprep.subr.mxu0 0.0
  %2447 = vmatpush1.msra.mxu0 0.0
  %2448 = vmatprep.subr.mxu0 0.0
  %2449 = vmatpush1.msra.mxu0 0.0
  %2450 = vmatprep.subr.mxu0 0.0
  %2451 = vmatpush1.msra.mxu0 0.0
  %2452 = vmatprep.subr.mxu0 0.0
  %2453 = vmatpush1.msra.mxu0 0.0
  %2454 = vmatprep.subr.mxu0 0.0
  %2455 = vmatpush1.msra.mxu0 0.0
  %2456 = vmatprep.subr.mxu0 0.0
  %2457 = vmatpush1.msra.mxu0 0.0
  %2458 = vmatprep.subr.mxu0 0.0
  %2459 = vmatpush1.msra.mxu0 0.0
  %2460 = vmatprep.subr.mxu0 0.0
  %2461 = vmatpush1.msra.mxu0 0.0
  %2462 = vmatprep.subr.mxu0 0.0
  %2463 = vmatpush1.msra.mxu0 0.0
  %2464 = vmatprep.subr.mxu0 0.0
  %2465 = vmatpush1.msra.mxu0 0.0
  %2466 = vmatprep.subr.mxu0 0.0
  %2467 = vmatpush1.msra.mxu0 0.0
  %2468 = vmatprep.subr.mxu0 0.0
  %2469 = vmatpush1.msra.mxu0 0.0
  %2470 = vmatprep.mubr.f32.mxu0 0.0
  %2471 = vmatmul.mubr.f32.gmra.mrb[0].mxu0 %v2395
  %v2472 = vpop.f32.mrb[0].mxu0
  %v2473 = vadd.f32 0.0, %v2472
  %v2474 = vpop.f32.mrb[0].mxu0
  %2475 = vmatprep.mubr.f32.mxu0 0.0
  %2476 = vmatmul.mubr.f32.gmra.mrb[0].mxu0 %v2398
  %v2477 = vpop.f32.mrb[0].mxu0
  %v2478 = vadd.f32 0.0, %v2477
  %v2479 = vpop.f32.mrb[0].mxu0
  %2480 = vmatprep.mubr.f32.mxu0 0.0
  %2481 = vmatmul.mubr.f32.gmra.mrb[0].mxu0 %v2401
  %v2482 = vpop.f32.mrb[0].mxu0
  %v2483 = vadd.f32 0.0, %v2482
  %v2484 = vpop.f32.mrb[0].mxu0
  %2485 = vmatprep.mubr.f32.mxu0 0.0
  %2486 = vmatmul.mubr.f32.gmra.mrb[0].mxu0 %v2404
  %v2487 = vpop.f32.mrb[0].mxu0
  %v2488 = vadd.f32 0.0, %v2487
  %v2489 = vpop.f32.mrb[0].mxu0
  %2490 = vdwg.mxu0
  %v2491 = vmax.f32 %v2473, 0.0
  %v2492 = vmax.f32 %v2478, 0.0
  %v2493 = vmax.f32 %v2483, 0.0
  %v2494 = vmax.f32 %v2488, 0.0
  %2495 = vmatprep.subr.mxu0 0.0
  %2496 = vmatpush1.msra.mxu0 %v2356
  %2497 = vmatprep.subr.mxu0 0.0
  %2498 = vmatpush1.msra.mxu0 %v2361
  %2499 = vmatprep.subr.mxu0 0.0
  %2500 = vmatpush1.msra.mxu0 %v2366
  %2501 = vmatprep.subr.mxu0 0.0
  %2502 = vmatpush1.msra.mxu0 %v2371
  %2503 = vmatprep.subr.mxu0 0.0
  %2504 = vmatpush1.msra.mxu0 %v2376
  %2505 = vmatprep.subr.mxu0 0.0
  %2506 = vmatpush1.msra.mxu0 %v2381
  %2507 = vmatprep.subr.mxu0 0.0
  %2508 = vmatpush1.msra.mxu0 %v2386
  %2509 = vmatprep.subr.mxu0 0.0
  %2510 = vmatpush1.msra.mxu0 %v2391
  %2511 = vmatprep.subr.mxu0 0.0
  %2512 = vmatpush1.msra.mxu0 0.0
  %2513 = vmatprep.subr.mxu0 0.0
  %2514 = vmatpush1.msra.mxu0 0.0
  %2515 = vmatprep.subr.mxu0 0.0
  %2516 = vmatpush1.msra.mxu0 0.0
  %2517 = vmatprep.subr.mxu0 0.0
  %2518 = vmatpush1.msra.mxu0 0.0
  %2519 = vmatprep.subr.mxu0 0.0
  %2520 = vmatpush1.msra.mxu0 0.0
  %2521 = vmatprep.subr.mxu0 0.0
  %2522 = vmatpush1.msra.mxu0 0.0
  %2523 = vmatprep.subr.mxu0 0.0
  %2524 = vmatpush1.msra.mxu0 0.0
  %2525 = vmatprep.subr.mxu0 0.0
  %2526 = vmatpush1.msra.mxu0 0.0
  %2527 = vmatprep.subr.mxu0 0.0
  %2528 = vmatpush1.msra.mxu0 0.0
  %2529 = vmatprep.subr.mxu0 0.0
  %2530 = vmatpush1.msra.mxu0 0.0
  %2531 = vmatprep.subr.mxu0 0.0
  %2532 = vmatpush1.msra.mxu0 0.0
  %2533 = vmatprep.subr.mxu0 0.0
  %2534 = vmatpush1.msra.mxu0 0.0
  %2535 = vmatprep.subr.mxu0 0.0
  %2536 = vmatpush1.msra.mxu0 0.0
  %2537 = vmatprep.subr.mxu0 0.0
  %2538 = vmatpush1.msra.mxu0 0.0
  %2539 = vmatprep.subr.mxu0 0.0
  %2540 = vmatpush1.msra.mxu0 0.0
  %2541 = vmatprep.subr.mxu0 0.0
  %2542 = vmatpush1.msra.mxu0 0.0
  %2543 = vmatprep.subr.mxu0 0.0
  %2544 = vmatpush1.msra.mxu0 0.0
  %2545 = vmatprep.subr.mxu0 0.0
  %2546 = vmatpush1.msra.mxu0 0.0
  %2547 = vmatprep.subr.mxu0 0.0
  %2548 = vmatpush1.msra.mxu0 0.0
  %2549 = vmatprep.subr.mxu0 0.0
  %2550 = vmatpush1.msra.mxu0 0.0
  %2551 = vmatprep.subr.mxu0 0.0
  %2552 = vmatpush1.msra.mxu0 0.0
  %2553 = vmatprep.subr.mxu0 0.0
  %2554 = vmatpush1.msra.mxu0 0.0
  %2555 = vmatprep.subr.mxu0 0.0
  %2556 = vmatpush1.msra.mxu0 0.0
  %2557 = vmatprep.subr.mxu0 0.0
  %2558 = vmatpush1.msra.mxu0 0.0
  %2559 = vmatprep.mubr.f32.mxu0 0.0
  %2560 = vmatmul.mubr.f32.gmra.mrb[0].mxu0 %v2395
  %v2561 = vpop.f32.mrb[0].mxu0
  %v2562 = vadd.f32 0.0, %v2561
  %v2563 = vpop.f32.mrb[0].mxu0
  %2564 = vmatprep.mubr.f32.mxu0 0.0
  %2565 = vmatmul.mubr.f32.gmra.mrb[0].mxu0 %v2398
  %v2566 = vpop.f32.mrb[0].mxu0
  %v2567 = vadd.f32 0.0, %v2566
  %v2568 = vpop.f32.mrb[0].mxu0
  %2569 = vmatprep.mubr.f32.mxu0 0.0
  %2570 = vmatmul.mubr.f32.gmra.mrb[0].mxu0 %v2401
  %v2571 = vpop.f32.mrb[0].mxu0
  %v2572 = vadd.f32 0.0, %v2571
  %v2573 = vpop.f32.mrb[0].mxu0
  %2574 = vmatprep.mubr.f32.mxu0 0.0
  %2575 = vmatmul.mubr.f32.gmra.mrb[0].mxu0 %v2404
  %v2576 = vpop.f32.mrb[0].mxu0
  %v2577 = vadd.f32 0.0, %v2576
  %v2578 = vpop.f32.mrb[0].mxu0
  %2579 = vdwg.mxu0
  %v2580 = vmax.f32 %v2562, 0.0
  %v2581 = vmax.f32 %v2567, 0.0
  %v2582 = vmax.f32 %v2572, 0.0
  %v2583 = vmax.f32 %v2577, 0.0
  %2584 = vmatprep.subr.mxu0 0.0
  %2585 = vmatpush1.msra.mxu0 %v2491
  %2586 = vmatprep.subr.mxu0 0.0
  %2587 = vmatpush1.msra.mxu0 %v2492
  %2588 = vmatprep.subr.mxu0 0.0
  %2589 = vmatpush1.msra.mxu0 %v2493
  %2590 = vmatprep.subr.mxu0 0.0
  %2591 = vmatpush1.msra.mxu0 %v2494
  %2592 = vmatprep.subr.mxu0 0.0
  %2593 = vmatpush1.msra.mxu0 0.0
  %2594 = vmatprep.subr.mxu0 0.0
  %2595 = vmatpush1.msra.mxu0 0.0
  %2596 = vmatprep.subr.mxu0 0.0
  %2597 = vmatpush1.msra.mxu0 0.0
  %2598 = vmatprep.subr.mxu0 0.0
  %2599 = vmatpush1.msra.mxu0 0.0
  %2600 = vmatprep.subr.mxu0 0.0
  %2601 = vmatpush1.msra.mxu0 0.0
  %2602 = vmatprep.subr.mxu0 0.0
  %2603 = vmatpush1.msra.mxu0 0.0
  %2604 = vmatprep.subr.mxu0 0.0
  %2605 = vmatpush1.msra.mxu0 0.0
  %2606 = vmatprep.subr.mxu0 0.0
  %2607 = vmatpush1.msra.mxu0 0.0
  %2608 = vmatprep.subr.mxu0 0.0
  %2609 = vmatpush1.msra.mxu0 0.0
  %2610 = vmatprep.subr.mxu0 0.0
  %2611 = vmatpush1.msra.mxu0 0.0
  %2612 = vmatprep.subr.mxu0 0.0
  %2613 = vmatpush1.msra.mxu0 0.0
  %2614 = vmatprep.subr.mxu0 0.0
  %2615 = vmatpush1.msra.mxu0 0.0
  %2616 = vmatprep.subr.mxu0 0.0
  %2617 = vmatpush1.msra.mxu0 0.0
  %2618 = vmatprep.subr.mxu0 0.0
  %2619 = vmatpush1.msra.mxu0 0.0
  %2620 = vmatprep.subr.mxu0 0.0
  %2621 = vmatpush1.msra.mxu0 0.0
  %2622 = vmatprep.subr.mxu0 0.0
  %2623 = vmatpush1.msra.mxu0 0.0
  %2624 = vmatprep.subr.mxu0 0.0
  %2625 = vmatpush1.msra.mxu0 0.0
  %2626 = vmatprep.subr.mxu0 0.0
  %2627 = vmatpush1.msra.mxu0 0.0
  %2628 = vmatprep.subr.mxu0 0.0
  %2629 = vmatpush1.msra.mxu0 0.0
  %2630 = vmatprep.subr.mxu0 0.0
  %2631 = vmatpush1.msra.mxu0 0.0
  %2632 = vmatprep.subr.mxu0 0.0
  %2633 = vmatpush1.msra.mxu0 0.0
  %2634 = vmatprep.subr.mxu0 0.0
  %2635 = vmatpush1.msra.mxu0 0.0
  %2636 = vmatprep.subr.mxu0 0.0
  %2637 = vmatpush1.msra.mxu0 0.0
  %2638 = vmatprep.subr.mxu0 0.0
  %2639 = vmatpush1.msra.mxu0 0.0
  %2640 = vmatprep.subr.mxu0 0.0
  %2641 = vmatpush1.msra.mxu0 0.0
  %2642 = vmatprep.subr.mxu0 0.0
  %2643 = vmatpush1.msra.mxu0 0.0
  %2644 = vmatprep.subr.mxu0 0.0
  %2645 = vmatpush1.msra.mxu0 0.0
  %2646 = vmatprep.subr.mxu0 0.0
  %2647 = vmatpush1.msra.mxu0 0.0
  %2648 = vmatprep.mubr.f32.mxu0 0.0
  %2649 = vmatmul.mubr.f32.gmra.mrb[0].mxu0 %v744
  %v2650 = vpop.f32.mrb[0].mxu0
  %v2651 = vadd.f32 0.0, %v2650
  %v2652 = vpop.f32.mrb[0].mxu0
  %2653 = vdwg.mxu0
  %v2654 = vlaneseq
  %v2655 = vshrl.u32 %v2654, 7
  %v2656 = vsub.s32 0, %v2655
  %v2657 = vrot.slane %v2651, %v2656
  %v2658 = vsub.f32 %v2491, %v2657
  %v2659 = vsub.f32 %v2492, %v2657
  %v2660 = vsub.f32 %v2493, %v2657
  %v2661 = vsub.f32 %v2494, %v2657
  %v2662 = vmul.f32 %v2658, %v2658
  %v2663 = vmul.f32 %v2659, %v2659
  %v2664 = vmul.f32 %v2660, %v2660
  %v2665 = vmul.f32 %v2661, %v2661
  %2666 = vmatprep.subr.mxu0 0.0
  %2667 = vmatpush1.msra.mxu0 %v2662
  %2668 = vmatprep.subr.mxu0 0.0
  %2669 = vmatpush1.msra.mxu0 %v2663
  %2670 = vmatprep.subr.mxu0 0.0
  %2671 = vmatpush1.msra.mxu0 %v2664
  %2672 = vmatprep.subr.mxu0 0.0
  %2673 = vmatpush1.msra.mxu0 %v2665
  %2674 = vmatprep.subr.mxu0 0.0
  %2675 = vmatpush1.msra.mxu0 0.0
  %2676 = vmatprep.subr.mxu0 0.0
  %2677 = vmatpush1.msra.mxu0 0.0
  %2678 = vmatprep.subr.mxu0 0.0
  %2679 = vmatpush1.msra.mxu0 0.0
  %2680 = vmatprep.subr.mxu0 0.0
  %2681 = vmatpush1.msra.mxu0 0.0
  %2682 = vmatprep.subr.mxu0 0.0
  %2683 = vmatpush1.msra.mxu0 0.0
  %2684 = vmatprep.subr.mxu0 0.0
  %2685 = vmatpush1.msra.mxu0 0.0
  %2686 = vmatprep.subr.mxu0 0.0
  %2687 = vmatpush1.msra.mxu0 0.0
  %2688 = vmatprep.subr.mxu0 0.0
  %2689 = vmatpush1.msra.mxu0 0.0
  %2690 = vmatprep.subr.mxu0 0.0
  %2691 = vmatpush1.msra.mxu0 0.0
  %2692 = vmatprep.subr.mxu0 0.0
  %2693 = vmatpush1.msra.mxu0 0.0
  %2694 = vmatprep.subr.mxu0 0.0
  %2695 = vmatpush1.msra.mxu0 0.0
  %2696 = vmatprep.subr.mxu0 0.0
  %2697 = vmatpush1.msra.mxu0 0.0
  %2698 = vmatprep.subr.mxu0 0.0
  %2699 = vmatpush1.msra.mxu0 0.0
  %2700 = vmatprep.subr.mxu0 0.0
  %2701 = vmatpush1.msra.mxu0 0.0
  %2702 = vmatprep.subr.mxu0 0.0
  %2703 = vmatpush1.msra.mxu0 0.0
  %2704 = vmatprep.subr.mxu0 0.0
  %2705 = vmatpush1.msra.mxu0 0.0
  %2706 = vmatprep.subr.mxu0 0.0
  %2707 = vmatpush1.msra.mxu0 0.0
  %2708 = vmatprep.subr.mxu0 0.0
  %2709 = vmatpush1.msra.mxu0 0.0
  %2710 = vmatprep.subr.mxu0 0.0
  %2711 = vmatpush1.msra.mxu0 0.0
  %2712 = vmatprep.subr.mxu0 0.0
  %2713 = vmatpush1.msra.mxu0 0.0
  %2714 = vmatprep.subr.mxu0 0.0
  %2715 = vmatpush1.msra.mxu0 0.0
  %2716 = vmatprep.subr.mxu0 0.0
  %2717 = vmatpush1.msra.mxu0 0.0
  %2718 = vmatprep.subr.mxu0 0.0
  %2719 = vmatpush1.msra.mxu0 0.0
  %2720 = vmatprep.subr.mxu0 0.0
  %2721 = vmatpush1.msra.mxu0 0.0
  %2722 = vmatprep.subr.mxu0 0.0
  %2723 = vmatpush1.msra.mxu0 0.0
  %2724 = vmatprep.subr.mxu0 0.0
  %2725 = vmatpush1.msra.mxu0 0.0
  %2726 = vmatprep.subr.mxu0 0.0
  %2727 = vmatpush1.msra.mxu0 0.0
  %2728 = vmatprep.subr.mxu0 0.0
  %2729 = vmatpush1.msra.mxu0 0.0
  %2730 = vmatprep.mubr.f32.mxu0 0.0
  %2731 = vmatmul.mubr.f32.gmra.mrb[0].mxu0 %v744
  %v2732 = vpop.f32.mrb[0].mxu0
  %v2733 = vadd.f32 1e-05, %v2732
  %v2734 = vpop.f32.mrb[0].mxu0
  %2735 = vdwg.mxu0
  %v2736 = vrsqrt.pop %v2733
  %v2737 = vlaneseq
  %v2738 = vshrl.u32 %v2737, 7
  %v2739 = vsub.s32 0, %v2738
  %v2740 = vrot.slane %v2736, %v2739
  %v2741 = vmul.f32 %v2658, %v2740
  %v2742 = vmul.f32 %v2659, %v2740
  %v2743 = vmul.f32 %v2660, %v2740
  %v2744 = vmul.f32 %v2661, %v2740
  %2745 = vset.pattern.permute.xlu0 2
  %2746 = vperm.xlu0 %2745, %v37
  %v2747 = vpop.permute.xlu0 %2746
  %2749 = vset.pattern.permute.xlu0 2
  %2750 = vperm.xlu0 %2749, %v38
  %v2751 = vpop.permute.xlu0 %2750
  %2753 = vset.pattern.permute.xlu0 2
  %2754 = vperm.xlu0 %2753, %v39
  %v2755 = vpop.permute.xlu0 %2754
  %2757 = vset.pattern.permute.xlu0 2
  %2758 = vperm.xlu0 %2757, %v40
  %v2759 = vpop.permute.xlu0 %2758
  %v2761 = vmul.f32 %v2741, %v2747
  %v2762 = vmul.f32 %v2742, %v2751
  %v2763 = vmul.f32 %v2743, %v2755
  %v2764 = vmul.f32 %v2744, %v2759
  %2765 = vset.pattern.permute.xlu0 6
  %2766 = vperm.xlu0 %2765, %v37
  %v2767 = vpop.permute.xlu0 %2766
  %2769 = vset.pattern.permute.xlu0 6
  %2770 = vperm.xlu0 %2769, %v38
  %v2771 = vpop.permute.xlu0 %2770
  %2773 = vset.pattern.permute.xlu0 6
  %2774 = vperm.xlu0 %2773, %v39
  %v2775 = vpop.permute.xlu0 %2774
  %2777 = vset.pattern.permute.xlu0 6
  %2778 = vperm.xlu0 %2777, %v40
  %v2779 = vpop.permute.xlu0 %2778
  %v2781 = vadd.f32 %v2761, %v2767
  %v2782 = vadd.f32 %v2762, %v2771
  %v2783 = vadd.f32 %v2763, %v2775
  %v2784 = vadd.f32 %v2764, %v2779
  %2785 = vmatprep.subr.mxu0 0.0
  %2786 = vmatpush1.msra.mxu0 %v2580
  %2787 = vmatprep.subr.mxu0 0.0
  %2788 = vmatpush1.msra.mxu0 %v2581
  %2789 = vmatprep.subr.mxu0 0.0
  %2790 = vmatpush1.msra.mxu0 %v2582
  %2791 = vmatprep.subr.mxu0 0.0
  %2792 = vmatpush1.msra.mxu0 %v2583
  %2793 = vmatprep.subr.mxu0 0.0
  %2794 = vmatpush1.msra.mxu0 0.0
  %2795 = vmatprep.subr.mxu0 0.0
  %2796 = vmatpush1.msra.mxu0 0.0
  %2797 = vmatprep.subr.mxu0 0.0
  %2798 = vmatpush1.msra.mxu0 0.0
  %2799 = vmatprep.subr.mxu0 0.0
  %2800 = vmatpush1.msra.mxu0 0.0
  %2801 = vmatprep.subr.mxu0 0.0
  %2802 = vmatpush1.msra.mxu0 0.0
  %2803 = vmatprep.subr.mxu0 0.0
  %2804 = vmatpush1.msra.mxu0 0.0
  %2805 = vmatprep.subr.mxu0 0.0
  %2806 = vmatpush1.msra.mxu0 0.0
  %2807 = vmatprep.subr.mxu0 0.0
  %2808 = vmatpush1.msra.mxu0 0.0
  %2809 = vmatprep.subr.mxu0 0.0
  %2810 = vmatpush1.msra.mxu0 0.0
  %2811 = vmatprep.subr.mxu0 0.0
  %2812 = vmatpush1.msra.mxu0 0.0
  %2813 = vmatprep.subr.mxu0 0.0
  %2814 = vmatpush1.msra.mxu0 0.0
  %2815 = vmatprep.subr.mxu0 0.0
  %2816 = vmatpush1.msra.mxu0 0.0
  %2817 = vmatprep.subr.mxu0 0.0
  %2818 = vmatpush1.msra.mxu0 0.0
  %2819 = vmatprep.subr.mxu0 0.0
  %2820 = vmatpush1.msra.mxu0 0.0
  %2821 = vmatprep.subr.mxu0 0.0
  %2822 = vmatpush1.msra.mxu0 0.0
  %2823 = vmatprep.subr.mxu0 0.0
  %2824 = vmatpush1.msra.mxu0 0.0
  %2825 = vmatprep.subr.mxu0 0.0
  %2826 = vmatpush1.msra.mxu0 0.0
  %2827 = vmatprep.subr.mxu0 0.0
  %2828 = vmatpush1.msra.mxu0 0.0
  %2829 = vmatprep.subr.mxu0 0.0
  %2830 = vmatpush1.msra.mxu0 0.0
  %2831 = vmatprep.subr.mxu0 0.0
  %2832 = vmatpush1.msra.mxu0 0.0
  %2833 = vmatprep.subr.mxu0 0.0
  %2834 = vmatpush1.msra.mxu0 0.0
  %2835 = vmatprep.subr.mxu0 0.0
  %2836 = vmatpush1.msra.mxu0 0.0
  %2837 = vmatprep.subr.mxu0 0.0
  %2838 = vmatpush1.msra.mxu0 0.0
  %2839 = vmatprep.subr.mxu0 0.0
  %2840 = vmatpush1.msra.mxu0 0.0
  %2841 = vmatprep.subr.mxu0 0.0
  %2842 = vmatpush1.msra.mxu0 0.0
  %2843 = vmatprep.subr.mxu0 0.0
  %2844 = vmatpush1.msra.mxu0 0.0
  %2845 = vmatprep.subr.mxu0 0.0
  %2846 = vmatpush1.msra.mxu0 0.0
  %2847 = vmatprep.subr.mxu0 0.0
  %2848 = vmatpush1.msra.mxu0 0.0
  %2849 = vmatprep.mubr.f32.mxu0 0.0
  %2850 = vmatmul.mubr.f32.gmra.mrb[0].mxu0 %v744
  %v2851 = vpop.f32.mrb[0].mxu0
  %v2852 = vadd.f32 0.0, %v2851
  %v2853 = vpop.f32.mrb[0].mxu0
  %2854 = vdwg.mxu0
  %v2855 = vlaneseq
  %v2856 = vshrl.u32 %v2855, 7
  %v2857 = vsub.s32 0, %v2856
  %v2858 = vrot.slane %v2852, %v2857
  %v2859 = vsub.f32 %v2580, %v2858
  %v2860 = vsub.f32 %v2581, %v2858
  %v2861 = vsub.f32 %v2582, %v2858
  %v2862 = vsub.f32 %v2583, %v2858
  %v2863 = vmul.f32 %v2859, %v2859
  %v2864 = vmul.f32 %v2860, %v2860
  %v2865 = vmul.f32 %v2861, %v2861
  %v2866 = vmul.f32 %v2862, %v2862
  %2867 = vmatprep.subr.mxu0 0.0
  %2868 = vmatpush1.msra.mxu0 %v2863
  %2869 = vmatprep.subr.mxu0 0.0
  %2870 = vmatpush1.msra.mxu0 %v2864
  %2871 = vmatprep.subr.mxu0 0.0
  %2872 = vmatpush1.msra.mxu0 %v2865
  %2873 = vmatprep.subr.mxu0 0.0
  %2874 = vmatpush1.msra.mxu0 %v2866
  %2875 = vmatprep.subr.mxu0 0.0
  %2876 = vmatpush1.msra.mxu0 0.0
  %2877 = vmatprep.subr.mxu0 0.0
  %2878 = vmatpush1.msra.mxu0 0.0
  %2879 = vmatprep.subr.mxu0 0.0
  %2880 = vmatpush1.msra.mxu0 0.0
  %2881 = vmatprep.subr.mxu0 0.0
  %2882 = vmatpush1.msra.mxu0 0.0
  %2883 = vmatprep.subr.mxu0 0.0
  %2884 = vmatpush1.msra.mxu0 0.0
  %2885 = vmatprep.subr.mxu0 0.0
  %2886 = vmatpush1.msra.mxu0 0.0
  %2887 = vmatprep.subr.mxu0 0.0
  %2888 = vmatpush1.msra.mxu0 0.0
  %2889 = vmatprep.subr.mxu0 0.0
  %2890 = vmatpush1.msra.mxu0 0.0
  %2891 = vmatprep.subr.mxu0 0.0
  %2892 = vmatpush1.msra.mxu0 0.0
  %2893 = vmatprep.subr.mxu0 0.0
  %2894 = vmatpush1.msra.mxu0 0.0
  %2895 = vmatprep.subr.mxu0 0.0
  %2896 = vmatpush1.msra.mxu0 0.0
  %2897 = vmatprep.subr.mxu0 0.0
  %2898 = vmatpush1.msra.mxu0 0.0
  %2899 = vmatprep.subr.mxu0 0.0
  %2900 = vmatpush1.msra.mxu0 0.0
  %2901 = vmatprep.subr.mxu0 0.0
  %2902 = vmatpush1.msra.mxu0 0.0
  %2903 = vmatprep.subr.mxu0 0.0
  %2904 = vmatpush1.msra.mxu0 0.0
  %2905 = vmatprep.subr.mxu0 0.0
  %2906 = vmatpush1.msra.mxu0 0.0
  %2907 = vmatprep.subr.mxu0 0.0
  %2908 = vmatpush1.msra.mxu0 0.0
  %2909 = vmatprep.subr.mxu0 0.0
  %2910 = vmatpush1.msra.mxu0 0.0
  %2911 = vmatprep.subr.mxu0 0.0
  %2912 = vmatpush1.msra.mxu0 0.0
  %2913 = vmatprep.subr.mxu0 0.0
  %2914 = vmatpush1.msra.mxu0 0.0
  %2915 = vmatprep.subr.mxu0 0.0
  %2916 = vmatpush1.msra.mxu0 0.0
  %2917 = vmatprep.subr.mxu0 0.0
  %2918 = vmatpush1.msra.mxu0 0.0
  %2919 = vmatprep.subr.mxu0 0.0
  %2920 = vmatpush1.msra.mxu0 0.0
  %2921 = vmatprep.subr.mxu0 0.0
  %2922 = vmatpush1.msra.mxu0 0.0
  %2923 = vmatprep.subr.mxu0 0.0
  %2924 = vmatpush1.msra.mxu0 0.0
  %2925 = vmatprep.subr.mxu0 0.0
  %2926 = vmatpush1.msra.mxu0 0.0
  %2927 = vmatprep.subr.mxu0 0.0
  %2928 = vmatpush1.msra.mxu0 0.0
  %2929 = vmatprep.subr.mxu0 0.0
  %2930 = vmatpush1.msra.mxu0 0.0
  %2931 = vmatprep.mubr.f32.mxu0 0.0
  %2932 = vmatmul.mubr.f32.gmra.mrb[0].mxu0 %v744
  %v2933 = vpop.f32.mrb[0].mxu0
  %v2934 = vadd.f32 1e-05, %v2933
  %v2935 = vpop.f32.mrb[0].mxu0
  %2936 = vdwg.mxu0
  %v2937 = vrsqrt.pop %v2934
  %v2938 = vlaneseq
  %v2939 = vshrl.u32 %v2938, 7
  %v2940 = vsub.s32 0, %v2939
  %v2941 = vrot.slane %v2937, %v2940
  %v2942 = vmul.f32 %v2859, %v2941
  %v2943 = vmul.f32 %v2860, %v2941
  %v2944 = vmul.f32 %v2861, %v2941
  %v2945 = vmul.f32 %v2862, %v2941
  %v2946 = vmul.f32 %v2942, %v2747
  %v2947 = vmul.f32 %v2943, %v2751
  %v2948 = vmul.f32 %v2944, %v2755
  %v2949 = vmul.f32 %v2945, %v2759
  %v2950 = vadd.f32 %v2946, %v2767
  %v2951 = vadd.f32 %v2947, %v2771
  %v2952 = vadd.f32 %v2948, %v2775
  %v2953 = vadd.f32 %v2949, %v2779
  %2954 = vxpose.xlu0.b32.start [1/16] %v2950, 128
  %2955 = vxpose.xlu0.b32.cont [2/16] %v2951, 128
  %2956 = vxpose.xlu0.b32.cont [3/16] %v2952, 128
  %2957 = vxpose.xlu0.b32.cont [4/16] %v2953, 128
  %2958 = vxpose.xlu0.b32.cont [5/16] 0.0, 128
  %2959 = vxpose.xlu0.b32.cont [6/16] 0.0, 128
  %2960 = vxpose.xlu0.b32.cont [7/16] 0.0, 128
  %2961 = vxpose.xlu0.b32.cont [8/16] 0.0, 128
  %2962 = vxpose.xlu0.b32.cont [9/16] 0.0, 128
  %2963 = vxpose.xlu0.b32.cont [10/16] 0.0, 128
  %2964 = vxpose.xlu0.b32.cont [11/16] 0.0, 128
  %2965 = vxpose.xlu0.b32.cont [12/16] 0.0, 128
  %2966 = vxpose.xlu0.b32.cont [13/16] 0.0, 128
  %2967 = vxpose.xlu0.b32.cont [14/16] 0.0, 128
  %2968 = vxpose.xlu0.b32.cont [15/16] 0.0, 128
  %2969 = vxpose.xlu0.b32.end [16/16] 0.0, 128
  %v2970 = vpop.trf.xlu0
  %v2971 = vpop.trf.xlu0
  %v2972 = vpop.trf.xlu0
  %v2973 = vpop.trf.xlu0
  %v2974 = vpop.trf.xlu0
  %v2975 = vpop.trf.xlu0
  %v2976 = vpop.trf.xlu0
  %v2977 = vpop.trf.xlu0
  %v2978 = vpop.trf.xlu0
  %v2979 = vpop.trf.xlu0
  %v2980 = vpop.trf.xlu0
  %v2981 = vpop.trf.xlu0
  %v2982 = vpop.trf.xlu0
  %v2983 = vpop.trf.xlu0
  %v2984 = vpop.trf.xlu0
  %v2985 = vpop.trf.xlu0
  %v2987 = vsel %vm742, %v2970, 0
  %2989 = vmatprep.subr.mxu0 0.0
  %2990 = vmatpush1.msra.mxu0 %v2781
  %2991 = vmatprep.subr.mxu0 0.0
  %2992 = vmatpush1.msra.mxu0 %v2782
  %2993 = vmatprep.subr.mxu0 0.0
  %2994 = vmatpush1.msra.mxu0 %v2783
  %2995 = vmatprep.subr.mxu0 0.0
  %2996 = vmatpush1.msra.mxu0 %v2784
  %2997 = vmatprep.subr.mxu0 0.0
  %2998 = vmatpush1.msra.mxu0 0.0
  %2999 = vmatprep.subr.mxu0 0.0
  %3000 = vmatpush1.msra.mxu0 0.0
  %3001 = vmatprep.subr.mxu0 0.0
  %3002 = vmatpush1.msra.mxu0 0.0
  %3003 = vmatprep.subr.mxu0 0.0
  %3004 = vmatpush1.msra.mxu0 0.0
  %3005 = vmatprep.subr.mxu0 0.0
  %3006 = vmatpush1.msra.mxu0 0.0
  %3007 = vmatprep.subr.mxu0 0.0
  %3008 = vmatpush1.msra.mxu0 0.0
  %3009 = vmatprep.subr.mxu0 0.0
  %3010 = vmatpush1.msra.mxu0 0.0
  %3011 = vmatprep.subr.mxu0 0.0
  %3012 = vmatpush1.msra.mxu0 0.0
  %3013 = vmatprep.subr.mxu0 0.0
  %3014 = vmatpush1.msra.mxu0 0.0
  %3015 = vmatprep.subr.mxu0 0.0
  %3016 = vmatpush1.msra.mxu0 0.0
  %3017 = vmatprep.subr.mxu0 0.0
  %3018 = vmatpush1.msra.mxu0 0.0
  %3019 = vmatprep.subr.mxu0 0.0
  %3020 = vmatpush1.msra.mxu0 0.0
  %3021 = vmatprep.subr.mxu0 0.0
  %3022 = vmatpush1.msra.mxu0 0.0
  %3023 = vmatprep.subr.mxu0 0.0
  %3024 = vmatpush1.msra.mxu0 0.0
  %3025 = vmatprep.subr.mxu0 0.0
  %3026 = vmatpush1.msra.mxu0 0.0
  %3027 = vmatprep.subr.mxu0 0.0
  %3028 = vmatpush1.msra.mxu0 0.0
  %3029 = vmatprep.subr.mxu0 0.0
  %3030 = vmatpush1.msra.mxu0 0.0
  %3031 = vmatprep.subr.mxu0 0.0
  %3032 = vmatpush1.msra.mxu0 0.0
  %3033 = vmatprep.subr.mxu0 0.0
  %3034 = vmatpush1.msra.mxu0 0.0
  %3035 = vmatprep.subr.mxu0 0.0
  %3036 = vmatpush1.msra.mxu0 0.0
  %3037 = vmatprep.subr.mxu0 0.0
  %3038 = vmatpush1.msra.mxu0 0.0
  %3039 = vmatprep.subr.mxu0 0.0
  %3040 = vmatpush1.msra.mxu0 0.0
  %3041 = vmatprep.subr.mxu0 0.0
  %3042 = vmatpush1.msra.mxu0 0.0
  %3043 = vmatprep.subr.mxu0 0.0
  %3044 = vmatpush1.msra.mxu0 0.0
  %3045 = vmatprep.subr.mxu0 0.0
  %3046 = vmatpush1.msra.mxu0 0.0
  %3047 = vmatprep.subr.mxu0 0.0
  %3048 = vmatpush1.msra.mxu0 0.0
  %3049 = vmatprep.subr.mxu0 0.0
  %3050 = vmatpush1.msra.mxu0 0.0
  %3051 = vmatprep.subr.mxu0 0.0
  %3052 = vmatpush1.msra.mxu0 0.0
  %3053 = vmatprep.mubr.f32.mxu0 0.0
  %3054 = vmatmul.mubr.f32.gmra.mrb[0].mxu0 %v2987
  %v3055 = vpop.f32.mrb[0].mxu0
  %v3056 = vadd.f32 0.0, %v3055
  %v3057 = vpop.f32.mrb[0].mxu0
  %3058 = vdwg.mxu0
  %v3059 = vmul.f32 %v3056, 0.17677669
  %v3060 = vsel %vm1226, %v3059, -1e+30
  %v3061 = vsel %vm1228, %v3060, -inf
  %3062 = vmax.xlane.f32.xlu0 %v3061
  %v3063 = vpop.xlane.xlu0 %3062
  %v3064 = vsub.f32 %v3060, %v3063
  %v3065 = vmul.f32 %v3064, 1.442695
  %v3066 = vpow.pop %v3065
  %v3067 = vmul.f32 %v3066, %v475
  %v3068 = vsel %vm1228, %v3067, 0.0
  %3069 = vadd.xlane.f32.xlu0 %v3068
  %v3070 = vpop.xlane.xlu0 %3069
  %v3071 = vrcp.pop %v3070
  %v3072 = vmul.f32 1.0, %v3071
  %v3073 = vmul.f32 %v3067, %v3072
  %v3074 = vsel %vm1228, %v3073, 0.0
  %v3075 = vrot.slane %v3074, 4
  %v3076 = vadd.f32 %v3074, %v3075
  %v3077 = vrot.slane %v3076, 2
  %v3078 = vadd.f32 %v3076, %v3077
  %v3079 = vrot.slane %v3078, 1
  %v3080 = vadd.f32 %v3078, %v3079
  %v3081 = vmul.f32 %v2273, %v3080
  %v3082 = vmul.f32 %v2274, %v3080
  %v3083 = vmul.f32 %v2275, %v3080
  %v3084 = vmul.f32 %v2276, %v3080
  %v3085 = vmul.f32 %v2277, %v3080
  %v3086 = vmul.f32 %v2278, %v3080
  %v3087 = vmul.f32 %v2279, %v3080
  %v3088 = vmul.f32 %v2280, %v3080
  %3089 = vxpose.xlu0.b32.start [1/16] %v2580, 128
  %3090 = vxpose.xlu0.b32.cont [2/16] %v2581, 128
  %3091 = vxpose.xlu0.b32.cont [3/16] %v2582, 128
  %3092 = vxpose.xlu0.b32.cont [4/16] %v2583, 128
  %3093 = vxpose.xlu0.b32.cont [5/16] 0.0, 128
  %3094 = vxpose.xlu0.b32.cont [6/16] 0.0, 128
  %3095 = vxpose.xlu0.b32.cont [7/16] 0.0, 128
  %3096 = vxpose.xlu0.b32.cont [8/16] 0.0, 128
  %3097 = vxpose.xlu0.b32.cont [9/16] 0.0, 128
  %3098 = vxpose.xlu0.b32.cont [10/16] 0.0, 128
  %3099 = vxpose.xlu0.b32.cont [11/16] 0.0, 128
  %3100 = vxpose.xlu0.b32.cont [12/16] 0.0, 128
  %3101 = vxpose.xlu0.b32.cont [13/16] 0.0, 128
  %3102 = vxpose.xlu0.b32.cont [14/16] 0.0, 128
  %3103 = vxpose.xlu0.b32.cont [15/16] 0.0, 128
  %3104 = vxpose.xlu0.b32.end [16/16] 0.0, 128
  %v3105 = vpop.trf.xlu0
  %v3106 = vpop.trf.xlu0
  %v3107 = vpop.trf.xlu0
  %v3108 = vpop.trf.xlu0
  %v3109 = vpop.trf.xlu0
  %v3110 = vpop.trf.xlu0
  %v3111 = vpop.trf.xlu0
  %v3112 = vpop.trf.xlu0
  %v3113 = vpop.trf.xlu0
  %v3114 = vpop.trf.xlu0
  %v3115 = vpop.trf.xlu0
  %v3116 = vpop.trf.xlu0
  %v3117 = vpop.trf.xlu0
  %v3118 = vpop.trf.xlu0
  %v3119 = vpop.trf.xlu0
  %v3120 = vpop.trf.xlu0
  %v3122 = vsel %vm742, %v3105, 0
  %3124 = vmatprep.subr.mxu0 0.0
  %3125 = vmatpush1.msra.mxu0 %v2285
  %3126 = vmatprep.subr.mxu0 0.0
  %3127 = vmatpush1.msra.mxu0 %v2286
  %3128 = vmatprep.subr.mxu0 0.0
  %3129 = vmatpush1.msra.mxu0 %v2287
  %3130 = vmatprep.subr.mxu0 0.0
  %3131 = vmatpush1.msra.mxu0 %v2288
  %3132 = vmatprep.subr.mxu0 0.0
  %3133 = vmatpush1.msra.mxu0 0.0
  %3134 = vmatprep.subr.mxu0 0.0
  %3135 = vmatpush1.msra.mxu0 0.0
  %3136 = vmatprep.subr.mxu0 0.0
  %3137 = vmatpush1.msra.mxu0 0.0
  %3138 = vmatprep.subr.mxu0 0.0
  %3139 = vmatpush1.msra.mxu0 0.0
  %3140 = vmatprep.subr.mxu0 0.0
  %3141 = vmatpush1.msra.mxu0 0.0
  %3142 = vmatprep.subr.mxu0 0.0
  %3143 = vmatpush1.msra.mxu0 0.0
  %3144 = vmatprep.subr.mxu0 0.0
  %3145 = vmatpush1.msra.mxu0 0.0
  %3146 = vmatprep.subr.mxu0 0.0
  %3147 = vmatpush1.msra.mxu0 0.0
  %3148 = vmatprep.subr.mxu0 0.0
  %3149 = vmatpush1.msra.mxu0 0.0
  %3150 = vmatprep.subr.mxu0 0.0
  %3151 = vmatpush1.msra.mxu0 0.0
  %3152 = vmatprep.subr.mxu0 0.0
  %3153 = vmatpush1.msra.mxu0 0.0
  %3154 = vmatprep.subr.mxu0 0.0
  %3155 = vmatpush1.msra.mxu0 0.0
  %3156 = vmatprep.subr.mxu0 0.0
  %3157 = vmatpush1.msra.mxu0 0.0
  %3158 = vmatprep.subr.mxu0 0.0
  %3159 = vmatpush1.msra.mxu0 0.0
  %3160 = vmatprep.subr.mxu0 0.0
  %3161 = vmatpush1.msra.mxu0 0.0
  %3162 = vmatprep.subr.mxu0 0.0
  %3163 = vmatpush1.msra.mxu0 0.0
  %3164 = vmatprep.subr.mxu0 0.0
  %3165 = vmatpush1.msra.mxu0 0.0
  %3166 = vmatprep.subr.mxu0 0.0
  %3167 = vmatpush1.msra.mxu0 0.0
  %3168 = vmatprep.subr.mxu0 0.0
  %3169 = vmatpush1.msra.mxu0 0.0
  %3170 = vmatprep.subr.mxu0 0.0
  %3171 = vmatpush1.msra.mxu0 0.0
  %3172 = vmatprep.subr.mxu0 0.0
  %3173 = vmatpush1.msra.mxu0 0.0
  %3174 = vmatprep.subr.mxu0 0.0
  %3175 = vmatpush1.msra.mxu0 0.0
  %3176 = vmatprep.subr.mxu0 0.0
  %3177 = vmatpush1.msra.mxu0 0.0
  %3178 = vmatprep.subr.mxu0 0.0
  %3179 = vmatpush1.msra.mxu0 0.0
  %3180 = vmatprep.subr.mxu0 0.0
  %3181 = vmatpush1.msra.mxu0 0.0
  %3182 = vmatprep.subr.mxu0 0.0
  %3183 = vmatpush1.msra.mxu0 0.0
  %3184 = vmatprep.subr.mxu0 0.0
  %3185 = vmatpush1.msra.mxu0 0.0
  %3186 = vmatprep.subr.mxu0 0.0
  %3187 = vmatpush1.msra.mxu0 0.0
  %3188 = vmatprep.mubr.f32.mxu0 0.0
  %3189 = vmatmul.mubr.f32.gmra.mrb[0].mxu0 %v3122
  %v3190 = vpop.f32.mrb[0].mxu0
  %v3191 = vadd.f32 0.0, %v3190
  %v3192 = vpop.f32.mrb[0].mxu0
  %3193 = vdwg.mxu0
  %v3194 = vld [vmem:[%s4 + $0x70] sm:$0xff]
  %v3195 = vld [vmem:[%s4 + $0x78] sm:$0xff]
  %v3196 = vld [vmem:[%s4 + $0x80] sm:$0xff]
  %v3197 = vld [vmem:[%s4 + $0x88] sm:$0xff]
  %v3198 = vld [vmem:[%s4 + $0x90] sm:$0xff]
  %v3199 = vld [vmem:[%s4 + $0x98] sm:$0xff]
  %v3200 = vld [vmem:[%s4 + $0xa0] sm:$0xff]
  %v3201 = vld [vmem:[%s4 + $0xa8] sm:$0xff]
  %v3202 = vld [vmem:[%s4 + $0xb0] sm:$0xff]
  %v3203 = vld [vmem:[%s4 + $0xb8] sm:$0xff]
  %v3204 = vld [vmem:[%s4 + $0xc0] sm:$0xff]
  %v3205 = vld [vmem:[%s4 + $0xc8] sm:$0xff]
  %v3206 = vld [vmem:[%s4 + $0xd0] sm:$0xff]
  %v3207 = vld [vmem:[%s4 + $0xd8] sm:$0xff]
  %v3208 = vld [vmem:[%s4 + $0xe0] sm:$0xff]
  %v3209 = vld [vmem:[%s4 + $0xe8] sm:$0xff]
  %v3211 = vsel %vm468, %v3194, 0
  %v3214 = vsel %vm468, %v3195, 0
  %v3217 = vsel %vm468, %v3196, 0
  %v3220 = vsel %vm468, %v3197, 0
  %v3223 = vsel %vm468, %v3198, 0
  %v3226 = vsel %vm468, %v3199, 0
  %v3229 = vsel %vm468, %v3200, 0
  %v3232 = vsel %vm468, %v3201, 0
  %v3235 = vsel %vm468, %v3202, 0
  %v3238 = vsel %vm468, %v3203, 0
  %v3241 = vsel %vm468, %v3204, 0
  %v3244 = vsel %vm468, %v3205, 0
  %v3247 = vsel %vm468, %v3206, 0
  %v3250 = vsel %vm468, %v3207, 0
  %v3253 = vsel %vm468, %v3208, 0
  %v3256 = vsel %vm468, %v3209, 0
  %3258 = vmatprep.subr.mxu0 0.0
  %3259 = vmatpush1.msra.mxu0 %v3081
  %3260 = vmatprep.subr.mxu0 0.0
  %3261 = vmatpush1.msra.mxu0 %v3082
  %3262 = vmatprep.subr.mxu0 0.0
  %3263 = vmatpush1.msra.mxu0 %v3083
  %3264 = vmatprep.subr.mxu0 0.0
  %3265 = vmatpush1.msra.mxu0 %v3084
  %3266 = vmatprep.subr.mxu0 0.0
  %3267 = vmatpush1.msra.mxu0 %v3085
  %3268 = vmatprep.subr.mxu0 0.0
  %3269 = vmatpush1.msra.mxu0 %v3086
  %3270 = vmatprep.subr.mxu0 0.0
  %3271 = vmatpush1.msra.mxu0 %v3087
  %3272 = vmatprep.subr.mxu0 0.0
  %3273 = vmatpush1.msra.mxu0 %v3088
  %3274 = vmatprep.subr.mxu0 0.0
  %3275 = vmatpush1.msra.mxu0 0.0
  %3276 = vmatprep.subr.mxu0 0.0
  %3277 = vmatpush1.msra.mxu0 0.0
  %3278 = vmatprep.subr.mxu0 0.0
  %3279 = vmatpush1.msra.mxu0 0.0
  %3280 = vmatprep.subr.mxu0 0.0
  %3281 = vmatpush1.msra.mxu0 0.0
  %3282 = vmatprep.subr.mxu0 0.0
  %3283 = vmatpush1.msra.mxu0 0.0
  %3284 = vmatprep.subr.mxu0 0.0
  %3285 = vmatpush1.msra.mxu0 0.0
  %3286 = vmatprep.subr.mxu0 0.0
  %3287 = vmatpush1.msra.mxu0 0.0
  %3288 = vmatprep.subr.mxu0 0.0
  %3289 = vmatpush1.msra.mxu0 0.0
  %3290 = vmatprep.subr.mxu0 0.0
  %3291 = vmatpush1.msra.mxu0 0.0
  %3292 = vmatprep.subr.mxu0 0.0
  %3293 = vmatpush1.msra.mxu0 0.0
  %3294 = vmatprep.subr.mxu0 0.0
  %3295 = vmatpush1.msra.mxu0 0.0
  %3296 = vmatprep.subr.mxu0 0.0
  %3297 = vmatpush1.msra.mxu0 0.0
  %3298 = vmatprep.subr.mxu0 0.0
  %3299 = vmatpush1.msra.mxu0 0.0
  %3300 = vmatprep.subr.mxu0 0.0
  %3301 = vmatpush1.msra.mxu0 0.0
  %3302 = vmatprep.subr.mxu0 0.0
  %3303 = vmatpush1.msra.mxu0 0.0
  %3304 = vmatprep.subr.mxu0 0.0
  %3305 = vmatpush1.msra.mxu0 0.0
  %3306 = vmatprep.subr.mxu0 0.0
  %3307 = vmatpush1.msra.mxu0 0.0
  %3308 = vmatprep.subr.mxu0 0.0
  %3309 = vmatpush1.msra.mxu0 0.0
  %3310 = vmatprep.subr.mxu0 0.0
  %3311 = vmatpush1.msra.mxu0 0.0
  %3312 = vmatprep.subr.mxu0 0.0
  %3313 = vmatpush1.msra.mxu0 0.0
  %3314 = vmatprep.subr.mxu0 0.0
  %3315 = vmatpush1.msra.mxu0 0.0
  %3316 = vmatprep.subr.mxu0 0.0
  %3317 = vmatpush1.msra.mxu0 0.0
  %3318 = vmatprep.subr.mxu0 0.0
  %3319 = vmatpush1.msra.mxu0 0.0
  %3320 = vmatprep.subr.mxu0 0.0
  %3321 = vmatpush1.msra.mxu0 0.0
  %3322 = vmatprep.mubr.f32.mxu0 0.0
  %3323 = vmatmul.mubr.f32.gmra.mrb[0].mxu0 %v3211
  %v3324 = vpop.f32.mrb[0].mxu0
  %v3325 = vadd.f32 0.0, %v3324
  %v3326 = vpop.f32.mrb[0].mxu0
  %3327 = vmatprep.mubr.f32.mxu0 0.0
  %3328 = vmatmul.mubr.f32.gmra.mrb[0].mxu0 %v3214
  %v3329 = vpop.f32.mrb[0].mxu0
  %v3330 = vadd.f32 0.0, %v3329
  %v3331 = vpop.f32.mrb[0].mxu0
  %3332 = vmatprep.mubr.f32.mxu0 0.0
  %3333 = vmatmul.mubr.f32.gmra.mrb[0].mxu0 %v3217
  %v3334 = vpop.f32.mrb[0].mxu0
  %v3335 = vadd.f32 0.0, %v3334
  %v3336 = vpop.f32.mrb[0].mxu0
  %3337 = vmatprep.mubr.f32.mxu0 0.0
  %3338 = vmatmul.mubr.f32.gmra.mrb[0].mxu0 %v3220
  %v3339 = vpop.f32.mrb[0].mxu0
  %v3340 = vadd.f32 0.0, %v3339
  %v3341 = vpop.f32.mrb[0].mxu0
  %3342 = vmatprep.mubr.f32.mxu0 0.0
  %3343 = vmatmul.mubr.f32.gmra.mrb[0].mxu0 %v3223
  %v3344 = vpop.f32.mrb[0].mxu0
  %v3345 = vadd.f32 0.0, %v3344
  %v3346 = vpop.f32.mrb[0].mxu0
  %3347 = vmatprep.mubr.f32.mxu0 0.0
  %3348 = vmatmul.mubr.f32.gmra.mrb[0].mxu0 %v3226
  %v3349 = vpop.f32.mrb[0].mxu0
  %v3350 = vadd.f32 0.0, %v3349
  %v3351 = vpop.f32.mrb[0].mxu0
  %3352 = vmatprep.mubr.f32.mxu0 0.0
  %3353 = vmatmul.mubr.f32.gmra.mrb[0].mxu0 %v3229
  %v3354 = vpop.f32.mrb[0].mxu0
  %v3355 = vadd.f32 0.0, %v3354
  %v3356 = vpop.f32.mrb[0].mxu0
  %3357 = vmatprep.mubr.f32.mxu0 0.0
  %3358 = vmatmul.mubr.f32.gmra.mrb[0].mxu0 %v3232
  %v3359 = vpop.f32.mrb[0].mxu0
  %v3360 = vadd.f32 0.0, %v3359
  %v3361 = vpop.f32.mrb[0].mxu0
  %3362 = vmatprep.mubr.f32.mxu0 0.0
  %3363 = vmatmul.mubr.f32.gmra.mrb[0].mxu0 %v3235
  %v3364 = vpop.f32.mrb[0].mxu0
  %v3365 = vadd.f32 0.0, %v3364
  %v3366 = vpop.f32.mrb[0].mxu0
  %3367 = vmatprep.mubr.f32.mxu0 0.0
  %3368 = vmatmul.mubr.f32.gmra.mrb[0].mxu0 %v3238
  %v3369 = vpop.f32.mrb[0].mxu0
  %v3370 = vadd.f32 0.0, %v3369
  %v3371 = vpop.f32.mrb[0].mxu0
  %3372 = vmatprep.mubr.f32.mxu0 0.0
  %3373 = vmatmul.mubr.f32.gmra.mrb[0].mxu0 %v3241
  %v3374 = vpop.f32.mrb[0].mxu0
  %v3375 = vadd.f32 0.0, %v3374
  %v3376 = vpop.f32.mrb[0].mxu0
  %3377 = vmatprep.mubr.f32.mxu0 0.0
  %3378 = vmatmul.mubr.f32.gmra.mrb[0].mxu0 %v3244
  %v3379 = vpop.f32.mrb[0].mxu0
  %v3380 = vadd.f32 0.0, %v3379
  %v3381 = vpop.f32.mrb[0].mxu0
  %3382 = vmatprep.mubr.f32.mxu0 0.0
  %3383 = vmatmul.mubr.f32.gmra.mrb[0].mxu0 %v3247
  %v3384 = vpop.f32.mrb[0].mxu0
  %v3385 = vadd.f32 0.0, %v3384
  %v3386 = vpop.f32.mrb[0].mxu0
  %3387 = vmatprep.mubr.f32.mxu0 0.0
  %3388 = vmatmul.mubr.f32.gmra.mrb[0].mxu0 %v3250
  %v3389 = vpop.f32.mrb[0].mxu0
  %v3390 = vadd.f32 0.0, %v3389
  %v3391 = vpop.f32.mrb[0].mxu0
  %3392 = vmatprep.mubr.f32.mxu0 0.0
  %3393 = vmatmul.mubr.f32.gmra.mrb[0].mxu0 %v3253
  %v3394 = vpop.f32.mrb[0].mxu0
  %v3395 = vadd.f32 0.0, %v3394
  %v3396 = vpop.f32.mrb[0].mxu0
  %3397 = vmatprep.mubr.f32.mxu0 0.0
  %3398 = vmatmul.mubr.f32.gmra.mrb[0].mxu0 %v3256
  %v3399 = vpop.f32.mrb[0].mxu0
  %v3400 = vadd.f32 0.0, %v3399
  %v3401 = vpop.f32.mrb[0].mxu0
  %3402 = vdwg.mxu0
  %v3403 = vmax.f32 %v3325, 0.0
  %v3404 = vmax.f32 %v3330, 0.0
  %v3405 = vmax.f32 %v3335, 0.0
  %v3406 = vmax.f32 %v3340, 0.0
  %v3407 = vmax.f32 %v3345, 0.0
  %v3408 = vmax.f32 %v3350, 0.0
  %v3409 = vmax.f32 %v3355, 0.0
  %v3410 = vmax.f32 %v3360, 0.0
  %v3411 = vmax.f32 %v3365, 0.0
  %v3412 = vmax.f32 %v3370, 0.0
  %v3413 = vmax.f32 %v3375, 0.0
  %v3414 = vmax.f32 %v3380, 0.0
  %v3415 = vmax.f32 %v3385, 0.0
  %v3416 = vmax.f32 %v3390, 0.0
  %v3417 = vmax.f32 %v3395, 0.0
  %v3418 = vmax.f32 %v3400, 0.0
  %v3419 = vld [vmem:[%s2 + $0x100] sm:$0xff]
  %v3420 = vld [vmem:[%s2 + $0x108] sm:$0xff]
  %v3421 = vld [vmem:[%s2 + $0x110] sm:$0xff]
  %v3422 = vld [vmem:[%s2 + $0x118] sm:$0xff]
  %v3423 = vld [vmem:[%s2 + $0x120] sm:$0xff]
  %v3424 = vld [vmem:[%s2 + $0x128] sm:$0xff]
  %v3425 = vld [vmem:[%s2 + $0x130] sm:$0xff]
  %v3426 = vld [vmem:[%s2 + $0x138] sm:$0xff]
  %v3427 = vld [vmem:[%s2 + $0x140] sm:$0xff]
  %v3428 = vld [vmem:[%s2 + $0x148] sm:$0xff]
  %v3429 = vld [vmem:[%s2 + $0x150] sm:$0xff]
  %v3430 = vld [vmem:[%s2 + $0x158] sm:$0xff]
  %v3431 = vld [vmem:[%s2 + $0x160] sm:$0xff]
  %v3432 = vld [vmem:[%s2 + $0x168] sm:$0xff]
  %v3433 = vld [vmem:[%s2 + $0x170] sm:$0xff]
  %v3434 = vld [vmem:[%s2 + $0x178] sm:$0xff]
  %3435 = vmatprep.subr.mxu0 0.0
  %3436 = vmatpush1.msra.mxu0 %v3419
  %3437 = vmatprep.subr.mxu0 0.0
  %3438 = vmatpush1.msra.mxu0 %v3420
  %3439 = vmatprep.subr.mxu0 0.0
  %3440 = vmatpush1.msra.mxu0 %v3421
  %3441 = vmatprep.subr.mxu0 0.0
  %3442 = vmatpush1.msra.mxu0 %v3422
  %3443 = vmatprep.subr.mxu0 0.0
  %3444 = vmatpush1.msra.mxu0 %v3423
  %3445 = vmatprep.subr.mxu0 0.0
  %3446 = vmatpush1.msra.mxu0 %v3424
  %3447 = vmatprep.subr.mxu0 0.0
  %3448 = vmatpush1.msra.mxu0 %v3425
  %3449 = vmatprep.subr.mxu0 0.0
  %3450 = vmatpush1.msra.mxu0 %v3426
  %3451 = vmatprep.subr.mxu0 0.0
  %3452 = vmatpush1.msra.mxu0 %v3427
  %3453 = vmatprep.subr.mxu0 0.0
  %3454 = vmatpush1.msra.mxu0 %v3428
  %3455 = vmatprep.subr.mxu0 0.0
  %3456 = vmatpush1.msra.mxu0 %v3429
  %3457 = vmatprep.subr.mxu0 0.0
  %3458 = vmatpush1.msra.mxu0 %v3430
  %3459 = vmatprep.subr.mxu0 0.0
  %3460 = vmatpush1.msra.mxu0 %v3431
  %3461 = vmatprep.subr.mxu0 0.0
  %3462 = vmatpush1.msra.mxu0 %v3432
  %3463 = vmatprep.subr.mxu0 0.0
  %3464 = vmatpush1.msra.mxu0 %v3433
  %3465 = vmatprep.subr.mxu0 0.0
  %3466 = vmatpush1.msra.mxu0 %v3434
  %3467 = vmatprep.subr.mxu0 0.0
  %3468 = vmatpush1.msra.mxu0 0.0
  %3469 = vmatprep.subr.mxu0 0.0
  %3470 = vmatpush1.msra.mxu0 0.0
  %3471 = vmatprep.subr.mxu0 0.0
  %3472 = vmatpush1.msra.mxu0 0.0
  %3473 = vmatprep.subr.mxu0 0.0
  %3474 = vmatpush1.msra.mxu0 0.0
  %3475 = vmatprep.subr.mxu0 0.0
  %3476 = vmatpush1.msra.mxu0 0.0
  %3477 = vmatprep.subr.mxu0 0.0
  %3478 = vmatpush1.msra.mxu0 0.0
  %3479 = vmatprep.subr.mxu0 0.0
  %3480 = vmatpush1.msra.mxu0 0.0
  %3481 = vmatprep.subr.mxu0 0.0
  %3482 = vmatpush1.msra.mxu0 0.0
  %3483 = vmatprep.subr.mxu0 0.0
  %3484 = vmatpush1.msra.mxu0 0.0
  %3485 = vmatprep.subr.mxu0 0.0
  %3486 = vmatpush1.msra.mxu0 0.0
  %3487 = vmatprep.subr.mxu0 0.0
  %3488 = vmatpush1.msra.mxu0 0.0
  %3489 = vmatprep.subr.mxu0 0.0
  %3490 = vmatpush1.msra.mxu0 0.0
  %3491 = vmatprep.subr.mxu0 0.0
  %3492 = vmatpush1.msra.mxu0 0.0
  %3493 = vmatprep.subr.mxu0 0.0
  %3494 = vmatpush1.msra.mxu0 0.0
  %3495 = vmatprep.subr.mxu0 0.0
  %3496 = vmatpush1.msra.mxu0 0.0
  %3497 = vmatprep.subr.mxu0 0.0
  %3498 = vmatpush1.msra.mxu0 0.0
  %3499 = vmatprep.mubr.f32.mxu0 0.0
  %3500 = vmatmul.mubr.f32.gmra.mrb[0].mxu0 %v3403
  %v3501 = vpop.f32.mrb[0].mxu0
  %v3502 = vadd.f32 0.0, %v3501
  %v3503 = vpop.f32.mrb[0].mxu0
  %3504 = vmatprep.mubr.f32.mxu0 0.0
  %3505 = vmatmul.mubr.f32.gmra.mrb[0].mxu0 %v3404
  %v3506 = vpop.f32.mrb[0].mxu0
  %v3507 = vadd.f32 0.0, %v3506
  %v3508 = vpop.f32.mrb[0].mxu0
  %3509 = vmatprep.mubr.f32.mxu0 0.0
  %3510 = vmatmul.mubr.f32.gmra.mrb[0].mxu0 %v3405
  %v3511 = vpop.f32.mrb[0].mxu0
  %v3512 = vadd.f32 0.0, %v3511
  %v3513 = vpop.f32.mrb[0].mxu0
  %3514 = vmatprep.mubr.f32.mxu0 0.0
  %3515 = vmatmul.mubr.f32.gmra.mrb[0].mxu0 %v3406
  %v3516 = vpop.f32.mrb[0].mxu0
  %v3517 = vadd.f32 0.0, %v3516
  %v3518 = vpop.f32.mrb[0].mxu0
  %3519 = vmatprep.mubr.f32.mxu0 0.0
  %3520 = vmatmul.mubr.f32.gmra.mrb[0].mxu0 %v3407
  %v3521 = vpop.f32.mrb[0].mxu0
  %v3522 = vadd.f32 0.0, %v3521
  %v3523 = vpop.f32.mrb[0].mxu0
  %3524 = vmatprep.mubr.f32.mxu0 0.0
  %3525 = vmatmul.mubr.f32.gmra.mrb[0].mxu0 %v3408
  %v3526 = vpop.f32.mrb[0].mxu0
  %v3527 = vadd.f32 0.0, %v3526
  %v3528 = vpop.f32.mrb[0].mxu0
  %3529 = vmatprep.mubr.f32.mxu0 0.0
  %3530 = vmatmul.mubr.f32.gmra.mrb[0].mxu0 %v3409
  %v3531 = vpop.f32.mrb[0].mxu0
  %v3532 = vadd.f32 0.0, %v3531
  %v3533 = vpop.f32.mrb[0].mxu0
  %3534 = vmatprep.mubr.f32.mxu0 0.0
  %3535 = vmatmul.mubr.f32.gmra.mrb[0].mxu0 %v3410
  %v3536 = vpop.f32.mrb[0].mxu0
  %v3537 = vadd.f32 0.0, %v3536
  %v3538 = vpop.f32.mrb[0].mxu0
  %3539 = vmatprep.mubr.f32.mxu0 0.0
  %3540 = vmatmul.mubr.f32.gmra.mrb[0].mxu0 %v3411
  %v3541 = vpop.f32.mrb[0].mxu0
  %v3542 = vadd.f32 0.0, %v3541
  %v3543 = vpop.f32.mrb[0].mxu0
  %3544 = vmatprep.mubr.f32.mxu0 0.0
  %3545 = vmatmul.mubr.f32.gmra.mrb[0].mxu0 %v3412
  %v3546 = vpop.f32.mrb[0].mxu0
  %v3547 = vadd.f32 0.0, %v3546
  %v3548 = vpop.f32.mrb[0].mxu0
  %3549 = vmatprep.mubr.f32.mxu0 0.0
  %3550 = vmatmul.mubr.f32.gmra.mrb[0].mxu0 %v3413
  %v3551 = vpop.f32.mrb[0].mxu0
  %v3552 = vadd.f32 0.0, %v3551
  %v3553 = vpop.f32.mrb[0].mxu0
  %3554 = vmatprep.mubr.f32.mxu0 0.0
  %3555 = vmatmul.mubr.f32.gmra.mrb[0].mxu0 %v3414
  %v3556 = vpop.f32.mrb[0].mxu0
  %v3557 = vadd.f32 0.0, %v3556
  %v3558 = vpop.f32.mrb[0].mxu0
  %3559 = vmatprep.mubr.f32.mxu0 0.0
  %3560 = vmatmul.mubr.f32.gmra.mrb[0].mxu0 %v3415
  %v3561 = vpop.f32.mrb[0].mxu0
  %v3562 = vadd.f32 0.0, %v3561
  %v3563 = vpop.f32.mrb[0].mxu0
  %3564 = vmatprep.mubr.f32.mxu0 0.0
  %3565 = vmatmul.mubr.f32.gmra.mrb[0].mxu0 %v3416
  %v3566 = vpop.f32.mrb[0].mxu0
  %v3567 = vadd.f32 0.0, %v3566
  %v3568 = vpop.f32.mrb[0].mxu0
  %3569 = vmatprep.mubr.f32.mxu0 0.0
  %3570 = vmatmul.mubr.f32.gmra.mrb[0].mxu0 %v3417
  %v3571 = vpop.f32.mrb[0].mxu0
  %v3572 = vadd.f32 0.0, %v3571
  %v3573 = vpop.f32.mrb[0].mxu0
  %3574 = vmatprep.mubr.f32.mxu0 0.0
  %3575 = vmatmul.mubr.f32.gmra.mrb[0].mxu0 %v3418
  %v3576 = vpop.f32.mrb[0].mxu0
  %v3577 = vadd.f32 0.0, %v3576
  %v3578 = vpop.f32.mrb[0].mxu0
  %3579 = vdwg.mxu0
  %v3580 = vld [vmem:[%s5 + $0x60] sm:$0xff]
  %v3581 = vld [vmem:[%s5 + $0x68] sm:$0xff]
  %v3582 = vld [vmem:[%s5 + $0x70] sm:$0xff]
  %v3583 = vld [vmem:[%s5 + $0x78] sm:$0xff]
  %v3584 = vld [vmem:[%s6 + $0x60] sm:$0xff]
  %v3585 = vld [vmem:[%s6 + $0x68] sm:$0xff]
  %v3586 = vld [vmem:[%s6 + $0x70] sm:$0xff]
  %v3587 = vld [vmem:[%s6 + $0x78] sm:$0xff]
  %v3588 = vmul.f32 %v36, 16.0
  %v3590 = vsel %vm742, %v3502, 0
  %v3593 = vsel %vm742, %v3507, 0
  %v3596 = vsel %vm742, %v3512, 0
  %v3599 = vsel %vm742, %v3517, 0
  %v3602 = vsel %vm742, %v3522, 0
  %v3605 = vsel %vm742, %v3527, 0
  %v3608 = vsel %vm742, %v3532, 0
  %v3611 = vsel %vm742, %v3537, 0
  %v3614 = vsel %vm742, %v3542, 0
  %v3617 = vsel %vm742, %v3547, 0
  %v3620 = vsel %vm742, %v3552, 0
  %v3623 = vsel %vm742, %v3557, 0
  %v3626 = vsel %vm742, %v3562, 0
  %v3629 = vsel %vm742, %v3567, 0
  %v3632 = vsel %vm742, %v3572, 0
  %v3635 = vsel %vm742, %v3577, 0
  %v3638 = vsel %vm742, %v36, 0
  %3640 = vmatprep.subr.mxu0 0.0
  %3641 = vmatpush1.xpose.msra.mxu0 %v3638
  %3642 = vmatprep.subr.mxu0 0.0
  %3643 = vmatpush1.xpose.msra.mxu0 0.0
  %3644 = vmatprep.subr.mxu0 0.0
  %3645 = vmatpush1.xpose.msra.mxu0 0.0
  %3646 = vmatprep.subr.mxu0 0.0
  %3647 = vmatpush1.xpose.msra.mxu0 0.0
  %3648 = vmatprep.subr.mxu0 0.0
  %3649 = vmatpush1.xpose.msra.mxu0 0.0
  %3650 = vmatprep.subr.mxu0 0.0
  %3651 = vmatpush1.xpose.msra.mxu0 0.0
  %3652 = vmatprep.subr.mxu0 0.0
  %3653 = vmatpush1.xpose.msra.mxu0 0.0
  %3654 = vmatprep.subr.mxu0 0.0
  %3655 = vmatpush1.xpose.msra.mxu0 0.0
  %3656 = vmatprep.subr.mxu0 0.0
  %3657 = vmatpush1.xpose.msra.mxu0 0.0
  %3658 = vmatprep.subr.mxu0 0.0
  %3659 = vmatpush1.xpose.msra.mxu0 0.0
  %3660 = vmatprep.subr.mxu0 0.0
  %3661 = vmatpush1.xpose.msra.mxu0 0.0
  %3662 = vmatprep.subr.mxu0 0.0
  %3663 = vmatpush1.xpose.msra.mxu0 0.0
  %3664 = vmatprep.subr.mxu0 0.0
  %3665 = vmatpush1.xpose.msra.mxu0 0.0
  %3666 = vmatprep.subr.mxu0 0.0
  %3667 = vmatpush1.xpose.msra.mxu0 0.0
  %3668 = vmatprep.subr.mxu0 0.0
  %3669 = vmatpush1.xpose.msra.mxu0 0.0
  %3670 = vmatprep.subr.mxu0 0.0
  %3671 = vmatpush1.xpose.msra.mxu0 0.0
  %3672 = vmatprep.subr.mxu0 0.0
  %3673 = vmatpush1.xpose.msra.mxu0 0.0
  %3674 = vmatprep.subr.mxu0 0.0
  %3675 = vmatpush1.xpose.msra.mxu0 0.0
  %3676 = vmatprep.subr.mxu0 0.0
  %3677 = vmatpush1.xpose.msra.mxu0 0.0
  %3678 = vmatprep.subr.mxu0 0.0
  %3679 = vmatpush1.xpose.msra.mxu0 0.0
  %3680 = vmatprep.subr.mxu0 0.0
  %3681 = vmatpush1.xpose.msra.mxu0 0.0
  %3682 = vmatprep.subr.mxu0 0.0
  %3683 = vmatpush1.xpose.msra.mxu0 0.0
  %3684 = vmatprep.subr.mxu0 0.0
  %3685 = vmatpush1.xpose.msra.mxu0 0.0
  %3686 = vmatprep.subr.mxu0 0.0
  %3687 = vmatpush1.xpose.msra.mxu0 0.0
  %3688 = vmatprep.subr.mxu0 0.0
  %3689 = vmatpush1.xpose.msra.mxu0 0.0
  %3690 = vmatprep.subr.mxu0 0.0
  %3691 = vmatpush1.xpose.msra.mxu0 0.0
  %3692 = vmatprep.subr.mxu0 0.0
  %3693 = vmatpush1.xpose.msra.mxu0 0.0
  %3694 = vmatprep.subr.mxu0 0.0
  %3695 = vmatpush1.xpose.msra.mxu0 0.0
  %3696 = vmatprep.subr.mxu0 0.0
  %3697 = vmatpush1.xpose.msra.mxu0 0.0
  %3698 = vmatprep.subr.mxu0 0.0
  %3699 = vmatpush1.xpose.msra.mxu0 0.0
  %3700 = vmatprep.subr.mxu0 0.0
  %3701 = vmatpush1.xpose.msra.mxu0 0.0
  %3702 = vmatprep.subr.mxu0 0.0
  %3703 = vmatpush1.xpose.msra.mxu0 0.0
  %3704 = vmatprep.mubr.f32.mxu0 0.0
  %3705 = vmatmul.mubr.f32.gmra.mrb[0].mxu0 %v3590
  %v3706 = vpop.f32.mrb[0].mxu0
  %v3707 = vadd.f32 0.0, %v3706
  %v3708 = vpop.f32.mrb[0].mxu0
  %3709 = vmatprep.mubr.f32.mxu0 0.0
  %3710 = vmatmul.mubr.f32.gmra.mrb[0].mxu0 %v3593
  %v3711 = vpop.f32.mrb[0].mxu0
  %v3712 = vadd.f32 0.0, %v3711
  %v3713 = vpop.f32.mrb[0].mxu0
  %3714 = vmatprep.mubr.f32.mxu0 0.0
  %3715 = vmatmul.mubr.f32.gmra.mrb[0].mxu0 %v3596
  %v3716 = vpop.f32.mrb[0].mxu0
  %v3717 = vadd.f32 0.0, %v3716
  %v3718 = vpop.f32.mrb[0].mxu0
  %3719 = vmatprep.mubr.f32.mxu0 0.0
  %3720 = vmatmul.mubr.f32.gmra.mrb[0].mxu0 %v3599
  %v3721 = vpop.f32.mrb[0].mxu0
  %v3722 = vadd.f32 0.0, %v3721
  %v3723 = vpop.f32.mrb[0].mxu0
  %3724 = vmatprep.mubr.f32.mxu0 0.0
  %3725 = vmatmul.mubr.f32.gmra.mrb[0].mxu0 %v3602
  %v3726 = vpop.f32.mrb[0].mxu0
  %v3727 = vadd.f32 0.0, %v3726
  %v3728 = vpop.f32.mrb[0].mxu0
  %3729 = vmatprep.mubr.f32.mxu0 0.0
  %3730 = vmatmul.mubr.f32.gmra.mrb[0].mxu0 %v3605
  %v3731 = vpop.f32.mrb[0].mxu0
  %v3732 = vadd.f32 0.0, %v3731
  %v3733 = vpop.f32.mrb[0].mxu0
  %3734 = vmatprep.mubr.f32.mxu0 0.0
  %3735 = vmatmul.mubr.f32.gmra.mrb[0].mxu0 %v3608
  %v3736 = vpop.f32.mrb[0].mxu0
  %v3737 = vadd.f32 0.0, %v3736
  %v3738 = vpop.f32.mrb[0].mxu0
  %3739 = vmatprep.mubr.f32.mxu0 0.0
  %3740 = vmatmul.mubr.f32.gmra.mrb[0].mxu0 %v3611
  %v3741 = vpop.f32.mrb[0].mxu0
  %v3742 = vadd.f32 0.0, %v3741
  %v3743 = vpop.f32.mrb[0].mxu0
  %3744 = vmatprep.mubr.f32.mxu0 0.0
  %3745 = vmatmul.mubr.f32.gmra.mrb[0].mxu0 %v3614
  %v3746 = vpop.f32.mrb[0].mxu0
  %v3747 = vadd.f32 0.0, %v3746
  %v3748 = vpop.f32.mrb[0].mxu0
  %3749 = vmatprep.mubr.f32.mxu0 0.0
  %3750 = vmatmul.mubr.f32.gmra.mrb[0].mxu0 %v3617
  %v3751 = vpop.f32.mrb[0].mxu0
  %v3752 = vadd.f32 0.0, %v3751
  %v3753 = vpop.f32.mrb[0].mxu0
  %3754 = vmatprep.mubr.f32.mxu0 0.0
  %3755 = vmatmul.mubr.f32.gmra.mrb[0].mxu0 %v3620
  %v3756 = vpop.f32.mrb[0].mxu0
  %v3757 = vadd.f32 0.0, %v3756
  %v3758 = vpop.f32.mrb[0].mxu0
  %3759 = vmatprep.mubr.f32.mxu0 0.0
  %3760 = vmatmul.mubr.f32.gmra.mrb[0].mxu0 %v3623
  %v3761 = vpop.f32.mrb[0].mxu0
  %v3762 = vadd.f32 0.0, %v3761
  %v3763 = vpop.f32.mrb[0].mxu0
  %3764 = vmatprep.mubr.f32.mxu0 0.0
  %3765 = vmatmul.mubr.f32.gmra.mrb[0].mxu0 %v3626
  %v3766 = vpop.f32.mrb[0].mxu0
  %v3767 = vadd.f32 0.0, %v3766
  %v3768 = vpop.f32.mrb[0].mxu0
  %3769 = vmatprep.mubr.f32.mxu0 0.0
  %3770 = vmatmul.mubr.f32.gmra.mrb[0].mxu0 %v3629
  %v3771 = vpop.f32.mrb[0].mxu0
  %v3772 = vadd.f32 0.0, %v3771
  %v3773 = vpop.f32.mrb[0].mxu0
  %3774 = vmatprep.mubr.f32.mxu0 0.0
  %3775 = vmatmul.mubr.f32.gmra.mrb[0].mxu0 %v3632
  %v3776 = vpop.f32.mrb[0].mxu0
  %v3777 = vadd.f32 0.0, %v3776
  %v3778 = vpop.f32.mrb[0].mxu0
  %3779 = vmatprep.mubr.f32.mxu0 0.0
  %3780 = vmatmul.mubr.f32.gmra.mrb[0].mxu0 %v3635
  %v3781 = vpop.f32.mrb[0].mxu0
  %v3782 = vadd.f32 0.0, %v3781
  %v3783 = vpop.f32.mrb[0].mxu0
  %3784 = vdwg.mxu0
  %3785 = vmatprep.subr.mxu0 0.0
  %3786 = vmatpush1.msra.mxu0 %v3502
  %3787 = vmatprep.subr.mxu0 0.0
  %3788 = vmatpush1.msra.mxu0 %v3507
  %3789 = vmatprep.subr.mxu0 0.0
  %3790 = vmatpush1.msra.mxu0 %v3512
  %3791 = vmatprep.subr.mxu0 0.0
  %3792 = vmatpush1.msra.mxu0 %v3517
  %3793 = vmatprep.subr.mxu0 0.0
  %3794 = vmatpush1.msra.mxu0 %v3522
  %3795 = vmatprep.subr.mxu0 0.0
  %3796 = vmatpush1.msra.mxu0 %v3527
  %3797 = vmatprep.subr.mxu0 0.0
  %3798 = vmatpush1.msra.mxu0 %v3532
  %3799 = vmatprep.subr.mxu0 0.0
  %3800 = vmatpush1.msra.mxu0 %v3537
  %3801 = vmatprep.subr.mxu0 0.0
  %3802 = vmatpush1.msra.mxu0 %v3542
  %3803 = vmatprep.subr.mxu0 0.0
  %3804 = vmatpush1.msra.mxu0 %v3547
  %3805 = vmatprep.subr.mxu0 0.0
  %3806 = vmatpush1.msra.mxu0 %v3552
  %3807 = vmatprep.subr.mxu0 0.0
  %3808 = vmatpush1.msra.mxu0 %v3557
  %3809 = vmatprep.subr.mxu0 0.0
  %3810 = vmatpush1.msra.mxu0 %v3562
  %3811 = vmatprep.subr.mxu0 0.0
  %3812 = vmatpush1.msra.mxu0 %v3567
  %3813 = vmatprep.subr.mxu0 0.0
  %3814 = vmatpush1.msra.mxu0 %v3572
  %3815 = vmatprep.subr.mxu0 0.0
  %3816 = vmatpush1.msra.mxu0 %v3577
  %3817 = vmatprep.subr.mxu0 0.0
  %3818 = vmatpush1.msra.mxu0 0.0
  %3819 = vmatprep.subr.mxu0 0.0
  %3820 = vmatpush1.msra.mxu0 0.0
  %3821 = vmatprep.subr.mxu0 0.0
  %3822 = vmatpush1.msra.mxu0 0.0
  %3823 = vmatprep.subr.mxu0 0.0
  %3824 = vmatpush1.msra.mxu0 0.0
  %3825 = vmatprep.subr.mxu0 0.0
  %3826 = vmatpush1.msra.mxu0 0.0
  %3827 = vmatprep.subr.mxu0 0.0
  %3828 = vmatpush1.msra.mxu0 0.0
  %3829 = vmatprep.subr.mxu0 0.0
  %3830 = vmatpush1.msra.mxu0 0.0
  %3831 = vmatprep.subr.mxu0 0.0
  %3832 = vmatpush1.msra.mxu0 0.0
  %3833 = vmatprep.subr.mxu0 0.0
  %3834 = vmatpush1.msra.mxu0 0.0
  %3835 = vmatprep.subr.mxu0 0.0
  %3836 = vmatpush1.msra.mxu0 0.0
  %3837 = vmatprep.subr.mxu0 0.0
  %3838 = vmatpush1.msra.mxu0 0.0
  %3839 = vmatprep.subr.mxu0 0.0
  %3840 = vmatpush1.msra.mxu0 0.0
  %3841 = vmatprep.subr.mxu0 0.0
  %3842 = vmatpush1.msra.mxu0 0.0
  %3843 = vmatprep.subr.mxu0 0.0
  %3844 = vmatpush1.msra.mxu0 0.0
  %3845 = vmatprep.subr.mxu0 0.0
  %3846 = vmatpush1.msra.mxu0 0.0
  %3847 = vmatprep.subr.mxu0 0.0
  %3848 = vmatpush1.msra.mxu0 0.0
  %3849 = vmatprep.mubr.f32.mxu0 0.0
  %3850 = vmatmul.mubr.f32.gmra.mrb[0].mxu0 %v3580
  %v3851 = vpop.f32.mrb[0].mxu0
  %v3852 = vadd.f32 0.0, %v3851
  %v3853 = vpop.f32.mrb[0].mxu0
  %3854 = vmatprep.mubr.f32.mxu0 0.0
  %3855 = vmatmul.mubr.f32.gmra.mrb[0].mxu0 %v3581
  %v3856 = vpop.f32.mrb[0].mxu0
  %v3857 = vadd.f32 0.0, %v3856
  %v3858 = vpop.f32.mrb[0].mxu0
  %3859 = vmatprep.mubr.f32.mxu0 0.0
  %3860 = vmatmul.mubr.f32.gmra.mrb[0].mxu0 %v3582
  %v3861 = vpop.f32.mrb[0].mxu0
  %v3862 = vadd.f32 0.0, %v3861
  %v3863 = vpop.f32.mrb[0].mxu0
  %3864 = vmatprep.mubr.f32.mxu0 0.0
  %3865 = vmatmul.mubr.f32.gmra.mrb[0].mxu0 %v3583
  %v3866 = vpop.f32.mrb[0].mxu0
  %v3867 = vadd.f32 0.0, %v3866
  %v3868 = vpop.f32.mrb[0].mxu0
  %3869 = vdwg.mxu0
  %v3870 = vmax.f32 %v3852, 0.0
  %v3871 = vmax.f32 %v3857, 0.0
  %v3872 = vmax.f32 %v3862, 0.0
  %v3873 = vmax.f32 %v3867, 0.0
  %3874 = vmatprep.subr.mxu0 0.0
  %3875 = vmatpush1.msra.mxu0 %v3707
  %3876 = vmatprep.subr.mxu0 0.0
  %3877 = vmatpush1.msra.mxu0 %v3712
  %3878 = vmatprep.subr.mxu0 0.0
  %3879 = vmatpush1.msra.mxu0 %v3717
  %3880 = vmatprep.subr.mxu0 0.0
  %3881 = vmatpush1.msra.mxu0 %v3722
  %3882 = vmatprep.subr.mxu0 0.0
  %3883 = vmatpush1.msra.mxu0 %v3727
  %3884 = vmatprep.subr.mxu0 0.0
  %3885 = vmatpush1.msra.mxu0 %v3732
  %3886 = vmatprep.subr.mxu0 0.0
  %3887 = vmatpush1.msra.mxu0 %v3737
  %3888 = vmatprep.subr.mxu0 0.0
  %3889 = vmatpush1.msra.mxu0 %v3742
  %3890 = vmatprep.subr.mxu0 0.0
  %3891 = vmatpush1.msra.mxu0 %v3747
  %3892 = vmatprep.subr.mxu0 0.0
  %3893 = vmatpush1.msra.mxu0 %v3752
  %3894 = vmatprep.subr.mxu0 0.0
  %3895 = vmatpush1.msra.mxu0 %v3757
  %3896 = vmatprep.subr.mxu0 0.0
  %3897 = vmatpush1.msra.mxu0 %v3762
  %3898 = vmatprep.subr.mxu0 0.0
  %3899 = vmatpush1.msra.mxu0 %v3767
  %3900 = vmatprep.subr.mxu0 0.0
  %3901 = vmatpush1.msra.mxu0 %v3772
  %3902 = vmatprep.subr.mxu0 0.0
  %3903 = vmatpush1.msra.mxu0 %v3777
  %3904 = vmatprep.subr.mxu0 0.0
  %3905 = vmatpush1.msra.mxu0 %v3782
  %3906 = vmatprep.subr.mxu0 0.0
  %3907 = vmatpush1.msra.mxu0 0.0
  %3908 = vmatprep.subr.mxu0 0.0
  %3909 = vmatpush1.msra.mxu0 0.0
  %3910 = vmatprep.subr.mxu0 0.0
  %3911 = vmatpush1.msra.mxu0 0.0
  %3912 = vmatprep.subr.mxu0 0.0
  %3913 = vmatpush1.msra.mxu0 0.0
  %3914 = vmatprep.subr.mxu0 0.0
  %3915 = vmatpush1.msra.mxu0 0.0
  %3916 = vmatprep.subr.mxu0 0.0
  %3917 = vmatpush1.msra.mxu0 0.0
  %3918 = vmatprep.subr.mxu0 0.0
  %3919 = vmatpush1.msra.mxu0 0.0
  %3920 = vmatprep.subr.mxu0 0.0
  %3921 = vmatpush1.msra.mxu0 0.0
  %3922 = vmatprep.subr.mxu0 0.0
  %3923 = vmatpush1.msra.mxu0 0.0
  %3924 = vmatprep.subr.mxu0 0.0
  %3925 = vmatpush1.msra.mxu0 0.0
  %3926 = vmatprep.subr.mxu0 0.0
  %3927 = vmatpush1.msra.mxu0 0.0
  %3928 = vmatprep.subr.mxu0 0.0
  %3929 = vmatpush1.msra.mxu0 0.0
  %3930 = vmatprep.subr.mxu0 0.0
  %3931 = vmatpush1.msra.mxu0 0.0
  %3932 = vmatprep.subr.mxu0 0.0
  %3933 = vmatpush1.msra.mxu0 0.0
  %3934 = vmatprep.subr.mxu0 0.0
  %3935 = vmatpush1.msra.mxu0 0.0
  %3936 = vmatprep.subr.mxu0 0.0
  %3937 = vmatpush1.msra.mxu0 0.0
  %3938 = vmatprep.mubr.f32.mxu0 0.0
  %3939 = vmatmul.mubr.f32.gmra.mrb[0].mxu0 %v3580
  %v3940 = vpop.f32.mrb[0].mxu0
  %v3941 = vadd.f32 0.0, %v3940
  %v3942 = vpop.f32.mrb[0].mxu0
  %3943 = vmatprep.mubr.f32.mxu0 0.0
  %3944 = vmatmul.mubr.f32.gmra.mrb[0].mxu0 %v3581
  %v3945 = vpop.f32.mrb[0].mxu0
  %v3946 = vadd.f32 0.0, %v3945
  %v3947 = vpop.f32.mrb[0].mxu0
  %3948 = vmatprep.mubr.f32.mxu0 0.0
  %3949 = vmatmul.mubr.f32.gmra.mrb[0].mxu0 %v3582
  %v3950 = vpop.f32.mrb[0].mxu0
  %v3951 = vadd.f32 0.0, %v3950
  %v3952 = vpop.f32.mrb[0].mxu0
  %3953 = vmatprep.mubr.f32.mxu0 0.0
  %3954 = vmatmul.mubr.f32.gmra.mrb[0].mxu0 %v3583
  %v3955 = vpop.f32.mrb[0].mxu0
  %v3956 = vadd.f32 0.0, %v3955
  %v3957 = vpop.f32.mrb[0].mxu0
  %3958 = vdwg.mxu0
  %v3959 = vmax.f32 %v3941, 0.0
  %v3960 = vmax.f32 %v3946, 0.0
  %v3961 = vmax.f32 %v3951, 0.0
  %v3962 = vmax.f32 %v3956, 0.0
  %3963 = vmatprep.subr.mxu0 0.0
  %3964 = vmatpush1.msra.mxu0 %v3870
  %3965 = vmatprep.subr.mxu0 0.0
  %3966 = vmatpush1.msra.mxu0 %v3871
  %3967 = vmatprep.subr.mxu0 0.0
  %3968 = vmatpush1.msra.mxu0 %v3872
  %3969 = vmatprep.subr.mxu0 0.0
  %3970 = vmatpush1.msra.mxu0 %v3873
  %3971 = vmatprep.subr.mxu0 0.0
  %3972 = vmatpush1.msra.mxu0 0.0
  %3973 = vmatprep.subr.mxu0 0.0
  %3974 = vmatpush1.msra.mxu0 0.0
  %3975 = vmatprep.subr.mxu0 0.0
  %3976 = vmatpush1.msra.mxu0 0.0
  %3977 = vmatprep.subr.mxu0 0.0
  %3978 = vmatpush1.msra.mxu0 0.0
  %3979 = vmatprep.subr.mxu0 0.0
  %3980 = vmatpush1.msra.mxu0 0.0
  %3981 = vmatprep.subr.mxu0 0.0
  %3982 = vmatpush1.msra.mxu0 0.0
  %3983 = vmatprep.subr.mxu0 0.0
  %3984 = vmatpush1.msra.mxu0 0.0
  %3985 = vmatprep.subr.mxu0 0.0
  %3986 = vmatpush1.msra.mxu0 0.0
  %3987 = vmatprep.subr.mxu0 0.0
  %3988 = vmatpush1.msra.mxu0 0.0
  %3989 = vmatprep.subr.mxu0 0.0
  %3990 = vmatpush1.msra.mxu0 0.0
  %3991 = vmatprep.subr.mxu0 0.0
  %3992 = vmatpush1.msra.mxu0 0.0
  %3993 = vmatprep.subr.mxu0 0.0
  %3994 = vmatpush1.msra.mxu0 0.0
  %3995 = vmatprep.subr.mxu0 0.0
  %3996 = vmatpush1.msra.mxu0 0.0
  %3997 = vmatprep.subr.mxu0 0.0
  %3998 = vmatpush1.msra.mxu0 0.0
  %3999 = vmatprep.subr.mxu0 0.0
  %4000 = vmatpush1.msra.mxu0 0.0
  %4001 = vmatprep.subr.mxu0 0.0
  %4002 = vmatpush1.msra.mxu0 0.0
  %4003 = vmatprep.subr.mxu0 0.0
  %4004 = vmatpush1.msra.mxu0 0.0
  %4005 = vmatprep.subr.mxu0 0.0
  %4006 = vmatpush1.msra.mxu0 0.0
  %4007 = vmatprep.subr.mxu0 0.0
  %4008 = vmatpush1.msra.mxu0 0.0
  %4009 = vmatprep.subr.mxu0 0.0
  %4010 = vmatpush1.msra.mxu0 0.0
  %4011 = vmatprep.subr.mxu0 0.0
  %4012 = vmatpush1.msra.mxu0 0.0
  %4013 = vmatprep.subr.mxu0 0.0
  %4014 = vmatpush1.msra.mxu0 0.0
  %4015 = vmatprep.subr.mxu0 0.0
  %4016 = vmatpush1.msra.mxu0 0.0
  %4017 = vmatprep.subr.mxu0 0.0
  %4018 = vmatpush1.msra.mxu0 0.0
  %4019 = vmatprep.subr.mxu0 0.0
  %4020 = vmatpush1.msra.mxu0 0.0
  %4021 = vmatprep.subr.mxu0 0.0
  %4022 = vmatpush1.msra.mxu0 0.0
  %4023 = vmatprep.subr.mxu0 0.0
  %4024 = vmatpush1.msra.mxu0 0.0
  %4025 = vmatprep.subr.mxu0 0.0
  %4026 = vmatpush1.msra.mxu0 0.0
  %4027 = vmatprep.mubr.f32.mxu0 0.0
  %4028 = vmatmul.mubr.f32.gmra.mrb[0].mxu0 %v744
  %v4029 = vpop.f32.mrb[0].mxu0
  %v4030 = vadd.f32 0.0, %v4029
  %v4031 = vpop.f32.mrb[0].mxu0
  %4032 = vdwg.mxu0
  %v4033 = vlaneseq
  %v4034 = vshrl.u32 %v4033, 7
  %v4035 = vsub.s32 0, %v4034
  %v4036 = vrot.slane %v4030, %v4035
  %v4037 = vsub.f32 %v3870, %v4036
  %v4038 = vsub.f32 %v3871, %v4036
  %v4039 = vsub.f32 %v3872, %v4036
  %v4040 = vsub.f32 %v3873, %v4036
  %v4041 = vmul.f32 %v4037, %v4037
  %v4042 = vmul.f32 %v4038, %v4038
  %v4043 = vmul.f32 %v4039, %v4039
  %v4044 = vmul.f32 %v4040, %v4040
  %4045 = vmatprep.subr.mxu0 0.0
  %4046 = vmatpush1.msra.mxu0 %v4041
  %4047 = vmatprep.subr.mxu0 0.0
  %4048 = vmatpush1.msra.mxu0 %v4042
  %4049 = vmatprep.subr.mxu0 0.0
  %4050 = vmatpush1.msra.mxu0 %v4043
  %4051 = vmatprep.subr.mxu0 0.0
  %4052 = vmatpush1.msra.mxu0 %v4044
  %4053 = vmatprep.subr.mxu0 0.0
  %4054 = vmatpush1.msra.mxu0 0.0
  %4055 = vmatprep.subr.mxu0 0.0
  %4056 = vmatpush1.msra.mxu0 0.0
  %4057 = vmatprep.subr.mxu0 0.0
  %4058 = vmatpush1.msra.mxu0 0.0
  %4059 = vmatprep.subr.mxu0 0.0
  %4060 = vmatpush1.msra.mxu0 0.0
  %4061 = vmatprep.subr.mxu0 0.0
  %4062 = vmatpush1.msra.mxu0 0.0
  %4063 = vmatprep.subr.mxu0 0.0
  %4064 = vmatpush1.msra.mxu0 0.0
  %4065 = vmatprep.subr.mxu0 0.0
  %4066 = vmatpush1.msra.mxu0 0.0
  %4067 = vmatprep.subr.mxu0 0.0
  %4068 = vmatpush1.msra.mxu0 0.0
  %4069 = vmatprep.subr.mxu0 0.0
  %4070 = vmatpush1.msra.mxu0 0.0
  %4071 = vmatprep.subr.mxu0 0.0
  %4072 = vmatpush1.msra.mxu0 0.0
  %4073 = vmatprep.subr.mxu0 0.0
  %4074 = vmatpush1.msra.mxu0 0.0
  %4075 = vmatprep.subr.mxu0 0.0
  %4076 = vmatpush1.msra.mxu0 0.0
  %4077 = vmatprep.subr.mxu0 0.0
  %4078 = vmatpush1.msra.mxu0 0.0
  %4079 = vmatprep.subr.mxu0 0.0
  %4080 = vmatpush1.msra.mxu0 0.0
  %4081 = vmatprep.subr.mxu0 0.0
  %4082 = vmatpush1.msra.mxu0 0.0
  %4083 = vmatprep.subr.mxu0 0.0
  %4084 = vmatpush1.msra.mxu0 0.0
  %4085 = vmatprep.subr.mxu0 0.0
  %4086 = vmatpush1.msra.mxu0 0.0
  %4087 = vmatprep.subr.mxu0 0.0
  %4088 = vmatpush1.msra.mxu0 0.0
  %4089 = vmatprep.subr.mxu0 0.0
  %4090 = vmatpush1.msra.mxu0 0.0
  %4091 = vmatprep.subr.mxu0 0.0
  %4092 = vmatpush1.msra.mxu0 0.0
  %4093 = vmatprep.subr.mxu0 0.0
  %4094 = vmatpush1.msra.mxu0 0.0
  %4095 = vmatprep.subr.mxu0 0.0
  %4096 = vmatpush1.msra.mxu0 0.0
  %4097 = vmatprep.subr.mxu0 0.0
  %4098 = vmatpush1.msra.mxu0 0.0
  %4099 = vmatprep.subr.mxu0 0.0
  %4100 = vmatpush1.msra.mxu0 0.0
  %4101 = vmatprep.subr.mxu0 0.0
  %4102 = vmatpush1.msra.mxu0 0.0
  %4103 = vmatprep.subr.mxu0 0.0
  %4104 = vmatpush1.msra.mxu0 0.0
  %4105 = vmatprep.subr.mxu0 0.0
  %4106 = vmatpush1.msra.mxu0 0.0
  %4107 = vmatprep.subr.mxu0 0.0
  %4108 = vmatpush1.msra.mxu0 0.0
  %4109 = vmatprep.mubr.f32.mxu0 0.0
  %4110 = vmatmul.mubr.f32.gmra.mrb[0].mxu0 %v744
  %v4111 = vpop.f32.mrb[0].mxu0
  %v4112 = vadd.f32 1e-05, %v4111
  %v4113 = vpop.f32.mrb[0].mxu0
  %4114 = vdwg.mxu0
  %v4115 = vrsqrt.pop %v4112
  %v4116 = vlaneseq
  %v4117 = vshrl.u32 %v4116, 7
  %v4118 = vsub.s32 0, %v4117
  %v4119 = vrot.slane %v4115, %v4118
  %v4120 = vmul.f32 %v4037, %v4119
  %v4121 = vmul.f32 %v4038, %v4119
  %v4122 = vmul.f32 %v4039, %v4119
  %v4123 = vmul.f32 %v4040, %v4119
  %4124 = vset.pattern.permute.xlu0 3
  %4125 = vperm.xlu0 %4124, %v37
  %v4126 = vpop.permute.xlu0 %4125
  %4128 = vset.pattern.permute.xlu0 3
  %4129 = vperm.xlu0 %4128, %v38
  %v4130 = vpop.permute.xlu0 %4129
  %4132 = vset.pattern.permute.xlu0 3
  %4133 = vperm.xlu0 %4132, %v39
  %v4134 = vpop.permute.xlu0 %4133
  %4136 = vset.pattern.permute.xlu0 3
  %4137 = vperm.xlu0 %4136, %v40
  %v4138 = vpop.permute.xlu0 %4137
  %v4140 = vmul.f32 %v4120, %v4126
  %v4141 = vmul.f32 %v4121, %v4130
  %v4142 = vmul.f32 %v4122, %v4134
  %v4143 = vmul.f32 %v4123, %v4138
  %4144 = vset.pattern.permute.xlu0 7
  %4145 = vperm.xlu0 %4144, %v37
  %v4146 = vpop.permute.xlu0 %4145
  %4148 = vset.pattern.permute.xlu0 7
  %4149 = vperm.xlu0 %4148, %v38
  %v4150 = vpop.permute.xlu0 %4149
  %4152 = vset.pattern.permute.xlu0 7
  %4153 = vperm.xlu0 %4152, %v39
  %v4154 = vpop.permute.xlu0 %4153
  %4156 = vset.pattern.permute.xlu0 7
  %4157 = vperm.xlu0 %4156, %v40
  %v4158 = vpop.permute.xlu0 %4157
  %v4160 = vadd.f32 %v4140, %v4146
  %v4161 = vadd.f32 %v4141, %v4150
  %v4162 = vadd.f32 %v4142, %v4154
  %v4163 = vadd.f32 %v4143, %v4158
  %4164 = vmatprep.subr.mxu0 0.0
  %4165 = vmatpush1.msra.mxu0 %v3959
  %4166 = vmatprep.subr.mxu0 0.0
  %4167 = vmatpush1.msra.mxu0 %v3960
  %4168 = vmatprep.subr.mxu0 0.0
  %4169 = vmatpush1.msra.mxu0 %v3961
  %4170 = vmatprep.subr.mxu0 0.0
  %4171 = vmatpush1.msra.mxu0 %v3962
  %4172 = vmatprep.subr.mxu0 0.0
  %4173 = vmatpush1.msra.mxu0 0.0
  %4174 = vmatprep.subr.mxu0 0.0
  %4175 = vmatpush1.msra.mxu0 0.0
  %4176 = vmatprep.subr.mxu0 0.0
  %4177 = vmatpush1.msra.mxu0 0.0
  %4178 = vmatprep.subr.mxu0 0.0
  %4179 = vmatpush1.msra.mxu0 0.0
  %4180 = vmatprep.subr.mxu0 0.0
  %4181 = vmatpush1.msra.mxu0 0.0
  %4182 = vmatprep.subr.mxu0 0.0
  %4183 = vmatpush1.msra.mxu0 0.0
  %4184 = vmatprep.subr.mxu0 0.0
  %4185 = vmatpush1.msra.mxu0 0.0
  %4186 = vmatprep.subr.mxu0 0.0
  %4187 = vmatpush1.msra.mxu0 0.0
  %4188 = vmatprep.subr.mxu0 0.0
  %4189 = vmatpush1.msra.mxu0 0.0
  %4190 = vmatprep.subr.mxu0 0.0
  %4191 = vmatpush1.msra.mxu0 0.0
  %4192 = vmatprep.subr.mxu0 0.0
  %4193 = vmatpush1.msra.mxu0 0.0
  %4194 = vmatprep.subr.mxu0 0.0
  %4195 = vmatpush1.msra.mxu0 0.0
  %4196 = vmatprep.subr.mxu0 0.0
  %4197 = vmatpush1.msra.mxu0 0.0
  %4198 = vmatprep.subr.mxu0 0.0
  %4199 = vmatpush1.msra.mxu0 0.0
  %4200 = vmatprep.subr.mxu0 0.0
  %4201 = vmatpush1.msra.mxu0 0.0
  %4202 = vmatprep.subr.mxu0 0.0
  %4203 = vmatpush1.msra.mxu0 0.0
  %4204 = vmatprep.subr.mxu0 0.0
  %4205 = vmatpush1.msra.mxu0 0.0
  %4206 = vmatprep.subr.mxu0 0.0
  %4207 = vmatpush1.msra.mxu0 0.0
  %4208 = vmatprep.subr.mxu0 0.0
  %4209 = vmatpush1.msra.mxu0 0.0
  %4210 = vmatprep.subr.mxu0 0.0
  %4211 = vmatpush1.msra.mxu0 0.0
  %4212 = vmatprep.subr.mxu0 0.0
  %4213 = vmatpush1.msra.mxu0 0.0
  %4214 = vmatprep.subr.mxu0 0.0
  %4215 = vmatpush1.msra.mxu0 0.0
  %4216 = vmatprep.subr.mxu0 0.0
  %4217 = vmatpush1.msra.mxu0 0.0
  %4218 = vmatprep.subr.mxu0 0.0
  %4219 = vmatpush1.msra.mxu0 0.0
  %4220 = vmatprep.subr.mxu0 0.0
  %4221 = vmatpush1.msra.mxu0 0.0
  %4222 = vmatprep.subr.mxu0 0.0
  %4223 = vmatpush1.msra.mxu0 0.0
  %4224 = vmatprep.subr.mxu0 0.0
  %4225 = vmatpush1.msra.mxu0 0.0
  %4226 = vmatprep.subr.mxu0 0.0
  %4227 = vmatpush1.msra.mxu0 0.0
  %4228 = vmatprep.mubr.f32.mxu0 0.0
  %4229 = vmatmul.mubr.f32.gmra.mrb[0].mxu0 %v744
  %v4230 = vpop.f32.mrb[0].mxu0
  %v4231 = vadd.f32 0.0, %v4230
  %v4232 = vpop.f32.mrb[0].mxu0
  %4233 = vdwg.mxu0
  %v4234 = vlaneseq
  %v4235 = vshrl.u32 %v4234, 7
  %v4236 = vsub.s32 0, %v4235
  %v4237 = vrot.slane %v4231, %v4236
  %v4238 = vsub.f32 %v3959, %v4237
  %v4239 = vsub.f32 %v3960, %v4237
  %v4240 = vsub.f32 %v3961, %v4237
  %v4241 = vsub.f32 %v3962, %v4237
  %v4242 = vmul.f32 %v4238, %v4238
  %v4243 = vmul.f32 %v4239, %v4239
  %v4244 = vmul.f32 %v4240, %v4240
  %v4245 = vmul.f32 %v4241, %v4241
  %4246 = vmatprep.subr.mxu0 0.0
  %4247 = vmatpush1.msra.mxu0 %v4242
  %4248 = vmatprep.subr.mxu0 0.0
  %4249 = vmatpush1.msra.mxu0 %v4243
  %4250 = vmatprep.subr.mxu0 0.0
  %4251 = vmatpush1.msra.mxu0 %v4244
  %4252 = vmatprep.subr.mxu0 0.0
  %4253 = vmatpush1.msra.mxu0 %v4245
  %4254 = vmatprep.subr.mxu0 0.0
  %4255 = vmatpush1.msra.mxu0 0.0
  %4256 = vmatprep.subr.mxu0 0.0
  %4257 = vmatpush1.msra.mxu0 0.0
  %4258 = vmatprep.subr.mxu0 0.0
  %4259 = vmatpush1.msra.mxu0 0.0
  %4260 = vmatprep.subr.mxu0 0.0
  %4261 = vmatpush1.msra.mxu0 0.0
  %4262 = vmatprep.subr.mxu0 0.0
  %4263 = vmatpush1.msra.mxu0 0.0
  %4264 = vmatprep.subr.mxu0 0.0
  %4265 = vmatpush1.msra.mxu0 0.0
  %4266 = vmatprep.subr.mxu0 0.0
  %4267 = vmatpush1.msra.mxu0 0.0
  %4268 = vmatprep.subr.mxu0 0.0
  %4269 = vmatpush1.msra.mxu0 0.0
  %4270 = vmatprep.subr.mxu0 0.0
  %4271 = vmatpush1.msra.mxu0 0.0
  %4272 = vmatprep.subr.mxu0 0.0
  %4273 = vmatpush1.msra.mxu0 0.0
  %4274 = vmatprep.subr.mxu0 0.0
  %4275 = vmatpush1.msra.mxu0 0.0
  %4276 = vmatprep.subr.mxu0 0.0
  %4277 = vmatpush1.msra.mxu0 0.0
  %4278 = vmatprep.subr.mxu0 0.0
  %4279 = vmatpush1.msra.mxu0 0.0
  %4280 = vmatprep.subr.mxu0 0.0
  %4281 = vmatpush1.msra.mxu0 0.0
  %4282 = vmatprep.subr.mxu0 0.0
  %4283 = vmatpush1.msra.mxu0 0.0
  %4284 = vmatprep.subr.mxu0 0.0
  %4285 = vmatpush1.msra.mxu0 0.0
  %4286 = vmatprep.subr.mxu0 0.0
  %4287 = vmatpush1.msra.mxu0 0.0
  %4288 = vmatprep.subr.mxu0 0.0
  %4289 = vmatpush1.msra.mxu0 0.0
  %4290 = vmatprep.subr.mxu0 0.0
  %4291 = vmatpush1.msra.mxu0 0.0
  %4292 = vmatprep.subr.mxu0 0.0
  %4293 = vmatpush1.msra.mxu0 0.0
  %4294 = vmatprep.subr.mxu0 0.0
  %4295 = vmatpush1.msra.mxu0 0.0
  %4296 = vmatprep.subr.mxu0 0.0
  %4297 = vmatpush1.msra.mxu0 0.0
  %4298 = vmatprep.subr.mxu0 0.0
  %4299 = vmatpush1.msra.mxu0 0.0
  %4300 = vmatprep.subr.mxu0 0.0
  %4301 = vmatpush1.msra.mxu0 0.0
  %4302 = vmatprep.subr.mxu0 0.0
  %4303 = vmatpush1.msra.mxu0 0.0
  %4304 = vmatprep.subr.mxu0 0.0
  %4305 = vmatpush1.msra.mxu0 0.0
  %4306 = vmatprep.subr.mxu0 0.0
  %4307 = vmatpush1.msra.mxu0 0.0
  %4308 = vmatprep.subr.mxu0 0.0
  %4309 = vmatpush1.msra.mxu0 0.0
  %4310 = vmatprep.mubr.f32.mxu0 0.0
  %4311 = vmatmul.mubr.f32.gmra.mrb[0].mxu0 %v744
  %v4312 = vpop.f32.mrb[0].mxu0
  %v4313 = vadd.f32 1e-05, %v4312
  %v4314 = vpop.f32.mrb[0].mxu0
  %4315 = vdwg.mxu0
  %v4316 = vrsqrt.pop %v4313
  %v4317 = vlaneseq
  %v4318 = vshrl.u32 %v4317, 7
  %v4319 = vsub.s32 0, %v4318
  %v4320 = vrot.slane %v4316, %v4319
  %v4321 = vmul.f32 %v4238, %v4320
  %v4322 = vmul.f32 %v4239, %v4320
  %v4323 = vmul.f32 %v4240, %v4320
  %v4324 = vmul.f32 %v4241, %v4320
  %v4325 = vmul.f32 %v4321, %v4126
  %v4326 = vmul.f32 %v4322, %v4130
  %v4327 = vmul.f32 %v4323, %v4134
  %v4328 = vmul.f32 %v4324, %v4138
  %v4329 = vadd.f32 %v4325, %v4146
  %v4330 = vadd.f32 %v4326, %v4150
  %v4331 = vadd.f32 %v4327, %v4154
  %v4332 = vadd.f32 %v4328, %v4158
  %4333 = vxpose.xlu0.b32.start [1/16] %v4329, 128
  %4334 = vxpose.xlu0.b32.cont [2/16] %v4330, 128
  %4335 = vxpose.xlu0.b32.cont [3/16] %v4331, 128
  %4336 = vxpose.xlu0.b32.cont [4/16] %v4332, 128
  %4337 = vxpose.xlu0.b32.cont [5/16] 0.0, 128
  %4338 = vxpose.xlu0.b32.cont [6/16] 0.0, 128
  %4339 = vxpose.xlu0.b32.cont [7/16] 0.0, 128
  %4340 = vxpose.xlu0.b32.cont [8/16] 0.0, 128
  %4341 = vxpose.xlu0.b32.cont [9/16] 0.0, 128
  %4342 = vxpose.xlu0.b32.cont [10/16] 0.0, 128
  %4343 = vxpose.xlu0.b32.cont [11/16] 0.0, 128
  %4344 = vxpose.xlu0.b32.cont [12/16] 0.0, 128
  %4345 = vxpose.xlu0.b32.cont [13/16] 0.0, 128
  %4346 = vxpose.xlu0.b32.cont [14/16] 0.0, 128
  %4347 = vxpose.xlu0.b32.cont [15/16] 0.0, 128
  %4348 = vxpose.xlu0.b32.end [16/16] 0.0, 128
  %v4349 = vpop.trf.xlu0
  %v4350 = vpop.trf.xlu0
  %v4351 = vpop.trf.xlu0
  %v4352 = vpop.trf.xlu0
  %v4353 = vpop.trf.xlu0
  %v4354 = vpop.trf.xlu0
  %v4355 = vpop.trf.xlu0
  %v4356 = vpop.trf.xlu0
  %v4357 = vpop.trf.xlu0
  %v4358 = vpop.trf.xlu0
  %v4359 = vpop.trf.xlu0
  %v4360 = vpop.trf.xlu0
  %v4361 = vpop.trf.xlu0
  %v4362 = vpop.trf.xlu0
  %v4363 = vpop.trf.xlu0
  %v4364 = vpop.trf.xlu0
  %v4366 = vsel %vm742, %v4349, 0
  %4368 = vmatprep.subr.mxu0 0.0
  %4369 = vmatpush1.msra.mxu0 %v4160
  %4370 = vmatprep.subr.mxu0 0.0
  %4371 = vmatpush1.msra.mxu0 %v4161
  %4372 = vmatprep.subr.mxu0 0.0
  %4373 = vmatpush1.msra.mxu0 %v4162
  %4374 = vmatprep.subr.mxu0 0.0
  %4375 = vmatpush1.msra.mxu0 %v4163
  %4376 = vmatprep.subr.mxu0 0.0
  %4377 = vmatpush1.msra.mxu0 0.0
  %4378 = vmatprep.subr.mxu0 0.0
  %4379 = vmatpush1.msra.mxu0 0.0
  %4380 = vmatprep.subr.mxu0 0.0
  %4381 = vmatpush1.msra.mxu0 0.0
  %4382 = vmatprep.subr.mxu0 0.0
  %4383 = vmatpush1.msra.mxu0 0.0
  %4384 = vmatprep.subr.mxu0 0.0
  %4385 = vmatpush1.msra.mxu0 0.0
  %4386 = vmatprep.subr.mxu0 0.0
  %4387 = vmatpush1.msra.mxu0 0.0
  %4388 = vmatprep.subr.mxu0 0.0
  %4389 = vmatpush1.msra.mxu0 0.0
  %4390 = vmatprep.subr.mxu0 0.0
  %4391 = vmatpush1.msra.mxu0 0.0
  %4392 = vmatprep.subr.mxu0 0.0
  %4393 = vmatpush1.msra.mxu0 0.0
  %4394 = vmatprep.subr.mxu0 0.0
  %4395 = vmatpush1.msra.mxu0 0.0
  %4396 = vmatprep.subr.mxu0 0.0
  %4397 = vmatpush1.msra.mxu0 0.0
  %4398 = vmatprep.subr.mxu0 0.0
  %4399 = vmatpush1.msra.mxu0 0.0
  %4400 = vmatprep.subr.mxu0 0.0
  %4401 = vmatpush1.msra.mxu0 0.0
  %4402 = vmatprep.subr.mxu0 0.0
  %4403 = vmatpush1.msra.mxu0 0.0
  %4404 = vmatprep.subr.mxu0 0.0
  %4405 = vmatpush1.msra.mxu0 0.0
  %4406 = vmatprep.subr.mxu0 0.0
  %4407 = vmatpush1.msra.mxu0 0.0
  %4408 = vmatprep.subr.mxu0 0.0
  %4409 = vmatpush1.msra.mxu0 0.0
  %4410 = vmatprep.subr.mxu0 0.0
  %4411 = vmatpush1.msra.mxu0 0.0
  %4412 = vmatprep.subr.mxu0 0.0
  %4413 = vmatpush1.msra.mxu0 0.0
  %4414 = vmatprep.subr.mxu0 0.0
  %4415 = vmatpush1.msra.mxu0 0.0
  %4416 = vmatprep.subr.mxu0 0.0
  %4417 = vmatpush1.msra.mxu0 0.0
  %4418 = vmatprep.subr.mxu0 0.0
  %4419 = vmatpush1.msra.mxu0 0.0
  %4420 = vmatprep.subr.mxu0 0.0
  %4421 = vmatpush1.msra.mxu0 0.0
  %4422 = vmatprep.subr.mxu0 0.0
  %4423 = vmatpush1.msra.mxu0 0.0
  %4424 = vmatprep.subr.mxu0 0.0
  %4425 = vmatpush1.msra.mxu0 0.0
  %4426 = vmatprep.subr.mxu0 0.0
  %4427 = vmatpush1.msra.mxu0 0.0
  %4428 = vmatprep.subr.mxu0 0.0
  %4429 = vmatpush1.msra.mxu0 0.0
  %4430 = vmatprep.subr.mxu0 0.0
  %4431 = vmatpush1.msra.mxu0 0.0
  %4432 = vmatprep.mubr.f32.mxu0 0.0
  %4433 = vmatmul.mubr.f32.gmra.mrb[0].mxu0 %v4366
  %v4434 = vpop.f32.mrb[0].mxu0
  %v4435 = vadd.f32 0.0, %v4434
  %v4436 = vpop.f32.mrb[0].mxu0
  %4437 = vdwg.mxu0
  %v4438 = vmul.f32 %v4435, 0.17677669
  %vm4439 = vcmp.gt.f32.partialorder %v3588, 0.0
  %v4440 = vsel %vm4439, %v4438, -1e+30
  %v4441 = vsel %vm58, %v4440, -inf
  %4442 = vmax.xlane.f32.xlu0 %v4441
  %v4443 = vpop.xlane.xlu0 %4442
  %v4444 = vsub.f32 %v4440, %v4443
  %v4445 = vmul.f32 %v4444, 1.442695
  %v4446 = vpow.pop %v4445
  %v4447 = vmul.f32 %v4446, %v3588
  %v4448 = vsel %vm58, %v4447, 0.0
  %4449 = vadd.xlane.f32.xlu0 %v4448
  %v4450 = vpop.xlane.xlu0 %4449
  %v4451 = vrcp.pop %v4450
  %v4452 = vmul.f32 1.0, %v4451
  %v4453 = vmul.f32 %v4447, %v4452
  %v4454 = vsel %vm58, %v4453, 0.0
  %v4455 = vrot.slane %v4454, 4
  %v4456 = vadd.f32 %v4454, %v4455
  %v4457 = vrot.slane %v4456, 2
  %v4458 = vadd.f32 %v4456, %v4457
  %v4459 = vrot.slane %v4458, 1
  %v4460 = vadd.f32 %v4458, %v4459
  %v4461 = vmul.f32 %v3502, %v4460
  %v4462 = vmul.f32 %v3507, %v4460
  %v4463 = vmul.f32 %v3512, %v4460
  %v4464 = vmul.f32 %v3517, %v4460
  %v4465 = vmul.f32 %v3522, %v4460
  %v4466 = vmul.f32 %v3527, %v4460
  %v4467 = vmul.f32 %v3532, %v4460
  %v4468 = vmul.f32 %v3537, %v4460
  %v4469 = vmul.f32 %v3542, %v4460
  %v4470 = vmul.f32 %v3547, %v4460
  %v4471 = vmul.f32 %v3552, %v4460
  %v4472 = vmul.f32 %v3557, %v4460
  %v4473 = vmul.f32 %v3562, %v4460
  %v4474 = vmul.f32 %v3567, %v4460
  %v4475 = vmul.f32 %v3572, %v4460
  %v4476 = vmul.f32 %v3577, %v4460
  %4477 = vxpose.xlu0.b32.start [1/16] %v3959, 128
  %4478 = vxpose.xlu0.b32.cont [2/16] %v3960, 128
  %4479 = vxpose.xlu0.b32.cont [3/16] %v3961, 128
  %4480 = vxpose.xlu0.b32.cont [4/16] %v3962, 128
  %4481 = vxpose.xlu0.b32.cont [5/16] 0.0, 128
  %4482 = vxpose.xlu0.b32.cont [6/16] 0.0, 128
  %4483 = vxpose.xlu0.b32.cont [7/16] 0.0, 128
  %4484 = vxpose.xlu0.b32.cont [8/16] 0.0, 128
  %4485 = vxpose.xlu0.b32.cont [9/16] 0.0, 128
  %4486 = vxpose.xlu0.b32.cont [10/16] 0.0, 128
  %4487 = vxpose.xlu0.b32.cont [11/16] 0.0, 128
  %4488 = vxpose.xlu0.b32.cont [12/16] 0.0, 128
  %4489 = vxpose.xlu0.b32.cont [13/16] 0.0, 128
  %4490 = vxpose.xlu0.b32.cont [14/16] 0.0, 128
  %4491 = vxpose.xlu0.b32.cont [15/16] 0.0, 128
  %4492 = vxpose.xlu0.b32.end [16/16] 0.0, 128
  %v4493 = vpop.trf.xlu0
  %v4494 = vpop.trf.xlu0
  %v4495 = vpop.trf.xlu0
  %v4496 = vpop.trf.xlu0
  %v4497 = vpop.trf.xlu0
  %v4498 = vpop.trf.xlu0
  %v4499 = vpop.trf.xlu0
  %v4500 = vpop.trf.xlu0
  %v4501 = vpop.trf.xlu0
  %v4502 = vpop.trf.xlu0
  %v4503 = vpop.trf.xlu0
  %v4504 = vpop.trf.xlu0
  %v4505 = vpop.trf.xlu0
  %v4506 = vpop.trf.xlu0
  %v4507 = vpop.trf.xlu0
  %v4508 = vpop.trf.xlu0
  %v4510 = vsel %vm742, %v4493, 0
  %4512 = vmatprep.subr.mxu0 0.0
  %4513 = vmatpush1.msra.mxu0 %v3584
  %4514 = vmatprep.subr.mxu0 0.0
  %4515 = vmatpush1.msra.mxu0 %v3585
  %4516 = vmatprep.subr.mxu0 0.0
  %4517 = vmatpush1.msra.mxu0 %v3586
  %4518 = vmatprep.subr.mxu0 0.0
  %4519 = vmatpush1.msra.mxu0 %v3587
  %4520 = vmatprep.subr.mxu0 0.0
  %4521 = vmatpush1.msra.mxu0 0.0
  %4522 = vmatprep.subr.mxu0 0.0
  %4523 = vmatpush1.msra.mxu0 0.0
  %4524 = vmatprep.subr.mxu0 0.0
  %4525 = vmatpush1.msra.mxu0 0.0
  %4526 = vmatprep.subr.mxu0 0.0
  %4527 = vmatpush1.msra.mxu0 0.0
  %4528 = vmatprep.subr.mxu0 0.0
  %4529 = vmatpush1.msra.mxu0 0.0
  %4530 = vmatprep.subr.mxu0 0.0
  %4531 = vmatpush1.msra.mxu0 0.0
  %4532 = vmatprep.subr.mxu0 0.0
  %4533 = vmatpush1.msra.mxu0 0.0
  %4534 = vmatprep.subr.mxu0 0.0
  %4535 = vmatpush1.msra.mxu0 0.0
  %4536 = vmatprep.subr.mxu0 0.0
  %4537 = vmatpush1.msra.mxu0 0.0
  %4538 = vmatprep.subr.mxu0 0.0
  %4539 = vmatpush1.msra.mxu0 0.0
  %4540 = vmatprep.subr.mxu0 0.0
  %4541 = vmatpush1.msra.mxu0 0.0
  %4542 = vmatprep.subr.mxu0 0.0
  %4543 = vmatpush1.msra.mxu0 0.0
  %4544 = vmatprep.subr.mxu0 0.0
  %4545 = vmatpush1.msra.mxu0 0.0
  %4546 = vmatprep.subr.mxu0 0.0
  %4547 = vmatpush1.msra.mxu0 0.0
  %4548 = vmatprep.subr.mxu0 0.0
  %4549 = vmatpush1.msra.mxu0 0.0
  %4550 = vmatprep.subr.mxu0 0.0
  %4551 = vmatpush1.msra.mxu0 0.0
  %4552 = vmatprep.subr.mxu0 0.0
  %4553 = vmatpush1.msra.mxu0 0.0
  %4554 = vmatprep.subr.mxu0 0.0
  %4555 = vmatpush1.msra.mxu0 0.0
  %4556 = vmatprep.subr.mxu0 0.0
  %4557 = vmatpush1.msra.mxu0 0.0
  %4558 = vmatprep.subr.mxu0 0.0
  %4559 = vmatpush1.msra.mxu0 0.0
  %4560 = vmatprep.subr.mxu0 0.0
  %4561 = vmatpush1.msra.mxu0 0.0
  %4562 = vmatprep.subr.mxu0 0.0
  %4563 = vmatpush1.msra.mxu0 0.0
  %4564 = vmatprep.subr.mxu0 0.0
  %4565 = vmatpush1.msra.mxu0 0.0
  %4566 = vmatprep.subr.mxu0 0.0
  %4567 = vmatpush1.msra.mxu0 0.0
  %4568 = vmatprep.subr.mxu0 0.0
  %4569 = vmatpush1.msra.mxu0 0.0
  %4570 = vmatprep.subr.mxu0 0.0
  %4571 = vmatpush1.msra.mxu0 0.0
  %4572 = vmatprep.subr.mxu0 0.0
  %4573 = vmatpush1.msra.mxu0 0.0
  %4574 = vmatprep.subr.mxu0 0.0
  %4575 = vmatpush1.msra.mxu0 0.0
  %4576 = vmatprep.mubr.f32.mxu0 0.0
  %4577 = vmatmul.mubr.f32.gmra.mrb[0].mxu0 %v4510
  %v4578 = vpop.f32.mrb[0].mxu0
  %v4579 = vadd.f32 0.0, %v4578
  %v4580 = vpop.f32.mrb[0].mxu0
  %4581 = vdwg.mxu0
  %v4583 = vsel %vm742, %v4461, 0
  %v4586 = vsel %vm742, %v4462, 0
  %v4589 = vsel %vm742, %v4463, 0
  %v4592 = vsel %vm742, %v4464, 0
  %v4595 = vsel %vm742, %v4465, 0
  %v4598 = vsel %vm742, %v4466, 0
  %v4601 = vsel %vm742, %v4467, 0
  %v4604 = vsel %vm742, %v4468, 0
  %v4607 = vsel %vm742, %v4469, 0
  %v4610 = vsel %vm742, %v4470, 0
  %v4613 = vsel %vm742, %v4471, 0
  %v4616 = vsel %vm742, %v4472, 0
  %v4619 = vsel %vm742, %v4473, 0
  %v4622 = vsel %vm742, %v4474, 0
  %v4625 = vsel %vm742, %v4475, 0
  %v4628 = vsel %vm742, %v4476, 0
  %4630 = vmatprep.subr.mxu0 0.0
  %4631 = vmatpush1.xpose.msra.mxu0 %v4583
  %4632 = vmatprep.subr.mxu0 0.0
  %4633 = vmatpush1.xpose.msra.mxu0 %v4586
  %4634 = vmatprep.subr.mxu0 0.0
  %4635 = vmatpush1.xpose.msra.mxu0 %v4589
  %4636 = vmatprep.subr.mxu0 0.0
  %4637 = vmatpush1.xpose.msra.mxu0 %v4592
  %4638 = vmatprep.subr.mxu0 0.0
  %4639 = vmatpush1.xpose.msra.mxu0 %v4595
  %4640 = vmatprep.subr.mxu0 0.0
  %4641 = vmatpush1.xpose.msra.mxu0 %v4598
  %4642 = vmatprep.subr.mxu0 0.0
  %4643 = vmatpush1.xpose.msra.mxu0 %v4601
  %4644 = vmatprep.subr.mxu0 0.0
  %4645 = vmatpush1.xpose.msra.mxu0 %v4604
  %4646 = vmatprep.subr.mxu0 0.0
  %4647 = vmatpush1.xpose.msra.mxu0 %v4607
  %4648 = vmatprep.subr.mxu0 0.0
  %4649 = vmatpush1.xpose.msra.mxu0 %v4610
  %4650 = vmatprep.subr.mxu0 0.0
  %4651 = vmatpush1.xpose.msra.mxu0 %v4613
  %4652 = vmatprep.subr.mxu0 0.0
  %4653 = vmatpush1.xpose.msra.mxu0 %v4616
  %4654 = vmatprep.subr.mxu0 0.0
  %4655 = vmatpush1.xpose.msra.mxu0 %v4619
  %4656 = vmatprep.subr.mxu0 0.0
  %4657 = vmatpush1.xpose.msra.mxu0 %v4622
  %4658 = vmatprep.subr.mxu0 0.0
  %4659 = vmatpush1.xpose.msra.mxu0 %v4625
  %4660 = vmatprep.subr.mxu0 0.0
  %4661 = vmatpush1.xpose.msra.mxu0 %v4628
  %4662 = vmatprep.subr.mxu0 0.0
  %4663 = vmatpush1.xpose.msra.mxu0 0.0
  %4664 = vmatprep.subr.mxu0 0.0
  %4665 = vmatpush1.xpose.msra.mxu0 0.0
  %4666 = vmatprep.subr.mxu0 0.0
  %4667 = vmatpush1.xpose.msra.mxu0 0.0
  %4668 = vmatprep.subr.mxu0 0.0
  %4669 = vmatpush1.xpose.msra.mxu0 0.0
  %4670 = vmatprep.subr.mxu0 0.0
  %4671 = vmatpush1.xpose.msra.mxu0 0.0
  %4672 = vmatprep.subr.mxu0 0.0
  %4673 = vmatpush1.xpose.msra.mxu0 0.0
  %4674 = vmatprep.subr.mxu0 0.0
  %4675 = vmatpush1.xpose.msra.mxu0 0.0
  %4676 = vmatprep.subr.mxu0 0.0
  %4677 = vmatpush1.xpose.msra.mxu0 0.0
  %4678 = vmatprep.subr.mxu0 0.0
  %4679 = vmatpush1.xpose.msra.mxu0 0.0
  %4680 = vmatprep.subr.mxu0 0.0
  %4681 = vmatpush1.xpose.msra.mxu0 0.0
  %4682 = vmatprep.subr.mxu0 0.0
  %4683 = vmatpush1.xpose.msra.mxu0 0.0
  %4684 = vmatprep.subr.mxu0 0.0
  %4685 = vmatpush1.xpose.msra.mxu0 0.0
  %4686 = vmatprep.subr.mxu0 0.0
  %4687 = vmatpush1.xpose.msra.mxu0 0.0
  %4688 = vmatprep.subr.mxu0 0.0
  %4689 = vmatpush1.xpose.msra.mxu0 0.0
  %4690 = vmatprep.subr.mxu0 0.0
  %4691 = vmatpush1.xpose.msra.mxu0 0.0
  %4692 = vmatprep.subr.mxu0 0.0
  %4693 = vmatpush1.xpose.msra.mxu0 0.0
  %4694 = vmatprep.mubr.f32.mxu0 0.0
  %4695 = vmatmul.mubr.f32.gmra.mrb[0].mxu0 %v3638
  %v4696 = vpop.f32.mrb[0].mxu0
  %v4697 = vadd.f32 0.0, %v4696
  %v4698 = vpop.f32.mrb[0].mxu0
  %4699 = vdwg.mxu0
  %v4700 = vld [vmem:[%s9] sm:$0xff]
  %v4701 = vld [vmem:[%s9 + $0x8] sm:$0xff]
  %v4702 = vld [vmem:[%s9 + $0x10] sm:$0xff]
  %v4703 = vld [vmem:[%s9 + $0x18] sm:$0xff]
  %v4704 = vld [vmem:[%s9 + $0x20] sm:$0xff]
  %v4705 = vld [vmem:[%s9 + $0x28] sm:$0xff]
  %v4706 = vld [vmem:[%s9 + $0x30] sm:$0xff]
  %v4707 = vld [vmem:[%s9 + $0x38] sm:$0xff]
  %v4708 = vld [vmem:[%s9 + $0x40] sm:$0xff]
  %v4709 = vld [vmem:[%s9 + $0x48] sm:$0xff]
  %v4710 = vld [vmem:[%s9 + $0x50] sm:$0xff]
  %v4711 = vld [vmem:[%s9 + $0x58] sm:$0xff]
  %v4712 = vld [vmem:[%s9 + $0x60] sm:$0xff]
  %v4713 = vld [vmem:[%s9 + $0x68] sm:$0xff]
  %v4714 = vld [vmem:[%s9 + $0x70] sm:$0xff]
  %v4715 = vld [vmem:[%s9 + $0x78] sm:$0xff]
  %v4716 = vld [vmem:[%s9 + $0x80] sm:$0xff]
  %v4717 = vld [vmem:[%s9 + $0x88] sm:$0xff]
  %v4718 = vld [vmem:[%s9 + $0x90] sm:$0xff]
  %v4719 = vld [vmem:[%s9 + $0x98] sm:$0xff]
  %v4720 = vld [vmem:[%s9 + $0xa0] sm:$0xff]
  %v4721 = vld [vmem:[%s9 + $0xa8] sm:$0xff]
  %v4722 = vld [vmem:[%s9 + $0xb0] sm:$0xff]
  %v4723 = vld [vmem:[%s9 + $0xb8] sm:$0xff]
  %v4724 = vld [vmem:[%s9 + $0xc0] sm:$0xff]
  %v4725 = vld [vmem:[%s9 + $0xc8] sm:$0xff]
  %v4726 = vld [vmem:[%s9 + $0xd0] sm:$0xff]
  %v4727 = vld [vmem:[%s9 + $0xd8] sm:$0xff]
  %v4728 = vld [vmem:[%s9 + $0xe0] sm:$0xff]
  %v4730 = vsel %vm742, %v91, 0
  %4732 = vmatprep.subr.mxu0 0.0
  %4733 = vmatpush1.msra.mxu0 %v4716
  %4734 = vmatprep.subr.mxu0 0.0
  %4735 = vmatpush1.msra.mxu0 %v4717
  %4736 = vmatprep.subr.mxu0 0.0
  %4737 = vmatpush1.msra.mxu0 %v4718
  %4738 = vmatprep.subr.mxu0 0.0
  %4739 = vmatpush1.msra.mxu0 %v4719
  %4740 = vmatprep.subr.mxu0 0.0
  %4741 = vmatpush1.msra.mxu0 0.0
  %4742 = vmatprep.subr.mxu0 0.0
  %4743 = vmatpush1.msra.mxu0 0.0
  %4744 = vmatprep.subr.mxu0 0.0
  %4745 = vmatpush1.msra.mxu0 0.0
  %4746 = vmatprep.subr.mxu0 0.0
  %4747 = vmatpush1.msra.mxu0 0.0
  %4748 = vmatprep.subr.mxu0 0.0
  %4749 = vmatpush1.msra.mxu0 0.0
  %4750 = vmatprep.subr.mxu0 0.0
  %4751 = vmatpush1.msra.mxu0 0.0
  %4752 = vmatprep.subr.mxu0 0.0
  %4753 = vmatpush1.msra.mxu0 0.0
  %4754 = vmatprep.subr.mxu0 0.0
  %4755 = vmatpush1.msra.mxu0 0.0
  %4756 = vmatprep.subr.mxu0 0.0
  %4757 = vmatpush1.msra.mxu0 0.0
  %4758 = vmatprep.subr.mxu0 0.0
  %4759 = vmatpush1.msra.mxu0 0.0
  %4760 = vmatprep.subr.mxu0 0.0
  %4761 = vmatpush1.msra.mxu0 0.0
  %4762 = vmatprep.subr.mxu0 0.0
  %4763 = vmatpush1.msra.mxu0 0.0
  %4764 = vmatprep.subr.mxu0 0.0
  %4765 = vmatpush1.msra.mxu0 0.0
  %4766 = vmatprep.subr.mxu0 0.0
  %4767 = vmatpush1.msra.mxu0 0.0
  %4768 = vmatprep.subr.mxu0 0.0
  %4769 = vmatpush1.msra.mxu0 0.0
  %4770 = vmatprep.subr.mxu0 0.0
  %4771 = vmatpush1.msra.mxu0 0.0
  %4772 = vmatprep.subr.mxu0 0.0
  %4773 = vmatpush1.msra.mxu0 0.0
  %4774 = vmatprep.subr.mxu0 0.0
  %4775 = vmatpush1.msra.mxu0 0.0
  %4776 = vmatprep.subr.mxu0 0.0
  %4777 = vmatpush1.msra.mxu0 0.0
  %4778 = vmatprep.subr.mxu0 0.0
  %4779 = vmatpush1.msra.mxu0 0.0
  %4780 = vmatprep.subr.mxu0 0.0
  %4781 = vmatpush1.msra.mxu0 0.0
  %4782 = vmatprep.subr.mxu0 0.0
  %4783 = vmatpush1.msra.mxu0 0.0
  %4784 = vmatprep.subr.mxu0 0.0
  %4785 = vmatpush1.msra.mxu0 0.0
  %4786 = vmatprep.subr.mxu0 0.0
  %4787 = vmatpush1.msra.mxu0 0.0
  %4788 = vmatprep.subr.mxu0 0.0
  %4789 = vmatpush1.msra.mxu0 0.0
  %4790 = vmatprep.subr.mxu0 0.0
  %4791 = vmatpush1.msra.mxu0 0.0
  %4792 = vmatprep.subr.mxu0 0.0
  %4793 = vmatpush1.msra.mxu0 0.0
  %4794 = vmatprep.subr.mxu0 0.0
  %4795 = vmatpush1.msra.mxu0 0.0
  %4796 = vmatprep.mubr.f32.mxu0 0.0
  %4797 = vmatmul.mubr.f32.gmra.mrb[0].mxu0 %v4730
  %v4798 = vpop.f32.mrb[0].mxu0
  %v4799 = vadd.f32 0.0, %v4798
  %v4800 = vpop.f32.mrb[0].mxu0
  %4801 = vdwg.mxu0
  %4802 = vmatprep.subr.mxu0 0.0
  %4803 = vmatpush1.msra.mxu0 %v4700
  %4804 = vmatprep.subr.mxu0 0.0
  %4805 = vmatpush1.msra.mxu0 %v4701
  %4806 = vmatprep.subr.mxu0 0.0
  %4807 = vmatpush1.msra.mxu0 %v4702
  %4808 = vmatprep.subr.mxu0 0.0
  %4809 = vmatpush1.msra.mxu0 %v4703
  %4810 = vmatprep.subr.mxu0 0.0
  %4811 = vmatpush1.msra.mxu0 %v4704
  %4812 = vmatprep.subr.mxu0 0.0
  %4813 = vmatpush1.msra.mxu0 %v4705
  %4814 = vmatprep.subr.mxu0 0.0
  %4815 = vmatpush1.msra.mxu0 %v4706
  %4816 = vmatprep.subr.mxu0 0.0
  %4817 = vmatpush1.msra.mxu0 %v4707
  %4818 = vmatprep.subr.mxu0 0.0
  %4819 = vmatpush1.msra.mxu0 %v4708
  %4820 = vmatprep.subr.mxu0 0.0
  %4821 = vmatpush1.msra.mxu0 %v4709
  %4822 = vmatprep.subr.mxu0 0.0
  %4823 = vmatpush1.msra.mxu0 %v4710
  %4824 = vmatprep.subr.mxu0 0.0
  %4825 = vmatpush1.msra.mxu0 %v4711
  %4826 = vmatprep.subr.mxu0 0.0
  %4827 = vmatpush1.msra.mxu0 %v4712
  %4828 = vmatprep.subr.mxu0 0.0
  %4829 = vmatpush1.msra.mxu0 %v4713
  %4830 = vmatprep.subr.mxu0 0.0
  %4831 = vmatpush1.msra.mxu0 %v4714
  %4832 = vmatprep.subr.mxu0 0.0
  %4833 = vmatpush1.msra.mxu0 %v4715
  %4834 = vmatprep.subr.mxu0 0.0
  %4835 = vmatpush1.msra.mxu0 0.0
  %4836 = vmatprep.subr.mxu0 0.0
  %4837 = vmatpush1.msra.mxu0 0.0
  %4838 = vmatprep.subr.mxu0 0.0
  %4839 = vmatpush1.msra.mxu0 0.0
  %4840 = vmatprep.subr.mxu0 0.0
  %4841 = vmatpush1.msra.mxu0 0.0
  %4842 = vmatprep.subr.mxu0 0.0
  %4843 = vmatpush1.msra.mxu0 0.0
  %4844 = vmatprep.subr.mxu0 0.0
  %4845 = vmatpush1.msra.mxu0 0.0
  %4846 = vmatprep.subr.mxu0 0.0
  %4847 = vmatpush1.msra.mxu0 0.0
  %4848 = vmatprep.subr.mxu0 0.0
  %4849 = vmatpush1.msra.mxu0 0.0
  %4850 = vmatprep.subr.mxu0 0.0
  %4851 = vmatpush1.msra.mxu0 0.0
  %4852 = vmatprep.subr.mxu0 0.0
  %4853 = vmatpush1.msra.mxu0 0.0
  %4854 = vmatprep.subr.mxu0 0.0
  %4855 = vmatpush1.msra.mxu0 0.0
  %4856 = vmatprep.subr.mxu0 0.0
  %4857 = vmatpush1.msra.mxu0 0.0
  %4858 = vmatprep.subr.mxu0 0.0
  %4859 = vmatpush1.msra.mxu0 0.0
  %4860 = vmatprep.subr.mxu0 0.0
  %4861 = vmatpush1.msra.mxu0 0.0
  %4862 = vmatprep.subr.mxu0 0.0
  %4863 = vmatpush1.msra.mxu0 0.0
  %4864 = vmatprep.subr.mxu0 0.0
  %4865 = vmatpush1.msra.mxu0 0.0
  %4866 = vmatprep.mubr.f32.mxu0 0.0
  %4867 = vmatmul.mubr.f32.gmra.mrb[0].mxu0 %v4697
  %v4868 = vpop.f32.mrb[0].mxu0
  %v4869 = vadd.f32 %v4799, %v4868
  %v4870 = vpop.f32.mrb[0].mxu0
  %4871 = vdwg.mxu0
  %v4872 = vlaneseq
  %v4873 = vshrl.u32 %v4872, 7
  %v4874 = vsub.s32 0, %v4873
  %v4875 = vrot.slane %v4728, %v4874
  %v4876 = vadd.f32 %v4869, %v4875
  %vm4877 = vcmask 517120
  %v4878 = vsel %vm4877, %v4876, 0.0
  %v4879 = vrot.slane %v4878, 4
  %v4880 = vadd.f32 %v4878, %v4879
  %v4881 = vrot.slane %v4880, 2
  %v4882 = vadd.f32 %v4880, %v4881
  %v4883 = vrot.slane %v4882, 1
  %v4884 = vadd.f32 %v4882, %v4883
  %v4885 = vmul.f32 %v4884, %v66
  %v4886 = vsub.f32 %v4876, %v4885
  %v4887 = vmul.f32 %v4886, %v4886
  %v4888 = vsel %vm4877, %v4887, 0.0
  %v4889 = vrot.slane %v4888, 4
  %v4890 = vadd.f32 %v4888, %v4889
  %v4891 = vrot.slane %v4890, 2
  %v4892 = vadd.f32 %v4890, %v4891
  %v4893 = vrot.slane %v4892, 1
  %v4894 = vadd.f32 %v4892, %v4893
  %v4895 = vmul.f32 %v4894, %v66
  %v4896 = vadd.f32 %v4895, 1e-05
  %v4897 = vrsqrt.pop %v4896
  %v4898 = vmul.f32 %v4886, %v4897
  %v4899 = vlaneseq
  %v4900 = vshrl.u32 %v4899, 7
  %v4901 = vsub.s32 1, %v4900
  %v4902 = vrot.slane %v4728, %v4901
  %v4903 = vmul.f32 %v4898, %v4902
  %v4904 = vlaneseq
  %v4905 = vshrl.u32 %v4904, 7
  %v4906 = vsub.s32 2, %v4905
  %v4907 = vrot.slane %v4728, %v4906
  %v4908 = vadd.f32 %v4903, %v4907
  %v4909 = vmax.f32 %v4908, 0.0
  %v4910 = vlaneseq
  %v4911 = vshrl.u32 %v4910, 7
  %v4912 = vsub.s32 3, %v4911
  %v4913 = vrot.slane %v4728, %v4912
  %v4915 = vsel %vm468, %v4909, 0
  %4917 = vmatprep.subr.mxu0 0.0
  %4918 = vmatpush1.msra.mxu0 %v4720
  %4919 = vmatprep.subr.mxu0 0.0
  %4920 = vmatpush1.msra.mxu0 %v4721
  %4921 = vmatprep.subr.mxu0 0.0
  %4922 = vmatpush1.msra.mxu0 %v4722
  %4923 = vmatprep.subr.mxu0 0.0
  %4924 = vmatpush1.msra.mxu0 %v4723
  %4925 = vmatprep.subr.mxu0 0.0
  %4926 = vmatpush1.msra.mxu0 %v4724
  %4927 = vmatprep.subr.mxu0 0.0
  %4928 = vmatpush1.msra.mxu0 %v4725
  %4929 = vmatprep.subr.mxu0 0.0
  %4930 = vmatpush1.msra.mxu0 %v4726
  %4931 = vmatprep.subr.mxu0 0.0
  %4932 = vmatpush1.msra.mxu0 %v4727
  %4933 = vmatprep.subr.mxu0 0.0
  %4934 = vmatpush1.msra.mxu0 0.0
  %4935 = vmatprep.subr.mxu0 0.0
  %4936 = vmatpush1.msra.mxu0 0.0
  %4937 = vmatprep.subr.mxu0 0.0
  %4938 = vmatpush1.msra.mxu0 0.0
  %4939 = vmatprep.subr.mxu0 0.0
  %4940 = vmatpush1.msra.mxu0 0.0
  %4941 = vmatprep.subr.mxu0 0.0
  %4942 = vmatpush1.msra.mxu0 0.0
  %4943 = vmatprep.subr.mxu0 0.0
  %4944 = vmatpush1.msra.mxu0 0.0
  %4945 = vmatprep.subr.mxu0 0.0
  %4946 = vmatpush1.msra.mxu0 0.0
  %4947 = vmatprep.subr.mxu0 0.0
  %4948 = vmatpush1.msra.mxu0 0.0
  %4949 = vmatprep.subr.mxu0 0.0
  %4950 = vmatpush1.msra.mxu0 0.0
  %4951 = vmatprep.subr.mxu0 0.0
  %4952 = vmatpush1.msra.mxu0 0.0
  %4953 = vmatprep.subr.mxu0 0.0
  %4954 = vmatpush1.msra.mxu0 0.0
  %4955 = vmatprep.subr.mxu0 0.0
  %4956 = vmatpush1.msra.mxu0 0.0
  %4957 = vmatprep.subr.mxu0 0.0
  %4958 = vmatpush1.msra.mxu0 0.0
  %4959 = vmatprep.subr.mxu0 0.0
  %4960 = vmatpush1.msra.mxu0 0.0
  %4961 = vmatprep.subr.mxu0 0.0
  %4962 = vmatpush1.msra.mxu0 0.0
  %4963 = vmatprep.subr.mxu0 0.0
  %4964 = vmatpush1.msra.mxu0 0.0
  %4965 = vmatprep.subr.mxu0 0.0
  %4966 = vmatpush1.msra.mxu0 0.0
  %4967 = vmatprep.subr.mxu0 0.0
  %4968 = vmatpush1.msra.mxu0 0.0
  %4969 = vmatprep.subr.mxu0 0.0
  %4970 = vmatpush1.msra.mxu0 0.0
  %4971 = vmatprep.subr.mxu0 0.0
  %4972 = vmatpush1.msra.mxu0 0.0
  %4973 = vmatprep.subr.mxu0 0.0
  %4974 = vmatpush1.msra.mxu0 0.0
  %4975 = vmatprep.subr.mxu0 0.0
  %4976 = vmatpush1.msra.mxu0 0.0
  %4977 = vmatprep.subr.mxu0 0.0
  %4978 = vmatpush1.msra.mxu0 0.0
  %4979 = vmatprep.subr.mxu0 0.0
  %4980 = vmatpush1.msra.mxu0 0.0
  %4981 = vmatprep.mubr.f32.mxu0 0.0
  %4982 = vmatmul.mubr.f32.gmra.mrb[0].mxu0 %v4915
  %v4983 = vpop.f32.mrb[0].mxu0
  %v4984 = vadd.f32 %v4913, %v4983
  %v4985 = vpop.f32.mrb[0].mxu0
  %4986 = vdwg.mxu0
  %v4987 = vsel %vm58, %v4984, 0.0
  %v4988 = vrot.slane %v4987, 4
  %v4989 = vadd.f32 %v4987, %v4988
  %v4990 = vrot.slane %v4989, 2
  %v4991 = vadd.f32 %v4989, %v4990
  %v4992 = vrot.slane %v4991, 1
  %v4993 = vadd.f32 %v4991, %v4992
  %v4994 = vmul.f32 %v4993, %v66
  %v4995 = vsub.f32 %v4984, %v4994
  %v4996 = vmul.f32 %v4995, %v4995
  %v4997 = vsel %vm58, %v4996, 0.0
  %v4998 = vrot.slane %v4997, 4
  %v4999 = vadd.f32 %v4997, %v4998
  %v5000 = vrot.slane %v4999, 2
  %v5001 = vadd.f32 %v4999, %v5000
  %v5002 = vrot.slane %v5001, 1
  %v5003 = vadd.f32 %v5001, %v5002
  %v5004 = vmul.f32 %v5003, %v66
  %v5005 = vadd.f32 %v5004, 1e-05
  %v5006 = vrsqrt.pop %v5005
  %v5007 = vmul.f32 %v4995, %v5006
  %v5008 = vlaneseq
  %v5009 = vshrl.u32 %v5008, 7
  %v5010 = vsub.s32 4, %v5009
  %v5011 = vrot.slane %v4728, %v5010
  %v5012 = vmul.f32 %v5007, %v5011
  %v5013 = vlaneseq
  %v5014 = vshrl.u32 %v5013, 7
  %v5015 = vsub.s32 5, %v5014
  %v5016 = vrot.slane %v4728, %v5015
  %v5017 = vadd.f32 %v5012, %v5016
  %v5018 = vmax.f32 %v5017, 0.0
  %v5019 = vlaneseq
  %v5020 = vshrl.u32 %v5019, 7
  %v5021 = vsub.s32 6, %v5020
  %v5022 = vrot.slane %v4728, %v5021
  %v5023 = vmul.f32 %v5018, %v5022
  %v5024 = vsel %vm58, %v5023, 0.0
  %5025 = vadd.xlane.f32.xlu0 %v5024
  %v5026 = vpop.xlane.xlu0 %5025
  %v5027 = vlaneseq
  %v5028 = vshrl.u32 %v5027, 7
  %v5029 = vsub.s32 7, %v5028
  %v5030 = vrot.slane %v4728, %v5029
  %v5031 = vadd.f32 %v5026, %v5030
  %v5032 = vld [vmem:[%s9 + $0xe8] sm:$0xff]
  %v5033 = vld [vmem:[%s9 + $0xf0] sm:$0xff]
  %v5034 = vld [vmem:[%s9 + $0xf8] sm:$0xff]
  %v5035 = vld [vmem:[%s9 + $0x100] sm:$0xff]
  %v5036 = vld [vmem:[%s9 + $0x108] sm:$0xff]
  %v5037 = vld [vmem:[%s9 + $0x110] sm:$0xff]
  %v5038 = vld [vmem:[%s9 + $0x118] sm:$0xff]
  %v5039 = vld [vmem:[%s9 + $0x120] sm:$0xff]
  %v5040 = vld [vmem:[%s9 + $0x128] sm:$0xff]
  %v5041 = vld [vmem:[%s9 + $0x130] sm:$0xff]
  %v5042 = vld [vmem:[%s9 + $0x138] sm:$0xff]
  %v5043 = vld [vmem:[%s9 + $0x140] sm:$0xff]
  %v5044 = vld [vmem:[%s9 + $0x148] sm:$0xff]
  %v5045 = vld [vmem:[%s9 + $0x150] sm:$0xff]
  %v5046 = vld [vmem:[%s9 + $0x158] sm:$0xff]
  %v5047 = vld [vmem:[%s9 + $0x160] sm:$0xff]
  %v5048 = vld [vmem:[%s9 + $0x168] sm:$0xff]
  %v5049 = vld [vmem:[%s9 + $0x170] sm:$0xff]
  %v5050 = vld [vmem:[%s9 + $0x178] sm:$0xff]
  %v5051 = vld [vmem:[%s9 + $0x180] sm:$0xff]
  %v5052 = vld [vmem:[%s9 + $0x188] sm:$0xff]
  %5053 = vmatprep.subr.mxu0 0.0
  %5054 = vmatpush1.msra.mxu0 %v5040
  %5055 = vmatprep.subr.mxu0 0.0
  %5056 = vmatpush1.msra.mxu0 %v5041
  %5057 = vmatprep.subr.mxu0 0.0
  %5058 = vmatpush1.msra.mxu0 %v5042
  %5059 = vmatprep.subr.mxu0 0.0
  %5060 = vmatpush1.msra.mxu0 %v5043
  %5061 = vmatprep.subr.mxu0 0.0
  %5062 = vmatpush1.msra.mxu0 0.0
  %5063 = vmatprep.subr.mxu0 0.0
  %5064 = vmatpush1.msra.mxu0 0.0
  %5065 = vmatprep.subr.mxu0 0.0
  %5066 = vmatpush1.msra.mxu0 0.0
  %5067 = vmatprep.subr.mxu0 0.0
  %5068 = vmatpush1.msra.mxu0 0.0
  %5069 = vmatprep.subr.mxu0 0.0
  %5070 = vmatpush1.msra.mxu0 0.0
  %5071 = vmatprep.subr.mxu0 0.0
  %5072 = vmatpush1.msra.mxu0 0.0
  %5073 = vmatprep.subr.mxu0 0.0
  %5074 = vmatpush1.msra.mxu0 0.0
  %5075 = vmatprep.subr.mxu0 0.0
  %5076 = vmatpush1.msra.mxu0 0.0
  %5077 = vmatprep.subr.mxu0 0.0
  %5078 = vmatpush1.msra.mxu0 0.0
  %5079 = vmatprep.subr.mxu0 0.0
  %5080 = vmatpush1.msra.mxu0 0.0
  %5081 = vmatprep.subr.mxu0 0.0
  %5082 = vmatpush1.msra.mxu0 0.0
  %5083 = vmatprep.subr.mxu0 0.0
  %5084 = vmatpush1.msra.mxu0 0.0
  %5085 = vmatprep.subr.mxu0 0.0
  %5086 = vmatpush1.msra.mxu0 0.0
  %5087 = vmatprep.subr.mxu0 0.0
  %5088 = vmatpush1.msra.mxu0 0.0
  %5089 = vmatprep.subr.mxu0 0.0
  %5090 = vmatpush1.msra.mxu0 0.0
  %5091 = vmatprep.subr.mxu0 0.0
  %5092 = vmatpush1.msra.mxu0 0.0
  %5093 = vmatprep.subr.mxu0 0.0
  %5094 = vmatpush1.msra.mxu0 0.0
  %5095 = vmatprep.subr.mxu0 0.0
  %5096 = vmatpush1.msra.mxu0 0.0
  %5097 = vmatprep.subr.mxu0 0.0
  %5098 = vmatpush1.msra.mxu0 0.0
  %5099 = vmatprep.subr.mxu0 0.0
  %5100 = vmatpush1.msra.mxu0 0.0
  %5101 = vmatprep.subr.mxu0 0.0
  %5102 = vmatpush1.msra.mxu0 0.0
  %5103 = vmatprep.subr.mxu0 0.0
  %5104 = vmatpush1.msra.mxu0 0.0
  %5105 = vmatprep.subr.mxu0 0.0
  %5106 = vmatpush1.msra.mxu0 0.0
  %5107 = vmatprep.subr.mxu0 0.0
  %5108 = vmatpush1.msra.mxu0 0.0
  %5109 = vmatprep.subr.mxu0 0.0
  %5110 = vmatpush1.msra.mxu0 0.0
  %5111 = vmatprep.subr.mxu0 0.0
  %5112 = vmatpush1.msra.mxu0 0.0
  %5113 = vmatprep.subr.mxu0 0.0
  %5114 = vmatpush1.msra.mxu0 0.0
  %5115 = vmatprep.subr.mxu0 0.0
  %5116 = vmatpush1.msra.mxu0 0.0
  %5117 = vmatprep.mubr.f32.mxu0 0.0
  %5118 = vmatmul.mubr.f32.gmra.mrb[0].mxu0 %v4730
  %v5119 = vpop.f32.mrb[0].mxu0
  %v5120 = vadd.f32 0.0, %v5119
  %v5121 = vpop.f32.mrb[0].mxu0
  %5122 = vdwg.mxu0
  %v5124 = vsel %vm468, %v3191, 0
  %5126 = vmatprep.subr.mxu0 0.0
  %5127 = vmatpush1.msra.mxu0 %v5032
  %5128 = vmatprep.subr.mxu0 0.0
  %5129 = vmatpush1.msra.mxu0 %v5033
  %5130 = vmatprep.subr.mxu0 0.0
  %5131 = vmatpush1.msra.mxu0 %v5034
  %5132 = vmatprep.subr.mxu0 0.0
  %5133 = vmatpush1.msra.mxu0 %v5035
  %5134 = vmatprep.subr.mxu0 0.0
  %5135 = vmatpush1.msra.mxu0 %v5036
  %5136 = vmatprep.subr.mxu0 0.0
  %5137 = vmatpush1.msra.mxu0 %v5037
  %5138 = vmatprep.subr.mxu0 0.0
  %5139 = vmatpush1.msra.mxu0 %v5038
  %5140 = vmatprep.subr.mxu0 0.0
  %5141 = vmatpush1.msra.mxu0 %v5039
  %5142 = vmatprep.subr.mxu0 0.0
  %5143 = vmatpush1.msra.mxu0 0.0
  %5144 = vmatprep.subr.mxu0 0.0
  %5145 = vmatpush1.msra.mxu0 0.0
  %5146 = vmatprep.subr.mxu0 0.0
  %5147 = vmatpush1.msra.mxu0 0.0
  %5148 = vmatprep.subr.mxu0 0.0
  %5149 = vmatpush1.msra.mxu0 0.0
  %5150 = vmatprep.subr.mxu0 0.0
  %5151 = vmatpush1.msra.mxu0 0.0
  %5152 = vmatprep.subr.mxu0 0.0
  %5153 = vmatpush1.msra.mxu0 0.0
  %5154 = vmatprep.subr.mxu0 0.0
  %5155 = vmatpush1.msra.mxu0 0.0
  %5156 = vmatprep.subr.mxu0 0.0
  %5157 = vmatpush1.msra.mxu0 0.0
  %5158 = vmatprep.subr.mxu0 0.0
  %5159 = vmatpush1.msra.mxu0 0.0
  %5160 = vmatprep.subr.mxu0 0.0
  %5161 = vmatpush1.msra.mxu0 0.0
  %5162 = vmatprep.subr.mxu0 0.0
  %5163 = vmatpush1.msra.mxu0 0.0
  %5164 = vmatprep.subr.mxu0 0.0
  %5165 = vmatpush1.msra.mxu0 0.0
  %5166 = vmatprep.subr.mxu0 0.0
  %5167 = vmatpush1.msra.mxu0 0.0
  %5168 = vmatprep.subr.mxu0 0.0
  %5169 = vmatpush1.msra.mxu0 0.0
  %5170 = vmatprep.subr.mxu0 0.0
  %5171 = vmatpush1.msra.mxu0 0.0
  %5172 = vmatprep.subr.mxu0 0.0
  %5173 = vmatpush1.msra.mxu0 0.0
  %5174 = vmatprep.subr.mxu0 0.0
  %5175 = vmatpush1.msra.mxu0 0.0
  %5176 = vmatprep.subr.mxu0 0.0
  %5177 = vmatpush1.msra.mxu0 0.0
  %5178 = vmatprep.subr.mxu0 0.0
  %5179 = vmatpush1.msra.mxu0 0.0
  %5180 = vmatprep.subr.mxu0 0.0
  %5181 = vmatpush1.msra.mxu0 0.0
  %5182 = vmatprep.subr.mxu0 0.0
  %5183 = vmatpush1.msra.mxu0 0.0
  %5184 = vmatprep.subr.mxu0 0.0
  %5185 = vmatpush1.msra.mxu0 0.0
  %5186 = vmatprep.subr.mxu0 0.0
  %5187 = vmatpush1.msra.mxu0 0.0
  %5188 = vmatprep.subr.mxu0 0.0
  %5189 = vmatpush1.msra.mxu0 0.0
  %5190 = vmatprep.mubr.f32.mxu0 0.0
  %5191 = vmatmul.mubr.f32.gmra.mrb[0].mxu0 %v5124
  %v5192 = vpop.f32.mrb[0].mxu0
  %v5193 = vadd.f32 %v5120, %v5192
  %v5194 = vpop.f32.mrb[0].mxu0
  %5195 = vdwg.mxu0
  %v5196 = vlaneseq
  %v5197 = vshrl.u32 %v5196, 7
  %v5198 = vsub.s32 0, %v5197
  %v5199 = vrot.slane %v5052, %v5198
  %v5200 = vadd.f32 %v5193, %v5199
  %v5201 = vsel %vm4877, %v5200, 0.0
  %v5202 = vrot.slane %v5201, 4
  %v5203 = vadd.f32 %v5201, %v5202
  %v5204 = vrot.slane %v5203, 2
  %v5205 = vadd.f32 %v5203, %v5204
  %v5206 = vrot.slane %v5205, 1
  %v5207 = vadd.f32 %v5205, %v5206
  %v5208 = vmul.f32 %v5207, %v66
  %v5209 = vsub.f32 %v5200, %v5208
  %v5210 = vmul.f32 %v5209, %v5209
  %v5211 = vsel %vm4877, %v5210, 0.0
  %v5212 = vrot.slane %v5211, 4
  %v5213 = vadd.f32 %v5211, %v5212
  %v5214 = vrot.slane %v5213, 2
  %v5215 = vadd.f32 %v5213, %v5214
  %v5216 = vrot.slane %v5215, 1
  %v5217 = vadd.f32 %v5215, %v5216
  %v5218 = vmul.f32 %v5217, %v66
  %v5219 = vadd.f32 %v5218, 1e-05
  %v5220 = vrsqrt.pop %v5219
  %v5221 = vmul.f32 %v5209, %v5220
  %v5222 = vlaneseq
  %v5223 = vshrl.u32 %v5222, 7
  %v5224 = vsub.s32 1, %v5223
  %v5225 = vrot.slane %v5052, %v5224
  %v5226 = vmul.f32 %v5221, %v5225
  %v5227 = vlaneseq
  %v5228 = vshrl.u32 %v5227, 7
  %v5229 = vsub.s32 2, %v5228
  %v5230 = vrot.slane %v5052, %v5229
  %v5231 = vadd.f32 %v5226, %v5230
  %v5232 = vmax.f32 %v5231, 0.0
  %v5233 = vlaneseq
  %v5234 = vshrl.u32 %v5233, 7
  %v5235 = vsub.s32 3, %v5234
  %v5236 = vrot.slane %v5052, %v5235
  %v5238 = vsel %vm468, %v5232, 0
  %5240 = vmatprep.subr.mxu0 0.0
  %5241 = vmatpush1.msra.mxu0 %v5044
  %5242 = vmatprep.subr.mxu0 0.0
  %5243 = vmatpush1.msra.mxu0 %v5045
  %5244 = vmatprep.subr.mxu0 0.0
  %5245 = vmatpush1.msra.mxu0 %v5046
  %5246 = vmatprep.subr.mxu0 0.0
  %5247 = vmatpush1.msra.mxu0 %v5047
  %5248 = vmatprep.subr.mxu0 0.0
  %5249 = vmatpush1.msra.mxu0 %v5048
  %5250 = vmatprep.subr.mxu0 0.0
  %5251 = vmatpush1.msra.mxu0 %v5049
  %5252 = vmatprep.subr.mxu0 0.0
  %5253 = vmatpush1.msra.mxu0 %v5050
  %5254 = vmatprep.subr.mxu0 0.0
  %5255 = vmatpush1.msra.mxu0 %v5051
  %5256 = vmatprep.subr.mxu0 0.0
  %5257 = vmatpush1.msra.mxu0 0.0
  %5258 = vmatprep.subr.mxu0 0.0
  %5259 = vmatpush1.msra.mxu0 0.0
  %5260 = vmatprep.subr.mxu0 0.0
  %5261 = vmatpush1.msra.mxu0 0.0
  %5262 = vmatprep.subr.mxu0 0.0
  %5263 = vmatpush1.msra.mxu0 0.0
  %5264 = vmatprep.subr.mxu0 0.0
  %5265 = vmatpush1.msra.mxu0 0.0
  %5266 = vmatprep.subr.mxu0 0.0
  %5267 = vmatpush1.msra.mxu0 0.0
  %5268 = vmatprep.subr.mxu0 0.0
  %5269 = vmatpush1.msra.mxu0 0.0
  %5270 = vmatprep.subr.mxu0 0.0
  %5271 = vmatpush1.msra.mxu0 0.0
  %5272 = vmatprep.subr.mxu0 0.0
  %5273 = vmatpush1.msra.mxu0 0.0
  %5274 = vmatprep.subr.mxu0 0.0
  %5275 = vmatpush1.msra.mxu0 0.0
  %5276 = vmatprep.subr.mxu0 0.0
  %5277 = vmatpush1.msra.mxu0 0.0
  %5278 = vmatprep.subr.mxu0 0.0
  %5279 = vmatpush1.msra.mxu0 0.0
  %5280 = vmatprep.subr.mxu0 0.0
  %5281 = vmatpush1.msra.mxu0 0.0
  %5282 = vmatprep.subr.mxu0 0.0
  %5283 = vmatpush1.msra.mxu0 0.0
  %5284 = vmatprep.subr.mxu0 0.0
  %5285 = vmatpush1.msra.mxu0 0.0
  %5286 = vmatprep.subr.mxu0 0.0
  %5287 = vmatpush1.msra.mxu0 0.0
  %5288 = vmatprep.subr.mxu0 0.0
  %5289 = vmatpush1.msra.mxu0 0.0
  %5290 = vmatprep.subr.mxu0 0.0
  %5291 = vmatpush1.msra.mxu0 0.0
  %5292 = vmatprep.subr.mxu0 0.0
  %5293 = vmatpush1.msra.mxu0 0.0
  %5294 = vmatprep.subr.mxu0 0.0
  %5295 = vmatpush1.msra.mxu0 0.0
  %5296 = vmatprep.subr.mxu0 0.0
  %5297 = vmatpush1.msra.mxu0 0.0
  %5298 = vmatprep.subr.mxu0 0.0
  %5299 = vmatpush1.msra.mxu0 0.0
  %5300 = vmatprep.subr.mxu0 0.0
  %5301 = vmatpush1.msra.mxu0 0.0
  %5302 = vmatprep.subr.mxu0 0.0
  %5303 = vmatpush1.msra.mxu0 0.0
  %5304 = vmatprep.mubr.f32.mxu0 0.0
  %5305 = vmatmul.mubr.f32.gmra.mrb[0].mxu0 %v5238
  %v5306 = vpop.f32.mrb[0].mxu0
  %v5307 = vadd.f32 %v5236, %v5306
  %v5308 = vpop.f32.mrb[0].mxu0
  %5309 = vdwg.mxu0
  %v5310 = vsel %vm58, %v5307, 0.0
  %v5311 = vrot.slane %v5310, 4
  %v5312 = vadd.f32 %v5310, %v5311
  %v5313 = vrot.slane %v5312, 2
  %v5314 = vadd.f32 %v5312, %v5313
  %v5315 = vrot.slane %v5314, 1
  %v5316 = vadd.f32 %v5314, %v5315
  %v5317 = vmul.f32 %v5316, %v66
  %v5318 = vsub.f32 %v5307, %v5317
  %v5319 = vmul.f32 %v5318, %v5318
  %v5320 = vsel %vm58, %v5319, 0.0
  %v5321 = vrot.slane %v5320, 4
  %v5322 = vadd.f32 %v5320, %v5321
  %v5323 = vrot.slane %v5322, 2
  %v5324 = vadd.f32 %v5322, %v5323
  %v5325 = vrot.slane %v5324, 1
  %v5326 = vadd.f32 %v5324, %v5325
  %v5327 = vmul.f32 %v5326, %v66
  %v5328 = vadd.f32 %v5327, 1e-05
  %v5329 = vrsqrt.pop %v5328
  %v5330 = vmul.f32 %v5318, %v5329
  %v5331 = vlaneseq
  %v5332 = vshrl.u32 %v5331, 7
  %v5333 = vsub.s32 4, %v5332
  %v5334 = vrot.slane %v5052, %v5333
  %v5335 = vmul.f32 %v5330, %v5334
  %v5336 = vlaneseq
  %v5337 = vshrl.u32 %v5336, 7
  %v5338 = vsub.s32 5, %v5337
  %v5339 = vrot.slane %v5052, %v5338
  %v5340 = vadd.f32 %v5335, %v5339
  %v5341 = vmax.f32 %v5340, 0.0
  %v5342 = vlaneseq
  %v5343 = vshrl.u32 %v5342, 7
  %v5344 = vsub.s32 6, %v5343
  %v5345 = vrot.slane %v5052, %v5344
  %v5346 = vmul.f32 %v5341, %v5345
  %v5347 = vsel %vm58, %v5346, 0.0
  %5348 = vadd.xlane.f32.xlu0 %v5347
  %v5349 = vpop.xlane.xlu0 %5348
  %v5350 = vlaneseq
  %v5351 = vshrl.u32 %v5350, 7
  %v5352 = vsub.s32 7, %v5351
  %v5353 = vrot.slane %v5052, %v5352
  %v5354 = vadd.f32 %v5349, %v5353
  %v5355 = vld [vmem:[%s9 + $0x190] sm:$0xff]
  %v5356 = vld [vmem:[%s9 + $0x198] sm:$0xff]
  %v5357 = vld [vmem:[%s9 + $0x1a0] sm:$0xff]
  %v5358 = vld [vmem:[%s9 + $0x1a8] sm:$0xff]
  %v5359 = vld [vmem:[%s9 + $0x1b0] sm:$0xff]
  %v5360 = vld [vmem:[%s9 + $0x1b8] sm:$0xff]
  %v5361 = vld [vmem:[%s9 + $0x1c0] sm:$0xff]
  %v5362 = vld [vmem:[%s9 + $0x1c8] sm:$0xff]
  %v5363 = vld [vmem:[%s9 + $0x1d0] sm:$0xff]
  %v5364 = vld [vmem:[%s9 + $0x1d8] sm:$0xff]
  %v5365 = vld [vmem:[%s9 + $0x1e0] sm:$0xff]
  %v5366 = vld [vmem:[%s9 + $0x1e8] sm:$0xff]
  %v5367 = vld [vmem:[%s9 + $0x1f0] sm:$0xff]
  %v5368 = vld [vmem:[%s9 + $0x1f8] sm:$0xff]
  %v5369 = vld [vmem:[%s9 + $0x200] sm:$0xff]
  %v5370 = vld [vmem:[%s9 + $0x208] sm:$0xff]
  %v5371 = vld [vmem:[%s9 + $0x210] sm:$0xff]
  %v5372 = vld [vmem:[%s9 + $0x218] sm:$0xff]
  %v5373 = vld [vmem:[%s9 + $0x220] sm:$0xff]
  %v5374 = vld [vmem:[%s9 + $0x228] sm:$0xff]
  %v5375 = vld [vmem:[%s9 + $0x230] sm:$0xff]
  %v5376 = vld [vmem:[%s9 + $0x238] sm:$0xff]
  %v5377 = vld [vmem:[%s9 + $0x240] sm:$0xff]
  %v5378 = vld [vmem:[%s9 + $0x248] sm:$0xff]
  %v5379 = vld [vmem:[%s9 + $0x250] sm:$0xff]
  %v5380 = vld [vmem:[%s9 + $0x258] sm:$0xff]
  %v5381 = vld [vmem:[%s9 + $0x260] sm:$0xff]
  %v5382 = vld [vmem:[%s9 + $0x268] sm:$0xff]
  %v5383 = vld [vmem:[%s9 + $0x270] sm:$0xff]
  %5384 = vmatprep.subr.mxu0 0.0
  %5385 = vmatpush1.msra.mxu0 %v5371
  %5386 = vmatprep.subr.mxu0 0.0
  %5387 = vmatpush1.msra.mxu0 %v5372
  %5388 = vmatprep.subr.mxu0 0.0
  %5389 = vmatpush1.msra.mxu0 %v5373
  %5390 = vmatprep.subr.mxu0 0.0
  %5391 = vmatpush1.msra.mxu0 %v5374
  %5392 = vmatprep.subr.mxu0 0.0
  %5393 = vmatpush1.msra.mxu0 0.0
  %5394 = vmatprep.subr.mxu0 0.0
  %5395 = vmatpush1.msra.mxu0 0.0
  %5396 = vmatprep.subr.mxu0 0.0
  %5397 = vmatpush1.msra.mxu0 0.0
  %5398 = vmatprep.subr.mxu0 0.0
  %5399 = vmatpush1.msra.mxu0 0.0
  %5400 = vmatprep.subr.mxu0 0.0
  %5401 = vmatpush1.msra.mxu0 0.0
  %5402 = vmatprep.subr.mxu0 0.0
  %5403 = vmatpush1.msra.mxu0 0.0
  %5404 = vmatprep.subr.mxu0 0.0
  %5405 = vmatpush1.msra.mxu0 0.0
  %5406 = vmatprep.subr.mxu0 0.0
  %5407 = vmatpush1.msra.mxu0 0.0
  %5408 = vmatprep.subr.mxu0 0.0
  %5409 = vmatpush1.msra.mxu0 0.0
  %5410 = vmatprep.subr.mxu0 0.0
  %5411 = vmatpush1.msra.mxu0 0.0
  %5412 = vmatprep.subr.mxu0 0.0
  %5413 = vmatpush1.msra.mxu0 0.0
  %5414 = vmatprep.subr.mxu0 0.0
  %5415 = vmatpush1.msra.mxu0 0.0
  %5416 = vmatprep.subr.mxu0 0.0
  %5417 = vmatpush1.msra.mxu0 0.0
  %5418 = vmatprep.subr.mxu0 0.0
  %5419 = vmatpush1.msra.mxu0 0.0
  %5420 = vmatprep.subr.mxu0 0.0
  %5421 = vmatpush1.msra.mxu0 0.0
  %5422 = vmatprep.subr.mxu0 0.0
  %5423 = vmatpush1.msra.mxu0 0.0
  %5424 = vmatprep.subr.mxu0 0.0
  %5425 = vmatpush1.msra.mxu0 0.0
  %5426 = vmatprep.subr.mxu0 0.0
  %5427 = vmatpush1.msra.mxu0 0.0
  %5428 = vmatprep.subr.mxu0 0.0
  %5429 = vmatpush1.msra.mxu0 0.0
  %5430 = vmatprep.subr.mxu0 0.0
  %5431 = vmatpush1.msra.mxu0 0.0
  %5432 = vmatprep.subr.mxu0 0.0
  %5433 = vmatpush1.msra.mxu0 0.0
  %5434 = vmatprep.subr.mxu0 0.0
  %5435 = vmatpush1.msra.mxu0 0.0
  %5436 = vmatprep.subr.mxu0 0.0
  %5437 = vmatpush1.msra.mxu0 0.0
  %5438 = vmatprep.subr.mxu0 0.0
  %5439 = vmatpush1.msra.mxu0 0.0
  %5440 = vmatprep.subr.mxu0 0.0
  %5441 = vmatpush1.msra.mxu0 0.0
  %5442 = vmatprep.subr.mxu0 0.0
  %5443 = vmatpush1.msra.mxu0 0.0
  %5444 = vmatprep.subr.mxu0 0.0
  %5445 = vmatpush1.msra.mxu0 0.0
  %5446 = vmatprep.subr.mxu0 0.0
  %5447 = vmatpush1.msra.mxu0 0.0
  %5448 = vmatprep.mubr.f32.mxu0 0.0
  %5449 = vmatmul.mubr.f32.gmra.mrb[0].mxu0 %v4730
  %v5450 = vpop.f32.mrb[0].mxu0
  %v5451 = vadd.f32 0.0, %v5450
  %v5452 = vpop.f32.mrb[0].mxu0
  %5453 = vdwg.mxu0
  %5454 = vmatprep.subr.mxu0 0.0
  %5455 = vmatpush1.msra.mxu0 %v5355
  %5456 = vmatprep.subr.mxu0 0.0
  %5457 = vmatpush1.msra.mxu0 %v5356
  %5458 = vmatprep.subr.mxu0 0.0
  %5459 = vmatpush1.msra.mxu0 %v5357
  %5460 = vmatprep.subr.mxu0 0.0
  %5461 = vmatpush1.msra.mxu0 %v5358
  %5462 = vmatprep.subr.mxu0 0.0
  %5463 = vmatpush1.msra.mxu0 %v5359
  %5464 = vmatprep.subr.mxu0 0.0
  %5465 = vmatpush1.msra.mxu0 %v5360
  %5466 = vmatprep.subr.mxu0 0.0
  %5467 = vmatpush1.msra.mxu0 %v5361
  %5468 = vmatprep.subr.mxu0 0.0
  %5469 = vmatpush1.msra.mxu0 %v5362
  %5470 = vmatprep.subr.mxu0 0.0
  %5471 = vmatpush1.msra.mxu0 %v5363
  %5472 = vmatprep.subr.mxu0 0.0
  %5473 = vmatpush1.msra.mxu0 %v5364
  %5474 = vmatprep.subr.mxu0 0.0
  %5475 = vmatpush1.msra.mxu0 %v5365
  %5476 = vmatprep.subr.mxu0 0.0
  %5477 = vmatpush1.msra.mxu0 %v5366
  %5478 = vmatprep.subr.mxu0 0.0
  %5479 = vmatpush1.msra.mxu0 %v5367
  %5480 = vmatprep.subr.mxu0 0.0
  %5481 = vmatpush1.msra.mxu0 %v5368
  %5482 = vmatprep.subr.mxu0 0.0
  %5483 = vmatpush1.msra.mxu0 %v5369
  %5484 = vmatprep.subr.mxu0 0.0
  %5485 = vmatpush1.msra.mxu0 %v5370
  %5486 = vmatprep.subr.mxu0 0.0
  %5487 = vmatpush1.msra.mxu0 0.0
  %5488 = vmatprep.subr.mxu0 0.0
  %5489 = vmatpush1.msra.mxu0 0.0
  %5490 = vmatprep.subr.mxu0 0.0
  %5491 = vmatpush1.msra.mxu0 0.0
  %5492 = vmatprep.subr.mxu0 0.0
  %5493 = vmatpush1.msra.mxu0 0.0
  %5494 = vmatprep.subr.mxu0 0.0
  %5495 = vmatpush1.msra.mxu0 0.0
  %5496 = vmatprep.subr.mxu0 0.0
  %5497 = vmatpush1.msra.mxu0 0.0
  %5498 = vmatprep.subr.mxu0 0.0
  %5499 = vmatpush1.msra.mxu0 0.0
  %5500 = vmatprep.subr.mxu0 0.0
  %5501 = vmatpush1.msra.mxu0 0.0
  %5502 = vmatprep.subr.mxu0 0.0
  %5503 = vmatpush1.msra.mxu0 0.0
  %5504 = vmatprep.subr.mxu0 0.0
  %5505 = vmatpush1.msra.mxu0 0.0
  %5506 = vmatprep.subr.mxu0 0.0
  %5507 = vmatpush1.msra.mxu0 0.0
  %5508 = vmatprep.subr.mxu0 0.0
  %5509 = vmatpush1.msra.mxu0 0.0
  %5510 = vmatprep.subr.mxu0 0.0
  %5511 = vmatpush1.msra.mxu0 0.0
  %5512 = vmatprep.subr.mxu0 0.0
  %5513 = vmatpush1.msra.mxu0 0.0
  %5514 = vmatprep.subr.mxu0 0.0
  %5515 = vmatpush1.msra.mxu0 0.0
  %5516 = vmatprep.subr.mxu0 0.0
  %5517 = vmatpush1.msra.mxu0 0.0
  %5518 = vmatprep.mubr.f32.mxu0 0.0
  %5519 = vmatmul.mubr.f32.gmra.mrb[0].mxu0 %v4579
  %v5520 = vpop.f32.mrb[0].mxu0
  %v5521 = vadd.f32 %v5451, %v5520
  %v5522 = vpop.f32.mrb[0].mxu0
  %5523 = vdwg.mxu0
  %v5524 = vlaneseq
  %v5525 = vshrl.u32 %v5524, 7
  %v5526 = vsub.s32 0, %v5525
  %v5527 = vrot.slane %v5383, %v5526
  %v5528 = vadd.f32 %v5521, %v5527
  %v5529 = vsel %vm4877, %v5528, 0.0
  %v5530 = vrot.slane %v5529, 4
  %v5531 = vadd.f32 %v5529, %v5530
  %v5532 = vrot.slane %v5531, 2
  %v5533 = vadd.f32 %v5531, %v5532
  %v5534 = vrot.slane %v5533, 1
  %v5535 = vadd.f32 %v5533, %v5534
  %v5536 = vmul.f32 %v5535, %v66
  %v5537 = vsub.f32 %v5528, %v5536
  %v5538 = vmul.f32 %v5537, %v5537
  %v5539 = vsel %vm4877, %v5538, 0.0
  %v5540 = vrot.slane %v5539, 4
  %v5541 = vadd.f32 %v5539, %v5540
  %v5542 = vrot.slane %v5541, 2
  %v5543 = vadd.f32 %v5541, %v5542
  %v5544 = vrot.slane %v5543, 1
  %v5545 = vadd.f32 %v5543, %v5544
  %v5546 = vmul.f32 %v5545, %v66
  %v5547 = vadd.f32 %v5546, 1e-05
  %v5548 = vrsqrt.pop %v5547
  %v5549 = vmul.f32 %v5537, %v5548
  %v5550 = vlaneseq
  %v5551 = vshrl.u32 %v5550, 7
  %v5552 = vsub.s32 1, %v5551
  %v5553 = vrot.slane %v5383, %v5552
  %v5554 = vmul.f32 %v5549, %v5553
  %v5555 = vlaneseq
  %v5556 = vshrl.u32 %v5555, 7
  %v5557 = vsub.s32 2, %v5556
  %v5558 = vrot.slane %v5383, %v5557
  %v5559 = vadd.f32 %v5554, %v5558
  %v5560 = vmax.f32 %v5559, 0.0
  %v5561 = vlaneseq
  %v5562 = vshrl.u32 %v5561, 7
  %v5563 = vsub.s32 3, %v5562
  %v5564 = vrot.slane %v5383, %v5563
  %v5566 = vsel %vm468, %v5560, 0
  %5568 = vmatprep.subr.mxu0 0.0
  %5569 = vmatpush1.msra.mxu0 %v5375
  %5570 = vmatprep.subr.mxu0 0.0
  %5571 = vmatpush1.msra.mxu0 %v5376
  %5572 = vmatprep.subr.mxu0 0.0
  %5573 = vmatpush1.msra.mxu0 %v5377
  %5574 = vmatprep.subr.mxu0 0.0
  %5575 = vmatpush1.msra.mxu0 %v5378
  %5576 = vmatprep.subr.mxu0 0.0
  %5577 = vmatpush1.msra.mxu0 %v5379
  %5578 = vmatprep.subr.mxu0 0.0
  %5579 = vmatpush1.msra.mxu0 %v5380
  %5580 = vmatprep.subr.mxu0 0.0
  %5581 = vmatpush1.msra.mxu0 %v5381
  %5582 = vmatprep.subr.mxu0 0.0
  %5583 = vmatpush1.msra.mxu0 %v5382
  %5584 = vmatprep.subr.mxu0 0.0
  %5585 = vmatpush1.msra.mxu0 0.0
  %5586 = vmatprep.subr.mxu0 0.0
  %5587 = vmatpush1.msra.mxu0 0.0
  %5588 = vmatprep.subr.mxu0 0.0
  %5589 = vmatpush1.msra.mxu0 0.0
  %5590 = vmatprep.subr.mxu0 0.0
  %5591 = vmatpush1.msra.mxu0 0.0
  %5592 = vmatprep.subr.mxu0 0.0
  %5593 = vmatpush1.msra.mxu0 0.0
  %5594 = vmatprep.subr.mxu0 0.0
  %5595 = vmatpush1.msra.mxu0 0.0
  %5596 = vmatprep.subr.mxu0 0.0
  %5597 = vmatpush1.msra.mxu0 0.0
  %5598 = vmatprep.subr.mxu0 0.0
  %5599 = vmatpush1.msra.mxu0 0.0
  %5600 = vmatprep.subr.mxu0 0.0
  %5601 = vmatpush1.msra.mxu0 0.0
  %5602 = vmatprep.subr.mxu0 0.0
  %5603 = vmatpush1.msra.mxu0 0.0
  %5604 = vmatprep.subr.mxu0 0.0
  %5605 = vmatpush1.msra.mxu0 0.0
  %5606 = vmatprep.subr.mxu0 0.0
  %5607 = vmatpush1.msra.mxu0 0.0
  %5608 = vmatprep.subr.mxu0 0.0
  %5609 = vmatpush1.msra.mxu0 0.0
  %5610 = vmatprep.subr.mxu0 0.0
  %5611 = vmatpush1.msra.mxu0 0.0
  %5612 = vmatprep.subr.mxu0 0.0
  %5613 = vmatpush1.msra.mxu0 0.0
  %5614 = vmatprep.subr.mxu0 0.0
  %5615 = vmatpush1.msra.mxu0 0.0
  %5616 = vmatprep.subr.mxu0 0.0
  %5617 = vmatpush1.msra.mxu0 0.0
  %5618 = vmatprep.subr.mxu0 0.0
  %5619 = vmatpush1.msra.mxu0 0.0
  %5620 = vmatprep.subr.mxu0 0.0
  %5621 = vmatpush1.msra.mxu0 0.0
  %5622 = vmatprep.subr.mxu0 0.0
  %5623 = vmatpush1.msra.mxu0 0.0
  %5624 = vmatprep.subr.mxu0 0.0
  %5625 = vmatpush1.msra.mxu0 0.0
  %5626 = vmatprep.subr.mxu0 0.0
  %5627 = vmatpush1.msra.mxu0 0.0
  %5628 = vmatprep.subr.mxu0 0.0
  %5629 = vmatpush1.msra.mxu0 0.0
  %5630 = vmatprep.subr.mxu0 0.0
  %5631 = vmatpush1.msra.mxu0 0.0
  %5632 = vmatprep.mubr.f32.mxu0 0.0
  %5633 = vmatmul.mubr.f32.gmra.mrb[0].mxu0 %v5566
  %v5634 = vpop.f32.mrb[0].mxu0
  %v5635 = vadd.f32 %v5564, %v5634
  %v5636 = vpop.f32.mrb[0].mxu0
  %5637 = vdwg.mxu0
  %v5638 = vsel %vm58, %v5635, 0.0
  %v5639 = vrot.slane %v5638, 4
  %v5640 = vadd.f32 %v5638, %v5639
  %v5641 = vrot.slane %v5640, 2
  %v5642 = vadd.f32 %v5640, %v5641
  %v5643 = vrot.slane %v5642, 1
  %v5644 = vadd.f32 %v5642, %v5643
  %v5645 = vmul.f32 %v5644, %v66
  %v5646 = vsub.f32 %v5635, %v5645
  %v5647 = vmul.f32 %v5646, %v5646
  %v5648 = vsel %vm58, %v5647, 0.0
  %v5649 = vrot.slane %v5648, 4
  %v5650 = vadd.f32 %v5648, %v5649
  %v5651 = vrot.slane %v5650, 2
  %v5652 = vadd.f32 %v5650, %v5651
  %v5653 = vrot.slane %v5652, 1
  %v5654 = vadd.f32 %v5652, %v5653
  %v5655 = vmul.f32 %v5654, %v66
  %v5656 = vadd.f32 %v5655, 1e-05
  %v5657 = vrsqrt.pop %v5656
  %v5658 = vmul.f32 %v5646, %v5657
  %v5659 = vlaneseq
  %v5660 = vshrl.u32 %v5659, 7
  %v5661 = vsub.s32 4, %v5660
  %v5662 = vrot.slane %v5383, %v5661
  %v5663 = vmul.f32 %v5658, %v5662
  %v5664 = vlaneseq
  %v5665 = vshrl.u32 %v5664, 7
  %v5666 = vsub.s32 5, %v5665
  %v5667 = vrot.slane %v5383, %v5666
  %v5668 = vadd.f32 %v5663, %v5667
  %v5669 = vmax.f32 %v5668, 0.0
  %v5670 = vlaneseq
  %v5671 = vshrl.u32 %v5670, 7
  %v5672 = vsub.s32 6, %v5671
  %v5673 = vrot.slane %v5383, %v5672
  %v5674 = vmul.f32 %v5669, %v5673
  %v5675 = vsel %vm58, %v5674, 0.0
  %5676 = vadd.xlane.f32.xlu0 %v5675
  %v5677 = vpop.xlane.xlu0 %5676
  %v5678 = vlaneseq
  %v5679 = vshrl.u32 %v5678, 7
  %v5680 = vsub.s32 7, %v5679
  %v5681 = vrot.slane %v5383, %v5680
  %v5682 = vadd.f32 %v5677, %v5681
  %v5683 = vsel %vm742, %v4460, 0.0
  %5685 = vrot.lane.b32.xlu0 %v5354, 1
  %v5686 = vpop.permute.xlu0 %5685
  %5689 = vrot.lane.b32.xlu0 %v5682, 2
  %v5690 = vpop.permute.xlu0 %5689
  %vm5692 = vcmask 7168
  %v5693 = vsel %vm5692, %v5031, %v5686
  %vm5694 = vcmask 15360
  %v5695 = vsel %vm5694, %v5693, %v5690
  %vm5696 = vcmask 23552
  %v5697 = vsel %vm5696, %v5695, 0.0
  %v5699 = vrot.slane %v5683, 5
  %v5702 = vrot.slane %v5697, 4
  %vm5704 = vcmask 1040384
  %v5705 = vsel %vm5704, %v1248, %v2131
  %v5706 = vsel %vm1228, %v5705, %v3080
  %vm5707 = vcmask 1042432
  %v5708 = vsel %vm5707, %v5706, %v5699
  %v5709 = vsel %vm107, %v5708, %v5702
  %vm5710 = vcmask 1045504
  %v5711 = vsel %vm5710, %v5709, 0.0
  %5712 = vst [vmem:[%s10] sm:$0xff] %v5711
  // Predicated region
  $region42: #{student_gcn_forward.1} parent=0 // pred_check
    _
  $region43: #{student_gcn_forward.1} parent=0 // pred_check_branch
    %5714 = sbr.rel (0) target = $region45
  $region44: #{student_gcn_forward.1} parent=0 // pred_region
    _
  $region45: #{student_gcn_forward.1} parent=0 // pred_fallthru
    _
  // Predicated region
  $region46: #{student_gcn_forward.1} parent=0 // pred_check
    _
  $region47: #{student_gcn_forward.1} parent=0 // pred_check_branch
    %5716 = sbr.rel (0) target = $region49
  $region48: #{student_gcn_forward.1} parent=0 // pred_region
    _
  $region49: #{student_gcn_forward.1} parent=0 // pred_fallthru
    _

</llo_original>
